<compile_context>
chip_gen: v5e
topology: v5e:2x2
jax: 0.10.0
libtpu: 0.0.40
codegen_flags: <defaults>
</compile_context>

<pallas_src>
import functools

import jax
import jax.numpy as jnp
from jax.experimental import pallas as pl
from jax.experimental.pallas import tpu as pltpu


def _deconv_in_act_kernel(w_ref, x_ref, o_ref, *, c_in, c_out, hq, wq,
                          pad_top, pad_left, tap_info, eps, use_relu):
    """Fused polyphase ConvTranspose2d + InstanceNorm2d + optional ReLU.

    w_ref : SMEM (n_taps_total * c_in * c_out,) f32 -- scalar-prefetched weights,
            laid out [(phase, tap), ci, co].
    x_ref : VMEM (1, c_in, Hp, Wp) f32 -- one halo-padded input sample.
    o_ref : VMEM (1, c_out, hq, s*s*wq) f32 -- phase-major staging/output:
            o[0, co, qy, phase*wq + qx] == y[co, s*qy+ry, s*qx+rx], phase = ry*s+rx.
    """
    n_phase = len(tap_info)

    # ---- polyphase transposed convolution (VPU broadcast-FMAs) -------------------
    for ph, taps in enumerate(tap_info):
        accs = [jnp.zeros((hq, wq), jnp.float32) for _ in range(c_out)]
        for ci in range(c_in):
            for (offy, offx, base) in taps:
                r0 = pad_top + offy
                c0 = pad_left + offx
                # window loaded ONCE, reused for all c_out accumulators
                win = x_ref[0, ci, r0:r0 + hq, c0:c0 + wq]
                for co in range(c_out):
                    w = w_ref[base + ci * c_out + co]
                    accs[co] = accs[co] + w * win
        for co in range(c_out):
            o_ref[0, co, :, ph * wq:(ph + 1) * wq] = accs[co]

    # ---- InstanceNorm2d (per sample, per channel, biased var, affine=False) + ReLU
    inv_hw = 1.0 / float(n_phase * hq * wq)          # == 1 / (Ho * Wo)
    for co in range(c_out):
        t = o_ref[0, co]                              # (hq, s*s*wq): all Ho*Wo elems
        mean = jnp.sum(t, axis=1, keepdims=True)      # lane reduce
        mean = jnp.sum(mean, axis=0, keepdims=True) * inv_hw
        cen = t - mean
        var = jnp.sum(cen * cen, axis=1, keepdims=True)
        var = jnp.sum(var, axis=0, keepdims=True) * inv_hw
        y = cen * jax.lax.rsqrt(var + eps)
        if use_relu:
            y = jnp.maximum(y, 0.0)
        o_ref[0, co] = y.astype(o_ref.dtype)


def basic_deconv2d(x, weight, *, stride, padding=0, activation=None, eps=1e-5):
    """Forward of BasicDeConv2d.

    x      : (N, C_in, H, W)   NCHW (PyTorch layout).
    weight : (C_in, C_out, kH, kW)  -- nn.ConvTranspose2d weight layout (bias=False).
    Returns (N, C_out, Ho, Wo), Ho = (H-1)*stride - 2*padding + kH.
    """
    n, c_in, h, w = x.shape
    c_in_w, c_out, kh, kw = weight.shape
    assert c_in == c_in_w
    s = int(stride)
    ho = (h - 1) * s - 2 * padding + kh
    wo = (w - 1) * s - 2 * padding + kw
    assert ho > 0 and wo > 0
    assert ho % s == 0 and wo % s == 0, \
        "TODO(synk): ragged polyphase (Ho/Wo not divisible by stride) unsupported"
    hq, wq = ho // s, wo // s

    # ---- static polyphase tap tables (pure Python, trace-time only) --------------
    # ConvTranspose: y[co, s*q + r] += w[ci,co,k] * x[ci, q + (r + p - k)/s]
    # for the k with (r + p - k) % s == 0.
    def taps_1d(k_size, r):
        out = []
        for kk in range(k_size):
            d = r + padding - kk
            if d % s == 0:
                out.append((kk, d // s))              # (kernel index, input offset)
        return out

    row_taps = [taps_1d(kh, ry) for ry in range(s)]
    col_taps = [taps_1d(kw, rx) for rx in range(s)]

    all_offy = [o for lst in row_taps for (_, o) in lst] or [0]
    all_offx = [o for lst in col_taps for (_, o) in lst] or [0]
    pad_t = max(0, -min(all_offy))
    pad_b = max(0, (hq - 1) + max(all_offy) - (h - 1))
    pad_l = max(0, -min(all_offx))
    pad_r = max(0, (wq - 1) + max(all_offx) - (w - 1))

    # single small halo pad (no dilated intermediate, no scatter)
    xp = jnp.pad(x.astype(jnp.float32),
                 ((0, 0), (0, 0), (pad_t, pad_b), (pad_l, pad_r)))
    hp, wp = h + pad_t + pad_b, w + pad_l + pad_r

    # ---- weight table in [(phase, tap), ci, co] order for SMEM scalar prefetch ---
    w_parts, tap_info, base = [], [], 0
    for ry in range(s):
        for rx in range(s):
            taps = []
            for (ky, offy) in row_taps[ry]:
                for (kx, offx) in col_taps[rx]:
                    w_parts.append(
                        weight[:, :, ky, kx].astype(jnp.float32).reshape(-1))
                    taps.append((offy, offx, base))
                    base += c_in * c_out
            tap_info.append(tuple(taps))
    w_flat = (jnp.concatenate(w_parts) if w_parts
              else jnp.zeros((1,), jnp.float32))

    n_phase = s * s
    kernel = functools.partial(
        _deconv_in_act_kernel, c_in=c_in, c_out=c_out, hq=hq, wq=wq,
        pad_top=pad_t, pad_left=pad_l, tap_info=tuple(tap_info),
        eps=eps, use_relu=(activation == "relu"))

    out = pl.pallas_call(
        kernel,
        out_shape=jax.ShapeDtypeStruct((n, c_out, hq, n_phase * wq), jnp.float32),
        grid_spec=pltpu.PrefetchScalarGridSpec(
            num_scalar_prefetch=1,                        # weights -> SMEM scalars
            grid=(n,),
            in_specs=[
                pl.BlockSpec((1, c_in, hp, wp), lambda i, w_sm: (i, 0, 0, 0)),
            ],
            out_specs=pl.BlockSpec((1, c_out, hq, n_phase * wq),
                                   lambda i, w_sm: (i, 0, 0, 0)),
        ),
        compiler_params=pltpu.CompilerParams(
            dimension_semantics=("parallel",)),
    )(w_flat, xp)

    # de-interleave phases (cheap XLA transpose over the small output):
    # out[n, co, qy, (ry*s+rx)*wq + qx]  ->  y[n, co, s*qy+ry, s*qx+rx]
    out = out.reshape(n, c_out, hq, s, s, wq)             # (n, co, qy, ry, rx, qx)
    out = out.transpose(0, 1, 2, 3, 5, 4)                 # (n, co, qy, ry, qx, rx)
    return out.reshape(n, c_out, ho, wo)


if __name__ == "__main__":
    # Module config: BasicDeConv2d(in_planes=4, out_planes=8, kernel_size=4,
    #                              stride=2, padding=1, activation=ReLU)
    in_planes, out_planes, ksize, stride, padding = 4, 8, 4, 2, 1

    key = jax.random.PRNGKey(0)
    kx, kw_ = jax.random.split(key)
    x = jax.random.normal(kx, (2, in_planes, 16, 16), dtype=jnp.float32)
    # nn.ConvTranspose2d weight layout: (in_planes, out_planes, kH, kW), bias=False
    weight = 0.1 * jax.random.normal(
        kw_, (in_planes, out_planes, ksize, ksize), dtype=jnp.float32)

    y = basic_deconv2d(x, weight, stride=stride, padding=padding, activation="relu")
    y = jax.block_until_ready(y)
    assert y.shape == (2, out_planes, 32, 32)

    # ---- pure-JAX reference (ConvTranspose2d == dilated conv w/ flipped kernel) ---
    w_oihw = jnp.transpose(weight, (1, 0, 2, 3))[:, :, ::-1, ::-1]
    ref = jax.lax.conv_general_dilated(
        x, w_oihw, window_strides=(1, 1),
        padding=((ksize - 1 - padding, ksize - 1 - padding),
                 (ksize - 1 - padding, ksize - 1 - padding)),
        lhs_dilation=(stride, stride), rhs_dilation=(1, 1),
        dimension_numbers=("NCHW", "OIHW", "NCHW"),
        precision=jax.lax.Precision.HIGHEST)
    mean = ref.mean(axis=(2, 3), keepdims=True)
    var = ((ref - mean) ** 2).mean(axis=(2, 3), keepdims=True)
    ref = jnp.maximum((ref - mean) * jax.lax.rsqrt(var + 1e-5), 0.0)
    assert jnp.allclose(y, ref, atol=1e-3, rtol=1e-3), \
        float(jnp.max(jnp.abs(y - ref)))
    print("KERNEL_OK")
</pallas_src>

<mosaic_0001>
module attributes {stable_mosaic.version = 11 : i64} {
  func.func @_deconv_in_act_kernel(%arg0: i32, %arg1: memref<512xf32, #tpu.memory_space<smem>>, %arg2: memref<1x4x18x18xf32, #tpu.memory_space<vmem>>, %arg3: memref<1x8x16x64xf32, #tpu.memory_space<vmem>>) attributes {dimension_semantics = [#tpu.dimension_semantics<parallel>], iteration_bounds = array<i64: 2>, scalar_prefetch = 1 : i64, scratch_operands = 0 : i64, tpu.core_type = #tpu.core_type<tc>, window_params = [{transform_indices = @transform_0, window_bounds = array<i64: 1, 4, 18, 18>}, {transform_indices = @transform_1, window_bounds = array<i64: 1, 8, 16, 64>}]} {
    %cst = arith.constant 0.000000e+00 : f32
    %0 = vector.broadcast %cst : f32 to vector<16x16xf32>
    %cst_0 = arith.constant 0.000000e+00 : f32
    %1 = vector.broadcast %cst_0 : f32 to vector<16x16xf32>
    %cst_1 = arith.constant 0.000000e+00 : f32
    %2 = vector.broadcast %cst_1 : f32 to vector<16x16xf32>
    %cst_2 = arith.constant 0.000000e+00 : f32
    %3 = vector.broadcast %cst_2 : f32 to vector<16x16xf32>
    %cst_3 = arith.constant 0.000000e+00 : f32
    %4 = vector.broadcast %cst_3 : f32 to vector<16x16xf32>
    %cst_4 = arith.constant 0.000000e+00 : f32
    %5 = vector.broadcast %cst_4 : f32 to vector<16x16xf32>
    %cst_5 = arith.constant 0.000000e+00 : f32
    %6 = vector.broadcast %cst_5 : f32 to vector<16x16xf32>
    %cst_6 = arith.constant 0.000000e+00 : f32
    %7 = vector.broadcast %cst_6 : f32 to vector<16x16xf32>
    %c0 = arith.constant 0 : index
    %c0_7 = arith.constant 0 : index
    %c1 = arith.constant 1 : index
    %c1_8 = arith.constant 1 : index
    %8 = vector.load %arg2[%c0, %c0_7, %c1, %c1_8] : memref<1x4x18x18xf32, #tpu.memory_space<vmem>>, vector<1x1x16x16xf32>
    %9 = vector.shape_cast %8 : vector<1x1x16x16xf32> to vector<16x16xf32>
    %c0_9 = arith.constant 0 : index
    %10 = memref.load %arg1[%c0_9] : memref<512xf32, #tpu.memory_space<smem>>
    %11 = vector.broadcast %10 : f32 to vector<16x16xf32>
    %12 = arith.mulf %11, %9 : vector<16x16xf32>
    %13 = arith.addf %0, %12 : vector<16x16xf32>
    %c1_10 = arith.constant 1 : index
    %14 = memref.load %arg1[%c1_10] : memref<512xf32, #tpu.memory_space<smem>>
    %15 = vector.broadcast %14 : f32 to vector<16x16xf32>
    %16 = arith.mulf %15, %9 : vector<16x16xf32>
    %17 = arith.addf %1, %16 : vector<16x16xf32>
    %c2 = arith.constant 2 : index
    %18 = memref.load %arg1[%c2] : memref<512xf32, #tpu.memory_space<smem>>
    %19 = vector.broadcast %18 : f32 to vector<16x16xf32>
    %20 = arith.mulf %19, %9 : vector<16x16xf32>
    %21 = arith.addf %2, %20 : vector<16x16xf32>
    %c3 = arith.constant 3 : index
    %22 = memref.load %arg1[%c3] : memref<512xf32, #tpu.memory_space<smem>>
    %23 = vector.broadcast %22 : f32 to vector<16x16xf32>
    %24 = arith.mulf %23, %9 : vector<16x16xf32>
    %25 = arith.addf %3, %24 : vector<16x16xf32>
    %c4 = arith.constant 4 : index
    %26 = memref.load %arg1[%c4] : memref<512xf32, #tpu.memory_space<smem>>
    %27 = vector.broadcast %26 : f32 to vector<16x16xf32>
    %28 = arith.mulf %27, %9 : vector<16x16xf32>
    %29 = arith.addf %4, %28 : vector<16x16xf32>
    %c5 = arith.constant 5 : index
    %30 = memref.load %arg1[%c5] : memref<512xf32, #tpu.memory_space<smem>>
    %31 = vector.broadcast %30 : f32 to vector<16x16xf32>
    %32 = arith.mulf %31, %9 : vector<16x16xf32>
    %33 = arith.addf %5, %32 : vector<16x16xf32>
    %c6 = arith.constant 6 : index
    %34 = memref.load %arg1[%c6] : memref<512xf32, #tpu.memory_space<smem>>
    %35 = vector.broadcast %34 : f32 to vector<16x16xf32>
    %36 = arith.mulf %35, %9 : vector<16x16xf32>
    %37 = arith.addf %6, %36 : vector<16x16xf32>
    %c7 = arith.constant 7 : index
    %38 = memref.load %arg1[%c7] : memref<512xf32, #tpu.memory_space<smem>>
    %39 = vector.broadcast %38 : f32 to vector<16x16xf32>
    %40 = arith.mulf %39, %9 : vector<16x16xf32>
    %41 = arith.addf %7, %40 : vector<16x16xf32>
    %c0_11 = arith.constant 0 : index
    %c0_12 = arith.constant 0 : index
    %c1_13 = arith.constant 1 : index
    %c0_14 = arith.constant 0 : index
    %42 = vector.load %arg2[%c0_11, %c0_12, %c1_13, %c0_14] : memref<1x4x18x18xf32, #tpu.memory_space<vmem>>, vector<1x1x16x16xf32>
    %43 = vector.shape_cast %42 : vector<1x1x16x16xf32> to vector<16x16xf32>
    %c32 = arith.constant 32 : index
    %44 = memref.load %arg1[%c32] : memref<512xf32, #tpu.memory_space<smem>>
    %45 = vector.broadcast %44 : f32 to vector<16x16xf32>
    %46 = arith.mulf %45, %43 : vector<16x16xf32>
    %47 = arith.addf %13, %46 : vector<16x16xf32>
    %c33 = arith.constant 33 : index
    %48 = memref.load %arg1[%c33] : memref<512xf32, #tpu.memory_space<smem>>
    %49 = vector.broadcast %48 : f32 to vector<16x16xf32>
    %50 = arith.mulf %49, %43 : vector<16x16xf32>
    %51 = arith.addf %17, %50 : vector<16x16xf32>
    %c34 = arith.constant 34 : index
    %52 = memref.load %arg1[%c34] : memref<512xf32, #tpu.memory_space<smem>>
    %53 = vector.broadcast %52 : f32 to vector<16x16xf32>
    %54 = arith.mulf %53, %43 : vector<16x16xf32>
    %55 = arith.addf %21, %54 : vector<16x16xf32>
    %c35 = arith.constant 35 : index
    %56 = memref.load %arg1[%c35] : memref<512xf32, #tpu.memory_space<smem>>
    %57 = vector.broadcast %56 : f32 to vector<16x16xf32>
    %58 = arith.mulf %57, %43 : vector<16x16xf32>
    %59 = arith.addf %25, %58 : vector<16x16xf32>
    %c36 = arith.constant 36 : index
    %60 = memref.load %arg1[%c36] : memref<512xf32, #tpu.memory_space<smem>>
    %61 = vector.broadcast %60 : f32 to vector<16x16xf32>
    %62 = arith.mulf %61, %43 : vector<16x16xf32>
    %63 = arith.addf %29, %62 : vector<16x16xf32>
    %c37 = arith.constant 37 : index
    %64 = memref.load %arg1[%c37] : memref<512xf32, #tpu.memory_space<smem>>
    %65 = vector.broadcast %64 : f32 to vector<16x16xf32>
    %66 = arith.mulf %65, %43 : vector<16x16xf32>
    %67 = arith.addf %33, %66 : vector<16x16xf32>
    %c38 = arith.constant 38 : index
    %68 = memref.load %arg1[%c38] : memref<512xf32, #tpu.memory_space<smem>>
    %69 = vector.broadcast %68 : f32 to vector<16x16xf32>
    %70 = arith.mulf %69, %43 : vector<16x16xf32>
    %71 = arith.addf %37, %70 : vector<16x16xf32>
    %c39 = arith.constant 39 : index
    %72 = memref.load %arg1[%c39] : memref<512xf32, #tpu.memory_space<smem>>
    %73 = vector.broadcast %72 : f32 to vector<16x16xf32>
    %74 = arith.mulf %73, %43 : vector<16x16xf32>
    %75 = arith.addf %41, %74 : vector<16x16xf32>
    %c0_15 = arith.constant 0 : index
    %c0_16 = arith.constant 0 : index
    %c0_17 = arith.constant 0 : index
    %c1_18 = arith.constant 1 : index
    %76 = vector.load %arg2[%c0_15, %c0_16, %c0_17, %c1_18] : memref<1x4x18x18xf32, #tpu.memory_space<vmem>>, vector<1x1x16x16xf32>
    %77 = vector.shape_cast %76 : vector<1x1x16x16xf32> to vector<16x16xf32>
    %c64 = arith.constant 64 : index
    %78 = memref.load %arg1[%c64] : memref<512xf32, #tpu.memory_space<smem>>
    %79 = vector.broadcast %78 : f32 to vector<16x16xf32>
    %80 = arith.mulf %79, %77 : vector<16x16xf32>
    %81 = arith.addf %47, %80 : vector<16x16xf32>
    %c65 = arith.constant 65 : index
    %82 = memref.load %arg1[%c65] : memref<512xf32, #tpu.memory_space<smem>>
    %83 = vector.broadcast %82 : f32 to vector<16x16xf32>
    %84 = arith.mulf %83, %77 : vector<16x16xf32>
    %85 = arith.addf %51, %84 : vector<16x16xf32>
    %c66 = arith.constant 66 : index
    %86 = memref.load %arg1[%c66] : memref<512xf32, #tpu.memory_space<smem>>
    %87 = vector.broadcast %86 : f32 to vector<16x16xf32>
    %88 = arith.mulf %87, %77 : vector<16x16xf32>
    %89 = arith.addf %55, %88 : vector<16x16xf32>
    %c67 = arith.constant 67 : index
    %90 = memref.load %arg1[%c67] : memref<512xf32, #tpu.memory_space<smem>>
    %91 = vector.broadcast %90 : f32 to vector<16x16xf32>
    %92 = arith.mulf %91, %77 : vector<16x16xf32>
    %93 = arith.addf %59, %92 : vector<16x16xf32>
    %c68 = arith.constant 68 : index
    %94 = memref.load %arg1[%c68] : memref<512xf32, #tpu.memory_space<smem>>
    %95 = vector.broadcast %94 : f32 to vector<16x16xf32>
    %96 = arith.mulf %95, %77 : vector<16x16xf32>
    %97 = arith.addf %63, %96 : vector<16x16xf32>
    %c69 = arith.constant 69 : index
    %98 = memref.load %arg1[%c69] : memref<512xf32, #tpu.memory_space<smem>>
    %99 = vector.broadcast %98 : f32 to vector<16x16xf32>
    %100 = arith.mulf %99, %77 : vector<16x16xf32>
    %101 = arith.addf %67, %100 : vector<16x16xf32>
    %c70 = arith.constant 70 : index
    %102 = memref.load %arg1[%c70] : memref<512xf32, #tpu.memory_space<smem>>
    %103 = vector.broadcast %102 : f32 to vector<16x16xf32>
    %104 = arith.mulf %103, %77 : vector<16x16xf32>
    %105 = arith.addf %71, %104 : vector<16x16xf32>
    %c71 = arith.constant 71 : index
    %106 = memref.load %arg1[%c71] : memref<512xf32, #tpu.memory_space<smem>>
    %107 = vector.broadcast %106 : f32 to vector<16x16xf32>
    %108 = arith.mulf %107, %77 : vector<16x16xf32>
    %109 = arith.addf %75, %108 : vector<16x16xf32>
    %c0_19 = arith.constant 0 : index
    %c0_20 = arith.constant 0 : index
    %c0_21 = arith.constant 0 : index
    %c0_22 = arith.constant 0 : index
    %110 = vector.load %arg2[%c0_19, %c0_20, %c0_21, %c0_22] : memref<1x4x18x18xf32, #tpu.memory_space<vmem>>, vector<1x1x16x16xf32>
    %111 = vector.shape_cast %110 : vector<1x1x16x16xf32> to vector<16x16xf32>
    %c96 = arith.constant 96 : index
    %112 = memref.load %arg1[%c96] : memref<512xf32, #tpu.memory_space<smem>>
    %113 = vector.broadcast %112 : f32 to vector<16x16xf32>
    %114 = arith.mulf %113, %111 : vector<16x16xf32>
    %115 = arith.addf %81, %114 : vector<16x16xf32>
    %c97 = arith.constant 97 : index
    %116 = memref.load %arg1[%c97] : memref<512xf32, #tpu.memory_space<smem>>
    %117 = vector.broadcast %116 : f32 to vector<16x16xf32>
    %118 = arith.mulf %117, %111 : vector<16x16xf32>
    %119 = arith.addf %85, %118 : vector<16x16xf32>
    %c98 = arith.constant 98 : index
    %120 = memref.load %arg1[%c98] : memref<512xf32, #tpu.memory_space<smem>>
    %121 = vector.broadcast %120 : f32 to vector<16x16xf32>
    %122 = arith.mulf %121, %111 : vector<16x16xf32>
    %123 = arith.addf %89, %122 : vector<16x16xf32>
    %c99 = arith.constant 99 : index
    %124 = memref.load %arg1[%c99] : memref<512xf32, #tpu.memory_space<smem>>
    %125 = vector.broadcast %124 : f32 to vector<16x16xf32>
    %126 = arith.mulf %125, %111 : vector<16x16xf32>
    %127 = arith.addf %93, %126 : vector<16x16xf32>
    %c100 = arith.constant 100 : index
    %128 = memref.load %arg1[%c100] : memref<512xf32, #tpu.memory_space<smem>>
    %129 = vector.broadcast %128 : f32 to vector<16x16xf32>
    %130 = arith.mulf %129, %111 : vector<16x16xf32>
    %131 = arith.addf %97, %130 : vector<16x16xf32>
    %c101 = arith.constant 101 : index
    %132 = memref.load %arg1[%c101] : memref<512xf32, #tpu.memory_space<smem>>
    %133 = vector.broadcast %132 : f32 to vector<16x16xf32>
    %134 = arith.mulf %133, %111 : vector<16x16xf32>
    %135 = arith.addf %101, %134 : vector<16x16xf32>
    %c102 = arith.constant 102 : index
    %136 = memref.load %arg1[%c102] : memref<512xf32, #tpu.memory_space<smem>>
    %137 = vector.broadcast %136 : f32 to vector<16x16xf32>
    %138 = arith.mulf %137, %111 : vector<16x16xf32>
    %139 = arith.addf %105, %138 : vector<16x16xf32>
    %c103 = arith.constant 103 : index
    %140 = memref.load %arg1[%c103] : memref<512xf32, #tpu.memory_space<smem>>
    %141 = vector.broadcast %140 : f32 to vector<16x16xf32>
    %142 = arith.mulf %141, %111 : vector<16x16xf32>
    %143 = arith.addf %109, %142 : vector<16x16xf32>
    %c0_23 = arith.constant 0 : index
    %c1_24 = arith.constant 1 : index
    %c1_25 = arith.constant 1 : index
    %c1_26 = arith.constant 1 : index
    %144 = vector.load %arg2[%c0_23, %c1_24, %c1_25, %c1_26] : memref<1x4x18x18xf32, #tpu.memory_space<vmem>>, vector<1x1x16x16xf32>
    %145 = vector.shape_cast %144 : vector<1x1x16x16xf32> to vector<16x16xf32>
    %c8 = arith.constant 8 : index
    %146 = memref.load %arg1[%c8] : memref<512xf32, #tpu.memory_space<smem>>
    %147 = vector.broadcast %146 : f32 to vector<16x16xf32>
    %148 = arith.mulf %147, %145 : vector<16x16xf32>
    %149 = arith.addf %115, %148 : vector<16x16xf32>
    %c9 = arith.constant 9 : index
    %150 = memref.load %arg1[%c9] : memref<512xf32, #tpu.memory_space<smem>>
    %151 = vector.broadcast %150 : f32 to vector<16x16xf32>
    %152 = arith.mulf %151, %145 : vector<16x16xf32>
    %153 = arith.addf %119, %152 : vector<16x16xf32>
    %c10 = arith.constant 10 : index
    %154 = memref.load %arg1[%c10] : memref<512xf32, #tpu.memory_space<smem>>
    %155 = vector.broadcast %154 : f32 to vector<16x16xf32>
    %156 = arith.mulf %155, %145 : vector<16x16xf32>
    %157 = arith.addf %123, %156 : vector<16x16xf32>
    %c11 = arith.constant 11 : index
    %158 = memref.load %arg1[%c11] : memref<512xf32, #tpu.memory_space<smem>>
    %159 = vector.broadcast %158 : f32 to vector<16x16xf32>
    %160 = arith.mulf %159, %145 : vector<16x16xf32>
    %161 = arith.addf %127, %160 : vector<16x16xf32>
    %c12 = arith.constant 12 : index
    %162 = memref.load %arg1[%c12] : memref<512xf32, #tpu.memory_space<smem>>
    %163 = vector.broadcast %162 : f32 to vector<16x16xf32>
    %164 = arith.mulf %163, %145 : vector<16x16xf32>
    %165 = arith.addf %131, %164 : vector<16x16xf32>
    %c13 = arith.constant 13 : index
    %166 = memref.load %arg1[%c13] : memref<512xf32, #tpu.memory_space<smem>>
    %167 = vector.broadcast %166 : f32 to vector<16x16xf32>
    %168 = arith.mulf %167, %145 : vector<16x16xf32>
    %169 = arith.addf %135, %168 : vector<16x16xf32>
    %c14 = arith.constant 14 : index
    %170 = memref.load %arg1[%c14] : memref<512xf32, #tpu.memory_space<smem>>
    %171 = vector.broadcast %170 : f32 to vector<16x16xf32>
    %172 = arith.mulf %171, %145 : vector<16x16xf32>
    %173 = arith.addf %139, %172 : vector<16x16xf32>
    %c15 = arith.constant 15 : index
    %174 = memref.load %arg1[%c15] : memref<512xf32, #tpu.memory_space<smem>>
    %175 = vector.broadcast %174 : f32 to vector<16x16xf32>
    %176 = arith.mulf %175, %145 : vector<16x16xf32>
    %177 = arith.addf %143, %176 : vector<16x16xf32>
    %c0_27 = arith.constant 0 : index
    %c1_28 = arith.constant 1 : index
    %c1_29 = arith.constant 1 : index
    %c0_30 = arith.constant 0 : index
    %178 = vector.load %arg2[%c0_27, %c1_28, %c1_29, %c0_30] : memref<1x4x18x18xf32, #tpu.memory_space<vmem>>, vector<1x1x16x16xf32>
    %179 = vector.shape_cast %178 : vector<1x1x16x16xf32> to vector<16x16xf32>
    %c40 = arith.constant 40 : index
    %180 = memref.load %arg1[%c40] : memref<512xf32, #tpu.memory_space<smem>>
    %181 = vector.broadcast %180 : f32 to vector<16x16xf32>
    %182 = arith.mulf %181, %179 : vector<16x16xf32>
    %183 = arith.addf %149, %182 : vector<16x16xf32>
    %c41 = arith.constant 41 : index
    %184 = memref.load %arg1[%c41] : memref<512xf32, #tpu.memory_space<smem>>
    %185 = vector.broadcast %184 : f32 to vector<16x16xf32>
    %186 = arith.mulf %185, %179 : vector<16x16xf32>
    %187 = arith.addf %153, %186 : vector<16x16xf32>
    %c42 = arith.constant 42 : index
    %188 = memref.load %arg1[%c42] : memref<512xf32, #tpu.memory_space<smem>>
    %189 = vector.broadcast %188 : f32 to vector<16x16xf32>
    %190 = arith.mulf %189, %179 : vector<16x16xf32>
    %191 = arith.addf %157, %190 : vector<16x16xf32>
    %c43 = arith.constant 43 : index
    %192 = memref.load %arg1[%c43] : memref<512xf32, #tpu.memory_space<smem>>
    %193 = vector.broadcast %192 : f32 to vector<16x16xf32>
    %194 = arith.mulf %193, %179 : vector<16x16xf32>
    %195 = arith.addf %161, %194 : vector<16x16xf32>
    %c44 = arith.constant 44 : index
    %196 = memref.load %arg1[%c44] : memref<512xf32, #tpu.memory_space<smem>>
    %197 = vector.broadcast %196 : f32 to vector<16x16xf32>
    %198 = arith.mulf %197, %179 : vector<16x16xf32>
    %199 = arith.addf %165, %198 : vector<16x16xf32>
    %c45 = arith.constant 45 : index
    %200 = memref.load %arg1[%c45] : memref<512xf32, #tpu.memory_space<smem>>
    %201 = vector.broadcast %200 : f32 to vector<16x16xf32>
    %202 = arith.mulf %201, %179 : vector<16x16xf32>
    %203 = arith.addf %169, %202 : vector<16x16xf32>
    %c46 = arith.constant 46 : index
    %204 = memref.load %arg1[%c46] : memref<512xf32, #tpu.memory_space<smem>>
    %205 = vector.broadcast %204 : f32 to vector<16x16xf32>
    %206 = arith.mulf %205, %179 : vector<16x16xf32>
    %207 = arith.addf %173, %206 : vector<16x16xf32>
    %c47 = arith.constant 47 : index
    %208 = memref.load %arg1[%c47] : memref<512xf32, #tpu.memory_space<smem>>
    %209 = vector.broadcast %208 : f32 to vector<16x16xf32>
    %210 = arith.mulf %209, %179 : vector<16x16xf32>
    %211 = arith.addf %177, %210 : vector<16x16xf32>
    %c0_31 = arith.constant 0 : index
    %c1_32 = arith.constant 1 : index
    %c0_33 = arith.constant 0 : index
    %c1_34 = arith.constant 1 : index
    %212 = vector.load %arg2[%c0_31, %c1_32, %c0_33, %c1_34] : memref<1x4x18x18xf32, #tpu.memory_space<vmem>>, vector<1x1x16x16xf32>
    %213 = vector.shape_cast %212 : vector<1x1x16x16xf32> to vector<16x16xf32>
    %c72 = arith.constant 72 : index
    %214 = memref.load %arg1[%c72] : memref<512xf32, #tpu.memory_space<smem>>
    %215 = vector.broadcast %214 : f32 to vector<16x16xf32>
    %216 = arith.mulf %215, %213 : vector<16x16xf32>
    %217 = arith.addf %183, %216 : vector<16x16xf32>
    %c73 = arith.constant 73 : index
    %218 = memref.load %arg1[%c73] : memref<512xf32, #tpu.memory_space<smem>>
    %219 = vector.broadcast %218 : f32 to vector<16x16xf32>
    %220 = arith.mulf %219, %213 : vector<16x16xf32>
    %221 = arith.addf %187, %220 : vector<16x16xf32>
    %c74 = arith.constant 74 : index
    %222 = memref.load %arg1[%c74] : memref<512xf32, #tpu.memory_space<smem>>
    %223 = vector.broadcast %222 : f32 to vector<16x16xf32>
    %224 = arith.mulf %223, %213 : vector<16x16xf32>
    %225 = arith.addf %191, %224 : vector<16x16xf32>
    %c75 = arith.constant 75 : index
    %226 = memref.load %arg1[%c75] : memref<512xf32, #tpu.memory_space<smem>>
    %227 = vector.broadcast %226 : f32 to vector<16x16xf32>
    %228 = arith.mulf %227, %213 : vector<16x16xf32>
    %229 = arith.addf %195, %228 : vector<16x16xf32>
    %c76 = arith.constant 76 : index
    %230 = memref.load %arg1[%c76] : memref<512xf32, #tpu.memory_space<smem>>
    %231 = vector.broadcast %230 : f32 to vector<16x16xf32>
    %232 = arith.mulf %231, %213 : vector<16x16xf32>
    %233 = arith.addf %199, %232 : vector<16x16xf32>
    %c77 = arith.constant 77 : index
    %234 = memref.load %arg1[%c77] : memref<512xf32, #tpu.memory_space<smem>>
    %235 = vector.broadcast %234 : f32 to vector<16x16xf32>
    %236 = arith.mulf %235, %213 : vector<16x16xf32>
    %237 = arith.addf %203, %236 : vector<16x16xf32>
    %c78 = arith.constant 78 : index
    %238 = memref.load %arg1[%c78] : memref<512xf32, #tpu.memory_space<smem>>
    %239 = vector.broadcast %238 : f32 to vector<16x16xf32>
    %240 = arith.mulf %239, %213 : vector<16x16xf32>
    %241 = arith.addf %207, %240 : vector<16x16xf32>
    %c79 = arith.constant 79 : index
    %242 = memref.load %arg1[%c79] : memref<512xf32, #tpu.memory_space<smem>>
    %243 = vector.broadcast %242 : f32 to vector<16x16xf32>
    %244 = arith.mulf %243, %213 : vector<16x16xf32>
    %245 = arith.addf %211, %244 : vector<16x16xf32>
    %c0_35 = arith.constant 0 : index
    %c1_36 = arith.constant 1 : index
    %c0_37 = arith.constant 0 : index
    %c0_38 = arith.constant 0 : index
    %246 = vector.load %arg2[%c0_35, %c1_36, %c0_37, %c0_38] : memref<1x4x18x18xf32, #tpu.memory_space<vmem>>, vector<1x1x16x16xf32>
    %247 = vector.shape_cast %246 : vector<1x1x16x16xf32> to vector<16x16xf32>
    %c104 = arith.constant 104 : index
    %248 = memref.load %arg1[%c104] : memref<512xf32, #tpu.memory_space<smem>>
    %249 = vector.broadcast %248 : f32 to vector<16x16xf32>
    %250 = arith.mulf %249, %247 : vector<16x16xf32>
    %251 = arith.addf %217, %250 : vector<16x16xf32>
    %c105 = arith.constant 105 : index
    %252 = memref.load %arg1[%c105] : memref<512xf32, #tpu.memory_space<smem>>
    %253 = vector.broadcast %252 : f32 to vector<16x16xf32>
    %254 = arith.mulf %253, %247 : vector<16x16xf32>
    %255 = arith.addf %221, %254 : vector<16x16xf32>
    %c106 = arith.constant 106 : index
    %256 = memref.load %arg1[%c106] : memref<512xf32, #tpu.memory_space<smem>>
    %257 = vector.broadcast %256 : f32 to vector<16x16xf32>
    %258 = arith.mulf %257, %247 : vector<16x16xf32>
    %259 = arith.addf %225, %258 : vector<16x16xf32>
    %c107 = arith.constant 107 : index
    %260 = memref.load %arg1[%c107] : memref<512xf32, #tpu.memory_space<smem>>
    %261 = vector.broadcast %260 : f32 to vector<16x16xf32>
    %262 = arith.mulf %261, %247 : vector<16x16xf32>
    %263 = arith.addf %229, %262 : vector<16x16xf32>
    %c108 = arith.constant 108 : index
    %264 = memref.load %arg1[%c108] : memref<512xf32, #tpu.memory_space<smem>>
    %265 = vector.broadcast %264 : f32 to vector<16x16xf32>
    %266 = arith.mulf %265, %247 : vector<16x16xf32>
    %267 = arith.addf %233, %266 : vector<16x16xf32>
    %c109 = arith.constant 109 : index
    %268 = memref.load %arg1[%c109] : memref<512xf32, #tpu.memory_space<smem>>
    %269 = vector.broadcast %268 : f32 to vector<16x16xf32>
    %270 = arith.mulf %269, %247 : vector<16x16xf32>
    %271 = arith.addf %237, %270 : vector<16x16xf32>
    %c110 = arith.constant 110 : index
    %272 = memref.load %arg1[%c110] : memref<512xf32, #tpu.memory_space<smem>>
    %273 = vector.broadcast %272 : f32 to vector<16x16xf32>
    %274 = arith.mulf %273, %247 : vector<16x16xf32>
    %275 = arith.addf %241, %274 : vector<16x16xf32>
    %c111 = arith.constant 111 : index
    %276 = memref.load %arg1[%c111] : memref<512xf32, #tpu.memory_space<smem>>
    %277 = vector.broadcast %276 : f32 to vector<16x16xf32>
    %278 = arith.mulf %277, %247 : vector<16x16xf32>
    %279 = arith.addf %245, %278 : vector<16x16xf32>
    %c0_39 = arith.constant 0 : index
    %c2_40 = arith.constant 2 : index
    %c1_41 = arith.constant 1 : index
    %c1_42 = arith.constant 1 : index
    %280 = vector.load %arg2[%c0_39, %c2_40, %c1_41, %c1_42] : memref<1x4x18x18xf32, #tpu.memory_space<vmem>>, vector<1x1x16x16xf32>
    %281 = vector.shape_cast %280 : vector<1x1x16x16xf32> to vector<16x16xf32>
    %c16 = arith.constant 16 : index
    %282 = memref.load %arg1[%c16] : memref<512xf32, #tpu.memory_space<smem>>
    %283 = vector.broadcast %282 : f32 to vector<16x16xf32>
    %284 = arith.mulf %283, %281 : vector<16x16xf32>
    %285 = arith.addf %251, %284 : vector<16x16xf32>
    %c17 = arith.constant 17 : index
    %286 = memref.load %arg1[%c17] : memref<512xf32, #tpu.memory_space<smem>>
    %287 = vector.broadcast %286 : f32 to vector<16x16xf32>
    %288 = arith.mulf %287, %281 : vector<16x16xf32>
    %289 = arith.addf %255, %288 : vector<16x16xf32>
    %c18 = arith.constant 18 : index
    %290 = memref.load %arg1[%c18] : memref<512xf32, #tpu.memory_space<smem>>
    %291 = vector.broadcast %290 : f32 to vector<16x16xf32>
    %292 = arith.mulf %291, %281 : vector<16x16xf32>
    %293 = arith.addf %259, %292 : vector<16x16xf32>
    %c19 = arith.constant 19 : index
    %294 = memref.load %arg1[%c19] : memref<512xf32, #tpu.memory_space<smem>>
    %295 = vector.broadcast %294 : f32 to vector<16x16xf32>
    %296 = arith.mulf %295, %281 : vector<16x16xf32>
    %297 = arith.addf %263, %296 : vector<16x16xf32>
    %c20 = arith.constant 20 : index
    %298 = memref.load %arg1[%c20] : memref<512xf32, #tpu.memory_space<smem>>
    %299 = vector.broadcast %298 : f32 to vector<16x16xf32>
    %300 = arith.mulf %299, %281 : vector<16x16xf32>
    %301 = arith.addf %267, %300 : vector<16x16xf32>
    %c21 = arith.constant 21 : index
    %302 = memref.load %arg1[%c21] : memref<512xf32, #tpu.memory_space<smem>>
    %303 = vector.broadcast %302 : f32 to vector<16x16xf32>
    %304 = arith.mulf %303, %281 : vector<16x16xf32>
    %305 = arith.addf %271, %304 : vector<16x16xf32>
    %c22 = arith.constant 22 : index
    %306 = memref.load %arg1[%c22] : memref<512xf32, #tpu.memory_space<smem>>
    %307 = vector.broadcast %306 : f32 to vector<16x16xf32>
    %308 = arith.mulf %307, %281 : vector<16x16xf32>
    %309 = arith.addf %275, %308 : vector<16x16xf32>
    %c23 = arith.constant 23 : index
    %310 = memref.load %arg1[%c23] : memref<512xf32, #tpu.memory_space<smem>>
    %311 = vector.broadcast %310 : f32 to vector<16x16xf32>
    %312 = arith.mulf %311, %281 : vector<16x16xf32>
    %313 = arith.addf %279, %312 : vector<16x16xf32>
    %c0_43 = arith.constant 0 : index
    %c2_44 = arith.constant 2 : index
    %c1_45 = arith.constant 1 : index
    %c0_46 = arith.constant 0 : index
    %314 = vector.load %arg2[%c0_43, %c2_44, %c1_45, %c0_46] : memref<1x4x18x18xf32, #tpu.memory_space<vmem>>, vector<1x1x16x16xf32>
    %315 = vector.shape_cast %314 : vector<1x1x16x16xf32> to vector<16x16xf32>
    %c48 = arith.constant 48 : index
    %316 = memref.load %arg1[%c48] : memref<512xf32, #tpu.memory_space<smem>>
    %317 = vector.broadcast %316 : f32 to vector<16x16xf32>
    %318 = arith.mulf %317, %315 : vector<16x16xf32>
    %319 = arith.addf %285, %318 : vector<16x16xf32>
    %c49 = arith.constant 49 : index
    %320 = memref.load %arg1[%c49] : memref<512xf32, #tpu.memory_space<smem>>
    %321 = vector.broadcast %320 : f32 to vector<16x16xf32>
    %322 = arith.mulf %321, %315 : vector<16x16xf32>
    %323 = arith.addf %289, %322 : vector<16x16xf32>
    %c50 = arith.constant 50 : index
    %324 = memref.load %arg1[%c50] : memref<512xf32, #tpu.memory_space<smem>>
    %325 = vector.broadcast %324 : f32 to vector<16x16xf32>
    %326 = arith.mulf %325, %315 : vector<16x16xf32>
    %327 = arith.addf %293, %326 : vector<16x16xf32>
    %c51 = arith.constant 51 : index
    %328 = memref.load %arg1[%c51] : memref<512xf32, #tpu.memory_space<smem>>
    %329 = vector.broadcast %328 : f32 to vector<16x16xf32>
    %330 = arith.mulf %329, %315 : vector<16x16xf32>
    %331 = arith.addf %297, %330 : vector<16x16xf32>
    %c52 = arith.constant 52 : index
    %332 = memref.load %arg1[%c52] : memref<512xf32, #tpu.memory_space<smem>>
    %333 = vector.broadcast %332 : f32 to vector<16x16xf32>
    %334 = arith.mulf %333, %315 : vector<16x16xf32>
    %335 = arith.addf %301, %334 : vector<16x16xf32>
    %c53 = arith.constant 53 : index
    %336 = memref.load %arg1[%c53] : memref<512xf32, #tpu.memory_space<smem>>
    %337 = vector.broadcast %336 : f32 to vector<16x16xf32>
    %338 = arith.mulf %337, %315 : vector<16x16xf32>
    %339 = arith.addf %305, %338 : vector<16x16xf32>
    %c54 = arith.constant 54 : index
    %340 = memref.load %arg1[%c54] : memref<512xf32, #tpu.memory_space<smem>>
    %341 = vector.broadcast %340 : f32 to vector<16x16xf32>
    %342 = arith.mulf %341, %315 : vector<16x16xf32>
    %343 = arith.addf %309, %342 : vector<16x16xf32>
    %c55 = arith.constant 55 : index
    %344 = memref.load %arg1[%c55] : memref<512xf32, #tpu.memory_space<smem>>
    %345 = vector.broadcast %344 : f32 to vector<16x16xf32>
    %346 = arith.mulf %345, %315 : vector<16x16xf32>
    %347 = arith.addf %313, %346 : vector<16x16xf32>
    %c0_47 = arith.constant 0 : index
    %c2_48 = arith.constant 2 : index
    %c0_49 = arith.constant 0 : index
    %c1_50 = arith.constant 1 : index
    %348 = vector.load %arg2[%c0_47, %c2_48, %c0_49, %c1_50] : memref<1x4x18x18xf32, #tpu.memory_space<vmem>>, vector<1x1x16x16xf32>
    %349 = vector.shape_cast %348 : vector<1x1x16x16xf32> to vector<16x16xf32>
    %c80 = arith.constant 80 : index
    %350 = memref.load %arg1[%c80] : memref<512xf32, #tpu.memory_space<smem>>
    %351 = vector.broadcast %350 : f32 to vector<16x16xf32>
    %352 = arith.mulf %351, %349 : vector<16x16xf32>
    %353 = arith.addf %319, %352 : vector<16x16xf32>
    %c81 = arith.constant 81 : index
    %354 = memref.load %arg1[%c81] : memref<512xf32, #tpu.memory_space<smem>>
    %355 = vector.broadcast %354 : f32 to vector<16x16xf32>
    %356 = arith.mulf %355, %349 : vector<16x16xf32>
    %357 = arith.addf %323, %356 : vector<16x16xf32>
    %c82 = arith.constant 82 : index
    %358 = memref.load %arg1[%c82] : memref<512xf32, #tpu.memory_space<smem>>
    %359 = vector.broadcast %358 : f32 to vector<16x16xf32>
    %360 = arith.mulf %359, %349 : vector<16x16xf32>
    %361 = arith.addf %327, %360 : vector<16x16xf32>
    %c83 = arith.constant 83 : index
    %362 = memref.load %arg1[%c83] : memref<512xf32, #tpu.memory_space<smem>>
    %363 = vector.broadcast %362 : f32 to vector<16x16xf32>
    %364 = arith.mulf %363, %349 : vector<16x16xf32>
    %365 = arith.addf %331, %364 : vector<16x16xf32>
    %c84 = arith.constant 84 : index
    %366 = memref.load %arg1[%c84] : memref<512xf32, #tpu.memory_space<smem>>
    %367 = vector.broadcast %366 : f32 to vector<16x16xf32>
    %368 = arith.mulf %367, %349 : vector<16x16xf32>
    %369 = arith.addf %335, %368 : vector<16x16xf32>
    %c85 = arith.constant 85 : index
    %370 = memref.load %arg1[%c85] : memref<512xf32, #tpu.memory_space<smem>>
    %371 = vector.broadcast %370 : f32 to vector<16x16xf32>
    %372 = arith.mulf %371, %349 : vector<16x16xf32>
    %373 = arith.addf %339, %372 : vector<16x16xf32>
    %c86 = arith.constant 86 : index
    %374 = memref.load %arg1[%c86] : memref<512xf32, #tpu.memory_space<smem>>
    %375 = vector.broadcast %374 : f32 to vector<16x16xf32>
    %376 = arith.mulf %375, %349 : vector<16x16xf32>
    %377 = arith.addf %343, %376 : vector<16x16xf32>
    %c87 = arith.constant 87 : index
    %378 = memref.load %arg1[%c87] : memref<512xf32, #tpu.memory_space<smem>>
    %379 = vector.broadcast %378 : f32 to vector<16x16xf32>
    %380 = arith.mulf %379, %349 : vector<16x16xf32>
    %381 = arith.addf %347, %380 : vector<16x16xf32>
    %c0_51 = arith.constant 0 : index
    %c2_52 = arith.constant 2 : index
    %c0_53 = arith.constant 0 : index
    %c0_54 = arith.constant 0 : index
    %382 = vector.load %arg2[%c0_51, %c2_52, %c0_53, %c0_54] : memref<1x4x18x18xf32, #tpu.memory_space<vmem>>, vector<1x1x16x16xf32>
    %383 = vector.shape_cast %382 : vector<1x1x16x16xf32> to vector<16x16xf32>
    %c112 = arith.constant 112 : index
    %384 = memref.load %arg1[%c112] : memref<512xf32, #tpu.memory_space<smem>>
    %385 = vector.broadcast %384 : f32 to vector<16x16xf32>
    %386 = arith.mulf %385, %383 : vector<16x16xf32>
    %387 = arith.addf %353, %386 : vector<16x16xf32>
    %c113 = arith.constant 113 : index
    %388 = memref.load %arg1[%c113] : memref<512xf32, #tpu.memory_space<smem>>
    %389 = vector.broadcast %388 : f32 to vector<16x16xf32>
    %390 = arith.mulf %389, %383 : vector<16x16xf32>
    %391 = arith.addf %357, %390 : vector<16x16xf32>
    %c114 = arith.constant 114 : index
    %392 = memref.load %arg1[%c114] : memref<512xf32, #tpu.memory_space<smem>>
    %393 = vector.broadcast %392 : f32 to vector<16x16xf32>
    %394 = arith.mulf %393, %383 : vector<16x16xf32>
    %395 = arith.addf %361, %394 : vector<16x16xf32>
    %c115 = arith.constant 115 : index
    %396 = memref.load %arg1[%c115] : memref<512xf32, #tpu.memory_space<smem>>
    %397 = vector.broadcast %396 : f32 to vector<16x16xf32>
    %398 = arith.mulf %397, %383 : vector<16x16xf32>
    %399 = arith.addf %365, %398 : vector<16x16xf32>
    %c116 = arith.constant 116 : index
    %400 = memref.load %arg1[%c116] : memref<512xf32, #tpu.memory_space<smem>>
    %401 = vector.broadcast %400 : f32 to vector<16x16xf32>
    %402 = arith.mulf %401, %383 : vector<16x16xf32>
    %403 = arith.addf %369, %402 : vector<16x16xf32>
    %c117 = arith.constant 117 : index
    %404 = memref.load %arg1[%c117] : memref<512xf32, #tpu.memory_space<smem>>
    %405 = vector.broadcast %404 : f32 to vector<16x16xf32>
    %406 = arith.mulf %405, %383 : vector<16x16xf32>
    %407 = arith.addf %373, %406 : vector<16x16xf32>
    %c118 = arith.constant 118 : index
    %408 = memref.load %arg1[%c118] : memref<512xf32, #tpu.memory_space<smem>>
    %409 = vector.broadcast %408 : f32 to vector<16x16xf32>
    %410 = arith.mulf %409, %383 : vector<16x16xf32>
    %411 = arith.addf %377, %410 : vector<16x16xf32>
    %c119 = arith.constant 119 : index
    %412 = memref.load %arg1[%c119] : memref<512xf32, #tpu.memory_space<smem>>
    %413 = vector.broadcast %412 : f32 to vector<16x16xf32>
    %414 = arith.mulf %413, %383 : vector<16x16xf32>
    %415 = arith.addf %381, %414 : vector<16x16xf32>
    %c0_55 = arith.constant 0 : index
    %c3_56 = arith.constant 3 : index
    %c1_57 = arith.constant 1 : index
    %c1_58 = arith.constant 1 : index
    %416 = vector.load %arg2[%c0_55, %c3_56, %c1_57, %c1_58] : memref<1x4x18x18xf32, #tpu.memory_space<vmem>>, vector<1x1x16x16xf32>
    %417 = vector.shape_cast %416 : vector<1x1x16x16xf32> to vector<16x16xf32>
    %c24 = arith.constant 24 : index
    %418 = memref.load %arg1[%c24] : memref<512xf32, #tpu.memory_space<smem>>
    %419 = vector.broadcast %418 : f32 to vector<16x16xf32>
    %420 = arith.mulf %419, %417 : vector<16x16xf32>
    %421 = arith.addf %387, %420 : vector<16x16xf32>
    %c25 = arith.constant 25 : index
    %422 = memref.load %arg1[%c25] : memref<512xf32, #tpu.memory_space<smem>>
    %423 = vector.broadcast %422 : f32 to vector<16x16xf32>
    %424 = arith.mulf %423, %417 : vector<16x16xf32>
    %425 = arith.addf %391, %424 : vector<16x16xf32>
    %c26 = arith.constant 26 : index
    %426 = memref.load %arg1[%c26] : memref<512xf32, #tpu.memory_space<smem>>
    %427 = vector.broadcast %426 : f32 to vector<16x16xf32>
    %428 = arith.mulf %427, %417 : vector<16x16xf32>
    %429 = arith.addf %395, %428 : vector<16x16xf32>
    %c27 = arith.constant 27 : index
    %430 = memref.load %arg1[%c27] : memref<512xf32, #tpu.memory_space<smem>>
    %431 = vector.broadcast %430 : f32 to vector<16x16xf32>
    %432 = arith.mulf %431, %417 : vector<16x16xf32>
    %433 = arith.addf %399, %432 : vector<16x16xf32>
    %c28 = arith.constant 28 : index
    %434 = memref.load %arg1[%c28] : memref<512xf32, #tpu.memory_space<smem>>
    %435 = vector.broadcast %434 : f32 to vector<16x16xf32>
    %436 = arith.mulf %435, %417 : vector<16x16xf32>
    %437 = arith.addf %403, %436 : vector<16x16xf32>
    %c29 = arith.constant 29 : index
    %438 = memref.load %arg1[%c29] : memref<512xf32, #tpu.memory_space<smem>>
    %439 = vector.broadcast %438 : f32 to vector<16x16xf32>
    %440 = arith.mulf %439, %417 : vector<16x16xf32>
    %441 = arith.addf %407, %440 : vector<16x16xf32>
    %c30 = arith.constant 30 : index
    %442 = memref.load %arg1[%c30] : memref<512xf32, #tpu.memory_space<smem>>
    %443 = vector.broadcast %442 : f32 to vector<16x16xf32>
    %444 = arith.mulf %443, %417 : vector<16x16xf32>
    %445 = arith.addf %411, %444 : vector<16x16xf32>
    %c31 = arith.constant 31 : index
    %446 = memref.load %arg1[%c31] : memref<512xf32, #tpu.memory_space<smem>>
    %447 = vector.broadcast %446 : f32 to vector<16x16xf32>
    %448 = arith.mulf %447, %417 : vector<16x16xf32>
    %449 = arith.addf %415, %448 : vector<16x16xf32>
    %c0_59 = arith.constant 0 : index
    %c3_60 = arith.constant 3 : index
    %c1_61 = arith.constant 1 : index
    %c0_62 = arith.constant 0 : index
    %450 = vector.load %arg2[%c0_59, %c3_60, %c1_61, %c0_62] : memref<1x4x18x18xf32, #tpu.memory_space<vmem>>, vector<1x1x16x16xf32>
    %451 = vector.shape_cast %450 : vector<1x1x16x16xf32> to vector<16x16xf32>
    %c56 = arith.constant 56 : index
    %452 = memref.load %arg1[%c56] : memref<512xf32, #tpu.memory_space<smem>>
    %453 = vector.broadcast %452 : f32 to vector<16x16xf32>
    %454 = arith.mulf %453, %451 : vector<16x16xf32>
    %455 = arith.addf %421, %454 : vector<16x16xf32>
    %c57 = arith.constant 57 : index
    %456 = memref.load %arg1[%c57] : memref<512xf32, #tpu.memory_space<smem>>
    %457 = vector.broadcast %456 : f32 to vector<16x16xf32>
    %458 = arith.mulf %457, %451 : vector<16x16xf32>
    %459 = arith.addf %425, %458 : vector<16x16xf32>
    %c58 = arith.constant 58 : index
    %460 = memref.load %arg1[%c58] : memref<512xf32, #tpu.memory_space<smem>>
    %461 = vector.broadcast %460 : f32 to vector<16x16xf32>
    %462 = arith.mulf %461, %451 : vector<16x16xf32>
    %463 = arith.addf %429, %462 : vector<16x16xf32>
    %c59 = arith.constant 59 : index
    %464 = memref.load %arg1[%c59] : memref<512xf32, #tpu.memory_space<smem>>
    %465 = vector.broadcast %464 : f32 to vector<16x16xf32>
    %466 = arith.mulf %465, %451 : vector<16x16xf32>
    %467 = arith.addf %433, %466 : vector<16x16xf32>
    %c60 = arith.constant 60 : index
    %468 = memref.load %arg1[%c60] : memref<512xf32, #tpu.memory_space<smem>>
    %469 = vector.broadcast %468 : f32 to vector<16x16xf32>
    %470 = arith.mulf %469, %451 : vector<16x16xf32>
    %471 = arith.addf %437, %470 : vector<16x16xf32>
    %c61 = arith.constant 61 : index
    %472 = memref.load %arg1[%c61] : memref<512xf32, #tpu.memory_space<smem>>
    %473 = vector.broadcast %472 : f32 to vector<16x16xf32>
    %474 = arith.mulf %473, %451 : vector<16x16xf32>
    %475 = arith.addf %441, %474 : vector<16x16xf32>
    %c62 = arith.constant 62 : index
    %476 = memref.load %arg1[%c62] : memref<512xf32, #tpu.memory_space<smem>>
    %477 = vector.broadcast %476 : f32 to vector<16x16xf32>
    %478 = arith.mulf %477, %451 : vector<16x16xf32>
    %479 = arith.addf %445, %478 : vector<16x16xf32>
    %c63 = arith.constant 63 : index
    %480 = memref.load %arg1[%c63] : memref<512xf32, #tpu.memory_space<smem>>
    %481 = vector.broadcast %480 : f32 to vector<16x16xf32>
    %482 = arith.mulf %481, %451 : vector<16x16xf32>
    %483 = arith.addf %449, %482 : vector<16x16xf32>
    %c0_63 = arith.constant 0 : index
    %c3_64 = arith.constant 3 : index
    %c0_65 = arith.constant 0 : index
    %c1_66 = arith.constant 1 : index
    %484 = vector.load %arg2[%c0_63, %c3_64, %c0_65, %c1_66] : memref<1x4x18x18xf32, #tpu.memory_space<vmem>>, vector<1x1x16x16xf32>
    %485 = vector.shape_cast %484 : vector<1x1x16x16xf32> to vector<16x16xf32>
    %c88 = arith.constant 88 : index
    %486 = memref.load %arg1[%c88] : memref<512xf32, #tpu.memory_space<smem>>
    %487 = vector.broadcast %486 : f32 to vector<16x16xf32>
    %488 = arith.mulf %487, %485 : vector<16x16xf32>
    %489 = arith.addf %455, %488 : vector<16x16xf32>
    %c89 = arith.constant 89 : index
    %490 = memref.load %arg1[%c89] : memref<512xf32, #tpu.memory_space<smem>>
    %491 = vector.broadcast %490 : f32 to vector<16x16xf32>
    %492 = arith.mulf %491, %485 : vector<16x16xf32>
    %493 = arith.addf %459, %492 : vector<16x16xf32>
    %c90 = arith.constant 90 : index
    %494 = memref.load %arg1[%c90] : memref<512xf32, #tpu.memory_space<smem>>
    %495 = vector.broadcast %494 : f32 to vector<16x16xf32>
    %496 = arith.mulf %495, %485 : vector<16x16xf32>
    %497 = arith.addf %463, %496 : vector<16x16xf32>
    %c91 = arith.constant 91 : index
    %498 = memref.load %arg1[%c91] : memref<512xf32, #tpu.memory_space<smem>>
    %499 = vector.broadcast %498 : f32 to vector<16x16xf32>
    %500 = arith.mulf %499, %485 : vector<16x16xf32>
    %501 = arith.addf %467, %500 : vector<16x16xf32>
    %c92 = arith.constant 92 : index
    %502 = memref.load %arg1[%c92] : memref<512xf32, #tpu.memory_space<smem>>
    %503 = vector.broadcast %502 : f32 to vector<16x16xf32>
    %504 = arith.mulf %503, %485 : vector<16x16xf32>
    %505 = arith.addf %471, %504 : vector<16x16xf32>
    %c93 = arith.constant 93 : index
    %506 = memref.load %arg1[%c93] : memref<512xf32, #tpu.memory_space<smem>>
    %507 = vector.broadcast %506 : f32 to vector<16x16xf32>
    %508 = arith.mulf %507, %485 : vector<16x16xf32>
    %509 = arith.addf %475, %508 : vector<16x16xf32>
    %c94 = arith.constant 94 : index
    %510 = memref.load %arg1[%c94] : memref<512xf32, #tpu.memory_space<smem>>
    %511 = vector.broadcast %510 : f32 to vector<16x16xf32>
    %512 = arith.mulf %511, %485 : vector<16x16xf32>
    %513 = arith.addf %479, %512 : vector<16x16xf32>
    %c95 = arith.constant 95 : index
    %514 = memref.load %arg1[%c95] : memref<512xf32, #tpu.memory_space<smem>>
    %515 = vector.broadcast %514 : f32 to vector<16x16xf32>
    %516 = arith.mulf %515, %485 : vector<16x16xf32>
    %517 = arith.addf %483, %516 : vector<16x16xf32>
    %c0_67 = arith.constant 0 : index
    %c3_68 = arith.constant 3 : index
    %c0_69 = arith.constant 0 : index
    %c0_70 = arith.constant 0 : index
    %518 = vector.load %arg2[%c0_67, %c3_68, %c0_69, %c0_70] : memref<1x4x18x18xf32, #tpu.memory_space<vmem>>, vector<1x1x16x16xf32>
    %519 = vector.shape_cast %518 : vector<1x1x16x16xf32> to vector<16x16xf32>
    %c120 = arith.constant 120 : index
    %520 = memref.load %arg1[%c120] : memref<512xf32, #tpu.memory_space<smem>>
    %521 = vector.broadcast %520 : f32 to vector<16x16xf32>
    %522 = arith.mulf %521, %519 : vector<16x16xf32>
    %523 = arith.addf %489, %522 : vector<16x16xf32>
    %c121 = arith.constant 121 : index
    %524 = memref.load %arg1[%c121] : memref<512xf32, #tpu.memory_space<smem>>
    %525 = vector.broadcast %524 : f32 to vector<16x16xf32>
    %526 = arith.mulf %525, %519 : vector<16x16xf32>
    %527 = arith.addf %493, %526 : vector<16x16xf32>
    %c122 = arith.constant 122 : index
    %528 = memref.load %arg1[%c122] : memref<512xf32, #tpu.memory_space<smem>>
    %529 = vector.broadcast %528 : f32 to vector<16x16xf32>
    %530 = arith.mulf %529, %519 : vector<16x16xf32>
    %531 = arith.addf %497, %530 : vector<16x16xf32>
    %c123 = arith.constant 123 : index
    %532 = memref.load %arg1[%c123] : memref<512xf32, #tpu.memory_space<smem>>
    %533 = vector.broadcast %532 : f32 to vector<16x16xf32>
    %534 = arith.mulf %533, %519 : vector<16x16xf32>
    %535 = arith.addf %501, %534 : vector<16x16xf32>
    %c124 = arith.constant 124 : index
    %536 = memref.load %arg1[%c124] : memref<512xf32, #tpu.memory_space<smem>>
    %537 = vector.broadcast %536 : f32 to vector<16x16xf32>
    %538 = arith.mulf %537, %519 : vector<16x16xf32>
    %539 = arith.addf %505, %538 : vector<16x16xf32>
    %c125 = arith.constant 125 : index
    %540 = memref.load %arg1[%c125] : memref<512xf32, #tpu.memory_space<smem>>
    %541 = vector.broadcast %540 : f32 to vector<16x16xf32>
    %542 = arith.mulf %541, %519 : vector<16x16xf32>
    %543 = arith.addf %509, %542 : vector<16x16xf32>
    %c126 = arith.constant 126 : index
    %544 = memref.load %arg1[%c126] : memref<512xf32, #tpu.memory_space<smem>>
    %545 = vector.broadcast %544 : f32 to vector<16x16xf32>
    %546 = arith.mulf %545, %519 : vector<16x16xf32>
    %547 = arith.addf %513, %546 : vector<16x16xf32>
    %c127 = arith.constant 127 : index
    %548 = memref.load %arg1[%c127] : memref<512xf32, #tpu.memory_space<smem>>
    %549 = vector.broadcast %548 : f32 to vector<16x16xf32>
    %550 = arith.mulf %549, %519 : vector<16x16xf32>
    %551 = arith.addf %517, %550 : vector<16x16xf32>
    %c0_71 = arith.constant 0 : index
    %c0_72 = arith.constant 0 : index
    %c0_73 = arith.constant 0 : index
    %c0_74 = arith.constant 0 : index
    %552 = vector.load %arg3[%c0_71, %c0_72, %c0_73, %c0_74] : memref<1x8x16x64xf32, #tpu.memory_space<vmem>>, vector<1x1x16x16xf32>
    %553 = vector.shape_cast %552 : vector<1x1x16x16xf32> to vector<16x16xf32>
    %554 = vector.shape_cast %523 : vector<16x16xf32> to vector<1x1x16x16xf32>
    tpu.vector_store %arg3[%c0_71, %c0_72, %c0_73, %c0_74], %554 {strides = array<i32>} : memref<1x8x16x64xf32, #tpu.memory_space<vmem>>, vector<1x1x16x16xf32>,
    %c0_75 = arith.constant 0 : index
    %c1_76 = arith.constant 1 : index
    %c0_77 = arith.constant 0 : index
    %c0_78 = arith.constant 0 : index
    %555 = vector.load %arg3[%c0_75, %c1_76, %c0_77, %c0_78] : memref<1x8x16x64xf32, #tpu.memory_space<vmem>>, vector<1x1x16x16xf32>
    %556 = vector.shape_cast %555 : vector<1x1x16x16xf32> to vector<16x16xf32>
    %557 = vector.shape_cast %527 : vector<16x16xf32> to vector<1x1x16x16xf32>
    tpu.vector_store %arg3[%c0_75, %c1_76, %c0_77, %c0_78], %557 {strides = array<i32>} : memref<1x8x16x64xf32, #tpu.memory_space<vmem>>, vector<1x1x16x16xf32>,
    %c0_79 = arith.constant 0 : index
    %c2_80 = arith.constant 2 : index
    %c0_81 = arith.constant 0 : index
    %c0_82 = arith.constant 0 : index
    %558 = vector.load %arg3[%c0_79, %c2_80, %c0_81, %c0_82] : memref<1x8x16x64xf32, #tpu.memory_space<vmem>>, vector<1x1x16x16xf32>
    %559 = vector.shape_cast %558 : vector<1x1x16x16xf32> to vector<16x16xf32>
    %560 = vector.shape_cast %531 : vector<16x16xf32> to vector<1x1x16x16xf32>
    tpu.vector_store %arg3[%c0_79, %c2_80, %c0_81, %c0_82], %560 {strides = array<i32>} : memref<1x8x16x64xf32, #tpu.memory_space<vmem>>, vector<1x1x16x16xf32>,
    %c0_83 = arith.constant 0 : index
    %c3_84 = arith.constant 3 : index
    %c0_85 = arith.constant 0 : index
    %c0_86 = arith.constant 0 : index
    %561 = vector.load %arg3[%c0_83, %c3_84, %c0_85, %c0_86] : memref<1x8x16x64xf32, #tpu.memory_space<vmem>>, vector<1x1x16x16xf32>
    %562 = vector.shape_cast %561 : vector<1x1x16x16xf32> to vector<16x16xf32>
    %563 = vector.shape_cast %535 : vector<16x16xf32> to vector<1x1x16x16xf32>
    tpu.vector_store %arg3[%c0_83, %c3_84, %c0_85, %c0_86], %563 {strides = array<i32>} : memref<1x8x16x64xf32, #tpu.memory_space<vmem>>, vector<1x1x16x16xf32>,
    %c0_87 = arith.constant 0 : index
    %c4_88 = arith.constant 4 : index
    %c0_89 = arith.constant 0 : index
    %c0_90 = arith.constant 0 : index
    %564 = vector.load %arg3[%c0_87, %c4_88, %c0_89, %c0_90] : memref<1x8x16x64xf32, #tpu.memory_space<vmem>>, vector<1x1x16x16xf32>
    %565 = vector.shape_cast %564 : vector<1x1x16x16xf32> to vector<16x16xf32>
    %566 = vector.shape_cast %539 : vector<16x16xf32> to vector<1x1x16x16xf32>
    tpu.vector_store %arg3[%c0_87, %c4_88, %c0_89, %c0_90], %566 {strides = array<i32>} : memref<1x8x16x64xf32, #tpu.memory_space<vmem>>, vector<1x1x16x16xf32>,
    %c0_91 = arith.constant 0 : index
    %c5_92 = arith.constant 5 : index
    %c0_93 = arith.constant 0 : index
    %c0_94 = arith.constant 0 : index
    %567 = vector.load %arg3[%c0_91, %c5_92, %c0_93, %c0_94] : memref<1x8x16x64xf32, #tpu.memory_space<vmem>>, vector<1x1x16x16xf32>
    %568 = vector.shape_cast %567 : vector<1x1x16x16xf32> to vector<16x16xf32>
    %569 = vector.shape_cast %543 : vector<16x16xf32> to vector<1x1x16x16xf32>
    tpu.vector_store %arg3[%c0_91, %c5_92, %c0_93, %c0_94], %569 {strides = array<i32>} : memref<1x8x16x64xf32, #tpu.memory_space<vmem>>, vector<1x1x16x16xf32>,
    %c0_95 = arith.constant 0 : index
    %c6_96 = arith.constant 6 : index
    %c0_97 = arith.constant 0 : index
    %c0_98 = arith.constant 0 : index
    %570 = vector.load %arg3[%c0_95, %c6_96, %c0_97, %c0_98] : memref<1x8x16x64xf32, #tpu.memory_space<vmem>>, vector<1x1x16x16xf32>
    %571 = vector.shape_cast %570 : vector<1x1x16x16xf32> to vector<16x16xf32>
    %572 = vector.shape_cast %547 : vector<16x16xf32> to vector<1x1x16x16xf32>
    tpu.vector_store %arg3[%c0_95, %c6_96, %c0_97, %c0_98], %572 {strides = array<i32>} : memref<1x8x16x64xf32, #tpu.memory_space<vmem>>, vector<1x1x16x16xf32>,
    %c0_99 = arith.constant 0 : index
    %c7_100 = arith.constant 7 : index
    %c0_101 = arith.constant 0 : index
    %c0_102 = arith.constant 0 : index
    %573 = vector.load %arg3[%c0_99, %c7_100, %c0_101, %c0_102] : memref<1x8x16x64xf32, #tpu.memory_space<vmem>>, vector<1x1x16x16xf32>
    %574 = vector.shape_cast %573 : vector<1x1x16x16xf32> to vector<16x16xf32>
    %575 = vector.shape_cast %551 : vector<16x16xf32> to vector<1x1x16x16xf32>
    tpu.vector_store %arg3[%c0_99, %c7_100, %c0_101, %c0_102], %575 {strides = array<i32>} : memref<1x8x16x64xf32, #tpu.memory_space<vmem>>, vector<1x1x16x16xf32>,
    %cst_103 = arith.constant 0.000000e+00 : f32
    %576 = vector.broadcast %cst_103 : f32 to vector<16x16xf32>
    %cst_104 = arith.constant 0.000000e+00 : f32
    %577 = vector.broadcast %cst_104 : f32 to vector<16x16xf32>
    %cst_105 = arith.constant 0.000000e+00 : f32
    %578 = vector.broadcast %cst_105 : f32 to vector<16x16xf32>
    %cst_106 = arith.constant 0.000000e+00 : f32
    %579 = vector.broadcast %cst_106 : f32 to vector<16x16xf32>
    %cst_107 = arith.constant 0.000000e+00 : f32
    %580 = vector.broadcast %cst_107 : f32 to vector<16x16xf32>
    %cst_108 = arith.constant 0.000000e+00 : f32
    %581 = vector.broadcast %cst_108 : f32 to vector<16x16xf32>
    %cst_109 = arith.constant 0.000000e+00 : f32
    %582 = vector.broadcast %cst_109 : f32 to vector<16x16xf32>
    %cst_110 = arith.constant 0.000000e+00 : f32
    %583 = vector.broadcast %cst_110 : f32 to vector<16x16xf32>
    %c0_111 = arith.constant 0 : index
    %c0_112 = arith.constant 0 : index
    %c1_113 = arith.constant 1 : index
    %c2_114 = arith.constant 2 : index
    %584 = vector.load %arg2[%c0_111, %c0_112, %c1_113, %c2_114] : memref<1x4x18x18xf32, #tpu.memory_space<vmem>>, vector<1x1x16x16xf32>
    %585 = vector.shape_cast %584 : vector<1x1x16x16xf32> to vector<16x16xf32>
    %c128 = arith.constant 128 : index
    %586 = memref.load %arg1[%c128] : memref<512xf32, #tpu.memory_space<smem>>
    %587 = vector.broadcast %586 : f32 to vector<16x16xf32>
    %588 = arith.mulf %587, %585 : vector<16x16xf32>
    %589 = arith.addf %576, %588 : vector<16x16xf32>
    %c129 = arith.constant 129 : index
    %590 = memref.load %arg1[%c129] : memref<512xf32, #tpu.memory_space<smem>>
    %591 = vector.broadcast %590 : f32 to vector<16x16xf32>
    %592 = arith.mulf %591, %585 : vector<16x16xf32>
    %593 = arith.addf %577, %592 : vector<16x16xf32>
    %c130 = arith.constant 130 : index
    %594 = memref.load %arg1[%c130] : memref<512xf32, #tpu.memory_space<smem>>
    %595 = vector.broadcast %594 : f32 to vector<16x16xf32>
    %596 = arith.mulf %595, %585 : vector<16x16xf32>
    %597 = arith.addf %578, %596 : vector<16x16xf32>
    %c131 = arith.constant 131 : index
    %598 = memref.load %arg1[%c131] : memref<512xf32, #tpu.memory_space<smem>>
    %599 = vector.broadcast %598 : f32 to vector<16x16xf32>
    %600 = arith.mulf %599, %585 : vector<16x16xf32>
    %601 = arith.addf %579, %600 : vector<16x16xf32>
    %c132 = arith.constant 132 : index
    %602 = memref.load %arg1[%c132] : memref<512xf32, #tpu.memory_space<smem>>
    %603 = vector.broadcast %602 : f32 to vector<16x16xf32>
    %604 = arith.mulf %603, %585 : vector<16x16xf32>
    %605 = arith.addf %580, %604 : vector<16x16xf32>
    %c133 = arith.constant 133 : index
    %606 = memref.load %arg1[%c133] : memref<512xf32, #tpu.memory_space<smem>>
    %607 = vector.broadcast %606 : f32 to vector<16x16xf32>
    %608 = arith.mulf %607, %585 : vector<16x16xf32>
    %609 = arith.addf %581, %608 : vector<16x16xf32>
    %c134 = arith.constant 134 : index
    %610 = memref.load %arg1[%c134] : memref<512xf32, #tpu.memory_space<smem>>
    %611 = vector.broadcast %610 : f32 to vector<16x16xf32>
    %612 = arith.mulf %611, %585 : vector<16x16xf32>
    %613 = arith.addf %582, %612 : vector<16x16xf32>
    %c135 = arith.constant 135 : index
    %614 = memref.load %arg1[%c135] : memref<512xf32, #tpu.memory_space<smem>>
    %615 = vector.broadcast %614 : f32 to vector<16x16xf32>
    %616 = arith.mulf %615, %585 : vector<16x16xf32>
    %617 = arith.addf %583, %616 : vector<16x16xf32>
    %c0_115 = arith.constant 0 : index
    %c0_116 = arith.constant 0 : index
    %c1_117 = arith.constant 1 : index
    %c1_118 = arith.constant 1 : index
    %618 = vector.load %arg2[%c0_115, %c0_116, %c1_117, %c1_118] : memref<1x4x18x18xf32, #tpu.memory_space<vmem>>, vector<1x1x16x16xf32>
    %619 = vector.shape_cast %618 : vector<1x1x16x16xf32> to vector<16x16xf32>
    %c160 = arith.constant 160 : index
    %620 = memref.load %arg1[%c160] : memref<512xf32, #tpu.memory_space<smem>>
    %621 = vector.broadcast %620 : f32 to vector<16x16xf32>
    %622 = arith.mulf %621, %619 : vector<16x16xf32>
    %623 = arith.addf %589, %622 : vector<16x16xf32>
    %c161 = arith.constant 161 : index
    %624 = memref.load %arg1[%c161] : memref<512xf32, #tpu.memory_space<smem>>
    %625 = vector.broadcast %624 : f32 to vector<16x16xf32>
    %626 = arith.mulf %625, %619 : vector<16x16xf32>
    %627 = arith.addf %593, %626 : vector<16x16xf32>
    %c162 = arith.constant 162 : index
    %628 = memref.load %arg1[%c162] : memref<512xf32, #tpu.memory_space<smem>>
    %629 = vector.broadcast %628 : f32 to vector<16x16xf32>
    %630 = arith.mulf %629, %619 : vector<16x16xf32>
    %631 = arith.addf %597, %630 : vector<16x16xf32>
    %c163 = arith.constant 163 : index
    %632 = memref.load %arg1[%c163] : memref<512xf32, #tpu.memory_space<smem>>
    %633 = vector.broadcast %632 : f32 to vector<16x16xf32>
    %634 = arith.mulf %633, %619 : vector<16x16xf32>
    %635 = arith.addf %601, %634 : vector<16x16xf32>
    %c164 = arith.constant 164 : index
    %636 = memref.load %arg1[%c164] : memref<512xf32, #tpu.memory_space<smem>>
    %637 = vector.broadcast %636 : f32 to vector<16x16xf32>
    %638 = arith.mulf %637, %619 : vector<16x16xf32>
    %639 = arith.addf %605, %638 : vector<16x16xf32>
    %c165 = arith.constant 165 : index
    %640 = memref.load %arg1[%c165] : memref<512xf32, #tpu.memory_space<smem>>
    %641 = vector.broadcast %640 : f32 to vector<16x16xf32>
    %642 = arith.mulf %641, %619 : vector<16x16xf32>
    %643 = arith.addf %609, %642 : vector<16x16xf32>
    %c166 = arith.constant 166 : index
    %644 = memref.load %arg1[%c166] : memref<512xf32, #tpu.memory_space<smem>>
    %645 = vector.broadcast %644 : f32 to vector<16x16xf32>
    %646 = arith.mulf %645, %619 : vector<16x16xf32>
    %647 = arith.addf %613, %646 : vector<16x16xf32>
    %c167 = arith.constant 167 : index
    %648 = memref.load %arg1[%c167] : memref<512xf32, #tpu.memory_space<smem>>
    %649 = vector.broadcast %648 : f32 to vector<16x16xf32>
    %650 = arith.mulf %649, %619 : vector<16x16xf32>
    %651 = arith.addf %617, %650 : vector<16x16xf32>
    %c0_119 = arith.constant 0 : index
    %c0_120 = arith.constant 0 : index
    %c0_121 = arith.constant 0 : index
    %c2_122 = arith.constant 2 : index
    %652 = vector.load %arg2[%c0_119, %c0_120, %c0_121, %c2_122] : memref<1x4x18x18xf32, #tpu.memory_space<vmem>>, vector<1x1x16x16xf32>
    %653 = vector.shape_cast %652 : vector<1x1x16x16xf32> to vector<16x16xf32>
    %c192 = arith.constant 192 : index
    %654 = memref.load %arg1[%c192] : memref<512xf32, #tpu.memory_space<smem>>
    %655 = vector.broadcast %654 : f32 to vector<16x16xf32>
    %656 = arith.mulf %655, %653 : vector<16x16xf32>
    %657 = arith.addf %623, %656 : vector<16x16xf32>
    %c193 = arith.constant 193 : index
    %658 = memref.load %arg1[%c193] : memref<512xf32, #tpu.memory_space<smem>>
    %659 = vector.broadcast %658 : f32 to vector<16x16xf32>
    %660 = arith.mulf %659, %653 : vector<16x16xf32>
    %661 = arith.addf %627, %660 : vector<16x16xf32>
    %c194 = arith.constant 194 : index
    %662 = memref.load %arg1[%c194] : memref<512xf32, #tpu.memory_space<smem>>
    %663 = vector.broadcast %662 : f32 to vector<16x16xf32>
    %664 = arith.mulf %663, %653 : vector<16x16xf32>
    %665 = arith.addf %631, %664 : vector<16x16xf32>
    %c195 = arith.constant 195 : index
    %666 = memref.load %arg1[%c195] : memref<512xf32, #tpu.memory_space<smem>>
    %667 = vector.broadcast %666 : f32 to vector<16x16xf32>
    %668 = arith.mulf %667, %653 : vector<16x16xf32>
    %669 = arith.addf %635, %668 : vector<16x16xf32>
    %c196 = arith.constant 196 : index
    %670 = memref.load %arg1[%c196] : memref<512xf32, #tpu.memory_space<smem>>
    %671 = vector.broadcast %670 : f32 to vector<16x16xf32>
    %672 = arith.mulf %671, %653 : vector<16x16xf32>
    %673 = arith.addf %639, %672 : vector<16x16xf32>
    %c197 = arith.constant 197 : index
    %674 = memref.load %arg1[%c197] : memref<512xf32, #tpu.memory_space<smem>>
    %675 = vector.broadcast %674 : f32 to vector<16x16xf32>
    %676 = arith.mulf %675, %653 : vector<16x16xf32>
    %677 = arith.addf %643, %676 : vector<16x16xf32>
    %c198 = arith.constant 198 : index
    %678 = memref.load %arg1[%c198] : memref<512xf32, #tpu.memory_space<smem>>
    %679 = vector.broadcast %678 : f32 to vector<16x16xf32>
    %680 = arith.mulf %679, %653 : vector<16x16xf32>
    %681 = arith.addf %647, %680 : vector<16x16xf32>
    %c199 = arith.constant 199 : index
    %682 = memref.load %arg1[%c199] : memref<512xf32, #tpu.memory_space<smem>>
    %683 = vector.broadcast %682 : f32 to vector<16x16xf32>
    %684 = arith.mulf %683, %653 : vector<16x16xf32>
    %685 = arith.addf %651, %684 : vector<16x16xf32>
    %c0_123 = arith.constant 0 : index
    %c0_124 = arith.constant 0 : index
    %c0_125 = arith.constant 0 : index
    %c1_126 = arith.constant 1 : index
    %686 = vector.load %arg2[%c0_123, %c0_124, %c0_125, %c1_126] : memref<1x4x18x18xf32, #tpu.memory_space<vmem>>, vector<1x1x16x16xf32>
    %687 = vector.shape_cast %686 : vector<1x1x16x16xf32> to vector<16x16xf32>
    %c224 = arith.constant 224 : index
    %688 = memref.load %arg1[%c224] : memref<512xf32, #tpu.memory_space<smem>>
    %689 = vector.broadcast %688 : f32 to vector<16x16xf32>
    %690 = arith.mulf %689, %687 : vector<16x16xf32>
    %691 = arith.addf %657, %690 : vector<16x16xf32>
    %c225 = arith.constant 225 : index
    %692 = memref.load %arg1[%c225] : memref<512xf32, #tpu.memory_space<smem>>
    %693 = vector.broadcast %692 : f32 to vector<16x16xf32>
    %694 = arith.mulf %693, %687 : vector<16x16xf32>
    %695 = arith.addf %661, %694 : vector<16x16xf32>
    %c226 = arith.constant 226 : index
    %696 = memref.load %arg1[%c226] : memref<512xf32, #tpu.memory_space<smem>>
    %697 = vector.broadcast %696 : f32 to vector<16x16xf32>
    %698 = arith.mulf %697, %687 : vector<16x16xf32>
    %699 = arith.addf %665, %698 : vector<16x16xf32>
    %c227 = arith.constant 227 : index
    %700 = memref.load %arg1[%c227] : memref<512xf32, #tpu.memory_space<smem>>
    %701 = vector.broadcast %700 : f32 to vector<16x16xf32>
    %702 = arith.mulf %701, %687 : vector<16x16xf32>
    %703 = arith.addf %669, %702 : vector<16x16xf32>
    %c228 = arith.constant 228 : index
    %704 = memref.load %arg1[%c228] : memref<512xf32, #tpu.memory_space<smem>>
    %705 = vector.broadcast %704 : f32 to vector<16x16xf32>
    %706 = arith.mulf %705, %687 : vector<16x16xf32>
    %707 = arith.addf %673, %706 : vector<16x16xf32>
    %c229 = arith.constant 229 : index
    %708 = memref.load %arg1[%c229] : memref<512xf32, #tpu.memory_space<smem>>
    %709 = vector.broadcast %708 : f32 to vector<16x16xf32>
    %710 = arith.mulf %709, %687 : vector<16x16xf32>
    %711 = arith.addf %677, %710 : vector<16x16xf32>
    %c230 = arith.constant 230 : index
    %712 = memref.load %arg1[%c230] : memref<512xf32, #tpu.memory_space<smem>>
    %713 = vector.broadcast %712 : f32 to vector<16x16xf32>
    %714 = arith.mulf %713, %687 : vector<16x16xf32>
    %715 = arith.addf %681, %714 : vector<16x16xf32>
    %c231 = arith.constant 231 : index
    %716 = memref.load %arg1[%c231] : memref<512xf32, #tpu.memory_space<smem>>
    %717 = vector.broadcast %716 : f32 to vector<16x16xf32>
    %718 = arith.mulf %717, %687 : vector<16x16xf32>
    %719 = arith.addf %685, %718 : vector<16x16xf32>
    %c0_127 = arith.constant 0 : index
    %c1_128 = arith.constant 1 : index
    %c1_129 = arith.constant 1 : index
    %c2_130 = arith.constant 2 : index
    %720 = vector.load %arg2[%c0_127, %c1_128, %c1_129, %c2_130] : memref<1x4x18x18xf32, #tpu.memory_space<vmem>>, vector<1x1x16x16xf32>
    %721 = vector.shape_cast %720 : vector<1x1x16x16xf32> to vector<16x16xf32>
    %c136 = arith.constant 136 : index
    %722 = memref.load %arg1[%c136] : memref<512xf32, #tpu.memory_space<smem>>
    %723 = vector.broadcast %722 : f32 to vector<16x16xf32>
    %724 = arith.mulf %723, %721 : vector<16x16xf32>
    %725 = arith.addf %691, %724 : vector<16x16xf32>
    %c137 = arith.constant 137 : index
    %726 = memref.load %arg1[%c137] : memref<512xf32, #tpu.memory_space<smem>>
    %727 = vector.broadcast %726 : f32 to vector<16x16xf32>
    %728 = arith.mulf %727, %721 : vector<16x16xf32>
    %729 = arith.addf %695, %728 : vector<16x16xf32>
    %c138 = arith.constant 138 : index
    %730 = memref.load %arg1[%c138] : memref<512xf32, #tpu.memory_space<smem>>
    %731 = vector.broadcast %730 : f32 to vector<16x16xf32>
    %732 = arith.mulf %731, %721 : vector<16x16xf32>
    %733 = arith.addf %699, %732 : vector<16x16xf32>
    %c139 = arith.constant 139 : index
    %734 = memref.load %arg1[%c139] : memref<512xf32, #tpu.memory_space<smem>>
    %735 = vector.broadcast %734 : f32 to vector<16x16xf32>
    %736 = arith.mulf %735, %721 : vector<16x16xf32>
    %737 = arith.addf %703, %736 : vector<16x16xf32>
    %c140 = arith.constant 140 : index
    %738 = memref.load %arg1[%c140] : memref<512xf32, #tpu.memory_space<smem>>
    %739 = vector.broadcast %738 : f32 to vector<16x16xf32>
    %740 = arith.mulf %739, %721 : vector<16x16xf32>
    %741 = arith.addf %707, %740 : vector<16x16xf32>
    %c141 = arith.constant 141 : index
    %742 = memref.load %arg1[%c141] : memref<512xf32, #tpu.memory_space<smem>>
    %743 = vector.broadcast %742 : f32 to vector<16x16xf32>
    %744 = arith.mulf %743, %721 : vector<16x16xf32>
    %745 = arith.addf %711, %744 : vector<16x16xf32>
    %c142 = arith.constant 142 : index
    %746 = memref.load %arg1[%c142] : memref<512xf32, #tpu.memory_space<smem>>
    %747 = vector.broadcast %746 : f32 to vector<16x16xf32>
    %748 = arith.mulf %747, %721 : vector<16x16xf32>
    %749 = arith.addf %715, %748 : vector<16x16xf32>
    %c143 = arith.constant 143 : index
    %750 = memref.load %arg1[%c143] : memref<512xf32, #tpu.memory_space<smem>>
    %751 = vector.broadcast %750 : f32 to vector<16x16xf32>
    %752 = arith.mulf %751, %721 : vector<16x16xf32>
    %753 = arith.addf %719, %752 : vector<16x16xf32>
    %c0_131 = arith.constant 0 : index
    %c1_132 = arith.constant 1 : index
    %c1_133 = arith.constant 1 : index
    %c1_134 = arith.constant 1 : index
    %754 = vector.load %arg2[%c0_131, %c1_132, %c1_133, %c1_134] : memref<1x4x18x18xf32, #tpu.memory_space<vmem>>, vector<1x1x16x16xf32>
    %755 = vector.shape_cast %754 : vector<1x1x16x16xf32> to vector<16x16xf32>
    %c168 = arith.constant 168 : index
    %756 = memref.load %arg1[%c168] : memref<512xf32, #tpu.memory_space<smem>>
    %757 = vector.broadcast %756 : f32 to vector<16x16xf32>
    %758 = arith.mulf %757, %755 : vector<16x16xf32>
    %759 = arith.addf %725, %758 : vector<16x16xf32>
    %c169 = arith.constant 169 : index
    %760 = memref.load %arg1[%c169] : memref<512xf32, #tpu.memory_space<smem>>
    %761 = vector.broadcast %760 : f32 to vector<16x16xf32>
    %762 = arith.mulf %761, %755 : vector<16x16xf32>
    %763 = arith.addf %729, %762 : vector<16x16xf32>
    %c170 = arith.constant 170 : index
    %764 = memref.load %arg1[%c170] : memref<512xf32, #tpu.memory_space<smem>>
    %765 = vector.broadcast %764 : f32 to vector<16x16xf32>
    %766 = arith.mulf %765, %755 : vector<16x16xf32>
    %767 = arith.addf %733, %766 : vector<16x16xf32>
    %c171 = arith.constant 171 : index
    %768 = memref.load %arg1[%c171] : memref<512xf32, #tpu.memory_space<smem>>
    %769 = vector.broadcast %768 : f32 to vector<16x16xf32>
    %770 = arith.mulf %769, %755 : vector<16x16xf32>
    %771 = arith.addf %737, %770 : vector<16x16xf32>
    %c172 = arith.constant 172 : index
    %772 = memref.load %arg1[%c172] : memref<512xf32, #tpu.memory_space<smem>>
    %773 = vector.broadcast %772 : f32 to vector<16x16xf32>
    %774 = arith.mulf %773, %755 : vector<16x16xf32>
    %775 = arith.addf %741, %774 : vector<16x16xf32>
    %c173 = arith.constant 173 : index
    %776 = memref.load %arg1[%c173] : memref<512xf32, #tpu.memory_space<smem>>
    %777 = vector.broadcast %776 : f32 to vector<16x16xf32>
    %778 = arith.mulf %777, %755 : vector<16x16xf32>
    %779 = arith.addf %745, %778 : vector<16x16xf32>
    %c174 = arith.constant 174 : index
    %780 = memref.load %arg1[%c174] : memref<512xf32, #tpu.memory_space<smem>>
    %781 = vector.broadcast %780 : f32 to vector<16x16xf32>
    %782 = arith.mulf %781, %755 : vector<16x16xf32>
    %783 = arith.addf %749, %782 : vector<16x16xf32>
    %c175 = arith.constant 175 : index
    %784 = memref.load %arg1[%c175] : memref<512xf32, #tpu.memory_space<smem>>
    %785 = vector.broadcast %784 : f32 to vector<16x16xf32>
    %786 = arith.mulf %785, %755 : vector<16x16xf32>
    %787 = arith.addf %753, %786 : vector<16x16xf32>
    %c0_135 = arith.constant 0 : index
    %c1_136 = arith.constant 1 : index
    %c0_137 = arith.constant 0 : index
    %c2_138 = arith.constant 2 : index
    %788 = vector.load %arg2[%c0_135, %c1_136, %c0_137, %c2_138] : memref<1x4x18x18xf32, #tpu.memory_space<vmem>>, vector<1x1x16x16xf32>
    %789 = vector.shape_cast %788 : vector<1x1x16x16xf32> to vector<16x16xf32>
    %c200 = arith.constant 200 : index
    %790 = memref.load %arg1[%c200] : memref<512xf32, #tpu.memory_space<smem>>
    %791 = vector.broadcast %790 : f32 to vector<16x16xf32>
    %792 = arith.mulf %791, %789 : vector<16x16xf32>
    %793 = arith.addf %759, %792 : vector<16x16xf32>
    %c201 = arith.constant 201 : index
    %794 = memref.load %arg1[%c201] : memref<512xf32, #tpu.memory_space<smem>>
    %795 = vector.broadcast %794 : f32 to vector<16x16xf32>
    %796 = arith.mulf %795, %789 : vector<16x16xf32>
    %797 = arith.addf %763, %796 : vector<16x16xf32>
    %c202 = arith.constant 202 : index
    %798 = memref.load %arg1[%c202] : memref<512xf32, #tpu.memory_space<smem>>
    %799 = vector.broadcast %798 : f32 to vector<16x16xf32>
    %800 = arith.mulf %799, %789 : vector<16x16xf32>
    %801 = arith.addf %767, %800 : vector<16x16xf32>
    %c203 = arith.constant 203 : index
    %802 = memref.load %arg1[%c203] : memref<512xf32, #tpu.memory_space<smem>>
    %803 = vector.broadcast %802 : f32 to vector<16x16xf32>
    %804 = arith.mulf %803, %789 : vector<16x16xf32>
    %805 = arith.addf %771, %804 : vector<16x16xf32>
    %c204 = arith.constant 204 : index
    %806 = memref.load %arg1[%c204] : memref<512xf32, #tpu.memory_space<smem>>
    %807 = vector.broadcast %806 : f32 to vector<16x16xf32>
    %808 = arith.mulf %807, %789 : vector<16x16xf32>
    %809 = arith.addf %775, %808 : vector<16x16xf32>
    %c205 = arith.constant 205 : index
    %810 = memref.load %arg1[%c205] : memref<512xf32, #tpu.memory_space<smem>>
    %811 = vector.broadcast %810 : f32 to vector<16x16xf32>
    %812 = arith.mulf %811, %789 : vector<16x16xf32>
    %813 = arith.addf %779, %812 : vector<16x16xf32>
    %c206 = arith.constant 206 : index
    %814 = memref.load %arg1[%c206] : memref<512xf32, #tpu.memory_space<smem>>
    %815 = vector.broadcast %814 : f32 to vector<16x16xf32>
    %816 = arith.mulf %815, %789 : vector<16x16xf32>
    %817 = arith.addf %783, %816 : vector<16x16xf32>
    %c207 = arith.constant 207 : index
    %818 = memref.load %arg1[%c207] : memref<512xf32, #tpu.memory_space<smem>>
    %819 = vector.broadcast %818 : f32 to vector<16x16xf32>
    %820 = arith.mulf %819, %789 : vector<16x16xf32>
    %821 = arith.addf %787, %820 : vector<16x16xf32>
    %c0_139 = arith.constant 0 : index
    %c1_140 = arith.constant 1 : index
    %c0_141 = arith.constant 0 : index
    %c1_142 = arith.constant 1 : index
    %822 = vector.load %arg2[%c0_139, %c1_140, %c0_141, %c1_142] : memref<1x4x18x18xf32, #tpu.memory_space<vmem>>, vector<1x1x16x16xf32>
    %823 = vector.shape_cast %822 : vector<1x1x16x16xf32> to vector<16x16xf32>
    %c232 = arith.constant 232 : index
    %824 = memref.load %arg1[%c232] : memref<512xf32, #tpu.memory_space<smem>>
    %825 = vector.broadcast %824 : f32 to vector<16x16xf32>
    %826 = arith.mulf %825, %823 : vector<16x16xf32>
    %827 = arith.addf %793, %826 : vector<16x16xf32>
    %c233 = arith.constant 233 : index
    %828 = memref.load %arg1[%c233] : memref<512xf32, #tpu.memory_space<smem>>
    %829 = vector.broadcast %828 : f32 to vector<16x16xf32>
    %830 = arith.mulf %829, %823 : vector<16x16xf32>
    %831 = arith.addf %797, %830 : vector<16x16xf32>
    %c234 = arith.constant 234 : index
    %832 = memref.load %arg1[%c234] : memref<512xf32, #tpu.memory_space<smem>>
    %833 = vector.broadcast %832 : f32 to vector<16x16xf32>
    %834 = arith.mulf %833, %823 : vector<16x16xf32>
    %835 = arith.addf %801, %834 : vector<16x16xf32>
    %c235 = arith.constant 235 : index
    %836 = memref.load %arg1[%c235] : memref<512xf32, #tpu.memory_space<smem>>
    %837 = vector.broadcast %836 : f32 to vector<16x16xf32>
    %838 = arith.mulf %837, %823 : vector<16x16xf32>
    %839 = arith.addf %805, %838 : vector<16x16xf32>
    %c236 = arith.constant 236 : index
    %840 = memref.load %arg1[%c236] : memref<512xf32, #tpu.memory_space<smem>>
    %841 = vector.broadcast %840 : f32 to vector<16x16xf32>
    %842 = arith.mulf %841, %823 : vector<16x16xf32>
    %843 = arith.addf %809, %842 : vector<16x16xf32>
    %c237 = arith.constant 237 : index
    %844 = memref.load %arg1[%c237] : memref<512xf32, #tpu.memory_space<smem>>
    %845 = vector.broadcast %844 : f32 to vector<16x16xf32>
    %846 = arith.mulf %845, %823 : vector<16x16xf32>
    %847 = arith.addf %813, %846 : vector<16x16xf32>
    %c238 = arith.constant 238 : index
    %848 = memref.load %arg1[%c238] : memref<512xf32, #tpu.memory_space<smem>>
    %849 = vector.broadcast %848 : f32 to vector<16x16xf32>
    %850 = arith.mulf %849, %823 : vector<16x16xf32>
    %851 = arith.addf %817, %850 : vector<16x16xf32>
    %c239 = arith.constant 239 : index
    %852 = memref.load %arg1[%c239] : memref<512xf32, #tpu.memory_space<smem>>
    %853 = vector.broadcast %852 : f32 to vector<16x16xf32>
    %854 = arith.mulf %853, %823 : vector<16x16xf32>
    %855 = arith.addf %821, %854 : vector<16x16xf32>
    %c0_143 = arith.constant 0 : index
    %c2_144 = arith.constant 2 : index
    %c1_145 = arith.constant 1 : index
    %c2_146 = arith.constant 2 : index
    %856 = vector.load %arg2[%c0_143, %c2_144, %c1_145, %c2_146] : memref<1x4x18x18xf32, #tpu.memory_space<vmem>>, vector<1x1x16x16xf32>
    %857 = vector.shape_cast %856 : vector<1x1x16x16xf32> to vector<16x16xf32>
    %c144 = arith.constant 144 : index
    %858 = memref.load %arg1[%c144] : memref<512xf32, #tpu.memory_space<smem>>
    %859 = vector.broadcast %858 : f32 to vector<16x16xf32>
    %860 = arith.mulf %859, %857 : vector<16x16xf32>
    %861 = arith.addf %827, %860 : vector<16x16xf32>
    %c145 = arith.constant 145 : index
    %862 = memref.load %arg1[%c145] : memref<512xf32, #tpu.memory_space<smem>>
    %863 = vector.broadcast %862 : f32 to vector<16x16xf32>
    %864 = arith.mulf %863, %857 : vector<16x16xf32>
    %865 = arith.addf %831, %864 : vector<16x16xf32>
    %c146 = arith.constant 146 : index
    %866 = memref.load %arg1[%c146] : memref<512xf32, #tpu.memory_space<smem>>
    %867 = vector.broadcast %866 : f32 to vector<16x16xf32>
    %868 = arith.mulf %867, %857 : vector<16x16xf32>
    %869 = arith.addf %835, %868 : vector<16x16xf32>
    %c147 = arith.constant 147 : index
    %870 = memref.load %arg1[%c147] : memref<512xf32, #tpu.memory_space<smem>>
    %871 = vector.broadcast %870 : f32 to vector<16x16xf32>
    %872 = arith.mulf %871, %857 : vector<16x16xf32>
    %873 = arith.addf %839, %872 : vector<16x16xf32>
    %c148 = arith.constant 148 : index
    %874 = memref.load %arg1[%c148] : memref<512xf32, #tpu.memory_space<smem>>
    %875 = vector.broadcast %874 : f32 to vector<16x16xf32>
    %876 = arith.mulf %875, %857 : vector<16x16xf32>
    %877 = arith.addf %843, %876 : vector<16x16xf32>
    %c149 = arith.constant 149 : index
    %878 = memref.load %arg1[%c149] : memref<512xf32, #tpu.memory_space<smem>>
    %879 = vector.broadcast %878 : f32 to vector<16x16xf32>
    %880 = arith.mulf %879, %857 : vector<16x16xf32>
    %881 = arith.addf %847, %880 : vector<16x16xf32>
    %c150 = arith.constant 150 : index
    %882 = memref.load %arg1[%c150] : memref<512xf32, #tpu.memory_space<smem>>
    %883 = vector.broadcast %882 : f32 to vector<16x16xf32>
    %884 = arith.mulf %883, %857 : vector<16x16xf32>
    %885 = arith.addf %851, %884 : vector<16x16xf32>
    %c151 = arith.constant 151 : index
    %886 = memref.load %arg1[%c151] : memref<512xf32, #tpu.memory_space<smem>>
    %887 = vector.broadcast %886 : f32 to vector<16x16xf32>
    %888 = arith.mulf %887, %857 : vector<16x16xf32>
    %889 = arith.addf %855, %888 : vector<16x16xf32>
    %c0_147 = arith.constant 0 : index
    %c2_148 = arith.constant 2 : index
    %c1_149 = arith.constant 1 : index
    %c1_150 = arith.constant 1 : index
    %890 = vector.load %arg2[%c0_147, %c2_148, %c1_149, %c1_150] : memref<1x4x18x18xf32, #tpu.memory_space<vmem>>, vector<1x1x16x16xf32>
    %891 = vector.shape_cast %890 : vector<1x1x16x16xf32> to vector<16x16xf32>
    %c176 = arith.constant 176 : index
    %892 = memref.load %arg1[%c176] : memref<512xf32, #tpu.memory_space<smem>>
    %893 = vector.broadcast %892 : f32 to vector<16x16xf32>
    %894 = arith.mulf %893, %891 : vector<16x16xf32>
    %895 = arith.addf %861, %894 : vector<16x16xf32>
    %c177 = arith.constant 177 : index
    %896 = memref.load %arg1[%c177] : memref<512xf32, #tpu.memory_space<smem>>
    %897 = vector.broadcast %896 : f32 to vector<16x16xf32>
    %898 = arith.mulf %897, %891 : vector<16x16xf32>
    %899 = arith.addf %865, %898 : vector<16x16xf32>
    %c178 = arith.constant 178 : index
    %900 = memref.load %arg1[%c178] : memref<512xf32, #tpu.memory_space<smem>>
    %901 = vector.broadcast %900 : f32 to vector<16x16xf32>
    %902 = arith.mulf %901, %891 : vector<16x16xf32>
    %903 = arith.addf %869, %902 : vector<16x16xf32>
    %c179 = arith.constant 179 : index
    %904 = memref.load %arg1[%c179] : memref<512xf32, #tpu.memory_space<smem>>
    %905 = vector.broadcast %904 : f32 to vector<16x16xf32>
    %906 = arith.mulf %905, %891 : vector<16x16xf32>
    %907 = arith.addf %873, %906 : vector<16x16xf32>
    %c180 = arith.constant 180 : index
    %908 = memref.load %arg1[%c180] : memref<512xf32, #tpu.memory_space<smem>>
    %909 = vector.broadcast %908 : f32 to vector<16x16xf32>
    %910 = arith.mulf %909, %891 : vector<16x16xf32>
    %911 = arith.addf %877, %910 : vector<16x16xf32>
    %c181 = arith.constant 181 : index
    %912 = memref.load %arg1[%c181] : memref<512xf32, #tpu.memory_space<smem>>
    %913 = vector.broadcast %912 : f32 to vector<16x16xf32>
    %914 = arith.mulf %913, %891 : vector<16x16xf32>
    %915 = arith.addf %881, %914 : vector<16x16xf32>
    %c182 = arith.constant 182 : index
    %916 = memref.load %arg1[%c182] : memref<512xf32, #tpu.memory_space<smem>>
    %917 = vector.broadcast %916 : f32 to vector<16x16xf32>
    %918 = arith.mulf %917, %891 : vector<16x16xf32>
    %919 = arith.addf %885, %918 : vector<16x16xf32>
    %c183 = arith.constant 183 : index
    %920 = memref.load %arg1[%c183] : memref<512xf32, #tpu.memory_space<smem>>
    %921 = vector.broadcast %920 : f32 to vector<16x16xf32>
    %922 = arith.mulf %921, %891 : vector<16x16xf32>
    %923 = arith.addf %889, %922 : vector<16x16xf32>
    %c0_151 = arith.constant 0 : index
    %c2_152 = arith.constant 2 : index
    %c0_153 = arith.constant 0 : index
    %c2_154 = arith.constant 2 : index
    %924 = vector.load %arg2[%c0_151, %c2_152, %c0_153, %c2_154] : memref<1x4x18x18xf32, #tpu.memory_space<vmem>>, vector<1x1x16x16xf32>
    %925 = vector.shape_cast %924 : vector<1x1x16x16xf32> to vector<16x16xf32>
    %c208 = arith.constant 208 : index
    %926 = memref.load %arg1[%c208] : memref<512xf32, #tpu.memory_space<smem>>
    %927 = vector.broadcast %926 : f32 to vector<16x16xf32>
    %928 = arith.mulf %927, %925 : vector<16x16xf32>
    %929 = arith.addf %895, %928 : vector<16x16xf32>
    %c209 = arith.constant 209 : index
    %930 = memref.load %arg1[%c209] : memref<512xf32, #tpu.memory_space<smem>>
    %931 = vector.broadcast %930 : f32 to vector<16x16xf32>
    %932 = arith.mulf %931, %925 : vector<16x16xf32>
    %933 = arith.addf %899, %932 : vector<16x16xf32>
    %c210 = arith.constant 210 : index
    %934 = memref.load %arg1[%c210] : memref<512xf32, #tpu.memory_space<smem>>
    %935 = vector.broadcast %934 : f32 to vector<16x16xf32>
    %936 = arith.mulf %935, %925 : vector<16x16xf32>
    %937 = arith.addf %903, %936 : vector<16x16xf32>
    %c211 = arith.constant 211 : index
    %938 = memref.load %arg1[%c211] : memref<512xf32, #tpu.memory_space<smem>>
    %939 = vector.broadcast %938 : f32 to vector<16x16xf32>
    %940 = arith.mulf %939, %925 : vector<16x16xf32>
    %941 = arith.addf %907, %940 : vector<16x16xf32>
    %c212 = arith.constant 212 : index
    %942 = memref.load %arg1[%c212] : memref<512xf32, #tpu.memory_space<smem>>
    %943 = vector.broadcast %942 : f32 to vector<16x16xf32>
    %944 = arith.mulf %943, %925 : vector<16x16xf32>
    %945 = arith.addf %911, %944 : vector<16x16xf32>
    %c213 = arith.constant 213 : index
    %946 = memref.load %arg1[%c213] : memref<512xf32, #tpu.memory_space<smem>>
    %947 = vector.broadcast %946 : f32 to vector<16x16xf32>
    %948 = arith.mulf %947, %925 : vector<16x16xf32>
    %949 = arith.addf %915, %948 : vector<16x16xf32>
    %c214 = arith.constant 214 : index
    %950 = memref.load %arg1[%c214] : memref<512xf32, #tpu.memory_space<smem>>
    %951 = vector.broadcast %950 : f32 to vector<16x16xf32>
    %952 = arith.mulf %951, %925 : vector<16x16xf32>
    %953 = arith.addf %919, %952 : vector<16x16xf32>
    %c215 = arith.constant 215 : index
    %954 = memref.load %arg1[%c215] : memref<512xf32, #tpu.memory_space<smem>>
    %955 = vector.broadcast %954 : f32 to vector<16x16xf32>
    %956 = arith.mulf %955, %925 : vector<16x16xf32>
    %957 = arith.addf %923, %956 : vector<16x16xf32>
    %c0_155 = arith.constant 0 : index
    %c2_156 = arith.constant 2 : index
    %c0_157 = arith.constant 0 : index
    %c1_158 = arith.constant 1 : index
    %958 = vector.load %arg2[%c0_155, %c2_156, %c0_157, %c1_158] : memref<1x4x18x18xf32, #tpu.memory_space<vmem>>, vector<1x1x16x16xf32>
    %959 = vector.shape_cast %958 : vector<1x1x16x16xf32> to vector<16x16xf32>
    %c240 = arith.constant 240 : index
    %960 = memref.load %arg1[%c240] : memref<512xf32, #tpu.memory_space<smem>>
    %961 = vector.broadcast %960 : f32 to vector<16x16xf32>
    %962 = arith.mulf %961, %959 : vector<16x16xf32>
    %963 = arith.addf %929, %962 : vector<16x16xf32>
    %c241 = arith.constant 241 : index
    %964 = memref.load %arg1[%c241] : memref<512xf32, #tpu.memory_space<smem>>
    %965 = vector.broadcast %964 : f32 to vector<16x16xf32>
    %966 = arith.mulf %965, %959 : vector<16x16xf32>
    %967 = arith.addf %933, %966 : vector<16x16xf32>
    %c242 = arith.constant 242 : index
    %968 = memref.load %arg1[%c242] : memref<512xf32, #tpu.memory_space<smem>>
    %969 = vector.broadcast %968 : f32 to vector<16x16xf32>
    %970 = arith.mulf %969, %959 : vector<16x16xf32>
    %971 = arith.addf %937, %970 : vector<16x16xf32>
    %c243 = arith.constant 243 : index
    %972 = memref.load %arg1[%c243] : memref<512xf32, #tpu.memory_space<smem>>
    %973 = vector.broadcast %972 : f32 to vector<16x16xf32>
    %974 = arith.mulf %973, %959 : vector<16x16xf32>
    %975 = arith.addf %941, %974 : vector<16x16xf32>
    %c244 = arith.constant 244 : index
    %976 = memref.load %arg1[%c244] : memref<512xf32, #tpu.memory_space<smem>>
    %977 = vector.broadcast %976 : f32 to vector<16x16xf32>
    %978 = arith.mulf %977, %959 : vector<16x16xf32>
    %979 = arith.addf %945, %978 : vector<16x16xf32>
    %c245 = arith.constant 245 : index
    %980 = memref.load %arg1[%c245] : memref<512xf32, #tpu.memory_space<smem>>
    %981 = vector.broadcast %980 : f32 to vector<16x16xf32>
    %982 = arith.mulf %981, %959 : vector<16x16xf32>
    %983 = arith.addf %949, %982 : vector<16x16xf32>
    %c246 = arith.constant 246 : index
    %984 = memref.load %arg1[%c246] : memref<512xf32, #tpu.memory_space<smem>>
    %985 = vector.broadcast %984 : f32 to vector<16x16xf32>
    %986 = arith.mulf %985, %959 : vector<16x16xf32>
    %987 = arith.addf %953, %986 : vector<16x16xf32>
    %c247 = arith.constant 247 : index
    %988 = memref.load %arg1[%c247] : memref<512xf32, #tpu.memory_space<smem>>
    %989 = vector.broadcast %988 : f32 to vector<16x16xf32>
    %990 = arith.mulf %989, %959 : vector<16x16xf32>
    %991 = arith.addf %957, %990 : vector<16x16xf32>
    %c0_159 = arith.constant 0 : index
    %c3_160 = arith.constant 3 : index
    %c1_161 = arith.constant 1 : index
    %c2_162 = arith.constant 2 : index
    %992 = vector.load %arg2[%c0_159, %c3_160, %c1_161, %c2_162] : memref<1x4x18x18xf32, #tpu.memory_space<vmem>>, vector<1x1x16x16xf32>
    %993 = vector.shape_cast %992 : vector<1x1x16x16xf32> to vector<16x16xf32>
    %c152 = arith.constant 152 : index
    %994 = memref.load %arg1[%c152] : memref<512xf32, #tpu.memory_space<smem>>
    %995 = vector.broadcast %994 : f32 to vector<16x16xf32>
    %996 = arith.mulf %995, %993 : vector<16x16xf32>
    %997 = arith.addf %963, %996 : vector<16x16xf32>
    %c153 = arith.constant 153 : index
    %998 = memref.load %arg1[%c153] : memref<512xf32, #tpu.memory_space<smem>>
    %999 = vector.broadcast %998 : f32 to vector<16x16xf32>
    %1000 = arith.mulf %999, %993 : vector<16x16xf32>
    %1001 = arith.addf %967, %1000 : vector<16x16xf32>
    %c154 = arith.constant 154 : index
    %1002 = memref.load %arg1[%c154] : memref<512xf32, #tpu.memory_space<smem>>
    %1003 = vector.broadcast %1002 : f32 to vector<16x16xf32>
    %1004 = arith.mulf %1003, %993 : vector<16x16xf32>
    %1005 = arith.addf %971, %1004 : vector<16x16xf32>
    %c155 = arith.constant 155 : index
    %1006 = memref.load %arg1[%c155] : memref<512xf32, #tpu.memory_space<smem>>
    %1007 = vector.broadcast %1006 : f32 to vector<16x16xf32>
    %1008 = arith.mulf %1007, %993 : vector<16x16xf32>
    %1009 = arith.addf %975, %1008 : vector<16x16xf32>
    %c156 = arith.constant 156 : index
    %1010 = memref.load %arg1[%c156] : memref<512xf32, #tpu.memory_space<smem>>
    %1011 = vector.broadcast %1010 : f32 to vector<16x16xf32>
    %1012 = arith.mulf %1011, %993 : vector<16x16xf32>
    %1013 = arith.addf %979, %1012 : vector<16x16xf32>
    %c157 = arith.constant 157 : index
    %1014 = memref.load %arg1[%c157] : memref<512xf32, #tpu.memory_space<smem>>
    %1015 = vector.broadcast %1014 : f32 to vector<16x16xf32>
    %1016 = arith.mulf %1015, %993 : vector<16x16xf32>
    %1017 = arith.addf %983, %1016 : vector<16x16xf32>
    %c158 = arith.constant 158 : index
    %1018 = memref.load %arg1[%c158] : memref<512xf32, #tpu.memory_space<smem>>
    %1019 = vector.broadcast %1018 : f32 to vector<16x16xf32>
    %1020 = arith.mulf %1019, %993 : vector<16x16xf32>
    %1021 = arith.addf %987, %1020 : vector<16x16xf32>
    %c159 = arith.constant 159 : index
    %1022 = memref.load %arg1[%c159] : memref<512xf32, #tpu.memory_space<smem>>
    %1023 = vector.broadcast %1022 : f32 to vector<16x16xf32>
    %1024 = arith.mulf %1023, %993 : vector<16x16xf32>
    %1025 = arith.addf %991, %1024 : vector<16x16xf32>
    %c0_163 = arith.constant 0 : index
    %c3_164 = arith.constant 3 : index
    %c1_165 = arith.constant 1 : index
    %c1_166 = arith.constant 1 : index
    %1026 = vector.load %arg2[%c0_163, %c3_164, %c1_165, %c1_166] : memref<1x4x18x18xf32, #tpu.memory_space<vmem>>, vector<1x1x16x16xf32>
    %1027 = vector.shape_cast %1026 : vector<1x1x16x16xf32> to vector<16x16xf32>
    %c184 = arith.constant 184 : index
    %1028 = memref.load %arg1[%c184] : memref<512xf32, #tpu.memory_space<smem>>
    %1029 = vector.broadcast %1028 : f32 to vector<16x16xf32>
    %1030 = arith.mulf %1029, %1027 : vector<16x16xf32>
    %1031 = arith.addf %997, %1030 : vector<16x16xf32>
    %c185 = arith.constant 185 : index
    %1032 = memref.load %arg1[%c185] : memref<512xf32, #tpu.memory_space<smem>>
    %1033 = vector.broadcast %1032 : f32 to vector<16x16xf32>
    %1034 = arith.mulf %1033, %1027 : vector<16x16xf32>
    %1035 = arith.addf %1001, %1034 : vector<16x16xf32>
    %c186 = arith.constant 186 : index
    %1036 = memref.load %arg1[%c186] : memref<512xf32, #tpu.memory_space<smem>>
    %1037 = vector.broadcast %1036 : f32 to vector<16x16xf32>
    %1038 = arith.mulf %1037, %1027 : vector<16x16xf32>
    %1039 = arith.addf %1005, %1038 : vector<16x16xf32>
    %c187 = arith.constant 187 : index
    %1040 = memref.load %arg1[%c187] : memref<512xf32, #tpu.memory_space<smem>>
    %1041 = vector.broadcast %1040 : f32 to vector<16x16xf32>
    %1042 = arith.mulf %1041, %1027 : vector<16x16xf32>
    %1043 = arith.addf %1009, %1042 : vector<16x16xf32>
    %c188 = arith.constant 188 : index
    %1044 = memref.load %arg1[%c188] : memref<512xf32, #tpu.memory_space<smem>>
    %1045 = vector.broadcast %1044 : f32 to vector<16x16xf32>
    %1046 = arith.mulf %1045, %1027 : vector<16x16xf32>
    %1047 = arith.addf %1013, %1046 : vector<16x16xf32>
    %c189 = arith.constant 189 : index
    %1048 = memref.load %arg1[%c189] : memref<512xf32, #tpu.memory_space<smem>>
    %1049 = vector.broadcast %1048 : f32 to vector<16x16xf32>
    %1050 = arith.mulf %1049, %1027 : vector<16x16xf32>
    %1051 = arith.addf %1017, %1050 : vector<16x16xf32>
    %c190 = arith.constant 190 : index
    %1052 = memref.load %arg1[%c190] : memref<512xf32, #tpu.memory_space<smem>>
    %1053 = vector.broadcast %1052 : f32 to vector<16x16xf32>
    %1054 = arith.mulf %1053, %1027 : vector<16x16xf32>
    %1055 = arith.addf %1021, %1054 : vector<16x16xf32>
    %c191 = arith.constant 191 : index
    %1056 = memref.load %arg1[%c191] : memref<512xf32, #tpu.memory_space<smem>>
    %1057 = vector.broadcast %1056 : f32 to vector<16x16xf32>
    %1058 = arith.mulf %1057, %1027 : vector<16x16xf32>
    %1059 = arith.addf %1025, %1058 : vector<16x16xf32>
    %c0_167 = arith.constant 0 : index
    %c3_168 = arith.constant 3 : index
    %c0_169 = arith.constant 0 : index
    %c2_170 = arith.constant 2 : index
    %1060 = vector.load %arg2[%c0_167, %c3_168, %c0_169, %c2_170] : memref<1x4x18x18xf32, #tpu.memory_space<vmem>>, vector<1x1x16x16xf32>
    %1061 = vector.shape_cast %1060 : vector<1x1x16x16xf32> to vector<16x16xf32>
    %c216 = arith.constant 216 : index
    %1062 = memref.load %arg1[%c216] : memref<512xf32, #tpu.memory_space<smem>>
    %1063 = vector.broadcast %1062 : f32 to vector<16x16xf32>
    %1064 = arith.mulf %1063, %1061 : vector<16x16xf32>
    %1065 = arith.addf %1031, %1064 : vector<16x16xf32>
    %c217 = arith.constant 217 : index
    %1066 = memref.load %arg1[%c217] : memref<512xf32, #tpu.memory_space<smem>>
    %1067 = vector.broadcast %1066 : f32 to vector<16x16xf32>
    %1068 = arith.mulf %1067, %1061 : vector<16x16xf32>
    %1069 = arith.addf %1035, %1068 : vector<16x16xf32>
    %c218 = arith.constant 218 : index
    %1070 = memref.load %arg1[%c218] : memref<512xf32, #tpu.memory_space<smem>>
    %1071 = vector.broadcast %1070 : f32 to vector<16x16xf32>
    %1072 = arith.mulf %1071, %1061 : vector<16x16xf32>
    %1073 = arith.addf %1039, %1072 : vector<16x16xf32>
    %c219 = arith.constant 219 : index
    %1074 = memref.load %arg1[%c219] : memref<512xf32, #tpu.memory_space<smem>>
    %1075 = vector.broadcast %1074 : f32 to vector<16x16xf32>
    %1076 = arith.mulf %1075, %1061 : vector<16x16xf32>
    %1077 = arith.addf %1043, %1076 : vector<16x16xf32>
    %c220 = arith.constant 220 : index
    %1078 = memref.load %arg1[%c220] : memref<512xf32, #tpu.memory_space<smem>>
    %1079 = vector.broadcast %1078 : f32 to vector<16x16xf32>
    %1080 = arith.mulf %1079, %1061 : vector<16x16xf32>
    %1081 = arith.addf %1047, %1080 : vector<16x16xf32>
    %c221 = arith.constant 221 : index
    %1082 = memref.load %arg1[%c221] : memref<512xf32, #tpu.memory_space<smem>>
    %1083 = vector.broadcast %1082 : f32 to vector<16x16xf32>
    %1084 = arith.mulf %1083, %1061 : vector<16x16xf32>
    %1085 = arith.addf %1051, %1084 : vector<16x16xf32>
    %c222 = arith.constant 222 : index
    %1086 = memref.load %arg1[%c222] : memref<512xf32, #tpu.memory_space<smem>>
    %1087 = vector.broadcast %1086 : f32 to vector<16x16xf32>
    %1088 = arith.mulf %1087, %1061 : vector<16x16xf32>
    %1089 = arith.addf %1055, %1088 : vector<16x16xf32>
    %c223 = arith.constant 223 : index
    %1090 = memref.load %arg1[%c223] : memref<512xf32, #tpu.memory_space<smem>>
    %1091 = vector.broadcast %1090 : f32 to vector<16x16xf32>
    %1092 = arith.mulf %1091, %1061 : vector<16x16xf32>
    %1093 = arith.addf %1059, %1092 : vector<16x16xf32>
    %c0_171 = arith.constant 0 : index
    %c3_172 = arith.constant 3 : index
    %c0_173 = arith.constant 0 : index
    %c1_174 = arith.constant 1 : index
    %1094 = vector.load %arg2[%c0_171, %c3_172, %c0_173, %c1_174] : memref<1x4x18x18xf32, #tpu.memory_space<vmem>>, vector<1x1x16x16xf32>
    %1095 = vector.shape_cast %1094 : vector<1x1x16x16xf32> to vector<16x16xf32>
    %c248 = arith.constant 248 : index
    %1096 = memref.load %arg1[%c248] : memref<512xf32, #tpu.memory_space<smem>>
    %1097 = vector.broadcast %1096 : f32 to vector<16x16xf32>
    %1098 = arith.mulf %1097, %1095 : vector<16x16xf32>
    %1099 = arith.addf %1065, %1098 : vector<16x16xf32>
    %c249 = arith.constant 249 : index
    %1100 = memref.load %arg1[%c249] : memref<512xf32, #tpu.memory_space<smem>>
    %1101 = vector.broadcast %1100 : f32 to vector<16x16xf32>
    %1102 = arith.mulf %1101, %1095 : vector<16x16xf32>
    %1103 = arith.addf %1069, %1102 : vector<16x16xf32>
    %c250 = arith.constant 250 : index
    %1104 = memref.load %arg1[%c250] : memref<512xf32, #tpu.memory_space<smem>>
    %1105 = vector.broadcast %1104 : f32 to vector<16x16xf32>
    %1106 = arith.mulf %1105, %1095 : vector<16x16xf32>
    %1107 = arith.addf %1073, %1106 : vector<16x16xf32>
    %c251 = arith.constant 251 : index
    %1108 = memref.load %arg1[%c251] : memref<512xf32, #tpu.memory_space<smem>>
    %1109 = vector.broadcast %1108 : f32 to vector<16x16xf32>
    %1110 = arith.mulf %1109, %1095 : vector<16x16xf32>
    %1111 = arith.addf %1077, %1110 : vector<16x16xf32>
    %c252 = arith.constant 252 : index
    %1112 = memref.load %arg1[%c252] : memref<512xf32, #tpu.memory_space<smem>>
    %1113 = vector.broadcast %1112 : f32 to vector<16x16xf32>
    %1114 = arith.mulf %1113, %1095 : vector<16x16xf32>
    %1115 = arith.addf %1081, %1114 : vector<16x16xf32>
    %c253 = arith.constant 253 : index
    %1116 = memref.load %arg1[%c253] : memref<512xf32, #tpu.memory_space<smem>>
    %1117 = vector.broadcast %1116 : f32 to vector<16x16xf32>
    %1118 = arith.mulf %1117, %1095 : vector<16x16xf32>
    %1119 = arith.addf %1085, %1118 : vector<16x16xf32>
    %c254 = arith.constant 254 : index
    %1120 = memref.load %arg1[%c254] : memref<512xf32, #tpu.memory_space<smem>>
    %1121 = vector.broadcast %1120 : f32 to vector<16x16xf32>
    %1122 = arith.mulf %1121, %1095 : vector<16x16xf32>
    %1123 = arith.addf %1089, %1122 : vector<16x16xf32>
    %c255 = arith.constant 255 : index
    %1124 = memref.load %arg1[%c255] : memref<512xf32, #tpu.memory_space<smem>>
    %1125 = vector.broadcast %1124 : f32 to vector<16x16xf32>
    %1126 = arith.mulf %1125, %1095 : vector<16x16xf32>
    %1127 = arith.addf %1093, %1126 : vector<16x16xf32>
    %c0_175 = arith.constant 0 : index
    %c0_176 = arith.constant 0 : index
    %c0_177 = arith.constant 0 : index
    %c16_178 = arith.constant 16 : index
    %1128 = vector.load %arg3[%c0_175, %c0_176, %c0_177, %c16_178] : memref<1x8x16x64xf32, #tpu.memory_space<vmem>>, vector<1x1x16x16xf32>
    %1129 = vector.shape_cast %1128 : vector<1x1x16x16xf32> to vector<16x16xf32>
    %1130 = vector.shape_cast %1099 : vector<16x16xf32> to vector<1x1x16x16xf32>
    tpu.vector_store %arg3[%c0_175, %c0_176, %c0_177, %c16_178], %1130 {strides = array<i32>} : memref<1x8x16x64xf32, #tpu.memory_space<vmem>>, vector<1x1x16x16xf32>,
    %c0_179 = arith.constant 0 : index
    %c1_180 = arith.constant 1 : index
    %c0_181 = arith.constant 0 : index
    %c16_182 = arith.constant 16 : index
    %1131 = vector.load %arg3[%c0_179, %c1_180, %c0_181, %c16_182] : memref<1x8x16x64xf32, #tpu.memory_space<vmem>>, vector<1x1x16x16xf32>
    %1132 = vector.shape_cast %1131 : vector<1x1x16x16xf32> to vector<16x16xf32>
    %1133 = vector.shape_cast %1103 : vector<16x16xf32> to vector<1x1x16x16xf32>
    tpu.vector_store %arg3[%c0_179, %c1_180, %c0_181, %c16_182], %1133 {strides = array<i32>} : memref<1x8x16x64xf32, #tpu.memory_space<vmem>>, vector<1x1x16x16xf32>,
    %c0_183 = arith.constant 0 : index
    %c2_184 = arith.constant 2 : index
    %c0_185 = arith.constant 0 : index
    %c16_186 = arith.constant 16 : index
    %1134 = vector.load %arg3[%c0_183, %c2_184, %c0_185, %c16_186] : memref<1x8x16x64xf32, #tpu.memory_space<vmem>>, vector<1x1x16x16xf32>
    %1135 = vector.shape_cast %1134 : vector<1x1x16x16xf32> to vector<16x16xf32>
    %1136 = vector.shape_cast %1107 : vector<16x16xf32> to vector<1x1x16x16xf32>
    tpu.vector_store %arg3[%c0_183, %c2_184, %c0_185, %c16_186], %1136 {strides = array<i32>} : memref<1x8x16x64xf32, #tpu.memory_space<vmem>>, vector<1x1x16x16xf32>,
    %c0_187 = arith.constant 0 : index
    %c3_188 = arith.constant 3 : index
    %c0_189 = arith.constant 0 : index
    %c16_190 = arith.constant 16 : index
    %1137 = vector.load %arg3[%c0_187, %c3_188, %c0_189, %c16_190] : memref<1x8x16x64xf32, #tpu.memory_space<vmem>>, vector<1x1x16x16xf32>
    %1138 = vector.shape_cast %1137 : vector<1x1x16x16xf32> to vector<16x16xf32>
    %1139 = vector.shape_cast %1111 : vector<16x16xf32> to vector<1x1x16x16xf32>
    tpu.vector_store %arg3[%c0_187, %c3_188, %c0_189, %c16_190], %1139 {strides = array<i32>} : memref<1x8x16x64xf32, #tpu.memory_space<vmem>>, vector<1x1x16x16xf32>,
    %c0_191 = arith.constant 0 : index
    %c4_192 = arith.constant 4 : index
    %c0_193 = arith.constant 0 : index
    %c16_194 = arith.constant 16 : index
    %1140 = vector.load %arg3[%c0_191, %c4_192, %c0_193, %c16_194] : memref<1x8x16x64xf32, #tpu.memory_space<vmem>>, vector<1x1x16x16xf32>
    %1141 = vector.shape_cast %1140 : vector<1x1x16x16xf32> to vector<16x16xf32>
    %1142 = vector.shape_cast %1115 : vector<16x16xf32> to vector<1x1x16x16xf32>
    tpu.vector_store %arg3[%c0_191, %c4_192, %c0_193, %c16_194], %1142 {strides = array<i32>} : memref<1x8x16x64xf32, #tpu.memory_space<vmem>>, vector<1x1x16x16xf32>,
    %c0_195 = arith.constant 0 : index
    %c5_196 = arith.constant 5 : index
    %c0_197 = arith.constant 0 : index
    %c16_198 = arith.constant 16 : index
    %1143 = vector.load %arg3[%c0_195, %c5_196, %c0_197, %c16_198] : memref<1x8x16x64xf32, #tpu.memory_space<vmem>>, vector<1x1x16x16xf32>
    %1144 = vector.shape_cast %1143 : vector<1x1x16x16xf32> to vector<16x16xf32>
    %1145 = vector.shape_cast %1119 : vector<16x16xf32> to vector<1x1x16x16xf32>
    tpu.vector_store %arg3[%c0_195, %c5_196, %c0_197, %c16_198], %1145 {strides = array<i32>} : memref<1x8x16x64xf32, #tpu.memory_space<vmem>>, vector<1x1x16x16xf32>,
    %c0_199 = arith.constant 0 : index
    %c6_200 = arith.constant 6 : index
    %c0_201 = arith.constant 0 : index
    %c16_202 = arith.constant 16 : index
    %1146 = vector.load %arg3[%c0_199, %c6_200, %c0_201, %c16_202] : memref<1x8x16x64xf32, #tpu.memory_space<vmem>>, vector<1x1x16x16xf32>
    %1147 = vector.shape_cast %1146 : vector<1x1x16x16xf32> to vector<16x16xf32>
    %1148 = vector.shape_cast %1123 : vector<16x16xf32> to vector<1x1x16x16xf32>
    tpu.vector_store %arg3[%c0_199, %c6_200, %c0_201, %c16_202], %1148 {strides = array<i32>} : memref<1x8x16x64xf32, #tpu.memory_space<vmem>>, vector<1x1x16x16xf32>,
    %c0_203 = arith.constant 0 : index
    %c7_204 = arith.constant 7 : index
    %c0_205 = arith.constant 0 : index
    %c16_206 = arith.constant 16 : index
    %1149 = vector.load %arg3[%c0_203, %c7_204, %c0_205, %c16_206] : memref<1x8x16x64xf32, #tpu.memory_space<vmem>>, vector<1x1x16x16xf32>
    %1150 = vector.shape_cast %1149 : vector<1x1x16x16xf32> to vector<16x16xf32>
    %1151 = vector.shape_cast %1127 : vector<16x16xf32> to vector<1x1x16x16xf32>
    tpu.vector_store %arg3[%c0_203, %c7_204, %c0_205, %c16_206], %1151 {strides = array<i32>} : memref<1x8x16x64xf32, #tpu.memory_space<vmem>>, vector<1x1x16x16xf32>,
    %cst_207 = arith.constant 0.000000e+00 : f32
    %1152 = vector.broadcast %cst_207 : f32 to vector<16x16xf32>
    %cst_208 = arith.constant 0.000000e+00 : f32
    %1153 = vector.broadcast %cst_208 : f32 to vector<16x16xf32>
    %cst_209 = arith.constant 0.000000e+00 : f32
    %1154 = vector.broadcast %cst_209 : f32 to vector<16x16xf32>
    %cst_210 = arith.constant 0.000000e+00 : f32
    %1155 = vector.broadcast %cst_210 : f32 to vector<16x16xf32>
    %cst_211 = arith.constant 0.000000e+00 : f32
    %1156 = vector.broadcast %cst_211 : f32 to vector<16x16xf32>
    %cst_212 = arith.constant 0.000000e+00 : f32
    %1157 = vector.broadcast %cst_212 : f32 to vector<16x16xf32>
    %cst_213 = arith.constant 0.000000e+00 : f32
    %1158 = vector.broadcast %cst_213 : f32 to vector<16x16xf32>
    %cst_214 = arith.constant 0.000000e+00 : f32
    %1159 = vector.broadcast %cst_214 : f32 to vector<16x16xf32>
    %c0_215 = arith.constant 0 : index
    %c0_216 = arith.constant 0 : index
    %c2_217 = arith.constant 2 : index
    %c1_218 = arith.constant 1 : index
    %1160 = vector.load %arg2[%c0_215, %c0_216, %c2_217, %c1_218] : memref<1x4x18x18xf32, #tpu.memory_space<vmem>>, vector<1x1x16x16xf32>
    %1161 = vector.shape_cast %1160 : vector<1x1x16x16xf32> to vector<16x16xf32>
    %c256 = arith.constant 256 : index
    %1162 = memref.load %arg1[%c256] : memref<512xf32, #tpu.memory_space<smem>>
    %1163 = vector.broadcast %1162 : f32 to vector<16x16xf32>
    %1164 = arith.mulf %1163, %1161 : vector<16x16xf32>
    %1165 = arith.addf %1152, %1164 : vector<16x16xf32>
    %c257 = arith.constant 257 : index
    %1166 = memref.load %arg1[%c257] : memref<512xf32, #tpu.memory_space<smem>>
    %1167 = vector.broadcast %1166 : f32 to vector<16x16xf32>
    %1168 = arith.mulf %1167, %1161 : vector<16x16xf32>
    %1169 = arith.addf %1153, %1168 : vector<16x16xf32>
    %c258 = arith.constant 258 : index
    %1170 = memref.load %arg1[%c258] : memref<512xf32, #tpu.memory_space<smem>>
    %1171 = vector.broadcast %1170 : f32 to vector<16x16xf32>
    %1172 = arith.mulf %1171, %1161 : vector<16x16xf32>
    %1173 = arith.addf %1154, %1172 : vector<16x16xf32>
    %c259 = arith.constant 259 : index
    %1174 = memref.load %arg1[%c259] : memref<512xf32, #tpu.memory_space<smem>>
    %1175 = vector.broadcast %1174 : f32 to vector<16x16xf32>
    %1176 = arith.mulf %1175, %1161 : vector<16x16xf32>
    %1177 = arith.addf %1155, %1176 : vector<16x16xf32>
    %c260 = arith.constant 260 : index
    %1178 = memref.load %arg1[%c260] : memref<512xf32, #tpu.memory_space<smem>>
    %1179 = vector.broadcast %1178 : f32 to vector<16x16xf32>
    %1180 = arith.mulf %1179, %1161 : vector<16x16xf32>
    %1181 = arith.addf %1156, %1180 : vector<16x16xf32>
    %c261 = arith.constant 261 : index
    %1182 = memref.load %arg1[%c261] : memref<512xf32, #tpu.memory_space<smem>>
    %1183 = vector.broadcast %1182 : f32 to vector<16x16xf32>
    %1184 = arith.mulf %1183, %1161 : vector<16x16xf32>
    %1185 = arith.addf %1157, %1184 : vector<16x16xf32>
    %c262 = arith.constant 262 : index
    %1186 = memref.load %arg1[%c262] : memref<512xf32, #tpu.memory_space<smem>>
    %1187 = vector.broadcast %1186 : f32 to vector<16x16xf32>
    %1188 = arith.mulf %1187, %1161 : vector<16x16xf32>
    %1189 = arith.addf %1158, %1188 : vector<16x16xf32>
    %c263 = arith.constant 263 : index
    %1190 = memref.load %arg1[%c263] : memref<512xf32, #tpu.memory_space<smem>>
    %1191 = vector.broadcast %1190 : f32 to vector<16x16xf32>
    %1192 = arith.mulf %1191, %1161 : vector<16x16xf32>
    %1193 = arith.addf %1159, %1192 : vector<16x16xf32>
    %c0_219 = arith.constant 0 : index
    %c0_220 = arith.constant 0 : index
    %c2_221 = arith.constant 2 : index
    %c0_222 = arith.constant 0 : index
    %1194 = vector.load %arg2[%c0_219, %c0_220, %c2_221, %c0_222] : memref<1x4x18x18xf32, #tpu.memory_space<vmem>>, vector<1x1x16x16xf32>
    %1195 = vector.shape_cast %1194 : vector<1x1x16x16xf32> to vector<16x16xf32>
    %c288 = arith.constant 288 : index
    %1196 = memref.load %arg1[%c288] : memref<512xf32, #tpu.memory_space<smem>>
    %1197 = vector.broadcast %1196 : f32 to vector<16x16xf32>
    %1198 = arith.mulf %1197, %1195 : vector<16x16xf32>
    %1199 = arith.addf %1165, %1198 : vector<16x16xf32>
    %c289 = arith.constant 289 : index
    %1200 = memref.load %arg1[%c289] : memref<512xf32, #tpu.memory_space<smem>>
    %1201 = vector.broadcast %1200 : f32 to vector<16x16xf32>
    %1202 = arith.mulf %1201, %1195 : vector<16x16xf32>
    %1203 = arith.addf %1169, %1202 : vector<16x16xf32>
    %c290 = arith.constant 290 : index
    %1204 = memref.load %arg1[%c290] : memref<512xf32, #tpu.memory_space<smem>>
    %1205 = vector.broadcast %1204 : f32 to vector<16x16xf32>
    %1206 = arith.mulf %1205, %1195 : vector<16x16xf32>
    %1207 = arith.addf %1173, %1206 : vector<16x16xf32>
    %c291 = arith.constant 291 : index
    %1208 = memref.load %arg1[%c291] : memref<512xf32, #tpu.memory_space<smem>>
    %1209 = vector.broadcast %1208 : f32 to vector<16x16xf32>
    %1210 = arith.mulf %1209, %1195 : vector<16x16xf32>
    %1211 = arith.addf %1177, %1210 : vector<16x16xf32>
    %c292 = arith.constant 292 : index
    %1212 = memref.load %arg1[%c292] : memref<512xf32, #tpu.memory_space<smem>>
    %1213 = vector.broadcast %1212 : f32 to vector<16x16xf32>
    %1214 = arith.mulf %1213, %1195 : vector<16x16xf32>
    %1215 = arith.addf %1181, %1214 : vector<16x16xf32>
    %c293 = arith.constant 293 : index
    %1216 = memref.load %arg1[%c293] : memref<512xf32, #tpu.memory_space<smem>>
    %1217 = vector.broadcast %1216 : f32 to vector<16x16xf32>
    %1218 = arith.mulf %1217, %1195 : vector<16x16xf32>
    %1219 = arith.addf %1185, %1218 : vector<16x16xf32>
    %c294 = arith.constant 294 : index
    %1220 = memref.load %arg1[%c294] : memref<512xf32, #tpu.memory_space<smem>>
    %1221 = vector.broadcast %1220 : f32 to vector<16x16xf32>
    %1222 = arith.mulf %1221, %1195 : vector<16x16xf32>
    %1223 = arith.addf %1189, %1222 : vector<16x16xf32>
    %c295 = arith.constant 295 : index
    %1224 = memref.load %arg1[%c295] : memref<512xf32, #tpu.memory_space<smem>>
    %1225 = vector.broadcast %1224 : f32 to vector<16x16xf32>
    %1226 = arith.mulf %1225, %1195 : vector<16x16xf32>
    %1227 = arith.addf %1193, %1226 : vector<16x16xf32>
    %c0_223 = arith.constant 0 : index
    %c0_224 = arith.constant 0 : index
    %c1_225 = arith.constant 1 : index
    %c1_226 = arith.constant 1 : index
    %1228 = vector.load %arg2[%c0_223, %c0_224, %c1_225, %c1_226] : memref<1x4x18x18xf32, #tpu.memory_space<vmem>>, vector<1x1x16x16xf32>
    %1229 = vector.shape_cast %1228 : vector<1x1x16x16xf32> to vector<16x16xf32>
    %c320 = arith.constant 320 : index
    %1230 = memref.load %arg1[%c320] : memref<512xf32, #tpu.memory_space<smem>>
    %1231 = vector.broadcast %1230 : f32 to vector<16x16xf32>
    %1232 = arith.mulf %1231, %1229 : vector<16x16xf32>
    %1233 = arith.addf %1199, %1232 : vector<16x16xf32>
    %c321 = arith.constant 321 : index
    %1234 = memref.load %arg1[%c321] : memref<512xf32, #tpu.memory_space<smem>>
    %1235 = vector.broadcast %1234 : f32 to vector<16x16xf32>
    %1236 = arith.mulf %1235, %1229 : vector<16x16xf32>
    %1237 = arith.addf %1203, %1236 : vector<16x16xf32>
    %c322 = arith.constant 322 : index
    %1238 = memref.load %arg1[%c322] : memref<512xf32, #tpu.memory_space<smem>>
    %1239 = vector.broadcast %1238 : f32 to vector<16x16xf32>
    %1240 = arith.mulf %1239, %1229 : vector<16x16xf32>
    %1241 = arith.addf %1207, %1240 : vector<16x16xf32>
    %c323 = arith.constant 323 : index
    %1242 = memref.load %arg1[%c323] : memref<512xf32, #tpu.memory_space<smem>>
    %1243 = vector.broadcast %1242 : f32 to vector<16x16xf32>
    %1244 = arith.mulf %1243, %1229 : vector<16x16xf32>
    %1245 = arith.addf %1211, %1244 : vector<16x16xf32>
    %c324 = arith.constant 324 : index
    %1246 = memref.load %arg1[%c324] : memref<512xf32, #tpu.memory_space<smem>>
    %1247 = vector.broadcast %1246 : f32 to vector<16x16xf32>
    %1248 = arith.mulf %1247, %1229 : vector<16x16xf32>
    %1249 = arith.addf %1215, %1248 : vector<16x16xf32>
    %c325 = arith.constant 325 : index
    %1250 = memref.load %arg1[%c325] : memref<512xf32, #tpu.memory_space<smem>>
    %1251 = vector.broadcast %1250 : f32 to vector<16x16xf32>
    %1252 = arith.mulf %1251, %1229 : vector<16x16xf32>
    %1253 = arith.addf %1219, %1252 : vector<16x16xf32>
    %c326 = arith.constant 326 : index
    %1254 = memref.load %arg1[%c326] : memref<512xf32, #tpu.memory_space<smem>>
    %1255 = vector.broadcast %1254 : f32 to vector<16x16xf32>
    %1256 = arith.mulf %1255, %1229 : vector<16x16xf32>
    %1257 = arith.addf %1223, %1256 : vector<16x16xf32>
    %c327 = arith.constant 327 : index
    %1258 = memref.load %arg1[%c327] : memref<512xf32, #tpu.memory_space<smem>>
    %1259 = vector.broadcast %1258 : f32 to vector<16x16xf32>
    %1260 = arith.mulf %1259, %1229 : vector<16x16xf32>
    %1261 = arith.addf %1227, %1260 : vector<16x16xf32>
    %c0_227 = arith.constant 0 : index
    %c0_228 = arith.constant 0 : index
    %c1_229 = arith.constant 1 : index
    %c0_230 = arith.constant 0 : index
    %1262 = vector.load %arg2[%c0_227, %c0_228, %c1_229, %c0_230] : memref<1x4x18x18xf32, #tpu.memory_space<vmem>>, vector<1x1x16x16xf32>
    %1263 = vector.shape_cast %1262 : vector<1x1x16x16xf32> to vector<16x16xf32>
    %c352 = arith.constant 352 : index
    %1264 = memref.load %arg1[%c352] : memref<512xf32, #tpu.memory_space<smem>>
    %1265 = vector.broadcast %1264 : f32 to vector<16x16xf32>
    %1266 = arith.mulf %1265, %1263 : vector<16x16xf32>
    %1267 = arith.addf %1233, %1266 : vector<16x16xf32>
    %c353 = arith.constant 353 : index
    %1268 = memref.load %arg1[%c353] : memref<512xf32, #tpu.memory_space<smem>>
    %1269 = vector.broadcast %1268 : f32 to vector<16x16xf32>
    %1270 = arith.mulf %1269, %1263 : vector<16x16xf32>
    %1271 = arith.addf %1237, %1270 : vector<16x16xf32>
    %c354 = arith.constant 354 : index
    %1272 = memref.load %arg1[%c354] : memref<512xf32, #tpu.memory_space<smem>>
    %1273 = vector.broadcast %1272 : f32 to vector<16x16xf32>
    %1274 = arith.mulf %1273, %1263 : vector<16x16xf32>
    %1275 = arith.addf %1241, %1274 : vector<16x16xf32>
    %c355 = arith.constant 355 : index
    %1276 = memref.load %arg1[%c355] : memref<512xf32, #tpu.memory_space<smem>>
    %1277 = vector.broadcast %1276 : f32 to vector<16x16xf32>
    %1278 = arith.mulf %1277, %1263 : vector<16x16xf32>
    %1279 = arith.addf %1245, %1278 : vector<16x16xf32>
    %c356 = arith.constant 356 : index
    %1280 = memref.load %arg1[%c356] : memref<512xf32, #tpu.memory_space<smem>>
    %1281 = vector.broadcast %1280 : f32 to vector<16x16xf32>
    %1282 = arith.mulf %1281, %1263 : vector<16x16xf32>
    %1283 = arith.addf %1249, %1282 : vector<16x16xf32>
    %c357 = arith.constant 357 : index
    %1284 = memref.load %arg1[%c357] : memref<512xf32, #tpu.memory_space<smem>>
    %1285 = vector.broadcast %1284 : f32 to vector<16x16xf32>
    %1286 = arith.mulf %1285, %1263 : vector<16x16xf32>
    %1287 = arith.addf %1253, %1286 : vector<16x16xf32>
    %c358 = arith.constant 358 : index
    %1288 = memref.load %arg1[%c358] : memref<512xf32, #tpu.memory_space<smem>>
    %1289 = vector.broadcast %1288 : f32 to vector<16x16xf32>
    %1290 = arith.mulf %1289, %1263 : vector<16x16xf32>
    %1291 = arith.addf %1257, %1290 : vector<16x16xf32>
    %c359 = arith.constant 359 : index
    %1292 = memref.load %arg1[%c359] : memref<512xf32, #tpu.memory_space<smem>>
    %1293 = vector.broadcast %1292 : f32 to vector<16x16xf32>
    %1294 = arith.mulf %1293, %1263 : vector<16x16xf32>
    %1295 = arith.addf %1261, %1294 : vector<16x16xf32>
    %c0_231 = arith.constant 0 : index
    %c1_232 = arith.constant 1 : index
    %c2_233 = arith.constant 2 : index
    %c1_234 = arith.constant 1 : index
    %1296 = vector.load %arg2[%c0_231, %c1_232, %c2_233, %c1_234] : memref<1x4x18x18xf32, #tpu.memory_space<vmem>>, vector<1x1x16x16xf32>
    %1297 = vector.shape_cast %1296 : vector<1x1x16x16xf32> to vector<16x16xf32>
    %c264 = arith.constant 264 : index
    %1298 = memref.load %arg1[%c264] : memref<512xf32, #tpu.memory_space<smem>>
    %1299 = vector.broadcast %1298 : f32 to vector<16x16xf32>
    %1300 = arith.mulf %1299, %1297 : vector<16x16xf32>
    %1301 = arith.addf %1267, %1300 : vector<16x16xf32>
    %c265 = arith.constant 265 : index
    %1302 = memref.load %arg1[%c265] : memref<512xf32, #tpu.memory_space<smem>>
    %1303 = vector.broadcast %1302 : f32 to vector<16x16xf32>
    %1304 = arith.mulf %1303, %1297 : vector<16x16xf32>
    %1305 = arith.addf %1271, %1304 : vector<16x16xf32>
    %c266 = arith.constant 266 : index
    %1306 = memref.load %arg1[%c266] : memref<512xf32, #tpu.memory_space<smem>>
    %1307 = vector.broadcast %1306 : f32 to vector<16x16xf32>
    %1308 = arith.mulf %1307, %1297 : vector<16x16xf32>
    %1309 = arith.addf %1275, %1308 : vector<16x16xf32>
    %c267 = arith.constant 267 : index
    %1310 = memref.load %arg1[%c267] : memref<512xf32, #tpu.memory_space<smem>>
    %1311 = vector.broadcast %1310 : f32 to vector<16x16xf32>
    %1312 = arith.mulf %1311, %1297 : vector<16x16xf32>
    %1313 = arith.addf %1279, %1312 : vector<16x16xf32>
    %c268 = arith.constant 268 : index
    %1314 = memref.load %arg1[%c268] : memref<512xf32, #tpu.memory_space<smem>>
    %1315 = vector.broadcast %1314 : f32 to vector<16x16xf32>
    %1316 = arith.mulf %1315, %1297 : vector<16x16xf32>
    %1317 = arith.addf %1283, %1316 : vector<16x16xf32>
    %c269 = arith.constant 269 : index
    %1318 = memref.load %arg1[%c269] : memref<512xf32, #tpu.memory_space<smem>>
    %1319 = vector.broadcast %1318 : f32 to vector<16x16xf32>
    %1320 = arith.mulf %1319, %1297 : vector<16x16xf32>
    %1321 = arith.addf %1287, %1320 : vector<16x16xf32>
    %c270 = arith.constant 270 : index
    %1322 = memref.load %arg1[%c270] : memref<512xf32, #tpu.memory_space<smem>>
    %1323 = vector.broadcast %1322 : f32 to vector<16x16xf32>
    %1324 = arith.mulf %1323, %1297 : vector<16x16xf32>
    %1325 = arith.addf %1291, %1324 : vector<16x16xf32>
    %c271 = arith.constant 271 : index
    %1326 = memref.load %arg1[%c271] : memref<512xf32, #tpu.memory_space<smem>>
    %1327 = vector.broadcast %1326 : f32 to vector<16x16xf32>
    %1328 = arith.mulf %1327, %1297 : vector<16x16xf32>
    %1329 = arith.addf %1295, %1328 : vector<16x16xf32>
    %c0_235 = arith.constant 0 : index
    %c1_236 = arith.constant 1 : index
    %c2_237 = arith.constant 2 : index
    %c0_238 = arith.constant 0 : index
    %1330 = vector.load %arg2[%c0_235, %c1_236, %c2_237, %c0_238] : memref<1x4x18x18xf32, #tpu.memory_space<vmem>>, vector<1x1x16x16xf32>
    %1331 = vector.shape_cast %1330 : vector<1x1x16x16xf32> to vector<16x16xf32>
    %c296 = arith.constant 296 : index
    %1332 = memref.load %arg1[%c296] : memref<512xf32, #tpu.memory_space<smem>>
    %1333 = vector.broadcast %1332 : f32 to vector<16x16xf32>
    %1334 = arith.mulf %1333, %1331 : vector<16x16xf32>
    %1335 = arith.addf %1301, %1334 : vector<16x16xf32>
    %c297 = arith.constant 297 : index
    %1336 = memref.load %arg1[%c297] : memref<512xf32, #tpu.memory_space<smem>>
    %1337 = vector.broadcast %1336 : f32 to vector<16x16xf32>
    %1338 = arith.mulf %1337, %1331 : vector<16x16xf32>
    %1339 = arith.addf %1305, %1338 : vector<16x16xf32>
    %c298 = arith.constant 298 : index
    %1340 = memref.load %arg1[%c298] : memref<512xf32, #tpu.memory_space<smem>>
    %1341 = vector.broadcast %1340 : f32 to vector<16x16xf32>
    %1342 = arith.mulf %1341, %1331 : vector<16x16xf32>
    %1343 = arith.addf %1309, %1342 : vector<16x16xf32>
    %c299 = arith.constant 299 : index
    %1344 = memref.load %arg1[%c299] : memref<512xf32, #tpu.memory_space<smem>>
    %1345 = vector.broadcast %1344 : f32 to vector<16x16xf32>
    %1346 = arith.mulf %1345, %1331 : vector<16x16xf32>
    %1347 = arith.addf %1313, %1346 : vector<16x16xf32>
    %c300 = arith.constant 300 : index
    %1348 = memref.load %arg1[%c300] : memref<512xf32, #tpu.memory_space<smem>>
    %1349 = vector.broadcast %1348 : f32 to vector<16x16xf32>
    %1350 = arith.mulf %1349, %1331 : vector<16x16xf32>
    %1351 = arith.addf %1317, %1350 : vector<16x16xf32>
    %c301 = arith.constant 301 : index
    %1352 = memref.load %arg1[%c301] : memref<512xf32, #tpu.memory_space<smem>>
    %1353 = vector.broadcast %1352 : f32 to vector<16x16xf32>
    %1354 = arith.mulf %1353, %1331 : vector<16x16xf32>
    %1355 = arith.addf %1321, %1354 : vector<16x16xf32>
    %c302 = arith.constant 302 : index
    %1356 = memref.load %arg1[%c302] : memref<512xf32, #tpu.memory_space<smem>>
    %1357 = vector.broadcast %1356 : f32 to vector<16x16xf32>
    %1358 = arith.mulf %1357, %1331 : vector<16x16xf32>
    %1359 = arith.addf %1325, %1358 : vector<16x16xf32>
    %c303 = arith.constant 303 : index
    %1360 = memref.load %arg1[%c303] : memref<512xf32, #tpu.memory_space<smem>>
    %1361 = vector.broadcast %1360 : f32 to vector<16x16xf32>
    %1362 = arith.mulf %1361, %1331 : vector<16x16xf32>
    %1363 = arith.addf %1329, %1362 : vector<16x16xf32>
    %c0_239 = arith.constant 0 : index
    %c1_240 = arith.constant 1 : index
    %c1_241 = arith.constant 1 : index
    %c1_242 = arith.constant 1 : index
    %1364 = vector.load %arg2[%c0_239, %c1_240, %c1_241, %c1_242] : memref<1x4x18x18xf32, #tpu.memory_space<vmem>>, vector<1x1x16x16xf32>
    %1365 = vector.shape_cast %1364 : vector<1x1x16x16xf32> to vector<16x16xf32>
    %c328 = arith.constant 328 : index
    %1366 = memref.load %arg1[%c328] : memref<512xf32, #tpu.memory_space<smem>>
    %1367 = vector.broadcast %1366 : f32 to vector<16x16xf32>
    %1368 = arith.mulf %1367, %1365 : vector<16x16xf32>
    %1369 = arith.addf %1335, %1368 : vector<16x16xf32>
    %c329 = arith.constant 329 : index
    %1370 = memref.load %arg1[%c329] : memref<512xf32, #tpu.memory_space<smem>>
    %1371 = vector.broadcast %1370 : f32 to vector<16x16xf32>
    %1372 = arith.mulf %1371, %1365 : vector<16x16xf32>
    %1373 = arith.addf %1339, %1372 : vector<16x16xf32>
    %c330 = arith.constant 330 : index
    %1374 = memref.load %arg1[%c330] : memref<512xf32, #tpu.memory_space<smem>>
    %1375 = vector.broadcast %1374 : f32 to vector<16x16xf32>
    %1376 = arith.mulf %1375, %1365 : vector<16x16xf32>
    %1377 = arith.addf %1343, %1376 : vector<16x16xf32>
    %c331 = arith.constant 331 : index
    %1378 = memref.load %arg1[%c331] : memref<512xf32, #tpu.memory_space<smem>>
    %1379 = vector.broadcast %1378 : f32 to vector<16x16xf32>
    %1380 = arith.mulf %1379, %1365 : vector<16x16xf32>
    %1381 = arith.addf %1347, %1380 : vector<16x16xf32>
    %c332 = arith.constant 332 : index
    %1382 = memref.load %arg1[%c332] : memref<512xf32, #tpu.memory_space<smem>>
    %1383 = vector.broadcast %1382 : f32 to vector<16x16xf32>
    %1384 = arith.mulf %1383, %1365 : vector<16x16xf32>
    %1385 = arith.addf %1351, %1384 : vector<16x16xf32>
    %c333 = arith.constant 333 : index
    %1386 = memref.load %arg1[%c333] : memref<512xf32, #tpu.memory_space<smem>>
    %1387 = vector.broadcast %1386 : f32 to vector<16x16xf32>
    %1388 = arith.mulf %1387, %1365 : vector<16x16xf32>
    %1389 = arith.addf %1355, %1388 : vector<16x16xf32>
    %c334 = arith.constant 334 : index
    %1390 = memref.load %arg1[%c334] : memref<512xf32, #tpu.memory_space<smem>>
    %1391 = vector.broadcast %1390 : f32 to vector<16x16xf32>
    %1392 = arith.mulf %1391, %1365 : vector<16x16xf32>
    %1393 = arith.addf %1359, %1392 : vector<16x16xf32>
    %c335 = arith.constant 335 : index
    %1394 = memref.load %arg1[%c335] : memref<512xf32, #tpu.memory_space<smem>>
    %1395 = vector.broadcast %1394 : f32 to vector<16x16xf32>
    %1396 = arith.mulf %1395, %1365 : vector<16x16xf32>
    %1397 = arith.addf %1363, %1396 : vector<16x16xf32>
    %c0_243 = arith.constant 0 : index
    %c1_244 = arith.constant 1 : index
    %c1_245 = arith.constant 1 : index
    %c0_246 = arith.constant 0 : index
    %1398 = vector.load %arg2[%c0_243, %c1_244, %c1_245, %c0_246] : memref<1x4x18x18xf32, #tpu.memory_space<vmem>>, vector<1x1x16x16xf32>
    %1399 = vector.shape_cast %1398 : vector<1x1x16x16xf32> to vector<16x16xf32>
    %c360 = arith.constant 360 : index
    %1400 = memref.load %arg1[%c360] : memref<512xf32, #tpu.memory_space<smem>>
    %1401 = vector.broadcast %1400 : f32 to vector<16x16xf32>
    %1402 = arith.mulf %1401, %1399 : vector<16x16xf32>
    %1403 = arith.addf %1369, %1402 : vector<16x16xf32>
    %c361 = arith.constant 361 : index
    %1404 = memref.load %arg1[%c361] : memref<512xf32, #tpu.memory_space<smem>>
    %1405 = vector.broadcast %1404 : f32 to vector<16x16xf32>
    %1406 = arith.mulf %1405, %1399 : vector<16x16xf32>
    %1407 = arith.addf %1373, %1406 : vector<16x16xf32>
    %c362 = arith.constant 362 : index
    %1408 = memref.load %arg1[%c362] : memref<512xf32, #tpu.memory_space<smem>>
    %1409 = vector.broadcast %1408 : f32 to vector<16x16xf32>
    %1410 = arith.mulf %1409, %1399 : vector<16x16xf32>
    %1411 = arith.addf %1377, %1410 : vector<16x16xf32>
    %c363 = arith.constant 363 : index
    %1412 = memref.load %arg1[%c363] : memref<512xf32, #tpu.memory_space<smem>>
    %1413 = vector.broadcast %1412 : f32 to vector<16x16xf32>
    %1414 = arith.mulf %1413, %1399 : vector<16x16xf32>
    %1415 = arith.addf %1381, %1414 : vector<16x16xf32>
    %c364 = arith.constant 364 : index
    %1416 = memref.load %arg1[%c364] : memref<512xf32, #tpu.memory_space<smem>>
    %1417 = vector.broadcast %1416 : f32 to vector<16x16xf32>
    %1418 = arith.mulf %1417, %1399 : vector<16x16xf32>
    %1419 = arith.addf %1385, %1418 : vector<16x16xf32>
    %c365 = arith.constant 365 : index
    %1420 = memref.load %arg1[%c365] : memref<512xf32, #tpu.memory_space<smem>>
    %1421 = vector.broadcast %1420 : f32 to vector<16x16xf32>
    %1422 = arith.mulf %1421, %1399 : vector<16x16xf32>
    %1423 = arith.addf %1389, %1422 : vector<16x16xf32>
    %c366 = arith.constant 366 : index
    %1424 = memref.load %arg1[%c366] : memref<512xf32, #tpu.memory_space<smem>>
    %1425 = vector.broadcast %1424 : f32 to vector<16x16xf32>
    %1426 = arith.mulf %1425, %1399 : vector<16x16xf32>
    %1427 = arith.addf %1393, %1426 : vector<16x16xf32>
    %c367 = arith.constant 367 : index
    %1428 = memref.load %arg1[%c367] : memref<512xf32, #tpu.memory_space<smem>>
    %1429 = vector.broadcast %1428 : f32 to vector<16x16xf32>
    %1430 = arith.mulf %1429, %1399 : vector<16x16xf32>
    %1431 = arith.addf %1397, %1430 : vector<16x16xf32>
    %c0_247 = arith.constant 0 : index
    %c2_248 = arith.constant 2 : index
    %c2_249 = arith.constant 2 : index
    %c1_250 = arith.constant 1 : index
    %1432 = vector.load %arg2[%c0_247, %c2_248, %c2_249, %c1_250] : memref<1x4x18x18xf32, #tpu.memory_space<vmem>>, vector<1x1x16x16xf32>
    %1433 = vector.shape_cast %1432 : vector<1x1x16x16xf32> to vector<16x16xf32>
    %c272 = arith.constant 272 : index
    %1434 = memref.load %arg1[%c272] : memref<512xf32, #tpu.memory_space<smem>>
    %1435 = vector.broadcast %1434 : f32 to vector<16x16xf32>
    %1436 = arith.mulf %1435, %1433 : vector<16x16xf32>
    %1437 = arith.addf %1403, %1436 : vector<16x16xf32>
    %c273 = arith.constant 273 : index
    %1438 = memref.load %arg1[%c273] : memref<512xf32, #tpu.memory_space<smem>>
    %1439 = vector.broadcast %1438 : f32 to vector<16x16xf32>
    %1440 = arith.mulf %1439, %1433 : vector<16x16xf32>
    %1441 = arith.addf %1407, %1440 : vector<16x16xf32>
    %c274 = arith.constant 274 : index
    %1442 = memref.load %arg1[%c274] : memref<512xf32, #tpu.memory_space<smem>>
    %1443 = vector.broadcast %1442 : f32 to vector<16x16xf32>
    %1444 = arith.mulf %1443, %1433 : vector<16x16xf32>
    %1445 = arith.addf %1411, %1444 : vector<16x16xf32>
    %c275 = arith.constant 275 : index
    %1446 = memref.load %arg1[%c275] : memref<512xf32, #tpu.memory_space<smem>>
    %1447 = vector.broadcast %1446 : f32 to vector<16x16xf32>
    %1448 = arith.mulf %1447, %1433 : vector<16x16xf32>
    %1449 = arith.addf %1415, %1448 : vector<16x16xf32>
    %c276 = arith.constant 276 : index
    %1450 = memref.load %arg1[%c276] : memref<512xf32, #tpu.memory_space<smem>>
    %1451 = vector.broadcast %1450 : f32 to vector<16x16xf32>
    %1452 = arith.mulf %1451, %1433 : vector<16x16xf32>
    %1453 = arith.addf %1419, %1452 : vector<16x16xf32>
    %c277 = arith.constant 277 : index
    %1454 = memref.load %arg1[%c277] : memref<512xf32, #tpu.memory_space<smem>>
    %1455 = vector.broadcast %1454 : f32 to vector<16x16xf32>
    %1456 = arith.mulf %1455, %1433 : vector<16x16xf32>
    %1457 = arith.addf %1423, %1456 : vector<16x16xf32>
    %c278 = arith.constant 278 : index
    %1458 = memref.load %arg1[%c278] : memref<512xf32, #tpu.memory_space<smem>>
    %1459 = vector.broadcast %1458 : f32 to vector<16x16xf32>
    %1460 = arith.mulf %1459, %1433 : vector<16x16xf32>
    %1461 = arith.addf %1427, %1460 : vector<16x16xf32>
    %c279 = arith.constant 279 : index
    %1462 = memref.load %arg1[%c279] : memref<512xf32, #tpu.memory_space<smem>>
    %1463 = vector.broadcast %1462 : f32 to vector<16x16xf32>
    %1464 = arith.mulf %1463, %1433 : vector<16x16xf32>
    %1465 = arith.addf %1431, %1464 : vector<16x16xf32>
    %c0_251 = arith.constant 0 : index
    %c2_252 = arith.constant 2 : index
    %c2_253 = arith.constant 2 : index
    %c0_254 = arith.constant 0 : index
    %1466 = vector.load %arg2[%c0_251, %c2_252, %c2_253, %c0_254] : memref<1x4x18x18xf32, #tpu.memory_space<vmem>>, vector<1x1x16x16xf32>
    %1467 = vector.shape_cast %1466 : vector<1x1x16x16xf32> to vector<16x16xf32>
    %c304 = arith.constant 304 : index
    %1468 = memref.load %arg1[%c304] : memref<512xf32, #tpu.memory_space<smem>>
    %1469 = vector.broadcast %1468 : f32 to vector<16x16xf32>
    %1470 = arith.mulf %1469, %1467 : vector<16x16xf32>
    %1471 = arith.addf %1437, %1470 : vector<16x16xf32>
    %c305 = arith.constant 305 : index
    %1472 = memref.load %arg1[%c305] : memref<512xf32, #tpu.memory_space<smem>>
    %1473 = vector.broadcast %1472 : f32 to vector<16x16xf32>
    %1474 = arith.mulf %1473, %1467 : vector<16x16xf32>
    %1475 = arith.addf %1441, %1474 : vector<16x16xf32>
    %c306 = arith.constant 306 : index
    %1476 = memref.load %arg1[%c306] : memref<512xf32, #tpu.memory_space<smem>>
    %1477 = vector.broadcast %1476 : f32 to vector<16x16xf32>
    %1478 = arith.mulf %1477, %1467 : vector<16x16xf32>
    %1479 = arith.addf %1445, %1478 : vector<16x16xf32>
    %c307 = arith.constant 307 : index
    %1480 = memref.load %arg1[%c307] : memref<512xf32, #tpu.memory_space<smem>>
    %1481 = vector.broadcast %1480 : f32 to vector<16x16xf32>
    %1482 = arith.mulf %1481, %1467 : vector<16x16xf32>
    %1483 = arith.addf %1449, %1482 : vector<16x16xf32>
    %c308 = arith.constant 308 : index
    %1484 = memref.load %arg1[%c308] : memref<512xf32, #tpu.memory_space<smem>>
    %1485 = vector.broadcast %1484 : f32 to vector<16x16xf32>
    %1486 = arith.mulf %1485, %1467 : vector<16x16xf32>
    %1487 = arith.addf %1453, %1486 : vector<16x16xf32>
    %c309 = arith.constant 309 : index
    %1488 = memref.load %arg1[%c309] : memref<512xf32, #tpu.memory_space<smem>>
    %1489 = vector.broadcast %1488 : f32 to vector<16x16xf32>
    %1490 = arith.mulf %1489, %1467 : vector<16x16xf32>
    %1491 = arith.addf %1457, %1490 : vector<16x16xf32>
    %c310 = arith.constant 310 : index
    %1492 = memref.load %arg1[%c310] : memref<512xf32, #tpu.memory_space<smem>>
    %1493 = vector.broadcast %1492 : f32 to vector<16x16xf32>
    %1494 = arith.mulf %1493, %1467 : vector<16x16xf32>
    %1495 = arith.addf %1461, %1494 : vector<16x16xf32>
    %c311 = arith.constant 311 : index
    %1496 = memref.load %arg1[%c311] : memref<512xf32, #tpu.memory_space<smem>>
    %1497 = vector.broadcast %1496 : f32 to vector<16x16xf32>
    %1498 = arith.mulf %1497, %1467 : vector<16x16xf32>
    %1499 = arith.addf %1465, %1498 : vector<16x16xf32>
    %c0_255 = arith.constant 0 : index
    %c2_256 = arith.constant 2 : index
    %c1_257 = arith.constant 1 : index
    %c1_258 = arith.constant 1 : index
    %1500 = vector.load %arg2[%c0_255, %c2_256, %c1_257, %c1_258] : memref<1x4x18x18xf32, #tpu.memory_space<vmem>>, vector<1x1x16x16xf32>
    %1501 = vector.shape_cast %1500 : vector<1x1x16x16xf32> to vector<16x16xf32>
    %c336 = arith.constant 336 : index
    %1502 = memref.load %arg1[%c336] : memref<512xf32, #tpu.memory_space<smem>>
    %1503 = vector.broadcast %1502 : f32 to vector<16x16xf32>
    %1504 = arith.mulf %1503, %1501 : vector<16x16xf32>
    %1505 = arith.addf %1471, %1504 : vector<16x16xf32>
    %c337 = arith.constant 337 : index
    %1506 = memref.load %arg1[%c337] : memref<512xf32, #tpu.memory_space<smem>>
    %1507 = vector.broadcast %1506 : f32 to vector<16x16xf32>
    %1508 = arith.mulf %1507, %1501 : vector<16x16xf32>
    %1509 = arith.addf %1475, %1508 : vector<16x16xf32>
    %c338 = arith.constant 338 : index
    %1510 = memref.load %arg1[%c338] : memref<512xf32, #tpu.memory_space<smem>>
    %1511 = vector.broadcast %1510 : f32 to vector<16x16xf32>
    %1512 = arith.mulf %1511, %1501 : vector<16x16xf32>
    %1513 = arith.addf %1479, %1512 : vector<16x16xf32>
    %c339 = arith.constant 339 : index
    %1514 = memref.load %arg1[%c339] : memref<512xf32, #tpu.memory_space<smem>>
    %1515 = vector.broadcast %1514 : f32 to vector<16x16xf32>
    %1516 = arith.mulf %1515, %1501 : vector<16x16xf32>
    %1517 = arith.addf %1483, %1516 : vector<16x16xf32>
    %c340 = arith.constant 340 : index
    %1518 = memref.load %arg1[%c340] : memref<512xf32, #tpu.memory_space<smem>>
    %1519 = vector.broadcast %1518 : f32 to vector<16x16xf32>
    %1520 = arith.mulf %1519, %1501 : vector<16x16xf32>
    %1521 = arith.addf %1487, %1520 : vector<16x16xf32>
    %c341 = arith.constant 341 : index
    %1522 = memref.load %arg1[%c341] : memref<512xf32, #tpu.memory_space<smem>>
    %1523 = vector.broadcast %1522 : f32 to vector<16x16xf32>
    %1524 = arith.mulf %1523, %1501 : vector<16x16xf32>
    %1525 = arith.addf %1491, %1524 : vector<16x16xf32>
    %c342 = arith.constant 342 : index
    %1526 = memref.load %arg1[%c342] : memref<512xf32, #tpu.memory_space<smem>>
    %1527 = vector.broadcast %1526 : f32 to vector<16x16xf32>
    %1528 = arith.mulf %1527, %1501 : vector<16x16xf32>
    %1529 = arith.addf %1495, %1528 : vector<16x16xf32>
    %c343 = arith.constant 343 : index
    %1530 = memref.load %arg1[%c343] : memref<512xf32, #tpu.memory_space<smem>>
    %1531 = vector.broadcast %1530 : f32 to vector<16x16xf32>
    %1532 = arith.mulf %1531, %1501 : vector<16x16xf32>
    %1533 = arith.addf %1499, %1532 : vector<16x16xf32>
    %c0_259 = arith.constant 0 : index
    %c2_260 = arith.constant 2 : index
    %c1_261 = arith.constant 1 : index
    %c0_262 = arith.constant 0 : index
    %1534 = vector.load %arg2[%c0_259, %c2_260, %c1_261, %c0_262] : memref<1x4x18x18xf32, #tpu.memory_space<vmem>>, vector<1x1x16x16xf32>
    %1535 = vector.shape_cast %1534 : vector<1x1x16x16xf32> to vector<16x16xf32>
    %c368 = arith.constant 368 : index
    %1536 = memref.load %arg1[%c368] : memref<512xf32, #tpu.memory_space<smem>>
    %1537 = vector.broadcast %1536 : f32 to vector<16x16xf32>
    %1538 = arith.mulf %1537, %1535 : vector<16x16xf32>
    %1539 = arith.addf %1505, %1538 : vector<16x16xf32>
    %c369 = arith.constant 369 : index
    %1540 = memref.load %arg1[%c369] : memref<512xf32, #tpu.memory_space<smem>>
    %1541 = vector.broadcast %1540 : f32 to vector<16x16xf32>
    %1542 = arith.mulf %1541, %1535 : vector<16x16xf32>
    %1543 = arith.addf %1509, %1542 : vector<16x16xf32>
    %c370 = arith.constant 370 : index
    %1544 = memref.load %arg1[%c370] : memref<512xf32, #tpu.memory_space<smem>>
    %1545 = vector.broadcast %1544 : f32 to vector<16x16xf32>
    %1546 = arith.mulf %1545, %1535 : vector<16x16xf32>
    %1547 = arith.addf %1513, %1546 : vector<16x16xf32>
    %c371 = arith.constant 371 : index
    %1548 = memref.load %arg1[%c371] : memref<512xf32, #tpu.memory_space<smem>>
    %1549 = vector.broadcast %1548 : f32 to vector<16x16xf32>
    %1550 = arith.mulf %1549, %1535 : vector<16x16xf32>
    %1551 = arith.addf %1517, %1550 : vector<16x16xf32>
    %c372 = arith.constant 372 : index
    %1552 = memref.load %arg1[%c372] : memref<512xf32, #tpu.memory_space<smem>>
    %1553 = vector.broadcast %1552 : f32 to vector<16x16xf32>
    %1554 = arith.mulf %1553, %1535 : vector<16x16xf32>
    %1555 = arith.addf %1521, %1554 : vector<16x16xf32>
    %c373 = arith.constant 373 : index
    %1556 = memref.load %arg1[%c373] : memref<512xf32, #tpu.memory_space<smem>>
    %1557 = vector.broadcast %1556 : f32 to vector<16x16xf32>
    %1558 = arith.mulf %1557, %1535 : vector<16x16xf32>
    %1559 = arith.addf %1525, %1558 : vector<16x16xf32>
    %c374 = arith.constant 374 : index
    %1560 = memref.load %arg1[%c374] : memref<512xf32, #tpu.memory_space<smem>>
    %1561 = vector.broadcast %1560 : f32 to vector<16x16xf32>
    %1562 = arith.mulf %1561, %1535 : vector<16x16xf32>
    %1563 = arith.addf %1529, %1562 : vector<16x16xf32>
    %c375 = arith.constant 375 : index
    %1564 = memref.load %arg1[%c375] : memref<512xf32, #tpu.memory_space<smem>>
    %1565 = vector.broadcast %1564 : f32 to vector<16x16xf32>
    %1566 = arith.mulf %1565, %1535 : vector<16x16xf32>
    %1567 = arith.addf %1533, %1566 : vector<16x16xf32>
    %c0_263 = arith.constant 0 : index
    %c3_264 = arith.constant 3 : index
    %c2_265 = arith.constant 2 : index
    %c1_266 = arith.constant 1 : index
    %1568 = vector.load %arg2[%c0_263, %c3_264, %c2_265, %c1_266] : memref<1x4x18x18xf32, #tpu.memory_space<vmem>>, vector<1x1x16x16xf32>
    %1569 = vector.shape_cast %1568 : vector<1x1x16x16xf32> to vector<16x16xf32>
    %c280 = arith.constant 280 : index
    %1570 = memref.load %arg1[%c280] : memref<512xf32, #tpu.memory_space<smem>>
    %1571 = vector.broadcast %1570 : f32 to vector<16x16xf32>
    %1572 = arith.mulf %1571, %1569 : vector<16x16xf32>
    %1573 = arith.addf %1539, %1572 : vector<16x16xf32>
    %c281 = arith.constant 281 : index
    %1574 = memref.load %arg1[%c281] : memref<512xf32, #tpu.memory_space<smem>>
    %1575 = vector.broadcast %1574 : f32 to vector<16x16xf32>
    %1576 = arith.mulf %1575, %1569 : vector<16x16xf32>
    %1577 = arith.addf %1543, %1576 : vector<16x16xf32>
    %c282 = arith.constant 282 : index
    %1578 = memref.load %arg1[%c282] : memref<512xf32, #tpu.memory_space<smem>>
    %1579 = vector.broadcast %1578 : f32 to vector<16x16xf32>
    %1580 = arith.mulf %1579, %1569 : vector<16x16xf32>
    %1581 = arith.addf %1547, %1580 : vector<16x16xf32>
    %c283 = arith.constant 283 : index
    %1582 = memref.load %arg1[%c283] : memref<512xf32, #tpu.memory_space<smem>>
    %1583 = vector.broadcast %1582 : f32 to vector<16x16xf32>
    %1584 = arith.mulf %1583, %1569 : vector<16x16xf32>
    %1585 = arith.addf %1551, %1584 : vector<16x16xf32>
    %c284 = arith.constant 284 : index
    %1586 = memref.load %arg1[%c284] : memref<512xf32, #tpu.memory_space<smem>>
    %1587 = vector.broadcast %1586 : f32 to vector<16x16xf32>
    %1588 = arith.mulf %1587, %1569 : vector<16x16xf32>
    %1589 = arith.addf %1555, %1588 : vector<16x16xf32>
    %c285 = arith.constant 285 : index
    %1590 = memref.load %arg1[%c285] : memref<512xf32, #tpu.memory_space<smem>>
    %1591 = vector.broadcast %1590 : f32 to vector<16x16xf32>
    %1592 = arith.mulf %1591, %1569 : vector<16x16xf32>
    %1593 = arith.addf %1559, %1592 : vector<16x16xf32>
    %c286 = arith.constant 286 : index
    %1594 = memref.load %arg1[%c286] : memref<512xf32, #tpu.memory_space<smem>>
    %1595 = vector.broadcast %1594 : f32 to vector<16x16xf32>
    %1596 = arith.mulf %1595, %1569 : vector<16x16xf32>
    %1597 = arith.addf %1563, %1596 : vector<16x16xf32>
    %c287 = arith.constant 287 : index
    %1598 = memref.load %arg1[%c287] : memref<512xf32, #tpu.memory_space<smem>>
    %1599 = vector.broadcast %1598 : f32 to vector<16x16xf32>
    %1600 = arith.mulf %1599, %1569 : vector<16x16xf32>
    %1601 = arith.addf %1567, %1600 : vector<16x16xf32>
    %c0_267 = arith.constant 0 : index
    %c3_268 = arith.constant 3 : index
    %c2_269 = arith.constant 2 : index
    %c0_270 = arith.constant 0 : index
    %1602 = vector.load %arg2[%c0_267, %c3_268, %c2_269, %c0_270] : memref<1x4x18x18xf32, #tpu.memory_space<vmem>>, vector<1x1x16x16xf32>
    %1603 = vector.shape_cast %1602 : vector<1x1x16x16xf32> to vector<16x16xf32>
    %c312 = arith.constant 312 : index
    %1604 = memref.load %arg1[%c312] : memref<512xf32, #tpu.memory_space<smem>>
    %1605 = vector.broadcast %1604 : f32 to vector<16x16xf32>
    %1606 = arith.mulf %1605, %1603 : vector<16x16xf32>
    %1607 = arith.addf %1573, %1606 : vector<16x16xf32>
    %c313 = arith.constant 313 : index
    %1608 = memref.load %arg1[%c313] : memref<512xf32, #tpu.memory_space<smem>>
    %1609 = vector.broadcast %1608 : f32 to vector<16x16xf32>
    %1610 = arith.mulf %1609, %1603 : vector<16x16xf32>
    %1611 = arith.addf %1577, %1610 : vector<16x16xf32>
    %c314 = arith.constant 314 : index
    %1612 = memref.load %arg1[%c314] : memref<512xf32, #tpu.memory_space<smem>>
    %1613 = vector.broadcast %1612 : f32 to vector<16x16xf32>
    %1614 = arith.mulf %1613, %1603 : vector<16x16xf32>
    %1615 = arith.addf %1581, %1614 : vector<16x16xf32>
    %c315 = arith.constant 315 : index
    %1616 = memref.load %arg1[%c315] : memref<512xf32, #tpu.memory_space<smem>>
    %1617 = vector.broadcast %1616 : f32 to vector<16x16xf32>
    %1618 = arith.mulf %1617, %1603 : vector<16x16xf32>
    %1619 = arith.addf %1585, %1618 : vector<16x16xf32>
    %c316 = arith.constant 316 : index
    %1620 = memref.load %arg1[%c316] : memref<512xf32, #tpu.memory_space<smem>>
    %1621 = vector.broadcast %1620 : f32 to vector<16x16xf32>
    %1622 = arith.mulf %1621, %1603 : vector<16x16xf32>
    %1623 = arith.addf %1589, %1622 : vector<16x16xf32>
    %c317 = arith.constant 317 : index
    %1624 = memref.load %arg1[%c317] : memref<512xf32, #tpu.memory_space<smem>>
    %1625 = vector.broadcast %1624 : f32 to vector<16x16xf32>
    %1626 = arith.mulf %1625, %1603 : vector<16x16xf32>
    %1627 = arith.addf %1593, %1626 : vector<16x16xf32>
    %c318 = arith.constant 318 : index
    %1628 = memref.load %arg1[%c318] : memref<512xf32, #tpu.memory_space<smem>>
    %1629 = vector.broadcast %1628 : f32 to vector<16x16xf32>
    %1630 = arith.mulf %1629, %1603 : vector<16x16xf32>
    %1631 = arith.addf %1597, %1630 : vector<16x16xf32>
    %c319 = arith.constant 319 : index
    %1632 = memref.load %arg1[%c319] : memref<512xf32, #tpu.memory_space<smem>>
    %1633 = vector.broadcast %1632 : f32 to vector<16x16xf32>
    %1634 = arith.mulf %1633, %1603 : vector<16x16xf32>
    %1635 = arith.addf %1601, %1634 : vector<16x16xf32>
    %c0_271 = arith.constant 0 : index
    %c3_272 = arith.constant 3 : index
    %c1_273 = arith.constant 1 : index
    %c1_274 = arith.constant 1 : index
    %1636 = vector.load %arg2[%c0_271, %c3_272, %c1_273, %c1_274] : memref<1x4x18x18xf32, #tpu.memory_space<vmem>>, vector<1x1x16x16xf32>
    %1637 = vector.shape_cast %1636 : vector<1x1x16x16xf32> to vector<16x16xf32>
    %c344 = arith.constant 344 : index
    %1638 = memref.load %arg1[%c344] : memref<512xf32, #tpu.memory_space<smem>>
    %1639 = vector.broadcast %1638 : f32 to vector<16x16xf32>
    %1640 = arith.mulf %1639, %1637 : vector<16x16xf32>
    %1641 = arith.addf %1607, %1640 : vector<16x16xf32>
    %c345 = arith.constant 345 : index
    %1642 = memref.load %arg1[%c345] : memref<512xf32, #tpu.memory_space<smem>>
    %1643 = vector.broadcast %1642 : f32 to vector<16x16xf32>
    %1644 = arith.mulf %1643, %1637 : vector<16x16xf32>
    %1645 = arith.addf %1611, %1644 : vector<16x16xf32>
    %c346 = arith.constant 346 : index
    %1646 = memref.load %arg1[%c346] : memref<512xf32, #tpu.memory_space<smem>>
    %1647 = vector.broadcast %1646 : f32 to vector<16x16xf32>
    %1648 = arith.mulf %1647, %1637 : vector<16x16xf32>
    %1649 = arith.addf %1615, %1648 : vector<16x16xf32>
    %c347 = arith.constant 347 : index
    %1650 = memref.load %arg1[%c347] : memref<512xf32, #tpu.memory_space<smem>>
    %1651 = vector.broadcast %1650 : f32 to vector<16x16xf32>
    %1652 = arith.mulf %1651, %1637 : vector<16x16xf32>
    %1653 = arith.addf %1619, %1652 : vector<16x16xf32>
    %c348 = arith.constant 348 : index
    %1654 = memref.load %arg1[%c348] : memref<512xf32, #tpu.memory_space<smem>>
    %1655 = vector.broadcast %1654 : f32 to vector<16x16xf32>
    %1656 = arith.mulf %1655, %1637 : vector<16x16xf32>
    %1657 = arith.addf %1623, %1656 : vector<16x16xf32>
    %c349 = arith.constant 349 : index
    %1658 = memref.load %arg1[%c349] : memref<512xf32, #tpu.memory_space<smem>>
    %1659 = vector.broadcast %1658 : f32 to vector<16x16xf32>
    %1660 = arith.mulf %1659, %1637 : vector<16x16xf32>
    %1661 = arith.addf %1627, %1660 : vector<16x16xf32>
    %c350 = arith.constant 350 : index
    %1662 = memref.load %arg1[%c350] : memref<512xf32, #tpu.memory_space<smem>>
    %1663 = vector.broadcast %1662 : f32 to vector<16x16xf32>
    %1664 = arith.mulf %1663, %1637 : vector<16x16xf32>
    %1665 = arith.addf %1631, %1664 : vector<16x16xf32>
    %c351 = arith.constant 351 : index
    %1666 = memref.load %arg1[%c351] : memref<512xf32, #tpu.memory_space<smem>>
    %1667 = vector.broadcast %1666 : f32 to vector<16x16xf32>
    %1668 = arith.mulf %1667, %1637 : vector<16x16xf32>
    %1669 = arith.addf %1635, %1668 : vector<16x16xf32>
    %c0_275 = arith.constant 0 : index
    %c3_276 = arith.constant 3 : index
    %c1_277 = arith.constant 1 : index
    %c0_278 = arith.constant 0 : index
    %1670 = vector.load %arg2[%c0_275, %c3_276, %c1_277, %c0_278] : memref<1x4x18x18xf32, #tpu.memory_space<vmem>>, vector<1x1x16x16xf32>
    %1671 = vector.shape_cast %1670 : vector<1x1x16x16xf32> to vector<16x16xf32>
    %c376 = arith.constant 376 : index
    %1672 = memref.load %arg1[%c376] : memref<512xf32, #tpu.memory_space<smem>>
    %1673 = vector.broadcast %1672 : f32 to vector<16x16xf32>
    %1674 = arith.mulf %1673, %1671 : vector<16x16xf32>
    %1675 = arith.addf %1641, %1674 : vector<16x16xf32>
    %c377 = arith.constant 377 : index
    %1676 = memref.load %arg1[%c377] : memref<512xf32, #tpu.memory_space<smem>>
    %1677 = vector.broadcast %1676 : f32 to vector<16x16xf32>
    %1678 = arith.mulf %1677, %1671 : vector<16x16xf32>
    %1679 = arith.addf %1645, %1678 : vector<16x16xf32>
    %c378 = arith.constant 378 : index
    %1680 = memref.load %arg1[%c378] : memref<512xf32, #tpu.memory_space<smem>>
    %1681 = vector.broadcast %1680 : f32 to vector<16x16xf32>
    %1682 = arith.mulf %1681, %1671 : vector<16x16xf32>
    %1683 = arith.addf %1649, %1682 : vector<16x16xf32>
    %c379 = arith.constant 379 : index
    %1684 = memref.load %arg1[%c379] : memref<512xf32, #tpu.memory_space<smem>>
    %1685 = vector.broadcast %1684 : f32 to vector<16x16xf32>
    %1686 = arith.mulf %1685, %1671 : vector<16x16xf32>
    %1687 = arith.addf %1653, %1686 : vector<16x16xf32>
    %c380 = arith.constant 380 : index
    %1688 = memref.load %arg1[%c380] : memref<512xf32, #tpu.memory_space<smem>>
    %1689 = vector.broadcast %1688 : f32 to vector<16x16xf32>
    %1690 = arith.mulf %1689, %1671 : vector<16x16xf32>
    %1691 = arith.addf %1657, %1690 : vector<16x16xf32>
    %c381 = arith.constant 381 : index
    %1692 = memref.load %arg1[%c381] : memref<512xf32, #tpu.memory_space<smem>>
    %1693 = vector.broadcast %1692 : f32 to vector<16x16xf32>
    %1694 = arith.mulf %1693, %1671 : vector<16x16xf32>
    %1695 = arith.addf %1661, %1694 : vector<16x16xf32>
    %c382 = arith.constant 382 : index
    %1696 = memref.load %arg1[%c382] : memref<512xf32, #tpu.memory_space<smem>>
    %1697 = vector.broadcast %1696 : f32 to vector<16x16xf32>
    %1698 = arith.mulf %1697, %1671 : vector<16x16xf32>
    %1699 = arith.addf %1665, %1698 : vector<16x16xf32>
    %c383 = arith.constant 383 : index
    %1700 = memref.load %arg1[%c383] : memref<512xf32, #tpu.memory_space<smem>>
    %1701 = vector.broadcast %1700 : f32 to vector<16x16xf32>
    %1702 = arith.mulf %1701, %1671 : vector<16x16xf32>
    %1703 = arith.addf %1669, %1702 : vector<16x16xf32>
    %c0_279 = arith.constant 0 : index
    %c0_280 = arith.constant 0 : index
    %c0_281 = arith.constant 0 : index
    %c32_282 = arith.constant 32 : index
    %1704 = vector.load %arg3[%c0_279, %c0_280, %c0_281, %c32_282] : memref<1x8x16x64xf32, #tpu.memory_space<vmem>>, vector<1x1x16x16xf32>
    %1705 = vector.shape_cast %1704 : vector<1x1x16x16xf32> to vector<16x16xf32>
    %1706 = vector.shape_cast %1675 : vector<16x16xf32> to vector<1x1x16x16xf32>
    tpu.vector_store %arg3[%c0_279, %c0_280, %c0_281, %c32_282], %1706 {strides = array<i32>} : memref<1x8x16x64xf32, #tpu.memory_space<vmem>>, vector<1x1x16x16xf32>,
    %c0_283 = arith.constant 0 : index
    %c1_284 = arith.constant 1 : index
    %c0_285 = arith.constant 0 : index
    %c32_286 = arith.constant 32 : index
    %1707 = vector.load %arg3[%c0_283, %c1_284, %c0_285, %c32_286] : memref<1x8x16x64xf32, #tpu.memory_space<vmem>>, vector<1x1x16x16xf32>
    %1708 = vector.shape_cast %1707 : vector<1x1x16x16xf32> to vector<16x16xf32>
    %1709 = vector.shape_cast %1679 : vector<16x16xf32> to vector<1x1x16x16xf32>
    tpu.vector_store %arg3[%c0_283, %c1_284, %c0_285, %c32_286], %1709 {strides = array<i32>} : memref<1x8x16x64xf32, #tpu.memory_space<vmem>>, vector<1x1x16x16xf32>,
    %c0_287 = arith.constant 0 : index
    %c2_288 = arith.constant 2 : index
    %c0_289 = arith.constant 0 : index
    %c32_290 = arith.constant 32 : index
    %1710 = vector.load %arg3[%c0_287, %c2_288, %c0_289, %c32_290] : memref<1x8x16x64xf32, #tpu.memory_space<vmem>>, vector<1x1x16x16xf32>
    %1711 = vector.shape_cast %1710 : vector<1x1x16x16xf32> to vector<16x16xf32>
    %1712 = vector.shape_cast %1683 : vector<16x16xf32> to vector<1x1x16x16xf32>
    tpu.vector_store %arg3[%c0_287, %c2_288, %c0_289, %c32_290], %1712 {strides = array<i32>} : memref<1x8x16x64xf32, #tpu.memory_space<vmem>>, vector<1x1x16x16xf32>,
    %c0_291 = arith.constant 0 : index
    %c3_292 = arith.constant 3 : index
    %c0_293 = arith.constant 0 : index
    %c32_294 = arith.constant 32 : index
    %1713 = vector.load %arg3[%c0_291, %c3_292, %c0_293, %c32_294] : memref<1x8x16x64xf32, #tpu.memory_space<vmem>>, vector<1x1x16x16xf32>
    %1714 = vector.shape_cast %1713 : vector<1x1x16x16xf32> to vector<16x16xf32>
    %1715 = vector.shape_cast %1687 : vector<16x16xf32> to vector<1x1x16x16xf32>
    tpu.vector_store %arg3[%c0_291, %c3_292, %c0_293, %c32_294], %1715 {strides = array<i32>} : memref<1x8x16x64xf32, #tpu.memory_space<vmem>>, vector<1x1x16x16xf32>,
    %c0_295 = arith.constant 0 : index
    %c4_296 = arith.constant 4 : index
    %c0_297 = arith.constant 0 : index
    %c32_298 = arith.constant 32 : index
    %1716 = vector.load %arg3[%c0_295, %c4_296, %c0_297, %c32_298] : memref<1x8x16x64xf32, #tpu.memory_space<vmem>>, vector<1x1x16x16xf32>
    %1717 = vector.shape_cast %1716 : vector<1x1x16x16xf32> to vector<16x16xf32>
    %1718 = vector.shape_cast %1691 : vector<16x16xf32> to vector<1x1x16x16xf32>
    tpu.vector_store %arg3[%c0_295, %c4_296, %c0_297, %c32_298], %1718 {strides = array<i32>} : memref<1x8x16x64xf32, #tpu.memory_space<vmem>>, vector<1x1x16x16xf32>,
    %c0_299 = arith.constant 0 : index
    %c5_300 = arith.constant 5 : index
    %c0_301 = arith.constant 0 : index
    %c32_302 = arith.constant 32 : index
    %1719 = vector.load %arg3[%c0_299, %c5_300, %c0_301, %c32_302] : memref<1x8x16x64xf32, #tpu.memory_space<vmem>>, vector<1x1x16x16xf32>
    %1720 = vector.shape_cast %1719 : vector<1x1x16x16xf32> to vector<16x16xf32>
    %1721 = vector.shape_cast %1695 : vector<16x16xf32> to vector<1x1x16x16xf32>
    tpu.vector_store %arg3[%c0_299, %c5_300, %c0_301, %c32_302], %1721 {strides = array<i32>} : memref<1x8x16x64xf32, #tpu.memory_space<vmem>>, vector<1x1x16x16xf32>,
    %c0_303 = arith.constant 0 : index
    %c6_304 = arith.constant 6 : index
    %c0_305 = arith.constant 0 : index
    %c32_306 = arith.constant 32 : index
    %1722 = vector.load %arg3[%c0_303, %c6_304, %c0_305, %c32_306] : memref<1x8x16x64xf32, #tpu.memory_space<vmem>>, vector<1x1x16x16xf32>
    %1723 = vector.shape_cast %1722 : vector<1x1x16x16xf32> to vector<16x16xf32>
    %1724 = vector.shape_cast %1699 : vector<16x16xf32> to vector<1x1x16x16xf32>
    tpu.vector_store %arg3[%c0_303, %c6_304, %c0_305, %c32_306], %1724 {strides = array<i32>} : memref<1x8x16x64xf32, #tpu.memory_space<vmem>>, vector<1x1x16x16xf32>,
    %c0_307 = arith.constant 0 : index
    %c7_308 = arith.constant 7 : index
    %c0_309 = arith.constant 0 : index
    %c32_310 = arith.constant 32 : index
    %1725 = vector.load %arg3[%c0_307, %c7_308, %c0_309, %c32_310] : memref<1x8x16x64xf32, #tpu.memory_space<vmem>>, vector<1x1x16x16xf32>
    %1726 = vector.shape_cast %1725 : vector<1x1x16x16xf32> to vector<16x16xf32>
    %1727 = vector.shape_cast %1703 : vector<16x16xf32> to vector<1x1x16x16xf32>
    tpu.vector_store %arg3[%c0_307, %c7_308, %c0_309, %c32_310], %1727 {strides = array<i32>} : memref<1x8x16x64xf32, #tpu.memory_space<vmem>>, vector<1x1x16x16xf32>,
    %cst_311 = arith.constant 0.000000e+00 : f32
    %1728 = vector.broadcast %cst_311 : f32 to vector<16x16xf32>
    %cst_312 = arith.constant 0.000000e+00 : f32
    %1729 = vector.broadcast %cst_312 : f32 to vector<16x16xf32>
    %cst_313 = arith.constant 0.000000e+00 : f32
    %1730 = vector.broadcast %cst_313 : f32 to vector<16x16xf32>
    %cst_314 = arith.constant 0.000000e+00 : f32
    %1731 = vector.broadcast %cst_314 : f32 to vector<16x16xf32>
    %cst_315 = arith.constant 0.000000e+00 : f32
    %1732 = vector.broadcast %cst_315 : f32 to vector<16x16xf32>
    %cst_316 = arith.constant 0.000000e+00 : f32
    %1733 = vector.broadcast %cst_316 : f32 to vector<16x16xf32>
    %cst_317 = arith.constant 0.000000e+00 : f32
    %1734 = vector.broadcast %cst_317 : f32 to vector<16x16xf32>
    %cst_318 = arith.constant 0.000000e+00 : f32
    %1735 = vector.broadcast %cst_318 : f32 to vector<16x16xf32>
    %c0_319 = arith.constant 0 : index
    %c0_320 = arith.constant 0 : index
    %c2_321 = arith.constant 2 : index
    %c2_322 = arith.constant 2 : index
    %1736 = vector.load %arg2[%c0_319, %c0_320, %c2_321, %c2_322] : memref<1x4x18x18xf32, #tpu.memory_space<vmem>>, vector<1x1x16x16xf32>
    %1737 = vector.shape_cast %1736 : vector<1x1x16x16xf32> to vector<16x16xf32>
    %c384 = arith.constant 384 : index
    %1738 = memref.load %arg1[%c384] : memref<512xf32, #tpu.memory_space<smem>>
    %1739 = vector.broadcast %1738 : f32 to vector<16x16xf32>
    %1740 = arith.mulf %1739, %1737 : vector<16x16xf32>
    %1741 = arith.addf %1728, %1740 : vector<16x16xf32>
    %c385 = arith.constant 385 : index
    %1742 = memref.load %arg1[%c385] : memref<512xf32, #tpu.memory_space<smem>>
    %1743 = vector.broadcast %1742 : f32 to vector<16x16xf32>
    %1744 = arith.mulf %1743, %1737 : vector<16x16xf32>
    %1745 = arith.addf %1729, %1744 : vector<16x16xf32>
    %c386 = arith.constant 386 : index
    %1746 = memref.load %arg1[%c386] : memref<512xf32, #tpu.memory_space<smem>>
    %1747 = vector.broadcast %1746 : f32 to vector<16x16xf32>
    %1748 = arith.mulf %1747, %1737 : vector<16x16xf32>
    %1749 = arith.addf %1730, %1748 : vector<16x16xf32>
    %c387 = arith.constant 387 : index
    %1750 = memref.load %arg1[%c387] : memref<512xf32, #tpu.memory_space<smem>>
    %1751 = vector.broadcast %1750 : f32 to vector<16x16xf32>
    %1752 = arith.mulf %1751, %1737 : vector<16x16xf32>
    %1753 = arith.addf %1731, %1752 : vector<16x16xf32>
    %c388 = arith.constant 388 : index
    %1754 = memref.load %arg1[%c388] : memref<512xf32, #tpu.memory_space<smem>>
    %1755 = vector.broadcast %1754 : f32 to vector<16x16xf32>
    %1756 = arith.mulf %1755, %1737 : vector<16x16xf32>
    %1757 = arith.addf %1732, %1756 : vector<16x16xf32>
    %c389 = arith.constant 389 : index
    %1758 = memref.load %arg1[%c389] : memref<512xf32, #tpu.memory_space<smem>>
    %1759 = vector.broadcast %1758 : f32 to vector<16x16xf32>
    %1760 = arith.mulf %1759, %1737 : vector<16x16xf32>
    %1761 = arith.addf %1733, %1760 : vector<16x16xf32>
    %c390 = arith.constant 390 : index
    %1762 = memref.load %arg1[%c390] : memref<512xf32, #tpu.memory_space<smem>>
    %1763 = vector.broadcast %1762 : f32 to vector<16x16xf32>
    %1764 = arith.mulf %1763, %1737 : vector<16x16xf32>
    %1765 = arith.addf %1734, %1764 : vector<16x16xf32>
    %c391 = arith.constant 391 : index
    %1766 = memref.load %arg1[%c391] : memref<512xf32, #tpu.memory_space<smem>>
    %1767 = vector.broadcast %1766 : f32 to vector<16x16xf32>
    %1768 = arith.mulf %1767, %1737 : vector<16x16xf32>
    %1769 = arith.addf %1735, %1768 : vector<16x16xf32>
    %c0_323 = arith.constant 0 : index
    %c0_324 = arith.constant 0 : index
    %c2_325 = arith.constant 2 : index
    %c1_326 = arith.constant 1 : index
    %1770 = vector.load %arg2[%c0_323, %c0_324, %c2_325, %c1_326] : memref<1x4x18x18xf32, #tpu.memory_space<vmem>>, vector<1x1x16x16xf32>
    %1771 = vector.shape_cast %1770 : vector<1x1x16x16xf32> to vector<16x16xf32>
    %c416 = arith.constant 416 : index
    %1772 = memref.load %arg1[%c416] : memref<512xf32, #tpu.memory_space<smem>>
    %1773 = vector.broadcast %1772 : f32 to vector<16x16xf32>
    %1774 = arith.mulf %1773, %1771 : vector<16x16xf32>
    %1775 = arith.addf %1741, %1774 : vector<16x16xf32>
    %c417 = arith.constant 417 : index
    %1776 = memref.load %arg1[%c417] : memref<512xf32, #tpu.memory_space<smem>>
    %1777 = vector.broadcast %1776 : f32 to vector<16x16xf32>
    %1778 = arith.mulf %1777, %1771 : vector<16x16xf32>
    %1779 = arith.addf %1745, %1778 : vector<16x16xf32>
    %c418 = arith.constant 418 : index
    %1780 = memref.load %arg1[%c418] : memref<512xf32, #tpu.memory_space<smem>>
    %1781 = vector.broadcast %1780 : f32 to vector<16x16xf32>
    %1782 = arith.mulf %1781, %1771 : vector<16x16xf32>
    %1783 = arith.addf %1749, %1782 : vector<16x16xf32>
    %c419 = arith.constant 419 : index
    %1784 = memref.load %arg1[%c419] : memref<512xf32, #tpu.memory_space<smem>>
    %1785 = vector.broadcast %1784 : f32 to vector<16x16xf32>
    %1786 = arith.mulf %1785, %1771 : vector<16x16xf32>
    %1787 = arith.addf %1753, %1786 : vector<16x16xf32>
    %c420 = arith.constant 420 : index
    %1788 = memref.load %arg1[%c420] : memref<512xf32, #tpu.memory_space<smem>>
    %1789 = vector.broadcast %1788 : f32 to vector<16x16xf32>
    %1790 = arith.mulf %1789, %1771 : vector<16x16xf32>
    %1791 = arith.addf %1757, %1790 : vector<16x16xf32>
    %c421 = arith.constant 421 : index
    %1792 = memref.load %arg1[%c421] : memref<512xf32, #tpu.memory_space<smem>>
    %1793 = vector.broadcast %1792 : f32 to vector<16x16xf32>
    %1794 = arith.mulf %1793, %1771 : vector<16x16xf32>
    %1795 = arith.addf %1761, %1794 : vector<16x16xf32>
    %c422 = arith.constant 422 : index
    %1796 = memref.load %arg1[%c422] : memref<512xf32, #tpu.memory_space<smem>>
    %1797 = vector.broadcast %1796 : f32 to vector<16x16xf32>
    %1798 = arith.mulf %1797, %1771 : vector<16x16xf32>
    %1799 = arith.addf %1765, %1798 : vector<16x16xf32>
    %c423 = arith.constant 423 : index
    %1800 = memref.load %arg1[%c423] : memref<512xf32, #tpu.memory_space<smem>>
    %1801 = vector.broadcast %1800 : f32 to vector<16x16xf32>
    %1802 = arith.mulf %1801, %1771 : vector<16x16xf32>
    %1803 = arith.addf %1769, %1802 : vector<16x16xf32>
    %c0_327 = arith.constant 0 : index
    %c0_328 = arith.constant 0 : index
    %c1_329 = arith.constant 1 : index
    %c2_330 = arith.constant 2 : index
    %1804 = vector.load %arg2[%c0_327, %c0_328, %c1_329, %c2_330] : memref<1x4x18x18xf32, #tpu.memory_space<vmem>>, vector<1x1x16x16xf32>
    %1805 = vector.shape_cast %1804 : vector<1x1x16x16xf32> to vector<16x16xf32>
    %c448 = arith.constant 448 : index
    %1806 = memref.load %arg1[%c448] : memref<512xf32, #tpu.memory_space<smem>>
    %1807 = vector.broadcast %1806 : f32 to vector<16x16xf32>
    %1808 = arith.mulf %1807, %1805 : vector<16x16xf32>
    %1809 = arith.addf %1775, %1808 : vector<16x16xf32>
    %c449 = arith.constant 449 : index
    %1810 = memref.load %arg1[%c449] : memref<512xf32, #tpu.memory_space<smem>>
    %1811 = vector.broadcast %1810 : f32 to vector<16x16xf32>
    %1812 = arith.mulf %1811, %1805 : vector<16x16xf32>
    %1813 = arith.addf %1779, %1812 : vector<16x16xf32>
    %c450 = arith.constant 450 : index
    %1814 = memref.load %arg1[%c450] : memref<512xf32, #tpu.memory_space<smem>>
    %1815 = vector.broadcast %1814 : f32 to vector<16x16xf32>
    %1816 = arith.mulf %1815, %1805 : vector<16x16xf32>
    %1817 = arith.addf %1783, %1816 : vector<16x16xf32>
    %c451 = arith.constant 451 : index
    %1818 = memref.load %arg1[%c451] : memref<512xf32, #tpu.memory_space<smem>>
    %1819 = vector.broadcast %1818 : f32 to vector<16x16xf32>
    %1820 = arith.mulf %1819, %1805 : vector<16x16xf32>
    %1821 = arith.addf %1787, %1820 : vector<16x16xf32>
    %c452 = arith.constant 452 : index
    %1822 = memref.load %arg1[%c452] : memref<512xf32, #tpu.memory_space<smem>>
    %1823 = vector.broadcast %1822 : f32 to vector<16x16xf32>
    %1824 = arith.mulf %1823, %1805 : vector<16x16xf32>
    %1825 = arith.addf %1791, %1824 : vector<16x16xf32>
    %c453 = arith.constant 453 : index
    %1826 = memref.load %arg1[%c453] : memref<512xf32, #tpu.memory_space<smem>>
    %1827 = vector.broadcast %1826 : f32 to vector<16x16xf32>
    %1828 = arith.mulf %1827, %1805 : vector<16x16xf32>
    %1829 = arith.addf %1795, %1828 : vector<16x16xf32>
    %c454 = arith.constant 454 : index
    %1830 = memref.load %arg1[%c454] : memref<512xf32, #tpu.memory_space<smem>>
    %1831 = vector.broadcast %1830 : f32 to vector<16x16xf32>
    %1832 = arith.mulf %1831, %1805 : vector<16x16xf32>
    %1833 = arith.addf %1799, %1832 : vector<16x16xf32>
    %c455 = arith.constant 455 : index
    %1834 = memref.load %arg1[%c455] : memref<512xf32, #tpu.memory_space<smem>>
    %1835 = vector.broadcast %1834 : f32 to vector<16x16xf32>
    %1836 = arith.mulf %1835, %1805 : vector<16x16xf32>
    %1837 = arith.addf %1803, %1836 : vector<16x16xf32>
    %c0_331 = arith.constant 0 : index
    %c0_332 = arith.constant 0 : index
    %c1_333 = arith.constant 1 : index
    %c1_334 = arith.constant 1 : index
    %1838 = vector.load %arg2[%c0_331, %c0_332, %c1_333, %c1_334] : memref<1x4x18x18xf32, #tpu.memory_space<vmem>>, vector<1x1x16x16xf32>
    %1839 = vector.shape_cast %1838 : vector<1x1x16x16xf32> to vector<16x16xf32>
    %c480 = arith.constant 480 : index
    %1840 = memref.load %arg1[%c480] : memref<512xf32, #tpu.memory_space<smem>>
    %1841 = vector.broadcast %1840 : f32 to vector<16x16xf32>
    %1842 = arith.mulf %1841, %1839 : vector<16x16xf32>
    %1843 = arith.addf %1809, %1842 : vector<16x16xf32>
    %c481 = arith.constant 481 : index
    %1844 = memref.load %arg1[%c481] : memref<512xf32, #tpu.memory_space<smem>>
    %1845 = vector.broadcast %1844 : f32 to vector<16x16xf32>
    %1846 = arith.mulf %1845, %1839 : vector<16x16xf32>
    %1847 = arith.addf %1813, %1846 : vector<16x16xf32>
    %c482 = arith.constant 482 : index
    %1848 = memref.load %arg1[%c482] : memref<512xf32, #tpu.memory_space<smem>>
    %1849 = vector.broadcast %1848 : f32 to vector<16x16xf32>
    %1850 = arith.mulf %1849, %1839 : vector<16x16xf32>
    %1851 = arith.addf %1817, %1850 : vector<16x16xf32>
    %c483 = arith.constant 483 : index
    %1852 = memref.load %arg1[%c483] : memref<512xf32, #tpu.memory_space<smem>>
    %1853 = vector.broadcast %1852 : f32 to vector<16x16xf32>
    %1854 = arith.mulf %1853, %1839 : vector<16x16xf32>
    %1855 = arith.addf %1821, %1854 : vector<16x16xf32>
    %c484 = arith.constant 484 : index
    %1856 = memref.load %arg1[%c484] : memref<512xf32, #tpu.memory_space<smem>>
    %1857 = vector.broadcast %1856 : f32 to vector<16x16xf32>
    %1858 = arith.mulf %1857, %1839 : vector<16x16xf32>
    %1859 = arith.addf %1825, %1858 : vector<16x16xf32>
    %c485 = arith.constant 485 : index
    %1860 = memref.load %arg1[%c485] : memref<512xf32, #tpu.memory_space<smem>>
    %1861 = vector.broadcast %1860 : f32 to vector<16x16xf32>
    %1862 = arith.mulf %1861, %1839 : vector<16x16xf32>
    %1863 = arith.addf %1829, %1862 : vector<16x16xf32>
    %c486 = arith.constant 486 : index
    %1864 = memref.load %arg1[%c486] : memref<512xf32, #tpu.memory_space<smem>>
    %1865 = vector.broadcast %1864 : f32 to vector<16x16xf32>
    %1866 = arith.mulf %1865, %1839 : vector<16x16xf32>
    %1867 = arith.addf %1833, %1866 : vector<16x16xf32>
    %c487 = arith.constant 487 : index
    %1868 = memref.load %arg1[%c487] : memref<512xf32, #tpu.memory_space<smem>>
    %1869 = vector.broadcast %1868 : f32 to vector<16x16xf32>
    %1870 = arith.mulf %1869, %1839 : vector<16x16xf32>
    %1871 = arith.addf %1837, %1870 : vector<16x16xf32>
    %c0_335 = arith.constant 0 : index
    %c1_336 = arith.constant 1 : index
    %c2_337 = arith.constant 2 : index
    %c2_338 = arith.constant 2 : index
    %1872 = vector.load %arg2[%c0_335, %c1_336, %c2_337, %c2_338] : memref<1x4x18x18xf32, #tpu.memory_space<vmem>>, vector<1x1x16x16xf32>
    %1873 = vector.shape_cast %1872 : vector<1x1x16x16xf32> to vector<16x16xf32>
    %c392 = arith.constant 392 : index
    %1874 = memref.load %arg1[%c392] : memref<512xf32, #tpu.memory_space<smem>>
    %1875 = vector.broadcast %1874 : f32 to vector<16x16xf32>
    %1876 = arith.mulf %1875, %1873 : vector<16x16xf32>
    %1877 = arith.addf %1843, %1876 : vector<16x16xf32>
    %c393 = arith.constant 393 : index
    %1878 = memref.load %arg1[%c393] : memref<512xf32, #tpu.memory_space<smem>>
    %1879 = vector.broadcast %1878 : f32 to vector<16x16xf32>
    %1880 = arith.mulf %1879, %1873 : vector<16x16xf32>
    %1881 = arith.addf %1847, %1880 : vector<16x16xf32>
    %c394 = arith.constant 394 : index
    %1882 = memref.load %arg1[%c394] : memref<512xf32, #tpu.memory_space<smem>>
    %1883 = vector.broadcast %1882 : f32 to vector<16x16xf32>
    %1884 = arith.mulf %1883, %1873 : vector<16x16xf32>
    %1885 = arith.addf %1851, %1884 : vector<16x16xf32>
    %c395 = arith.constant 395 : index
    %1886 = memref.load %arg1[%c395] : memref<512xf32, #tpu.memory_space<smem>>
    %1887 = vector.broadcast %1886 : f32 to vector<16x16xf32>
    %1888 = arith.mulf %1887, %1873 : vector<16x16xf32>
    %1889 = arith.addf %1855, %1888 : vector<16x16xf32>
    %c396 = arith.constant 396 : index
    %1890 = memref.load %arg1[%c396] : memref<512xf32, #tpu.memory_space<smem>>
    %1891 = vector.broadcast %1890 : f32 to vector<16x16xf32>
    %1892 = arith.mulf %1891, %1873 : vector<16x16xf32>
    %1893 = arith.addf %1859, %1892 : vector<16x16xf32>
    %c397 = arith.constant 397 : index
    %1894 = memref.load %arg1[%c397] : memref<512xf32, #tpu.memory_space<smem>>
    %1895 = vector.broadcast %1894 : f32 to vector<16x16xf32>
    %1896 = arith.mulf %1895, %1873 : vector<16x16xf32>
    %1897 = arith.addf %1863, %1896 : vector<16x16xf32>
    %c398 = arith.constant 398 : index
    %1898 = memref.load %arg1[%c398] : memref<512xf32, #tpu.memory_space<smem>>
    %1899 = vector.broadcast %1898 : f32 to vector<16x16xf32>
    %1900 = arith.mulf %1899, %1873 : vector<16x16xf32>
    %1901 = arith.addf %1867, %1900 : vector<16x16xf32>
    %c399 = arith.constant 399 : index
    %1902 = memref.load %arg1[%c399] : memref<512xf32, #tpu.memory_space<smem>>
    %1903 = vector.broadcast %1902 : f32 to vector<16x16xf32>
    %1904 = arith.mulf %1903, %1873 : vector<16x16xf32>
    %1905 = arith.addf %1871, %1904 : vector<16x16xf32>
    %c0_339 = arith.constant 0 : index
    %c1_340 = arith.constant 1 : index
    %c2_341 = arith.constant 2 : index
    %c1_342 = arith.constant 1 : index
    %1906 = vector.load %arg2[%c0_339, %c1_340, %c2_341, %c1_342] : memref<1x4x18x18xf32, #tpu.memory_space<vmem>>, vector<1x1x16x16xf32>
    %1907 = vector.shape_cast %1906 : vector<1x1x16x16xf32> to vector<16x16xf32>
    %c424 = arith.constant 424 : index
    %1908 = memref.load %arg1[%c424] : memref<512xf32, #tpu.memory_space<smem>>
    %1909 = vector.broadcast %1908 : f32 to vector<16x16xf32>
    %1910 = arith.mulf %1909, %1907 : vector<16x16xf32>
    %1911 = arith.addf %1877, %1910 : vector<16x16xf32>
    %c425 = arith.constant 425 : index
    %1912 = memref.load %arg1[%c425] : memref<512xf32, #tpu.memory_space<smem>>
    %1913 = vector.broadcast %1912 : f32 to vector<16x16xf32>
    %1914 = arith.mulf %1913, %1907 : vector<16x16xf32>
    %1915 = arith.addf %1881, %1914 : vector<16x16xf32>
    %c426 = arith.constant 426 : index
    %1916 = memref.load %arg1[%c426] : memref<512xf32, #tpu.memory_space<smem>>
    %1917 = vector.broadcast %1916 : f32 to vector<16x16xf32>
    %1918 = arith.mulf %1917, %1907 : vector<16x16xf32>
    %1919 = arith.addf %1885, %1918 : vector<16x16xf32>
    %c427 = arith.constant 427 : index
    %1920 = memref.load %arg1[%c427] : memref<512xf32, #tpu.memory_space<smem>>
    %1921 = vector.broadcast %1920 : f32 to vector<16x16xf32>
    %1922 = arith.mulf %1921, %1907 : vector<16x16xf32>
    %1923 = arith.addf %1889, %1922 : vector<16x16xf32>
    %c428 = arith.constant 428 : index
    %1924 = memref.load %arg1[%c428] : memref<512xf32, #tpu.memory_space<smem>>
    %1925 = vector.broadcast %1924 : f32 to vector<16x16xf32>
    %1926 = arith.mulf %1925, %1907 : vector<16x16xf32>
    %1927 = arith.addf %1893, %1926 : vector<16x16xf32>
    %c429 = arith.constant 429 : index
    %1928 = memref.load %arg1[%c429] : memref<512xf32, #tpu.memory_space<smem>>
    %1929 = vector.broadcast %1928 : f32 to vector<16x16xf32>
    %1930 = arith.mulf %1929, %1907 : vector<16x16xf32>
    %1931 = arith.addf %1897, %1930 : vector<16x16xf32>
    %c430 = arith.constant 430 : index
    %1932 = memref.load %arg1[%c430] : memref<512xf32, #tpu.memory_space<smem>>
    %1933 = vector.broadcast %1932 : f32 to vector<16x16xf32>
    %1934 = arith.mulf %1933, %1907 : vector<16x16xf32>
    %1935 = arith.addf %1901, %1934 : vector<16x16xf32>
    %c431 = arith.constant 431 : index
    %1936 = memref.load %arg1[%c431] : memref<512xf32, #tpu.memory_space<smem>>
    %1937 = vector.broadcast %1936 : f32 to vector<16x16xf32>
    %1938 = arith.mulf %1937, %1907 : vector<16x16xf32>
    %1939 = arith.addf %1905, %1938 : vector<16x16xf32>
    %c0_343 = arith.constant 0 : index
    %c1_344 = arith.constant 1 : index
    %c1_345 = arith.constant 1 : index
    %c2_346 = arith.constant 2 : index
    %1940 = vector.load %arg2[%c0_343, %c1_344, %c1_345, %c2_346] : memref<1x4x18x18xf32, #tpu.memory_space<vmem>>, vector<1x1x16x16xf32>
    %1941 = vector.shape_cast %1940 : vector<1x1x16x16xf32> to vector<16x16xf32>
    %c456 = arith.constant 456 : index
    %1942 = memref.load %arg1[%c456] : memref<512xf32, #tpu.memory_space<smem>>
    %1943 = vector.broadcast %1942 : f32 to vector<16x16xf32>
    %1944 = arith.mulf %1943, %1941 : vector<16x16xf32>
    %1945 = arith.addf %1911, %1944 : vector<16x16xf32>
    %c457 = arith.constant 457 : index
    %1946 = memref.load %arg1[%c457] : memref<512xf32, #tpu.memory_space<smem>>
    %1947 = vector.broadcast %1946 : f32 to vector<16x16xf32>
    %1948 = arith.mulf %1947, %1941 : vector<16x16xf32>
    %1949 = arith.addf %1915, %1948 : vector<16x16xf32>
    %c458 = arith.constant 458 : index
    %1950 = memref.load %arg1[%c458] : memref<512xf32, #tpu.memory_space<smem>>
    %1951 = vector.broadcast %1950 : f32 to vector<16x16xf32>
    %1952 = arith.mulf %1951, %1941 : vector<16x16xf32>
    %1953 = arith.addf %1919, %1952 : vector<16x16xf32>
    %c459 = arith.constant 459 : index
    %1954 = memref.load %arg1[%c459] : memref<512xf32, #tpu.memory_space<smem>>
    %1955 = vector.broadcast %1954 : f32 to vector<16x16xf32>
    %1956 = arith.mulf %1955, %1941 : vector<16x16xf32>
    %1957 = arith.addf %1923, %1956 : vector<16x16xf32>
    %c460 = arith.constant 460 : index
    %1958 = memref.load %arg1[%c460] : memref<512xf32, #tpu.memory_space<smem>>
    %1959 = vector.broadcast %1958 : f32 to vector<16x16xf32>
    %1960 = arith.mulf %1959, %1941 : vector<16x16xf32>
    %1961 = arith.addf %1927, %1960 : vector<16x16xf32>
    %c461 = arith.constant 461 : index
    %1962 = memref.load %arg1[%c461] : memref<512xf32, #tpu.memory_space<smem>>
    %1963 = vector.broadcast %1962 : f32 to vector<16x16xf32>
    %1964 = arith.mulf %1963, %1941 : vector<16x16xf32>
    %1965 = arith.addf %1931, %1964 : vector<16x16xf32>
    %c462 = arith.constant 462 : index
    %1966 = memref.load %arg1[%c462] : memref<512xf32, #tpu.memory_space<smem>>
    %1967 = vector.broadcast %1966 : f32 to vector<16x16xf32>
    %1968 = arith.mulf %1967, %1941 : vector<16x16xf32>
    %1969 = arith.addf %1935, %1968 : vector<16x16xf32>
    %c463 = arith.constant 463 : index
    %1970 = memref.load %arg1[%c463] : memref<512xf32, #tpu.memory_space<smem>>
    %1971 = vector.broadcast %1970 : f32 to vector<16x16xf32>
    %1972 = arith.mulf %1971, %1941 : vector<16x16xf32>
    %1973 = arith.addf %1939, %1972 : vector<16x16xf32>
    %c0_347 = arith.constant 0 : index
    %c1_348 = arith.constant 1 : index
    %c1_349 = arith.constant 1 : index
    %c1_350 = arith.constant 1 : index
    %1974 = vector.load %arg2[%c0_347, %c1_348, %c1_349, %c1_350] : memref<1x4x18x18xf32, #tpu.memory_space<vmem>>, vector<1x1x16x16xf32>
    %1975 = vector.shape_cast %1974 : vector<1x1x16x16xf32> to vector<16x16xf32>
    %c488 = arith.constant 488 : index
    %1976 = memref.load %arg1[%c488] : memref<512xf32, #tpu.memory_space<smem>>
    %1977 = vector.broadcast %1976 : f32 to vector<16x16xf32>
    %1978 = arith.mulf %1977, %1975 : vector<16x16xf32>
    %1979 = arith.addf %1945, %1978 : vector<16x16xf32>
    %c489 = arith.constant 489 : index
    %1980 = memref.load %arg1[%c489] : memref<512xf32, #tpu.memory_space<smem>>
    %1981 = vector.broadcast %1980 : f32 to vector<16x16xf32>
    %1982 = arith.mulf %1981, %1975 : vector<16x16xf32>
    %1983 = arith.addf %1949, %1982 : vector<16x16xf32>
    %c490 = arith.constant 490 : index
    %1984 = memref.load %arg1[%c490] : memref<512xf32, #tpu.memory_space<smem>>
    %1985 = vector.broadcast %1984 : f32 to vector<16x16xf32>
    %1986 = arith.mulf %1985, %1975 : vector<16x16xf32>
    %1987 = arith.addf %1953, %1986 : vector<16x16xf32>
    %c491 = arith.constant 491 : index
    %1988 = memref.load %arg1[%c491] : memref<512xf32, #tpu.memory_space<smem>>
    %1989 = vector.broadcast %1988 : f32 to vector<16x16xf32>
    %1990 = arith.mulf %1989, %1975 : vector<16x16xf32>
    %1991 = arith.addf %1957, %1990 : vector<16x16xf32>
    %c492 = arith.constant 492 : index
    %1992 = memref.load %arg1[%c492] : memref<512xf32, #tpu.memory_space<smem>>
    %1993 = vector.broadcast %1992 : f32 to vector<16x16xf32>
    %1994 = arith.mulf %1993, %1975 : vector<16x16xf32>
    %1995 = arith.addf %1961, %1994 : vector<16x16xf32>
    %c493 = arith.constant 493 : index
    %1996 = memref.load %arg1[%c493] : memref<512xf32, #tpu.memory_space<smem>>
    %1997 = vector.broadcast %1996 : f32 to vector<16x16xf32>
    %1998 = arith.mulf %1997, %1975 : vector<16x16xf32>
    %1999 = arith.addf %1965, %1998 : vector<16x16xf32>
    %c494 = arith.constant 494 : index
    %2000 = memref.load %arg1[%c494] : memref<512xf32, #tpu.memory_space<smem>>
    %2001 = vector.broadcast %2000 : f32 to vector<16x16xf32>
    %2002 = arith.mulf %2001, %1975 : vector<16x16xf32>
    %2003 = arith.addf %1969, %2002 : vector<16x16xf32>
    %c495 = arith.constant 495 : index
    %2004 = memref.load %arg1[%c495] : memref<512xf32, #tpu.memory_space<smem>>
    %2005 = vector.broadcast %2004 : f32 to vector<16x16xf32>
    %2006 = arith.mulf %2005, %1975 : vector<16x16xf32>
    %2007 = arith.addf %1973, %2006 : vector<16x16xf32>
    %c0_351 = arith.constant 0 : index
    %c2_352 = arith.constant 2 : index
    %c2_353 = arith.constant 2 : index
    %c2_354 = arith.constant 2 : index
    %2008 = vector.load %arg2[%c0_351, %c2_352, %c2_353, %c2_354] : memref<1x4x18x18xf32, #tpu.memory_space<vmem>>, vector<1x1x16x16xf32>
    %2009 = vector.shape_cast %2008 : vector<1x1x16x16xf32> to vector<16x16xf32>
    %c400 = arith.constant 400 : index
    %2010 = memref.load %arg1[%c400] : memref<512xf32, #tpu.memory_space<smem>>
    %2011 = vector.broadcast %2010 : f32 to vector<16x16xf32>
    %2012 = arith.mulf %2011, %2009 : vector<16x16xf32>
    %2013 = arith.addf %1979, %2012 : vector<16x16xf32>
    %c401 = arith.constant 401 : index
    %2014 = memref.load %arg1[%c401] : memref<512xf32, #tpu.memory_space<smem>>
    %2015 = vector.broadcast %2014 : f32 to vector<16x16xf32>
    %2016 = arith.mulf %2015, %2009 : vector<16x16xf32>
    %2017 = arith.addf %1983, %2016 : vector<16x16xf32>
    %c402 = arith.constant 402 : index
    %2018 = memref.load %arg1[%c402] : memref<512xf32, #tpu.memory_space<smem>>
    %2019 = vector.broadcast %2018 : f32 to vector<16x16xf32>
    %2020 = arith.mulf %2019, %2009 : vector<16x16xf32>
    %2021 = arith.addf %1987, %2020 : vector<16x16xf32>
    %c403 = arith.constant 403 : index
    %2022 = memref.load %arg1[%c403] : memref<512xf32, #tpu.memory_space<smem>>
    %2023 = vector.broadcast %2022 : f32 to vector<16x16xf32>
    %2024 = arith.mulf %2023, %2009 : vector<16x16xf32>
    %2025 = arith.addf %1991, %2024 : vector<16x16xf32>
    %c404 = arith.constant 404 : index
    %2026 = memref.load %arg1[%c404] : memref<512xf32, #tpu.memory_space<smem>>
    %2027 = vector.broadcast %2026 : f32 to vector<16x16xf32>
    %2028 = arith.mulf %2027, %2009 : vector<16x16xf32>
    %2029 = arith.addf %1995, %2028 : vector<16x16xf32>
    %c405 = arith.constant 405 : index
    %2030 = memref.load %arg1[%c405] : memref<512xf32, #tpu.memory_space<smem>>
    %2031 = vector.broadcast %2030 : f32 to vector<16x16xf32>
    %2032 = arith.mulf %2031, %2009 : vector<16x16xf32>
    %2033 = arith.addf %1999, %2032 : vector<16x16xf32>
    %c406 = arith.constant 406 : index
    %2034 = memref.load %arg1[%c406] : memref<512xf32, #tpu.memory_space<smem>>
    %2035 = vector.broadcast %2034 : f32 to vector<16x16xf32>
    %2036 = arith.mulf %2035, %2009 : vector<16x16xf32>
    %2037 = arith.addf %2003, %2036 : vector<16x16xf32>
    %c407 = arith.constant 407 : index
    %2038 = memref.load %arg1[%c407] : memref<512xf32, #tpu.memory_space<smem>>
    %2039 = vector.broadcast %2038 : f32 to vector<16x16xf32>
    %2040 = arith.mulf %2039, %2009 : vector<16x16xf32>
    %2041 = arith.addf %2007, %2040 : vector<16x16xf32>
    %c0_355 = arith.constant 0 : index
    %c2_356 = arith.constant 2 : index
    %c2_357 = arith.constant 2 : index
    %c1_358 = arith.constant 1 : index
    %2042 = vector.load %arg2[%c0_355, %c2_356, %c2_357, %c1_358] : memref<1x4x18x18xf32, #tpu.memory_space<vmem>>, vector<1x1x16x16xf32>
    %2043 = vector.shape_cast %2042 : vector<1x1x16x16xf32> to vector<16x16xf32>
    %c432 = arith.constant 432 : index
    %2044 = memref.load %arg1[%c432] : memref<512xf32, #tpu.memory_space<smem>>
    %2045 = vector.broadcast %2044 : f32 to vector<16x16xf32>
    %2046 = arith.mulf %2045, %2043 : vector<16x16xf32>
    %2047 = arith.addf %2013, %2046 : vector<16x16xf32>
    %c433 = arith.constant 433 : index
    %2048 = memref.load %arg1[%c433] : memref<512xf32, #tpu.memory_space<smem>>
    %2049 = vector.broadcast %2048 : f32 to vector<16x16xf32>
    %2050 = arith.mulf %2049, %2043 : vector<16x16xf32>
    %2051 = arith.addf %2017, %2050 : vector<16x16xf32>
    %c434 = arith.constant 434 : index
    %2052 = memref.load %arg1[%c434] : memref<512xf32, #tpu.memory_space<smem>>
    %2053 = vector.broadcast %2052 : f32 to vector<16x16xf32>
    %2054 = arith.mulf %2053, %2043 : vector<16x16xf32>
    %2055 = arith.addf %2021, %2054 : vector<16x16xf32>
    %c435 = arith.constant 435 : index
    %2056 = memref.load %arg1[%c435] : memref<512xf32, #tpu.memory_space<smem>>
    %2057 = vector.broadcast %2056 : f32 to vector<16x16xf32>
    %2058 = arith.mulf %2057, %2043 : vector<16x16xf32>
    %2059 = arith.addf %2025, %2058 : vector<16x16xf32>
    %c436 = arith.constant 436 : index
    %2060 = memref.load %arg1[%c436] : memref<512xf32, #tpu.memory_space<smem>>
    %2061 = vector.broadcast %2060 : f32 to vector<16x16xf32>
    %2062 = arith.mulf %2061, %2043 : vector<16x16xf32>
    %2063 = arith.addf %2029, %2062 : vector<16x16xf32>
    %c437 = arith.constant 437 : index
    %2064 = memref.load %arg1[%c437] : memref<512xf32, #tpu.memory_space<smem>>
    %2065 = vector.broadcast %2064 : f32 to vector<16x16xf32>
    %2066 = arith.mulf %2065, %2043 : vector<16x16xf32>
    %2067 = arith.addf %2033, %2066 : vector<16x16xf32>
    %c438 = arith.constant 438 : index
    %2068 = memref.load %arg1[%c438] : memref<512xf32, #tpu.memory_space<smem>>
    %2069 = vector.broadcast %2068 : f32 to vector<16x16xf32>
    %2070 = arith.mulf %2069, %2043 : vector<16x16xf32>
    %2071 = arith.addf %2037, %2070 : vector<16x16xf32>
    %c439 = arith.constant 439 : index
    %2072 = memref.load %arg1[%c439] : memref<512xf32, #tpu.memory_space<smem>>
    %2073 = vector.broadcast %2072 : f32 to vector<16x16xf32>
    %2074 = arith.mulf %2073, %2043 : vector<16x16xf32>
    %2075 = arith.addf %2041, %2074 : vector<16x16xf32>
    %c0_359 = arith.constant 0 : index
    %c2_360 = arith.constant 2 : index
    %c1_361 = arith.constant 1 : index
    %c2_362 = arith.constant 2 : index
    %2076 = vector.load %arg2[%c0_359, %c2_360, %c1_361, %c2_362] : memref<1x4x18x18xf32, #tpu.memory_space<vmem>>, vector<1x1x16x16xf32>
    %2077 = vector.shape_cast %2076 : vector<1x1x16x16xf32> to vector<16x16xf32>
    %c464 = arith.constant 464 : index
    %2078 = memref.load %arg1[%c464] : memref<512xf32, #tpu.memory_space<smem>>
    %2079 = vector.broadcast %2078 : f32 to vector<16x16xf32>
    %2080 = arith.mulf %2079, %2077 : vector<16x16xf32>
    %2081 = arith.addf %2047, %2080 : vector<16x16xf32>
    %c465 = arith.constant 465 : index
    %2082 = memref.load %arg1[%c465] : memref<512xf32, #tpu.memory_space<smem>>
    %2083 = vector.broadcast %2082 : f32 to vector<16x16xf32>
    %2084 = arith.mulf %2083, %2077 : vector<16x16xf32>
    %2085 = arith.addf %2051, %2084 : vector<16x16xf32>
    %c466 = arith.constant 466 : index
    %2086 = memref.load %arg1[%c466] : memref<512xf32, #tpu.memory_space<smem>>
    %2087 = vector.broadcast %2086 : f32 to vector<16x16xf32>
    %2088 = arith.mulf %2087, %2077 : vector<16x16xf32>
    %2089 = arith.addf %2055, %2088 : vector<16x16xf32>
    %c467 = arith.constant 467 : index
    %2090 = memref.load %arg1[%c467] : memref<512xf32, #tpu.memory_space<smem>>
    %2091 = vector.broadcast %2090 : f32 to vector<16x16xf32>
    %2092 = arith.mulf %2091, %2077 : vector<16x16xf32>
    %2093 = arith.addf %2059, %2092 : vector<16x16xf32>
    %c468 = arith.constant 468 : index
    %2094 = memref.load %arg1[%c468] : memref<512xf32, #tpu.memory_space<smem>>
    %2095 = vector.broadcast %2094 : f32 to vector<16x16xf32>
    %2096 = arith.mulf %2095, %2077 : vector<16x16xf32>
    %2097 = arith.addf %2063, %2096 : vector<16x16xf32>
    %c469 = arith.constant 469 : index
    %2098 = memref.load %arg1[%c469] : memref<512xf32, #tpu.memory_space<smem>>
    %2099 = vector.broadcast %2098 : f32 to vector<16x16xf32>
    %2100 = arith.mulf %2099, %2077 : vector<16x16xf32>
    %2101 = arith.addf %2067, %2100 : vector<16x16xf32>
    %c470 = arith.constant 470 : index
    %2102 = memref.load %arg1[%c470] : memref<512xf32, #tpu.memory_space<smem>>
    %2103 = vector.broadcast %2102 : f32 to vector<16x16xf32>
    %2104 = arith.mulf %2103, %2077 : vector<16x16xf32>
    %2105 = arith.addf %2071, %2104 : vector<16x16xf32>
    %c471 = arith.constant 471 : index
    %2106 = memref.load %arg1[%c471] : memref<512xf32, #tpu.memory_space<smem>>
    %2107 = vector.broadcast %2106 : f32 to vector<16x16xf32>
    %2108 = arith.mulf %2107, %2077 : vector<16x16xf32>
    %2109 = arith.addf %2075, %2108 : vector<16x16xf32>
    %c0_363 = arith.constant 0 : index
    %c2_364 = arith.constant 2 : index
    %c1_365 = arith.constant 1 : index
    %c1_366 = arith.constant 1 : index
    %2110 = vector.load %arg2[%c0_363, %c2_364, %c1_365, %c1_366] : memref<1x4x18x18xf32, #tpu.memory_space<vmem>>, vector<1x1x16x16xf32>
    %2111 = vector.shape_cast %2110 : vector<1x1x16x16xf32> to vector<16x16xf32>
    %c496 = arith.constant 496 : index
    %2112 = memref.load %arg1[%c496] : memref<512xf32, #tpu.memory_space<smem>>
    %2113 = vector.broadcast %2112 : f32 to vector<16x16xf32>
    %2114 = arith.mulf %2113, %2111 : vector<16x16xf32>
    %2115 = arith.addf %2081, %2114 : vector<16x16xf32>
    %c497 = arith.constant 497 : index
    %2116 = memref.load %arg1[%c497] : memref<512xf32, #tpu.memory_space<smem>>
    %2117 = vector.broadcast %2116 : f32 to vector<16x16xf32>
    %2118 = arith.mulf %2117, %2111 : vector<16x16xf32>
    %2119 = arith.addf %2085, %2118 : vector<16x16xf32>
    %c498 = arith.constant 498 : index
    %2120 = memref.load %arg1[%c498] : memref<512xf32, #tpu.memory_space<smem>>
    %2121 = vector.broadcast %2120 : f32 to vector<16x16xf32>
    %2122 = arith.mulf %2121, %2111 : vector<16x16xf32>
    %2123 = arith.addf %2089, %2122 : vector<16x16xf32>
    %c499 = arith.constant 499 : index
    %2124 = memref.load %arg1[%c499] : memref<512xf32, #tpu.memory_space<smem>>
    %2125 = vector.broadcast %2124 : f32 to vector<16x16xf32>
    %2126 = arith.mulf %2125, %2111 : vector<16x16xf32>
    %2127 = arith.addf %2093, %2126 : vector<16x16xf32>
    %c500 = arith.constant 500 : index
    %2128 = memref.load %arg1[%c500] : memref<512xf32, #tpu.memory_space<smem>>
    %2129 = vector.broadcast %2128 : f32 to vector<16x16xf32>
    %2130 = arith.mulf %2129, %2111 : vector<16x16xf32>
    %2131 = arith.addf %2097, %2130 : vector<16x16xf32>
    %c501 = arith.constant 501 : index
    %2132 = memref.load %arg1[%c501] : memref<512xf32, #tpu.memory_space<smem>>
    %2133 = vector.broadcast %2132 : f32 to vector<16x16xf32>
    %2134 = arith.mulf %2133, %2111 : vector<16x16xf32>
    %2135 = arith.addf %2101, %2134 : vector<16x16xf32>
    %c502 = arith.constant 502 : index
    %2136 = memref.load %arg1[%c502] : memref<512xf32, #tpu.memory_space<smem>>
    %2137 = vector.broadcast %2136 : f32 to vector<16x16xf32>
    %2138 = arith.mulf %2137, %2111 : vector<16x16xf32>
    %2139 = arith.addf %2105, %2138 : vector<16x16xf32>
    %c503 = arith.constant 503 : index
    %2140 = memref.load %arg1[%c503] : memref<512xf32, #tpu.memory_space<smem>>
    %2141 = vector.broadcast %2140 : f32 to vector<16x16xf32>
    %2142 = arith.mulf %2141, %2111 : vector<16x16xf32>
    %2143 = arith.addf %2109, %2142 : vector<16x16xf32>
    %c0_367 = arith.constant 0 : index
    %c3_368 = arith.constant 3 : index
    %c2_369 = arith.constant 2 : index
    %c2_370 = arith.constant 2 : index
    %2144 = vector.load %arg2[%c0_367, %c3_368, %c2_369, %c2_370] : memref<1x4x18x18xf32, #tpu.memory_space<vmem>>, vector<1x1x16x16xf32>
    %2145 = vector.shape_cast %2144 : vector<1x1x16x16xf32> to vector<16x16xf32>
    %c408 = arith.constant 408 : index
    %2146 = memref.load %arg1[%c408] : memref<512xf32, #tpu.memory_space<smem>>
    %2147 = vector.broadcast %2146 : f32 to vector<16x16xf32>
    %2148 = arith.mulf %2147, %2145 : vector<16x16xf32>
    %2149 = arith.addf %2115, %2148 : vector<16x16xf32>
    %c409 = arith.constant 409 : index
    %2150 = memref.load %arg1[%c409] : memref<512xf32, #tpu.memory_space<smem>>
    %2151 = vector.broadcast %2150 : f32 to vector<16x16xf32>
    %2152 = arith.mulf %2151, %2145 : vector<16x16xf32>
    %2153 = arith.addf %2119, %2152 : vector<16x16xf32>
    %c410 = arith.constant 410 : index
    %2154 = memref.load %arg1[%c410] : memref<512xf32, #tpu.memory_space<smem>>
    %2155 = vector.broadcast %2154 : f32 to vector<16x16xf32>
    %2156 = arith.mulf %2155, %2145 : vector<16x16xf32>
    %2157 = arith.addf %2123, %2156 : vector<16x16xf32>
    %c411 = arith.constant 411 : index
    %2158 = memref.load %arg1[%c411] : memref<512xf32, #tpu.memory_space<smem>>
    %2159 = vector.broadcast %2158 : f32 to vector<16x16xf32>
    %2160 = arith.mulf %2159, %2145 : vector<16x16xf32>
    %2161 = arith.addf %2127, %2160 : vector<16x16xf32>
    %c412 = arith.constant 412 : index
    %2162 = memref.load %arg1[%c412] : memref<512xf32, #tpu.memory_space<smem>>
    %2163 = vector.broadcast %2162 : f32 to vector<16x16xf32>
    %2164 = arith.mulf %2163, %2145 : vector<16x16xf32>
    %2165 = arith.addf %2131, %2164 : vector<16x16xf32>
    %c413 = arith.constant 413 : index
    %2166 = memref.load %arg1[%c413] : memref<512xf32, #tpu.memory_space<smem>>
    %2167 = vector.broadcast %2166 : f32 to vector<16x16xf32>
    %2168 = arith.mulf %2167, %2145 : vector<16x16xf32>
    %2169 = arith.addf %2135, %2168 : vector<16x16xf32>
    %c414 = arith.constant 414 : index
    %2170 = memref.load %arg1[%c414] : memref<512xf32, #tpu.memory_space<smem>>
    %2171 = vector.broadcast %2170 : f32 to vector<16x16xf32>
    %2172 = arith.mulf %2171, %2145 : vector<16x16xf32>
    %2173 = arith.addf %2139, %2172 : vector<16x16xf32>
    %c415 = arith.constant 415 : index
    %2174 = memref.load %arg1[%c415] : memref<512xf32, #tpu.memory_space<smem>>
    %2175 = vector.broadcast %2174 : f32 to vector<16x16xf32>
    %2176 = arith.mulf %2175, %2145 : vector<16x16xf32>
    %2177 = arith.addf %2143, %2176 : vector<16x16xf32>
    %c0_371 = arith.constant 0 : index
    %c3_372 = arith.constant 3 : index
    %c2_373 = arith.constant 2 : index
    %c1_374 = arith.constant 1 : index
    %2178 = vector.load %arg2[%c0_371, %c3_372, %c2_373, %c1_374] : memref<1x4x18x18xf32, #tpu.memory_space<vmem>>, vector<1x1x16x16xf32>
    %2179 = vector.shape_cast %2178 : vector<1x1x16x16xf32> to vector<16x16xf32>
    %c440 = arith.constant 440 : index
    %2180 = memref.load %arg1[%c440] : memref<512xf32, #tpu.memory_space<smem>>
    %2181 = vector.broadcast %2180 : f32 to vector<16x16xf32>
    %2182 = arith.mulf %2181, %2179 : vector<16x16xf32>
    %2183 = arith.addf %2149, %2182 : vector<16x16xf32>
    %c441 = arith.constant 441 : index
    %2184 = memref.load %arg1[%c441] : memref<512xf32, #tpu.memory_space<smem>>
    %2185 = vector.broadcast %2184 : f32 to vector<16x16xf32>
    %2186 = arith.mulf %2185, %2179 : vector<16x16xf32>
    %2187 = arith.addf %2153, %2186 : vector<16x16xf32>
    %c442 = arith.constant 442 : index
    %2188 = memref.load %arg1[%c442] : memref<512xf32, #tpu.memory_space<smem>>
    %2189 = vector.broadcast %2188 : f32 to vector<16x16xf32>
    %2190 = arith.mulf %2189, %2179 : vector<16x16xf32>
    %2191 = arith.addf %2157, %2190 : vector<16x16xf32>
    %c443 = arith.constant 443 : index
    %2192 = memref.load %arg1[%c443] : memref<512xf32, #tpu.memory_space<smem>>
    %2193 = vector.broadcast %2192 : f32 to vector<16x16xf32>
    %2194 = arith.mulf %2193, %2179 : vector<16x16xf32>
    %2195 = arith.addf %2161, %2194 : vector<16x16xf32>
    %c444 = arith.constant 444 : index
    %2196 = memref.load %arg1[%c444] : memref<512xf32, #tpu.memory_space<smem>>
    %2197 = vector.broadcast %2196 : f32 to vector<16x16xf32>
    %2198 = arith.mulf %2197, %2179 : vector<16x16xf32>
    %2199 = arith.addf %2165, %2198 : vector<16x16xf32>
    %c445 = arith.constant 445 : index
    %2200 = memref.load %arg1[%c445] : memref<512xf32, #tpu.memory_space<smem>>
    %2201 = vector.broadcast %2200 : f32 to vector<16x16xf32>
    %2202 = arith.mulf %2201, %2179 : vector<16x16xf32>
    %2203 = arith.addf %2169, %2202 : vector<16x16xf32>
    %c446 = arith.constant 446 : index
    %2204 = memref.load %arg1[%c446] : memref<512xf32, #tpu.memory_space<smem>>
    %2205 = vector.broadcast %2204 : f32 to vector<16x16xf32>
    %2206 = arith.mulf %2205, %2179 : vector<16x16xf32>
    %2207 = arith.addf %2173, %2206 : vector<16x16xf32>
    %c447 = arith.constant 447 : index
    %2208 = memref.load %arg1[%c447] : memref<512xf32, #tpu.memory_space<smem>>
    %2209 = vector.broadcast %2208 : f32 to vector<16x16xf32>
    %2210 = arith.mulf %2209, %2179 : vector<16x16xf32>
    %2211 = arith.addf %2177, %2210 : vector<16x16xf32>
    %c0_375 = arith.constant 0 : index
    %c3_376 = arith.constant 3 : index
    %c1_377 = arith.constant 1 : index
    %c2_378 = arith.constant 2 : index
    %2212 = vector.load %arg2[%c0_375, %c3_376, %c1_377, %c2_378] : memref<1x4x18x18xf32, #tpu.memory_space<vmem>>, vector<1x1x16x16xf32>
    %2213 = vector.shape_cast %2212 : vector<1x1x16x16xf32> to vector<16x16xf32>
    %c472 = arith.constant 472 : index
    %2214 = memref.load %arg1[%c472] : memref<512xf32, #tpu.memory_space<smem>>
    %2215 = vector.broadcast %2214 : f32 to vector<16x16xf32>
    %2216 = arith.mulf %2215, %2213 : vector<16x16xf32>
    %2217 = arith.addf %2183, %2216 : vector<16x16xf32>
    %c473 = arith.constant 473 : index
    %2218 = memref.load %arg1[%c473] : memref<512xf32, #tpu.memory_space<smem>>
    %2219 = vector.broadcast %2218 : f32 to vector<16x16xf32>
    %2220 = arith.mulf %2219, %2213 : vector<16x16xf32>
    %2221 = arith.addf %2187, %2220 : vector<16x16xf32>
    %c474 = arith.constant 474 : index
    %2222 = memref.load %arg1[%c474] : memref<512xf32, #tpu.memory_space<smem>>
    %2223 = vector.broadcast %2222 : f32 to vector<16x16xf32>
    %2224 = arith.mulf %2223, %2213 : vector<16x16xf32>
    %2225 = arith.addf %2191, %2224 : vector<16x16xf32>
    %c475 = arith.constant 475 : index
    %2226 = memref.load %arg1[%c475] : memref<512xf32, #tpu.memory_space<smem>>
    %2227 = vector.broadcast %2226 : f32 to vector<16x16xf32>
    %2228 = arith.mulf %2227, %2213 : vector<16x16xf32>
    %2229 = arith.addf %2195, %2228 : vector<16x16xf32>
    %c476 = arith.constant 476 : index
    %2230 = memref.load %arg1[%c476] : memref<512xf32, #tpu.memory_space<smem>>
    %2231 = vector.broadcast %2230 : f32 to vector<16x16xf32>
    %2232 = arith.mulf %2231, %2213 : vector<16x16xf32>
    %2233 = arith.addf %2199, %2232 : vector<16x16xf32>
    %c477 = arith.constant 477 : index
    %2234 = memref.load %arg1[%c477] : memref<512xf32, #tpu.memory_space<smem>>
    %2235 = vector.broadcast %2234 : f32 to vector<16x16xf32>
    %2236 = arith.mulf %2235, %2213 : vector<16x16xf32>
    %2237 = arith.addf %2203, %2236 : vector<16x16xf32>
    %c478 = arith.constant 478 : index
    %2238 = memref.load %arg1[%c478] : memref<512xf32, #tpu.memory_space<smem>>
    %2239 = vector.broadcast %2238 : f32 to vector<16x16xf32>
    %2240 = arith.mulf %2239, %2213 : vector<16x16xf32>
    %2241 = arith.addf %2207, %2240 : vector<16x16xf32>
    %c479 = arith.constant 479 : index
    %2242 = memref.load %arg1[%c479] : memref<512xf32, #tpu.memory_space<smem>>
    %2243 = vector.broadcast %2242 : f32 to vector<16x16xf32>
    %2244 = arith.mulf %2243, %2213 : vector<16x16xf32>
    %2245 = arith.addf %2211, %2244 : vector<16x16xf32>
    %c0_379 = arith.constant 0 : index
    %c3_380 = arith.constant 3 : index
    %c1_381 = arith.constant 1 : index
    %c1_382 = arith.constant 1 : index
    %2246 = vector.load %arg2[%c0_379, %c3_380, %c1_381, %c1_382] : memref<1x4x18x18xf32, #tpu.memory_space<vmem>>, vector<1x1x16x16xf32>
    %2247 = vector.shape_cast %2246 : vector<1x1x16x16xf32> to vector<16x16xf32>
    %c504 = arith.constant 504 : index
    %2248 = memref.load %arg1[%c504] : memref<512xf32, #tpu.memory_space<smem>>
    %2249 = vector.broadcast %2248 : f32 to vector<16x16xf32>
    %2250 = arith.mulf %2249, %2247 : vector<16x16xf32>
    %2251 = arith.addf %2217, %2250 : vector<16x16xf32>
    %c505 = arith.constant 505 : index
    %2252 = memref.load %arg1[%c505] : memref<512xf32, #tpu.memory_space<smem>>
    %2253 = vector.broadcast %2252 : f32 to vector<16x16xf32>
    %2254 = arith.mulf %2253, %2247 : vector<16x16xf32>
    %2255 = arith.addf %2221, %2254 : vector<16x16xf32>
    %c506 = arith.constant 506 : index
    %2256 = memref.load %arg1[%c506] : memref<512xf32, #tpu.memory_space<smem>>
    %2257 = vector.broadcast %2256 : f32 to vector<16x16xf32>
    %2258 = arith.mulf %2257, %2247 : vector<16x16xf32>
    %2259 = arith.addf %2225, %2258 : vector<16x16xf32>
    %c507 = arith.constant 507 : index
    %2260 = memref.load %arg1[%c507] : memref<512xf32, #tpu.memory_space<smem>>
    %2261 = vector.broadcast %2260 : f32 to vector<16x16xf32>
    %2262 = arith.mulf %2261, %2247 : vector<16x16xf32>
    %2263 = arith.addf %2229, %2262 : vector<16x16xf32>
    %c508 = arith.constant 508 : index
    %2264 = memref.load %arg1[%c508] : memref<512xf32, #tpu.memory_space<smem>>
    %2265 = vector.broadcast %2264 : f32 to vector<16x16xf32>
    %2266 = arith.mulf %2265, %2247 : vector<16x16xf32>
    %2267 = arith.addf %2233, %2266 : vector<16x16xf32>
    %c509 = arith.constant 509 : index
    %2268 = memref.load %arg1[%c509] : memref<512xf32, #tpu.memory_space<smem>>
    %2269 = vector.broadcast %2268 : f32 to vector<16x16xf32>
    %2270 = arith.mulf %2269, %2247 : vector<16x16xf32>
    %2271 = arith.addf %2237, %2270 : vector<16x16xf32>
    %c510 = arith.constant 510 : index
    %2272 = memref.load %arg1[%c510] : memref<512xf32, #tpu.memory_space<smem>>
    %2273 = vector.broadcast %2272 : f32 to vector<16x16xf32>
    %2274 = arith.mulf %2273, %2247 : vector<16x16xf32>
    %2275 = arith.addf %2241, %2274 : vector<16x16xf32>
    %c511 = arith.constant 511 : index
    %2276 = memref.load %arg1[%c511] : memref<512xf32, #tpu.memory_space<smem>>
    %2277 = vector.broadcast %2276 : f32 to vector<16x16xf32>
    %2278 = arith.mulf %2277, %2247 : vector<16x16xf32>
    %2279 = arith.addf %2245, %2278 : vector<16x16xf32>
    %c0_383 = arith.constant 0 : index
    %c0_384 = arith.constant 0 : index
    %c0_385 = arith.constant 0 : index
    %c48_386 = arith.constant 48 : index
    %2280 = vector.load %arg3[%c0_383, %c0_384, %c0_385, %c48_386] : memref<1x8x16x64xf32, #tpu.memory_space<vmem>>, vector<1x1x16x16xf32>
    %2281 = vector.shape_cast %2280 : vector<1x1x16x16xf32> to vector<16x16xf32>
    %2282 = vector.shape_cast %2251 : vector<16x16xf32> to vector<1x1x16x16xf32>
    tpu.vector_store %arg3[%c0_383, %c0_384, %c0_385, %c48_386], %2282 {strides = array<i32>} : memref<1x8x16x64xf32, #tpu.memory_space<vmem>>, vector<1x1x16x16xf32>,
    %c0_387 = arith.constant 0 : index
    %c1_388 = arith.constant 1 : index
    %c0_389 = arith.constant 0 : index
    %c48_390 = arith.constant 48 : index
    %2283 = vector.load %arg3[%c0_387, %c1_388, %c0_389, %c48_390] : memref<1x8x16x64xf32, #tpu.memory_space<vmem>>, vector<1x1x16x16xf32>
    %2284 = vector.shape_cast %2283 : vector<1x1x16x16xf32> to vector<16x16xf32>
    %2285 = vector.shape_cast %2255 : vector<16x16xf32> to vector<1x1x16x16xf32>
    tpu.vector_store %arg3[%c0_387, %c1_388, %c0_389, %c48_390], %2285 {strides = array<i32>} : memref<1x8x16x64xf32, #tpu.memory_space<vmem>>, vector<1x1x16x16xf32>,
    %c0_391 = arith.constant 0 : index
    %c2_392 = arith.constant 2 : index
    %c0_393 = arith.constant 0 : index
    %c48_394 = arith.constant 48 : index
    %2286 = vector.load %arg3[%c0_391, %c2_392, %c0_393, %c48_394] : memref<1x8x16x64xf32, #tpu.memory_space<vmem>>, vector<1x1x16x16xf32>
    %2287 = vector.shape_cast %2286 : vector<1x1x16x16xf32> to vector<16x16xf32>
    %2288 = vector.shape_cast %2259 : vector<16x16xf32> to vector<1x1x16x16xf32>
    tpu.vector_store %arg3[%c0_391, %c2_392, %c0_393, %c48_394], %2288 {strides = array<i32>} : memref<1x8x16x64xf32, #tpu.memory_space<vmem>>, vector<1x1x16x16xf32>,
    %c0_395 = arith.constant 0 : index
    %c3_396 = arith.constant 3 : index
    %c0_397 = arith.constant 0 : index
    %c48_398 = arith.constant 48 : index
    %2289 = vector.load %arg3[%c0_395, %c3_396, %c0_397, %c48_398] : memref<1x8x16x64xf32, #tpu.memory_space<vmem>>, vector<1x1x16x16xf32>
    %2290 = vector.shape_cast %2289 : vector<1x1x16x16xf32> to vector<16x16xf32>
    %2291 = vector.shape_cast %2263 : vector<16x16xf32> to vector<1x1x16x16xf32>
    tpu.vector_store %arg3[%c0_395, %c3_396, %c0_397, %c48_398], %2291 {strides = array<i32>} : memref<1x8x16x64xf32, #tpu.memory_space<vmem>>, vector<1x1x16x16xf32>,
    %c0_399 = arith.constant 0 : index
    %c4_400 = arith.constant 4 : index
    %c0_401 = arith.constant 0 : index
    %c48_402 = arith.constant 48 : index
    %2292 = vector.load %arg3[%c0_399, %c4_400, %c0_401, %c48_402] : memref<1x8x16x64xf32, #tpu.memory_space<vmem>>, vector<1x1x16x16xf32>
    %2293 = vector.shape_cast %2292 : vector<1x1x16x16xf32> to vector<16x16xf32>
    %2294 = vector.shape_cast %2267 : vector<16x16xf32> to vector<1x1x16x16xf32>
    tpu.vector_store %arg3[%c0_399, %c4_400, %c0_401, %c48_402], %2294 {strides = array<i32>} : memref<1x8x16x64xf32, #tpu.memory_space<vmem>>, vector<1x1x16x16xf32>,
    %c0_403 = arith.constant 0 : index
    %c5_404 = arith.constant 5 : index
    %c0_405 = arith.constant 0 : index
    %c48_406 = arith.constant 48 : index
    %2295 = vector.load %arg3[%c0_403, %c5_404, %c0_405, %c48_406] : memref<1x8x16x64xf32, #tpu.memory_space<vmem>>, vector<1x1x16x16xf32>
    %2296 = vector.shape_cast %2295 : vector<1x1x16x16xf32> to vector<16x16xf32>
    %2297 = vector.shape_cast %2271 : vector<16x16xf32> to vector<1x1x16x16xf32>
    tpu.vector_store %arg3[%c0_403, %c5_404, %c0_405, %c48_406], %2297 {strides = array<i32>} : memref<1x8x16x64xf32, #tpu.memory_space<vmem>>, vector<1x1x16x16xf32>,
    %c0_407 = arith.constant 0 : index
    %c6_408 = arith.constant 6 : index
    %c0_409 = arith.constant 0 : index
    %c48_410 = arith.constant 48 : index
    %2298 = vector.load %arg3[%c0_407, %c6_408, %c0_409, %c48_410] : memref<1x8x16x64xf32, #tpu.memory_space<vmem>>, vector<1x1x16x16xf32>
    %2299 = vector.shape_cast %2298 : vector<1x1x16x16xf32> to vector<16x16xf32>
    %2300 = vector.shape_cast %2275 : vector<16x16xf32> to vector<1x1x16x16xf32>
    tpu.vector_store %arg3[%c0_407, %c6_408, %c0_409, %c48_410], %2300 {strides = array<i32>} : memref<1x8x16x64xf32, #tpu.memory_space<vmem>>, vector<1x1x16x16xf32>,
    %c0_411 = arith.constant 0 : index
    %c7_412 = arith.constant 7 : index
    %c0_413 = arith.constant 0 : index
    %c48_414 = arith.constant 48 : index
    %2301 = vector.load %arg3[%c0_411, %c7_412, %c0_413, %c48_414] : memref<1x8x16x64xf32, #tpu.memory_space<vmem>>, vector<1x1x16x16xf32>
    %2302 = vector.shape_cast %2301 : vector<1x1x16x16xf32> to vector<16x16xf32>
    %2303 = vector.shape_cast %2279 : vector<16x16xf32> to vector<1x1x16x16xf32>
    tpu.vector_store %arg3[%c0_411, %c7_412, %c0_413, %c48_414], %2303 {strides = array<i32>} : memref<1x8x16x64xf32, #tpu.memory_space<vmem>>, vector<1x1x16x16xf32>,
    %c0_415 = arith.constant 0 : index
    %c0_416 = arith.constant 0 : index
    %c0_417 = arith.constant 0 : index
    %c0_418 = arith.constant 0 : index
    %2304 = vector.load %arg3[%c0_415, %c0_416, %c0_417, %c0_418] : memref<1x8x16x64xf32, #tpu.memory_space<vmem>>, vector<1x1x16x64xf32>
    %2305 = vector.shape_cast %2304 : vector<1x1x16x64xf32> to vector<16x64xf32>
    %cst_419 = arith.constant dense<0.000000e+00> : vector<16xf32>
    %2306 = vector.multi_reduction <add>, %2305, %cst_419 [1] : vector<16x64xf32> to vector<16xf32>
    %2307 = vector.shape_cast %2306 : vector<16xf32> to vector<16x1xf32>
    %cst_420 = arith.constant dense<0.000000e+00> : vector<1xf32>
    %2308 = vector.multi_reduction <add>, %2307, %cst_420 [0] : vector<16x1xf32> to vector<1xf32>
    %2309 = vector.shape_cast %2308 : vector<1xf32> to vector<1x1xf32>
    %cst_421 = arith.constant 9.765625E-4 : f32
    %2310 = vector.broadcast %cst_421 : f32 to vector<1x1xf32>
    %2311 = arith.mulf %2309, %2310 : vector<1x1xf32>
    %2312 = vector.broadcast %2311 : vector<1x1xf32> to vector<16x64xf32>
    %2313 = arith.subf %2305, %2312 : vector<16x64xf32>
    %2314 = arith.mulf %2313, %2313 : vector<16x64xf32>
    %cst_422 = arith.constant dense<0.000000e+00> : vector<16xf32>
    %2315 = vector.multi_reduction <add>, %2314, %cst_422 [1] : vector<16x64xf32> to vector<16xf32>
    %2316 = vector.shape_cast %2315 : vector<16xf32> to vector<16x1xf32>
    %cst_423 = arith.constant dense<0.000000e+00> : vector<1xf32>
    %2317 = vector.multi_reduction <add>, %2316, %cst_423 [0] : vector<16x1xf32> to vector<1xf32>
    %2318 = vector.shape_cast %2317 : vector<1xf32> to vector<1x1xf32>
    %cst_424 = arith.constant 9.765625E-4 : f32
    %2319 = vector.broadcast %cst_424 : f32 to vector<1x1xf32>
    %2320 = arith.mulf %2318, %2319 : vector<1x1xf32>
    %cst_425 = arith.constant 9.99999974E-6 : f32
    %2321 = vector.broadcast %cst_425 : f32 to vector<1x1xf32>
    %2322 = arith.addf %2320, %2321 : vector<1x1xf32>
    %2323 = math.rsqrt %2322 : vector<1x1xf32>
    %2324 = vector.broadcast %2323 : vector<1x1xf32> to vector<16x64xf32>
    %2325 = arith.mulf %2313, %2324 : vector<16x64xf32>
    %cst_426 = arith.constant 0.000000e+00 : f32
    %2326 = vector.broadcast %cst_426 : f32 to vector<16x64xf32>
    %2327 = arith.maximumf %2325, %2326 : vector<16x64xf32>
    %c0_427 = arith.constant 0 : index
    %c0_428 = arith.constant 0 : index
    %c0_429 = arith.constant 0 : index
    %c0_430 = arith.constant 0 : index
    %2328 = vector.load %arg3[%c0_427, %c0_428, %c0_429, %c0_430] : memref<1x8x16x64xf32, #tpu.memory_space<vmem>>, vector<1x1x16x64xf32>
    %2329 = vector.shape_cast %2328 : vector<1x1x16x64xf32> to vector<16x64xf32>
    %2330 = vector.shape_cast %2327 : vector<16x64xf32> to vector<1x1x16x64xf32>
    tpu.vector_store %arg3[%c0_427, %c0_428, %c0_429, %c0_430], %2330 {strides = array<i32>} : memref<1x8x16x64xf32, #tpu.memory_space<vmem>>, vector<1x1x16x64xf32>,
    %c0_431 = arith.constant 0 : index
    %c1_432 = arith.constant 1 : index
    %c0_433 = arith.constant 0 : index
    %c0_434 = arith.constant 0 : index
    %2331 = vector.load %arg3[%c0_431, %c1_432, %c0_433, %c0_434] : memref<1x8x16x64xf32, #tpu.memory_space<vmem>>, vector<1x1x16x64xf32>
    %2332 = vector.shape_cast %2331 : vector<1x1x16x64xf32> to vector<16x64xf32>
    %cst_435 = arith.constant dense<0.000000e+00> : vector<16xf32>
    %2333 = vector.multi_reduction <add>, %2332, %cst_435 [1] : vector<16x64xf32> to vector<16xf32>
    %2334 = vector.shape_cast %2333 : vector<16xf32> to vector<16x1xf32>
    %cst_436 = arith.constant dense<0.000000e+00> : vector<1xf32>
    %2335 = vector.multi_reduction <add>, %2334, %cst_436 [0] : vector<16x1xf32> to vector<1xf32>
    %2336 = vector.shape_cast %2335 : vector<1xf32> to vector<1x1xf32>
    %cst_437 = arith.constant 9.765625E-4 : f32
    %2337 = vector.broadcast %cst_437 : f32 to vector<1x1xf32>
    %2338 = arith.mulf %2336, %2337 : vector<1x1xf32>
    %2339 = vector.broadcast %2338 : vector<1x1xf32> to vector<16x64xf32>
    %2340 = arith.subf %2332, %2339 : vector<16x64xf32>
    %2341 = arith.mulf %2340, %2340 : vector<16x64xf32>
    %cst_438 = arith.constant dense<0.000000e+00> : vector<16xf32>
    %2342 = vector.multi_reduction <add>, %2341, %cst_438 [1] : vector<16x64xf32> to vector<16xf32>
    %2343 = vector.shape_cast %2342 : vector<16xf32> to vector<16x1xf32>
    %cst_439 = arith.constant dense<0.000000e+00> : vector<1xf32>
    %2344 = vector.multi_reduction <add>, %2343, %cst_439 [0] : vector<16x1xf32> to vector<1xf32>
    %2345 = vector.shape_cast %2344 : vector<1xf32> to vector<1x1xf32>
    %cst_440 = arith.constant 9.765625E-4 : f32
    %2346 = vector.broadcast %cst_440 : f32 to vector<1x1xf32>
    %2347 = arith.mulf %2345, %2346 : vector<1x1xf32>
    %cst_441 = arith.constant 9.99999974E-6 : f32
    %2348 = vector.broadcast %cst_441 : f32 to vector<1x1xf32>
    %2349 = arith.addf %2347, %2348 : vector<1x1xf32>
    %2350 = math.rsqrt %2349 : vector<1x1xf32>
    %2351 = vector.broadcast %2350 : vector<1x1xf32> to vector<16x64xf32>
    %2352 = arith.mulf %2340, %2351 : vector<16x64xf32>
    %cst_442 = arith.constant 0.000000e+00 : f32
    %2353 = vector.broadcast %cst_442 : f32 to vector<16x64xf32>
    %2354 = arith.maximumf %2352, %2353 : vector<16x64xf32>
    %c0_443 = arith.constant 0 : index
    %c1_444 = arith.constant 1 : index
    %c0_445 = arith.constant 0 : index
    %c0_446 = arith.constant 0 : index
    %2355 = vector.load %arg3[%c0_443, %c1_444, %c0_445, %c0_446] : memref<1x8x16x64xf32, #tpu.memory_space<vmem>>, vector<1x1x16x64xf32>
    %2356 = vector.shape_cast %2355 : vector<1x1x16x64xf32> to vector<16x64xf32>
    %2357 = vector.shape_cast %2354 : vector<16x64xf32> to vector<1x1x16x64xf32>
    tpu.vector_store %arg3[%c0_443, %c1_444, %c0_445, %c0_446], %2357 {strides = array<i32>} : memref<1x8x16x64xf32, #tpu.memory_space<vmem>>, vector<1x1x16x64xf32>,
    %c0_447 = arith.constant 0 : index
    %c2_448 = arith.constant 2 : index
    %c0_449 = arith.constant 0 : index
    %c0_450 = arith.constant 0 : index
    %2358 = vector.load %arg3[%c0_447, %c2_448, %c0_449, %c0_450] : memref<1x8x16x64xf32, #tpu.memory_space<vmem>>, vector<1x1x16x64xf32>
    %2359 = vector.shape_cast %2358 : vector<1x1x16x64xf32> to vector<16x64xf32>
    %cst_451 = arith.constant dense<0.000000e+00> : vector<16xf32>
    %2360 = vector.multi_reduction <add>, %2359, %cst_451 [1] : vector<16x64xf32> to vector<16xf32>
    %2361 = vector.shape_cast %2360 : vector<16xf32> to vector<16x1xf32>
    %cst_452 = arith.constant dense<0.000000e+00> : vector<1xf32>
    %2362 = vector.multi_reduction <add>, %2361, %cst_452 [0] : vector<16x1xf32> to vector<1xf32>
    %2363 = vector.shape_cast %2362 : vector<1xf32> to vector<1x1xf32>
    %cst_453 = arith.constant 9.765625E-4 : f32
    %2364 = vector.broadcast %cst_453 : f32 to vector<1x1xf32>
    %2365 = arith.mulf %2363, %2364 : vector<1x1xf32>
    %2366 = vector.broadcast %2365 : vector<1x1xf32> to vector<16x64xf32>
    %2367 = arith.subf %2359, %2366 : vector<16x64xf32>
    %2368 = arith.mulf %2367, %2367 : vector<16x64xf32>
    %cst_454 = arith.constant dense<0.000000e+00> : vector<16xf32>
    %2369 = vector.multi_reduction <add>, %2368, %cst_454 [1] : vector<16x64xf32> to vector<16xf32>
    %2370 = vector.shape_cast %2369 : vector<16xf32> to vector<16x1xf32>
    %cst_455 = arith.constant dense<0.000000e+00> : vector<1xf32>
    %2371 = vector.multi_reduction <add>, %2370, %cst_455 [0] : vector<16x1xf32> to vector<1xf32>
    %2372 = vector.shape_cast %2371 : vector<1xf32> to vector<1x1xf32>
    %cst_456 = arith.constant 9.765625E-4 : f32
    %2373 = vector.broadcast %cst_456 : f32 to vector<1x1xf32>
    %2374 = arith.mulf %2372, %2373 : vector<1x1xf32>
    %cst_457 = arith.constant 9.99999974E-6 : f32
    %2375 = vector.broadcast %cst_457 : f32 to vector<1x1xf32>
    %2376 = arith.addf %2374, %2375 : vector<1x1xf32>
    %2377 = math.rsqrt %2376 : vector<1x1xf32>
    %2378 = vector.broadcast %2377 : vector<1x1xf32> to vector<16x64xf32>
    %2379 = arith.mulf %2367, %2378 : vector<16x64xf32>
    %cst_458 = arith.constant 0.000000e+00 : f32
    %2380 = vector.broadcast %cst_458 : f32 to vector<16x64xf32>
    %2381 = arith.maximumf %2379, %2380 : vector<16x64xf32>
    %c0_459 = arith.constant 0 : index
    %c2_460 = arith.constant 2 : index
    %c0_461 = arith.constant 0 : index
    %c0_462 = arith.constant 0 : index
    %2382 = vector.load %arg3[%c0_459, %c2_460, %c0_461, %c0_462] : memref<1x8x16x64xf32, #tpu.memory_space<vmem>>, vector<1x1x16x64xf32>
    %2383 = vector.shape_cast %2382 : vector<1x1x16x64xf32> to vector<16x64xf32>
    %2384 = vector.shape_cast %2381 : vector<16x64xf32> to vector<1x1x16x64xf32>
    tpu.vector_store %arg3[%c0_459, %c2_460, %c0_461, %c0_462], %2384 {strides = array<i32>} : memref<1x8x16x64xf32, #tpu.memory_space<vmem>>, vector<1x1x16x64xf32>,
    %c0_463 = arith.constant 0 : index
    %c3_464 = arith.constant 3 : index
    %c0_465 = arith.constant 0 : index
    %c0_466 = arith.constant 0 : index
    %2385 = vector.load %arg3[%c0_463, %c3_464, %c0_465, %c0_466] : memref<1x8x16x64xf32, #tpu.memory_space<vmem>>, vector<1x1x16x64xf32>
    %2386 = vector.shape_cast %2385 : vector<1x1x16x64xf32> to vector<16x64xf32>
    %cst_467 = arith.constant dense<0.000000e+00> : vector<16xf32>
    %2387 = vector.multi_reduction <add>, %2386, %cst_467 [1] : vector<16x64xf32> to vector<16xf32>
    %2388 = vector.shape_cast %2387 : vector<16xf32> to vector<16x1xf32>
    %cst_468 = arith.constant dense<0.000000e+00> : vector<1xf32>
    %2389 = vector.multi_reduction <add>, %2388, %cst_468 [0] : vector<16x1xf32> to vector<1xf32>
    %2390 = vector.shape_cast %2389 : vector<1xf32> to vector<1x1xf32>
    %cst_469 = arith.constant 9.765625E-4 : f32
    %2391 = vector.broadcast %cst_469 : f32 to vector<1x1xf32>
    %2392 = arith.mulf %2390, %2391 : vector<1x1xf32>
    %2393 = vector.broadcast %2392 : vector<1x1xf32> to vector<16x64xf32>
    %2394 = arith.subf %2386, %2393 : vector<16x64xf32>
    %2395 = arith.mulf %2394, %2394 : vector<16x64xf32>
    %cst_470 = arith.constant dense<0.000000e+00> : vector<16xf32>
    %2396 = vector.multi_reduction <add>, %2395, %cst_470 [1] : vector<16x64xf32> to vector<16xf32>
    %2397 = vector.shape_cast %2396 : vector<16xf32> to vector<16x1xf32>
    %cst_471 = arith.constant dense<0.000000e+00> : vector<1xf32>
    %2398 = vector.multi_reduction <add>, %2397, %cst_471 [0] : vector<16x1xf32> to vector<1xf32>
    %2399 = vector.shape_cast %2398 : vector<1xf32> to vector<1x1xf32>
    %cst_472 = arith.constant 9.765625E-4 : f32
    %2400 = vector.broadcast %cst_472 : f32 to vector<1x1xf32>
    %2401 = arith.mulf %2399, %2400 : vector<1x1xf32>
    %cst_473 = arith.constant 9.99999974E-6 : f32
    %2402 = vector.broadcast %cst_473 : f32 to vector<1x1xf32>
    %2403 = arith.addf %2401, %2402 : vector<1x1xf32>
    %2404 = math.rsqrt %2403 : vector<1x1xf32>
    %2405 = vector.broadcast %2404 : vector<1x1xf32> to vector<16x64xf32>
    %2406 = arith.mulf %2394, %2405 : vector<16x64xf32>
    %cst_474 = arith.constant 0.000000e+00 : f32
    %2407 = vector.broadcast %cst_474 : f32 to vector<16x64xf32>
    %2408 = arith.maximumf %2406, %2407 : vector<16x64xf32>
    %c0_475 = arith.constant 0 : index
    %c3_476 = arith.constant 3 : index
    %c0_477 = arith.constant 0 : index
    %c0_478 = arith.constant 0 : index
    %2409 = vector.load %arg3[%c0_475, %c3_476, %c0_477, %c0_478] : memref<1x8x16x64xf32, #tpu.memory_space<vmem>>, vector<1x1x16x64xf32>
    %2410 = vector.shape_cast %2409 : vector<1x1x16x64xf32> to vector<16x64xf32>
    %2411 = vector.shape_cast %2408 : vector<16x64xf32> to vector<1x1x16x64xf32>
    tpu.vector_store %arg3[%c0_475, %c3_476, %c0_477, %c0_478], %2411 {strides = array<i32>} : memref<1x8x16x64xf32, #tpu.memory_space<vmem>>, vector<1x1x16x64xf32>,
    %c0_479 = arith.constant 0 : index
    %c4_480 = arith.constant 4 : index
    %c0_481 = arith.constant 0 : index
    %c0_482 = arith.constant 0 : index
    %2412 = vector.load %arg3[%c0_479, %c4_480, %c0_481, %c0_482] : memref<1x8x16x64xf32, #tpu.memory_space<vmem>>, vector<1x1x16x64xf32>
    %2413 = vector.shape_cast %2412 : vector<1x1x16x64xf32> to vector<16x64xf32>
    %cst_483 = arith.constant dense<0.000000e+00> : vector<16xf32>
    %2414 = vector.multi_reduction <add>, %2413, %cst_483 [1] : vector<16x64xf32> to vector<16xf32>
    %2415 = vector.shape_cast %2414 : vector<16xf32> to vector<16x1xf32>
    %cst_484 = arith.constant dense<0.000000e+00> : vector<1xf32>
    %2416 = vector.multi_reduction <add>, %2415, %cst_484 [0] : vector<16x1xf32> to vector<1xf32>
    %2417 = vector.shape_cast %2416 : vector<1xf32> to vector<1x1xf32>
    %cst_485 = arith.constant 9.765625E-4 : f32
    %2418 = vector.broadcast %cst_485 : f32 to vector<1x1xf32>
    %2419 = arith.mulf %2417, %2418 : vector<1x1xf32>
    %2420 = vector.broadcast %2419 : vector<1x1xf32> to vector<16x64xf32>
    %2421 = arith.subf %2413, %2420 : vector<16x64xf32>
    %2422 = arith.mulf %2421, %2421 : vector<16x64xf32>
    %cst_486 = arith.constant dense<0.000000e+00> : vector<16xf32>
    %2423 = vector.multi_reduction <add>, %2422, %cst_486 [1] : vector<16x64xf32> to vector<16xf32>
    %2424 = vector.shape_cast %2423 : vector<16xf32> to vector<16x1xf32>
    %cst_487 = arith.constant dense<0.000000e+00> : vector<1xf32>
    %2425 = vector.multi_reduction <add>, %2424, %cst_487 [0] : vector<16x1xf32> to vector<1xf32>
    %2426 = vector.shape_cast %2425 : vector<1xf32> to vector<1x1xf32>
    %cst_488 = arith.constant 9.765625E-4 : f32
    %2427 = vector.broadcast %cst_488 : f32 to vector<1x1xf32>
    %2428 = arith.mulf %2426, %2427 : vector<1x1xf32>
    %cst_489 = arith.constant 9.99999974E-6 : f32
    %2429 = vector.broadcast %cst_489 : f32 to vector<1x1xf32>
    %2430 = arith.addf %2428, %2429 : vector<1x1xf32>
    %2431 = math.rsqrt %2430 : vector<1x1xf32>
    %2432 = vector.broadcast %2431 : vector<1x1xf32> to vector<16x64xf32>
    %2433 = arith.mulf %2421, %2432 : vector<16x64xf32>
    %cst_490 = arith.constant 0.000000e+00 : f32
    %2434 = vector.broadcast %cst_490 : f32 to vector<16x64xf32>
    %2435 = arith.maximumf %2433, %2434 : vector<16x64xf32>
    %c0_491 = arith.constant 0 : index
    %c4_492 = arith.constant 4 : index
    %c0_493 = arith.constant 0 : index
    %c0_494 = arith.constant 0 : index
    %2436 = vector.load %arg3[%c0_491, %c4_492, %c0_493, %c0_494] : memref<1x8x16x64xf32, #tpu.memory_space<vmem>>, vector<1x1x16x64xf32>
    %2437 = vector.shape_cast %2436 : vector<1x1x16x64xf32> to vector<16x64xf32>
    %2438 = vector.shape_cast %2435 : vector<16x64xf32> to vector<1x1x16x64xf32>
    tpu.vector_store %arg3[%c0_491, %c4_492, %c0_493, %c0_494], %2438 {strides = array<i32>} : memref<1x8x16x64xf32, #tpu.memory_space<vmem>>, vector<1x1x16x64xf32>,
    %c0_495 = arith.constant 0 : index
    %c5_496 = arith.constant 5 : index
    %c0_497 = arith.constant 0 : index
    %c0_498 = arith.constant 0 : index
    %2439 = vector.load %arg3[%c0_495, %c5_496, %c0_497, %c0_498] : memref<1x8x16x64xf32, #tpu.memory_space<vmem>>, vector<1x1x16x64xf32>
    %2440 = vector.shape_cast %2439 : vector<1x1x16x64xf32> to vector<16x64xf32>
    %cst_499 = arith.constant dense<0.000000e+00> : vector<16xf32>
    %2441 = vector.multi_reduction <add>, %2440, %cst_499 [1] : vector<16x64xf32> to vector<16xf32>
    %2442 = vector.shape_cast %2441 : vector<16xf32> to vector<16x1xf32>
    %cst_500 = arith.constant dense<0.000000e+00> : vector<1xf32>
    %2443 = vector.multi_reduction <add>, %2442, %cst_500 [0] : vector<16x1xf32> to vector<1xf32>
    %2444 = vector.shape_cast %2443 : vector<1xf32> to vector<1x1xf32>
    %cst_501 = arith.constant 9.765625E-4 : f32
    %2445 = vector.broadcast %cst_501 : f32 to vector<1x1xf32>
    %2446 = arith.mulf %2444, %2445 : vector<1x1xf32>
    %2447 = vector.broadcast %2446 : vector<1x1xf32> to vector<16x64xf32>
    %2448 = arith.subf %2440, %2447 : vector<16x64xf32>
    %2449 = arith.mulf %2448, %2448 : vector<16x64xf32>
    %cst_502 = arith.constant dense<0.000000e+00> : vector<16xf32>
    %2450 = vector.multi_reduction <add>, %2449, %cst_502 [1] : vector<16x64xf32> to vector<16xf32>
    %2451 = vector.shape_cast %2450 : vector<16xf32> to vector<16x1xf32>
    %cst_503 = arith.constant dense<0.000000e+00> : vector<1xf32>
    %2452 = vector.multi_reduction <add>, %2451, %cst_503 [0] : vector<16x1xf32> to vector<1xf32>
    %2453 = vector.shape_cast %2452 : vector<1xf32> to vector<1x1xf32>
    %cst_504 = arith.constant 9.765625E-4 : f32
    %2454 = vector.broadcast %cst_504 : f32 to vector<1x1xf32>
    %2455 = arith.mulf %2453, %2454 : vector<1x1xf32>
    %cst_505 = arith.constant 9.99999974E-6 : f32
    %2456 = vector.broadcast %cst_505 : f32 to vector<1x1xf32>
    %2457 = arith.addf %2455, %2456 : vector<1x1xf32>
    %2458 = math.rsqrt %2457 : vector<1x1xf32>
    %2459 = vector.broadcast %2458 : vector<1x1xf32> to vector<16x64xf32>
    %2460 = arith.mulf %2448, %2459 : vector<16x64xf32>
    %cst_506 = arith.constant 0.000000e+00 : f32
    %2461 = vector.broadcast %cst_506 : f32 to vector<16x64xf32>
    %2462 = arith.maximumf %2460, %2461 : vector<16x64xf32>
    %c0_507 = arith.constant 0 : index
    %c5_508 = arith.constant 5 : index
    %c0_509 = arith.constant 0 : index
    %c0_510 = arith.constant 0 : index
    %2463 = vector.load %arg3[%c0_507, %c5_508, %c0_509, %c0_510] : memref<1x8x16x64xf32, #tpu.memory_space<vmem>>, vector<1x1x16x64xf32>
    %2464 = vector.shape_cast %2463 : vector<1x1x16x64xf32> to vector<16x64xf32>
    %2465 = vector.shape_cast %2462 : vector<16x64xf32> to vector<1x1x16x64xf32>
    tpu.vector_store %arg3[%c0_507, %c5_508, %c0_509, %c0_510], %2465 {strides = array<i32>} : memref<1x8x16x64xf32, #tpu.memory_space<vmem>>, vector<1x1x16x64xf32>,
    %c0_511 = arith.constant 0 : index
    %c6_512 = arith.constant 6 : index
    %c0_513 = arith.constant 0 : index
    %c0_514 = arith.constant 0 : index
    %2466 = vector.load %arg3[%c0_511, %c6_512, %c0_513, %c0_514] : memref<1x8x16x64xf32, #tpu.memory_space<vmem>>, vector<1x1x16x64xf32>
    %2467 = vector.shape_cast %2466 : vector<1x1x16x64xf32> to vector<16x64xf32>
    %cst_515 = arith.constant dense<0.000000e+00> : vector<16xf32>
    %2468 = vector.multi_reduction <add>, %2467, %cst_515 [1] : vector<16x64xf32> to vector<16xf32>
    %2469 = vector.shape_cast %2468 : vector<16xf32> to vector<16x1xf32>
    %cst_516 = arith.constant dense<0.000000e+00> : vector<1xf32>
    %2470 = vector.multi_reduction <add>, %2469, %cst_516 [0] : vector<16x1xf32> to vector<1xf32>
    %2471 = vector.shape_cast %2470 : vector<1xf32> to vector<1x1xf32>
    %cst_517 = arith.constant 9.765625E-4 : f32
    %2472 = vector.broadcast %cst_517 : f32 to vector<1x1xf32>
    %2473 = arith.mulf %2471, %2472 : vector<1x1xf32>
    %2474 = vector.broadcast %2473 : vector<1x1xf32> to vector<16x64xf32>
    %2475 = arith.subf %2467, %2474 : vector<16x64xf32>
    %2476 = arith.mulf %2475, %2475 : vector<16x64xf32>
    %cst_518 = arith.constant dense<0.000000e+00> : vector<16xf32>
    %2477 = vector.multi_reduction <add>, %2476, %cst_518 [1] : vector<16x64xf32> to vector<16xf32>
    %2478 = vector.shape_cast %2477 : vector<16xf32> to vector<16x1xf32>
    %cst_519 = arith.constant dense<0.000000e+00> : vector<1xf32>
    %2479 = vector.multi_reduction <add>, %2478, %cst_519 [0] : vector<16x1xf32> to vector<1xf32>
    %2480 = vector.shape_cast %2479 : vector<1xf32> to vector<1x1xf32>
    %cst_520 = arith.constant 9.765625E-4 : f32
    %2481 = vector.broadcast %cst_520 : f32 to vector<1x1xf32>
    %2482 = arith.mulf %2480, %2481 : vector<1x1xf32>
    %cst_521 = arith.constant 9.99999974E-6 : f32
    %2483 = vector.broadcast %cst_521 : f32 to vector<1x1xf32>
    %2484 = arith.addf %2482, %2483 : vector<1x1xf32>
    %2485 = math.rsqrt %2484 : vector<1x1xf32>
    %2486 = vector.broadcast %2485 : vector<1x1xf32> to vector<16x64xf32>
    %2487 = arith.mulf %2475, %2486 : vector<16x64xf32>
    %cst_522 = arith.constant 0.000000e+00 : f32
    %2488 = vector.broadcast %cst_522 : f32 to vector<16x64xf32>
    %2489 = arith.maximumf %2487, %2488 : vector<16x64xf32>
    %c0_523 = arith.constant 0 : index
    %c6_524 = arith.constant 6 : index
    %c0_525 = arith.constant 0 : index
    %c0_526 = arith.constant 0 : index
    %2490 = vector.load %arg3[%c0_523, %c6_524, %c0_525, %c0_526] : memref<1x8x16x64xf32, #tpu.memory_space<vmem>>, vector<1x1x16x64xf32>
    %2491 = vector.shape_cast %2490 : vector<1x1x16x64xf32> to vector<16x64xf32>
    %2492 = vector.shape_cast %2489 : vector<16x64xf32> to vector<1x1x16x64xf32>
    tpu.vector_store %arg3[%c0_523, %c6_524, %c0_525, %c0_526], %2492 {strides = array<i32>} : memref<1x8x16x64xf32, #tpu.memory_space<vmem>>, vector<1x1x16x64xf32>,
    %c0_527 = arith.constant 0 : index
    %c7_528 = arith.constant 7 : index
    %c0_529 = arith.constant 0 : index
    %c0_530 = arith.constant 0 : index
    %2493 = vector.load %arg3[%c0_527, %c7_528, %c0_529, %c0_530] : memref<1x8x16x64xf32, #tpu.memory_space<vmem>>, vector<1x1x16x64xf32>
    %2494 = vector.shape_cast %2493 : vector<1x1x16x64xf32> to vector<16x64xf32>
    %cst_531 = arith.constant dense<0.000000e+00> : vector<16xf32>
    %2495 = vector.multi_reduction <add>, %2494, %cst_531 [1] : vector<16x64xf32> to vector<16xf32>
    %2496 = vector.shape_cast %2495 : vector<16xf32> to vector<16x1xf32>
    %cst_532 = arith.constant dense<0.000000e+00> : vector<1xf32>
    %2497 = vector.multi_reduction <add>, %2496, %cst_532 [0] : vector<16x1xf32> to vector<1xf32>
    %2498 = vector.shape_cast %2497 : vector<1xf32> to vector<1x1xf32>
    %cst_533 = arith.constant 9.765625E-4 : f32
    %2499 = vector.broadcast %cst_533 : f32 to vector<1x1xf32>
    %2500 = arith.mulf %2498, %2499 : vector<1x1xf32>
    %2501 = vector.broadcast %2500 : vector<1x1xf32> to vector<16x64xf32>
    %2502 = arith.subf %2494, %2501 : vector<16x64xf32>
    %2503 = arith.mulf %2502, %2502 : vector<16x64xf32>
    %cst_534 = arith.constant dense<0.000000e+00> : vector<16xf32>
    %2504 = vector.multi_reduction <add>, %2503, %cst_534 [1] : vector<16x64xf32> to vector<16xf32>
    %2505 = vector.shape_cast %2504 : vector<16xf32> to vector<16x1xf32>
    %cst_535 = arith.constant dense<0.000000e+00> : vector<1xf32>
    %2506 = vector.multi_reduction <add>, %2505, %cst_535 [0] : vector<16x1xf32> to vector<1xf32>
    %2507 = vector.shape_cast %2506 : vector<1xf32> to vector<1x1xf32>
    %cst_536 = arith.constant 9.765625E-4 : f32
    %2508 = vector.broadcast %cst_536 : f32 to vector<1x1xf32>
    %2509 = arith.mulf %2507, %2508 : vector<1x1xf32>
    %cst_537 = arith.constant 9.99999974E-6 : f32
    %2510 = vector.broadcast %cst_537 : f32 to vector<1x1xf32>
    %2511 = arith.addf %2509, %2510 : vector<1x1xf32>
    %2512 = math.rsqrt %2511 : vector<1x1xf32>
    %2513 = vector.broadcast %2512 : vector<1x1xf32> to vector<16x64xf32>
    %2514 = arith.mulf %2502, %2513 : vector<16x64xf32>
    %cst_538 = arith.constant 0.000000e+00 : f32
    %2515 = vector.broadcast %cst_538 : f32 to vector<16x64xf32>
    %2516 = arith.maximumf %2514, %2515 : vector<16x64xf32>
    %c0_539 = arith.constant 0 : index
    %c7_540 = arith.constant 7 : index
    %c0_541 = arith.constant 0 : index
    %c0_542 = arith.constant 0 : index
    %2517 = vector.load %arg3[%c0_539, %c7_540, %c0_541, %c0_542] : memref<1x8x16x64xf32, #tpu.memory_space<vmem>>, vector<1x1x16x64xf32>
    %2518 = vector.shape_cast %2517 : vector<1x1x16x64xf32> to vector<16x64xf32>
    %2519 = vector.shape_cast %2516 : vector<16x64xf32> to vector<1x1x16x64xf32>
    tpu.vector_store %arg3[%c0_539, %c7_540, %c0_541, %c0_542], %2519 {strides = array<i32>} : memref<1x8x16x64xf32, #tpu.memory_space<vmem>>, vector<1x1x16x64xf32>,
    return
  }
  func.func @transform_0(%arg0: i32, %arg1: memref<512xf32, #tpu.memory_space<smem>>) -> (i32, i32, i32, i32) {
    %c0_i32 = arith.constant 0 : i32
    %c0_i32_0 = arith.constant 0 : i32
    %c0_i32_1 = arith.constant 0 : i32
    %c0_i32_2 = arith.constant 0 : i32
    return %arg0, %c0_i32, %c0_i32_0, %c0_i32_1 : i32, i32, i32, i32
  }
  func.func @transform_1(%arg0: i32, %arg1: memref<512xf32, #tpu.memory_space<smem>>) -> (i32, i32, i32, i32) {
    %c0_i32 = arith.constant 0 : i32
    %c0_i32_0 = arith.constant 0 : i32
    %c0_i32_1 = arith.constant 0 : i32
    %c0_i32_2 = arith.constant 0 : i32
    return %arg0, %c0_i32, %c0_i32_0, %c0_i32_1 : i32, i32, i32, i32
  }
}

</mosaic_0001>

<llo_original>
// kernel: tpu_custom_call.1
$region0: #{tpu_custom_call.1}
  #allocation0 [shape = 'u32[]', space=smem, size = 0x4, offset = 0x4, fixed_abs, tag = 'smem constant byte address 0x4 - core index']
  #allocation1 [shape = 'u32[72,128]{1,0:T(1,128)}', space=vmem, size = 0x9000, scoped, tag = 'internal scratch']
  #allocation2 [shape = 's32[1]{0}', space=sflag, size = 0x4, scoped, tag = 'scoped memory for tpu_custom_call.1']
  #allocation3 [shape = 'u8[2048]{0}', space=smem, size = 0x800, scoped, tag = 'prefetched SMEM operand 0']
  %s0 = inlined_call_operand.vmem [shape: f32[512], index: 0, kind: input, shape index: {}]
  %s1 = inlined_call_operand.vmem [shape: f32[2,4,18,18], index: 1, kind: input, shape index: {}]
  %s2 = inlined_call_operand.hbm [shape: f32[2,8,16,64], index: 2, kind: output, shape index: {}]
  %s3 = sld [smem:[#allocation0]]
  $region37: #{tpu_custom_call.1} parent=0
    _
  %s5 = ssub.s32 1, %s3
  %s6 = scalar_select 0, %s5, %s3
  %s8 = sshll.u32 %s0, 4
  %s9 = int_to_ptr.vmem [resolvable:$true] %s8
  %11 = dma.vmem_to_smem %s9, 64, [#allocation3], [#allocation2]
  %13 = dma.done [#allocation2], 64
  %14 = sfence
  $region1: #{tpu_custom_call.1} parent=0
    #allocation4 [shape = 'u8[131072]{0}', space=vmem, size = 0x20000, scoped, tag = 'output window, operand 0']
    #allocation5 [shape = 's32[2]{0}', space=sflag, size = 0x8, scoped, tag = 'scoped memory for tpu_custom_call.1']
    %15 = vsyncpa [#allocation5], 0
    %s16 = scalar_lea.sflag [#allocation5], 1
    %17 = vsyncpa %s16, 0
    loop: start=0, step=1, limit=4
    $region2: #{tpu_custom_call.1} parent=1 // loop_pre_header
      _
    $region3: #{tpu_custom_call.1} parent=1 // loop_header
      %s19 = sphi 0, %s23
      %p20 = scmp.ge.s32.totalorder %s19, 4
      %s29 = sphi 0, %s31
      %s32 = sphi 0, %s29
      %s33 = sphi 0, %s32
      %s49 = sphi 0, %s33
      %s55 = sphi 0, %s57
      %s58 = sphi 0, %s55
      %s59 = sphi 0, %s58
      %s75 = sphi 0, %s59
    $region4: #{tpu_custom_call.1} parent=1 // loop_header_branch
      %22 = sbr.rel (%p20) target = $region8
    $region5: #{tpu_custom_call.1} parent=1 // loop_body
      %s24 = ssub.s32 %s19, 1
      %s25 = ssub.s32 %s19, 2
      %s26 = sadd.s32 %s19, 1
      %s27 = ssub.s32 %s19, %s26
      %p28 = scmp.eq.s32.totalorder %s27, 0
      %s30 = sadd.s32 %s29, 1
      %s31 = scalar_select %p28, %s29, %s30
      %p34 = pneg %p28
      %p35 = scmp.eq.s32.totalorder %s19, 1
      %p36 = por %p34, %p35
      %p37 = scmp.ne.s32.totalorder %s29, %s32
      %p38 = scmp.eq.s32.totalorder %s19, 0
      %p39 = por %p37, %p38
      %p40 = scmp.ne.s32.totalorder %s29, %s32
      %p41 = scmp.eq.s32.totalorder %s24, 1
      %p42 = por %p40, %p41
      %p43 = scmp.ne.s32.totalorder %s32, %s33
      %p44 = scmp.eq.s32.totalorder %s24, 0
      %p45 = por %p43, %p44
      %p46 = scmp.ne.s32.totalorder %s32, %s33
      %p47 = scmp.eq.s32.totalorder %s25, 1
      %p48 = por %p46, %p47
      %p50 = scmp.ne.s32.totalorder %s33, %s49
      %p51 = scmp.eq.s32.totalorder %s25, 0
      %p52 = por %p50, %p51
      %s53 = ssub.s32 %s19, %s26
      %p54 = scmp.eq.s32.totalorder %s53, 0
      %s56 = sadd.s32 %s55, 1
      %s57 = scalar_select %p54, %s55, %s56
      %p60 = pneg %p54
      %p61 = scmp.eq.s32.totalorder %s19, 1
      %p62 = por %p60, %p61
      %p63 = scmp.ne.s32.totalorder %s55, %s58
      %p64 = scmp.eq.s32.totalorder %s19, 0
      %p65 = por %p63, %p64
      %p66 = scmp.ne.s32.totalorder %s55, %s58
      %p67 = scmp.eq.s32.totalorder %s24, 1
      %p68 = por %p66, %p67
      %p69 = scmp.ne.s32.totalorder %s58, %s59
      %p70 = scmp.eq.s32.totalorder %s24, 0
      %p71 = por %p69, %p70
      %p72 = scmp.ne.s32.totalorder %s58, %s59
      %p73 = scmp.eq.s32.totalorder %s25, 1
      %p74 = por %p72, %p73
      %p76 = scmp.ne.s32.totalorder %s59, %s75
      %p77 = scmp.eq.s32.totalorder %s25, 0
      %p78 = por %p76, %p77
      %p79 = scmp.le.s32.totalorder 1, %s19
      %p80 = scmp.lt.s32.totalorder %s19, 3
      %p81 = pnand %p79, %p80
      %p82 = pneg %p81
      // Predicated region
      $region9: #{tpu_custom_call.1} parent=5 // pred_check
        _
      $region10: #{tpu_custom_call.1} parent=5 // pred_check_branch
        %84 = sbr.rel (%p81) target = $region12
      $region11: #{tpu_custom_call.1} parent=5 // pred_region
        %s85 = ssub.s32 %s19, 1
      $region12: #{tpu_custom_call.1} parent=5 // pred_fallthru
        _
      %p86 = scmp.lt.s32.totalorder %s19, 2
      // Predicated region
      $region13: #{tpu_custom_call.1} parent=5 // pred_check
        %p87 = pneg %p86
      $region14: #{tpu_custom_call.1} parent=5 // pred_check_branch
        %89 = sbr.rel (%p87) target = $region16
      $region15: #{tpu_custom_call.1} parent=5 // pred_region
        // Predicated region
        $region17: #{tpu_custom_call.1} parent=15 // pred_check
          %p90 = pneg %p39
        $region18: #{tpu_custom_call.1} parent=15 // pred_check_branch
          %92 = sbr.rel (%p90) target = $region20
        $region19: #{tpu_custom_call.1} parent=15 // pred_region
          %p93 = scmp.lt.s32.totalorder %s19, 1
          %s94 = scalar_select %p93, %s19, 1
          %s95 = smul.addr %s94, 12
          %s96 = smul.addr %s95, 8
          %s97 = scalar_lea.vmem %s1, %s96
        $region20: #{tpu_custom_call.1} parent=15 // pred_fallthru
          _
      $region16: #{tpu_custom_call.1} parent=5 // pred_fallthru
        _
      %p98 = scmp.le.s32.totalorder 1, %s19
      %p99 = scmp.lt.s32.totalorder %s19, 3
      %p100 = pnand %p98, %p99
      %p101 = pneg %p100
      // Predicated region
      $region21: #{tpu_custom_call.1} parent=5 // pred_check
        _
      $region22: #{tpu_custom_call.1} parent=5 // pred_check_branch
        %103 = sbr.rel (%p100) target = $region24
      $region23: #{tpu_custom_call.1} parent=5 // pred_region
        %s104 = ssub.s32 %s19, 1
        %p105 = scmp.lt.s32.totalorder %s24, 1
        %s106 = scalar_select %p105, %s24, 1
        %s107 = smul.addr %s106, 12
        %s108 = smul.addr %s107, 8
        %s109 = scalar_lea.vmem %s1, %s108
        %p110 = pneg %p45
        %p111 = pneg %p42
        %p112 = pneg %p71
        %p113 = pneg %p68
        %s114 = sand.u32 %s58, 1
        %s115 = scalar_lea.sflag [#allocation5], %s114
        %s116 = sand.u32 %s58, 1
        %s117 = smul.addr %s116, 128
        %s118 = scalar_lea.vmem [#allocation4], %s117
        %p119 = scmp.lt.s32.totalorder %s24, 1
        %s120 = scalar_select %p119, %s24, 1
        %s121 = smul.addr %s120, 12
        %s122 = smul.addr %s121, 8
        %s123 = scalar_lea.vmem %s1, %s122
        %v124 = vld [vmem:[%s123 + $0x1] sm:$0xff]
        %v125 = vld [vmem:[%s123 + $0x9] sm:$0xff]
        %s126 = sld [smem:[#allocation3]]
        %v127 = vstv %s126
        %v128 = vmul.f32 %v127, %v124
        %v129 = vmul.f32 %v127, %v125
        %v130 = vadd.f32 %v128, 0.0
        %v131 = vadd.f32 %v129, 0.0
        %s132 = sld [smem:[#allocation3 + $0x1]]
        %v133 = vstv %s132
        %v134 = vmul.f32 %v133, %v124
        %v135 = vmul.f32 %v133, %v125
        %v136 = vadd.f32 %v134, 0.0
        %v137 = vadd.f32 %v135, 0.0
        %s138 = sld [smem:[#allocation3 + $0x2]]
        %v139 = vstv %s138
        %v140 = vmul.f32 %v139, %v124
        %v141 = vmul.f32 %v139, %v125
        %v142 = vadd.f32 %v140, 0.0
        %v143 = vadd.f32 %v141, 0.0
        %s144 = sld [smem:[#allocation3 + $0x3]]
        %v145 = vstv %s144
        %v146 = vmul.f32 %v145, %v124
        %v147 = vmul.f32 %v145, %v125
        %v148 = vadd.f32 %v146, 0.0
        %v149 = vadd.f32 %v147, 0.0
        %s150 = sld [smem:[#allocation3 + $0x4]]
        %v151 = vstv %s150
        %v152 = vmul.f32 %v151, %v124
        %v153 = vmul.f32 %v151, %v125
        %v154 = vadd.f32 %v152, 0.0
        %v155 = vadd.f32 %v153, 0.0
        %s156 = sld [smem:[#allocation3 + $0x5]]
        %v157 = vstv %s156
        %v158 = vmul.f32 %v157, %v124
        %v159 = vmul.f32 %v157, %v125
        %v160 = vadd.f32 %v158, 0.0
        %v161 = vadd.f32 %v159, 0.0
        %s162 = sld [smem:[#allocation3 + $0x6]]
        %v163 = vstv %s162
        %v164 = vmul.f32 %v163, %v124
        %v165 = vmul.f32 %v163, %v125
        %v166 = vadd.f32 %v164, 0.0
        %v167 = vadd.f32 %v165, 0.0
        %s168 = sld [smem:[#allocation3 + $0x7]]
        %v169 = vstv %s168
        %v170 = vmul.f32 %v169, %v124
        %v171 = vmul.f32 %v169, %v125
        %v172 = vadd.f32 %v170, 0.0
        %v173 = vadd.f32 %v171, 0.0
        %s174 = sld [smem:[#allocation3 + $0x20]]
        %v175 = vstv %s174
        %v176 = vmul.f32 %v175, %v124
        %v177 = vmul.f32 %v175, %v125
        %180 = vrot.lane.b32.xlu0 %v176, 1
        %v181 = vpop.permute.xlu0 %180
        %182 = vrot.lane.b32.xlu0 %v177, 1
        %v183 = vpop.permute.xlu0 %182
        %v186 = vadd.f32 %v130, %v181
        %v187 = vadd.f32 %v131, %v183
        %s188 = sld [smem:[#allocation3 + $0x21]]
        %v189 = vstv %s188
        %v190 = vmul.f32 %v189, %v124
        %v191 = vmul.f32 %v189, %v125
        %194 = vrot.lane.b32.xlu0 %v190, 1
        %v195 = vpop.permute.xlu0 %194
        %196 = vrot.lane.b32.xlu0 %v191, 1
        %v197 = vpop.permute.xlu0 %196
        %v200 = vadd.f32 %v136, %v195
        %v201 = vadd.f32 %v137, %v197
        %s202 = sld [smem:[#allocation3 + $0x22]]
        %v203 = vstv %s202
        %v204 = vmul.f32 %v203, %v124
        %v205 = vmul.f32 %v203, %v125
        %208 = vrot.lane.b32.xlu0 %v204, 1
        %v209 = vpop.permute.xlu0 %208
        %210 = vrot.lane.b32.xlu0 %v205, 1
        %v211 = vpop.permute.xlu0 %210
        %v214 = vadd.f32 %v142, %v209
        %v215 = vadd.f32 %v143, %v211
        %s216 = sld [smem:[#allocation3 + $0x23]]
        %v217 = vstv %s216
        %v218 = vmul.f32 %v217, %v124
        %v219 = vmul.f32 %v217, %v125
        %222 = vrot.lane.b32.xlu0 %v218, 1
        %v223 = vpop.permute.xlu0 %222
        %224 = vrot.lane.b32.xlu0 %v219, 1
        %v225 = vpop.permute.xlu0 %224
        %v228 = vadd.f32 %v148, %v223
        %v229 = vadd.f32 %v149, %v225
        %s230 = sld [smem:[#allocation3 + $0x24]]
        %v231 = vstv %s230
        %v232 = vmul.f32 %v231, %v124
        %v233 = vmul.f32 %v231, %v125
        %236 = vrot.lane.b32.xlu0 %v232, 1
        %v237 = vpop.permute.xlu0 %236
        %238 = vrot.lane.b32.xlu0 %v233, 1
        %v239 = vpop.permute.xlu0 %238
        %v242 = vadd.f32 %v154, %v237
        %v243 = vadd.f32 %v155, %v239
        %s244 = sld [smem:[#allocation3 + $0x25]]
        %v245 = vstv %s244
        %v246 = vmul.f32 %v245, %v124
        %v247 = vmul.f32 %v245, %v125
        %250 = vrot.lane.b32.xlu0 %v246, 1
        %v251 = vpop.permute.xlu0 %250
        %252 = vrot.lane.b32.xlu0 %v247, 1
        %v253 = vpop.permute.xlu0 %252
        %v256 = vadd.f32 %v160, %v251
        %v257 = vadd.f32 %v161, %v253
        %s258 = sld [smem:[#allocation3 + $0x26]]
        %v259 = vstv %s258
        %v260 = vmul.f32 %v259, %v124
        %v261 = vmul.f32 %v259, %v125
        %264 = vrot.lane.b32.xlu0 %v260, 1
        %v265 = vpop.permute.xlu0 %264
        %266 = vrot.lane.b32.xlu0 %v261, 1
        %v267 = vpop.permute.xlu0 %266
        %v270 = vadd.f32 %v166, %v265
        %v271 = vadd.f32 %v167, %v267
        %s272 = sld [smem:[#allocation3 + $0x27]]
        %v273 = vstv %s272
        %v274 = vmul.f32 %v273, %v124
        %v275 = vmul.f32 %v273, %v125
        %278 = vrot.lane.b32.xlu0 %v274, 1
        %v279 = vpop.permute.xlu0 %278
        %280 = vrot.lane.b32.xlu0 %v275, 1
        %v281 = vpop.permute.xlu0 %280
        %v284 = vadd.f32 %v172, %v279
        %v285 = vadd.f32 %v173, %v281
        %v286 = vld [vmem:[%s123] sm:$0xff]
        %v287 = vld [vmem:[%s123 + $0x8] sm:$0xff]
        %s288 = sld [smem:[#allocation3 + $0x40]]
        %v289 = vstv %s288
        %v290 = vmul.f32 %v289, %v286
        %v291 = vmul.f32 %v289, %v287
        %v292 = vadd.f32 %v186, %v290
        %v293 = vadd.f32 %v187, %v291
        %s294 = sld [smem:[#allocation3 + $0x41]]
        %v295 = vstv %s294
        %v296 = vmul.f32 %v295, %v286
        %v297 = vmul.f32 %v295, %v287
        %v298 = vadd.f32 %v200, %v296
        %v299 = vadd.f32 %v201, %v297
        %s300 = sld [smem:[#allocation3 + $0x42]]
        %v301 = vstv %s300
        %v302 = vmul.f32 %v301, %v286
        %v303 = vmul.f32 %v301, %v287
        %v304 = vadd.f32 %v214, %v302
        %v305 = vadd.f32 %v215, %v303
        %s306 = sld [smem:[#allocation3 + $0x43]]
        %v307 = vstv %s306
        %v308 = vmul.f32 %v307, %v286
        %v309 = vmul.f32 %v307, %v287
        %v310 = vadd.f32 %v228, %v308
        %v311 = vadd.f32 %v229, %v309
        %s312 = sld [smem:[#allocation3 + $0x44]]
        %v313 = vstv %s312
        %v314 = vmul.f32 %v313, %v286
        %v315 = vmul.f32 %v313, %v287
        %v316 = vadd.f32 %v242, %v314
        %v317 = vadd.f32 %v243, %v315
        %s318 = sld [smem:[#allocation3 + $0x45]]
        %v319 = vstv %s318
        %v320 = vmul.f32 %v319, %v286
        %v321 = vmul.f32 %v319, %v287
        %v322 = vadd.f32 %v256, %v320
        %v323 = vadd.f32 %v257, %v321
        %s324 = sld [smem:[#allocation3 + $0x46]]
        %v325 = vstv %s324
        %v326 = vmul.f32 %v325, %v286
        %v327 = vmul.f32 %v325, %v287
        %v328 = vadd.f32 %v270, %v326
        %v329 = vadd.f32 %v271, %v327
        %s330 = sld [smem:[#allocation3 + $0x47]]
        %v331 = vstv %s330
        %v332 = vmul.f32 %v331, %v286
        %v333 = vmul.f32 %v331, %v287
        %v334 = vadd.f32 %v284, %v332
        %v335 = vadd.f32 %v285, %v333
        %s336 = sld [smem:[#allocation3 + $0x60]]
        %v337 = vstv %s336
        %v338 = vmul.f32 %v337, %v286
        %v339 = vmul.f32 %v337, %v287
        %342 = vrot.lane.b32.xlu0 %v338, 1
        %v343 = vpop.permute.xlu0 %342
        %344 = vrot.lane.b32.xlu0 %v339, 1
        %v345 = vpop.permute.xlu0 %344
        %v348 = vadd.f32 %v292, %v343
        %v349 = vadd.f32 %v293, %v345
        %s350 = sld [smem:[#allocation3 + $0x61]]
        %v351 = vstv %s350
        %v352 = vmul.f32 %v351, %v286
        %v353 = vmul.f32 %v351, %v287
        %356 = vrot.lane.b32.xlu0 %v352, 1
        %v357 = vpop.permute.xlu0 %356
        %358 = vrot.lane.b32.xlu0 %v353, 1
        %v359 = vpop.permute.xlu0 %358
        %v362 = vadd.f32 %v298, %v357
        %v363 = vadd.f32 %v299, %v359
        %s364 = sld [smem:[#allocation3 + $0x62]]
        %v365 = vstv %s364
        %v366 = vmul.f32 %v365, %v286
        %v367 = vmul.f32 %v365, %v287
        %370 = vrot.lane.b32.xlu0 %v366, 1
        %v371 = vpop.permute.xlu0 %370
        %372 = vrot.lane.b32.xlu0 %v367, 1
        %v373 = vpop.permute.xlu0 %372
        %v376 = vadd.f32 %v304, %v371
        %v377 = vadd.f32 %v305, %v373
        %s378 = sld [smem:[#allocation3 + $0x63]]
        %v379 = vstv %s378
        %v380 = vmul.f32 %v379, %v286
        %v381 = vmul.f32 %v379, %v287
        %384 = vrot.lane.b32.xlu0 %v380, 1
        %v385 = vpop.permute.xlu0 %384
        %386 = vrot.lane.b32.xlu0 %v381, 1
        %v387 = vpop.permute.xlu0 %386
        %v390 = vadd.f32 %v310, %v385
        %v391 = vadd.f32 %v311, %v387
        %s392 = sld [smem:[#allocation3 + $0x64]]
        %v393 = vstv %s392
        %v394 = vmul.f32 %v393, %v286
        %v395 = vmul.f32 %v393, %v287
        %398 = vrot.lane.b32.xlu0 %v394, 1
        %v399 = vpop.permute.xlu0 %398
        %400 = vrot.lane.b32.xlu0 %v395, 1
        %v401 = vpop.permute.xlu0 %400
        %v404 = vadd.f32 %v316, %v399
        %v405 = vadd.f32 %v317, %v401
        %s406 = sld [smem:[#allocation3 + $0x65]]
        %v407 = vstv %s406
        %v408 = vmul.f32 %v407, %v286
        %v409 = vmul.f32 %v407, %v287
        %412 = vrot.lane.b32.xlu0 %v408, 1
        %v413 = vpop.permute.xlu0 %412
        %414 = vrot.lane.b32.xlu0 %v409, 1
        %v415 = vpop.permute.xlu0 %414
        %v418 = vadd.f32 %v322, %v413
        %v419 = vadd.f32 %v323, %v415
        %s420 = sld [smem:[#allocation3 + $0x66]]
        %v421 = vstv %s420
        %v422 = vmul.f32 %v421, %v286
        %v423 = vmul.f32 %v421, %v287
        %426 = vrot.lane.b32.xlu0 %v422, 1
        %v427 = vpop.permute.xlu0 %426
        %428 = vrot.lane.b32.xlu0 %v423, 1
        %v429 = vpop.permute.xlu0 %428
        %v432 = vadd.f32 %v328, %v427
        %v433 = vadd.f32 %v329, %v429
        %s434 = sld [smem:[#allocation3 + $0x67]]
        %v435 = vstv %s434
        %v436 = vmul.f32 %v435, %v286
        %v437 = vmul.f32 %v435, %v287
        %440 = vrot.lane.b32.xlu0 %v436, 1
        %v441 = vpop.permute.xlu0 %440
        %442 = vrot.lane.b32.xlu0 %v437, 1
        %v443 = vpop.permute.xlu0 %442
        %v446 = vadd.f32 %v334, %v441
        %v447 = vadd.f32 %v335, %v443
        %s448 = scalar_lea.vmem %s123, 24
        %v449 = vld [vmem:[%s448 + $0x1] sm:$0xff]
        %v450 = vld [vmem:[%s448 + $0x9] sm:$0xff]
        %s451 = sld [smem:[#allocation3 + $0x8]]
        %v452 = vstv %s451
        %v453 = vmul.f32 %v452, %v449
        %v454 = vmul.f32 %v452, %v450
        %v455 = vadd.f32 %v348, %v453
        %v456 = vadd.f32 %v349, %v454
        %s457 = sld [smem:[#allocation3 + $0x9]]
        %v458 = vstv %s457
        %v459 = vmul.f32 %v458, %v449
        %v460 = vmul.f32 %v458, %v450
        %v461 = vadd.f32 %v362, %v459
        %v462 = vadd.f32 %v363, %v460
        %s463 = sld [smem:[#allocation3 + $0xa]]
        %v464 = vstv %s463
        %v465 = vmul.f32 %v464, %v449
        %v466 = vmul.f32 %v464, %v450
        %v467 = vadd.f32 %v376, %v465
        %v468 = vadd.f32 %v377, %v466
        %s469 = sld [smem:[#allocation3 + $0xb]]
        %v470 = vstv %s469
        %v471 = vmul.f32 %v470, %v449
        %v472 = vmul.f32 %v470, %v450
        %v473 = vadd.f32 %v390, %v471
        %v474 = vadd.f32 %v391, %v472
        %s475 = sld [smem:[#allocation3 + $0xc]]
        %v476 = vstv %s475
        %v477 = vmul.f32 %v476, %v449
        %v478 = vmul.f32 %v476, %v450
        %v479 = vadd.f32 %v404, %v477
        %v480 = vadd.f32 %v405, %v478
        %s481 = sld [smem:[#allocation3 + $0xd]]
        %v482 = vstv %s481
        %v483 = vmul.f32 %v482, %v449
        %v484 = vmul.f32 %v482, %v450
        %v485 = vadd.f32 %v418, %v483
        %v486 = vadd.f32 %v419, %v484
        %s487 = sld [smem:[#allocation3 + $0xe]]
        %v488 = vstv %s487
        %v489 = vmul.f32 %v488, %v449
        %v490 = vmul.f32 %v488, %v450
        %v491 = vadd.f32 %v432, %v489
        %v492 = vadd.f32 %v433, %v490
        %s493 = sld [smem:[#allocation3 + $0xf]]
        %v494 = vstv %s493
        %v495 = vmul.f32 %v494, %v449
        %v496 = vmul.f32 %v494, %v450
        %v497 = vadd.f32 %v446, %v495
        %v498 = vadd.f32 %v447, %v496
        %s499 = sld [smem:[#allocation3 + $0x28]]
        %v500 = vstv %s499
        %v501 = vmul.f32 %v500, %v449
        %v502 = vmul.f32 %v500, %v450
        %505 = vrot.lane.b32.xlu0 %v501, 1
        %v506 = vpop.permute.xlu0 %505
        %507 = vrot.lane.b32.xlu0 %v502, 1
        %v508 = vpop.permute.xlu0 %507
        %v511 = vadd.f32 %v455, %v506
        %v512 = vadd.f32 %v456, %v508
        %s513 = sld [smem:[#allocation3 + $0x29]]
        %v514 = vstv %s513
        %v515 = vmul.f32 %v514, %v449
        %v516 = vmul.f32 %v514, %v450
        %519 = vrot.lane.b32.xlu0 %v515, 1
        %v520 = vpop.permute.xlu0 %519
        %521 = vrot.lane.b32.xlu0 %v516, 1
        %v522 = vpop.permute.xlu0 %521
        %v525 = vadd.f32 %v461, %v520
        %v526 = vadd.f32 %v462, %v522
        %s527 = sld [smem:[#allocation3 + $0x2a]]
        %v528 = vstv %s527
        %v529 = vmul.f32 %v528, %v449
        %v530 = vmul.f32 %v528, %v450
        %533 = vrot.lane.b32.xlu0 %v529, 1
        %v534 = vpop.permute.xlu0 %533
        %535 = vrot.lane.b32.xlu0 %v530, 1
        %v536 = vpop.permute.xlu0 %535
        %v539 = vadd.f32 %v467, %v534
        %v540 = vadd.f32 %v468, %v536
        %s541 = sld [smem:[#allocation3 + $0x2b]]
        %v542 = vstv %s541
        %v543 = vmul.f32 %v542, %v449
        %v544 = vmul.f32 %v542, %v450
        %547 = vrot.lane.b32.xlu0 %v543, 1
        %v548 = vpop.permute.xlu0 %547
        %549 = vrot.lane.b32.xlu0 %v544, 1
        %v550 = vpop.permute.xlu0 %549
        %v553 = vadd.f32 %v473, %v548
        %v554 = vadd.f32 %v474, %v550
        %s555 = sld [smem:[#allocation3 + $0x2c]]
        %v556 = vstv %s555
        %v557 = vmul.f32 %v556, %v449
        %v558 = vmul.f32 %v556, %v450
        %561 = vrot.lane.b32.xlu0 %v557, 1
        %v562 = vpop.permute.xlu0 %561
        %563 = vrot.lane.b32.xlu0 %v558, 1
        %v564 = vpop.permute.xlu0 %563
        %v567 = vadd.f32 %v479, %v562
        %v568 = vadd.f32 %v480, %v564
        %s569 = sld [smem:[#allocation3 + $0x2d]]
        %v570 = vstv %s569
        %v571 = vmul.f32 %v570, %v449
        %v572 = vmul.f32 %v570, %v450
        %575 = vrot.lane.b32.xlu0 %v571, 1
        %v576 = vpop.permute.xlu0 %575
        %577 = vrot.lane.b32.xlu0 %v572, 1
        %v578 = vpop.permute.xlu0 %577
        %v581 = vadd.f32 %v485, %v576
        %v582 = vadd.f32 %v486, %v578
        %s583 = sld [smem:[#allocation3 + $0x2e]]
        %v584 = vstv %s583
        %v585 = vmul.f32 %v584, %v449
        %v586 = vmul.f32 %v584, %v450
        %589 = vrot.lane.b32.xlu0 %v585, 1
        %v590 = vpop.permute.xlu0 %589
        %591 = vrot.lane.b32.xlu0 %v586, 1
        %v592 = vpop.permute.xlu0 %591
        %v595 = vadd.f32 %v491, %v590
        %v596 = vadd.f32 %v492, %v592
        %s597 = sld [smem:[#allocation3 + $0x2f]]
        %v598 = vstv %s597
        %v599 = vmul.f32 %v598, %v449
        %v600 = vmul.f32 %v598, %v450
        %603 = vrot.lane.b32.xlu0 %v599, 1
        %v604 = vpop.permute.xlu0 %603
        %605 = vrot.lane.b32.xlu0 %v600, 1
        %v606 = vpop.permute.xlu0 %605
        %v609 = vadd.f32 %v497, %v604
        %v610 = vadd.f32 %v498, %v606
        %v611 = vld [vmem:[%s448] sm:$0xff]
        %v612 = vld [vmem:[%s448 + $0x8] sm:$0xff]
        %s613 = sld [smem:[#allocation3 + $0x48]]
        %v614 = vstv %s613
        %v615 = vmul.f32 %v614, %v611
        %v616 = vmul.f32 %v614, %v612
        %v617 = vadd.f32 %v511, %v615
        %v618 = vadd.f32 %v512, %v616
        %s619 = sld [smem:[#allocation3 + $0x49]]
        %v620 = vstv %s619
        %v621 = vmul.f32 %v620, %v611
        %v622 = vmul.f32 %v620, %v612
        %v623 = vadd.f32 %v525, %v621
        %v624 = vadd.f32 %v526, %v622
        %s625 = sld [smem:[#allocation3 + $0x4a]]
        %v626 = vstv %s625
        %v627 = vmul.f32 %v626, %v611
        %v628 = vmul.f32 %v626, %v612
        %v629 = vadd.f32 %v539, %v627
        %v630 = vadd.f32 %v540, %v628
        %s631 = sld [smem:[#allocation3 + $0x4b]]
        %v632 = vstv %s631
        %v633 = vmul.f32 %v632, %v611
        %v634 = vmul.f32 %v632, %v612
        %v635 = vadd.f32 %v553, %v633
        %v636 = vadd.f32 %v554, %v634
        %s637 = sld [smem:[#allocation3 + $0x4c]]
        %v638 = vstv %s637
        %v639 = vmul.f32 %v638, %v611
        %v640 = vmul.f32 %v638, %v612
        %v641 = vadd.f32 %v567, %v639
        %v642 = vadd.f32 %v568, %v640
        %s643 = sld [smem:[#allocation3 + $0x4d]]
        %v644 = vstv %s643
        %v645 = vmul.f32 %v644, %v611
        %v646 = vmul.f32 %v644, %v612
        %v647 = vadd.f32 %v581, %v645
        %v648 = vadd.f32 %v582, %v646
        %s649 = sld [smem:[#allocation3 + $0x4e]]
        %v650 = vstv %s649
        %v651 = vmul.f32 %v650, %v611
        %v652 = vmul.f32 %v650, %v612
        %v653 = vadd.f32 %v595, %v651
        %v654 = vadd.f32 %v596, %v652
        %s655 = sld [smem:[#allocation3 + $0x4f]]
        %v656 = vstv %s655
        %v657 = vmul.f32 %v656, %v611
        %v658 = vmul.f32 %v656, %v612
        %v659 = vadd.f32 %v609, %v657
        %v660 = vadd.f32 %v610, %v658
        %s661 = sld [smem:[#allocation3 + $0x68]]
        %v662 = vstv %s661
        %v663 = vmul.f32 %v662, %v611
        %v664 = vmul.f32 %v662, %v612
        %667 = vrot.lane.b32.xlu0 %v663, 1
        %v668 = vpop.permute.xlu0 %667
        %669 = vrot.lane.b32.xlu0 %v664, 1
        %v670 = vpop.permute.xlu0 %669
        %v673 = vadd.f32 %v617, %v668
        %v674 = vadd.f32 %v618, %v670
        %s675 = sld [smem:[#allocation3 + $0x69]]
        %v676 = vstv %s675
        %v677 = vmul.f32 %v676, %v611
        %v678 = vmul.f32 %v676, %v612
        %681 = vrot.lane.b32.xlu0 %v677, 1
        %v682 = vpop.permute.xlu0 %681
        %683 = vrot.lane.b32.xlu0 %v678, 1
        %v684 = vpop.permute.xlu0 %683
        %v687 = vadd.f32 %v623, %v682
        %v688 = vadd.f32 %v624, %v684
        %s689 = sld [smem:[#allocation3 + $0x6a]]
        %v690 = vstv %s689
        %v691 = vmul.f32 %v690, %v611
        %v692 = vmul.f32 %v690, %v612
        %695 = vrot.lane.b32.xlu0 %v691, 1
        %v696 = vpop.permute.xlu0 %695
        %697 = vrot.lane.b32.xlu0 %v692, 1
        %v698 = vpop.permute.xlu0 %697
        %v701 = vadd.f32 %v629, %v696
        %v702 = vadd.f32 %v630, %v698
        %s703 = sld [smem:[#allocation3 + $0x6b]]
        %v704 = vstv %s703
        %v705 = vmul.f32 %v704, %v611
        %v706 = vmul.f32 %v704, %v612
        %709 = vrot.lane.b32.xlu0 %v705, 1
        %v710 = vpop.permute.xlu0 %709
        %711 = vrot.lane.b32.xlu0 %v706, 1
        %v712 = vpop.permute.xlu0 %711
        %v715 = vadd.f32 %v635, %v710
        %v716 = vadd.f32 %v636, %v712
        %s717 = sld [smem:[#allocation3 + $0x6c]]
        %v718 = vstv %s717
        %v719 = vmul.f32 %v718, %v611
        %v720 = vmul.f32 %v718, %v612
        %723 = vrot.lane.b32.xlu0 %v719, 1
        %v724 = vpop.permute.xlu0 %723
        %725 = vrot.lane.b32.xlu0 %v720, 1
        %v726 = vpop.permute.xlu0 %725
        %v729 = vadd.f32 %v641, %v724
        %v730 = vadd.f32 %v642, %v726
        %s731 = sld [smem:[#allocation3 + $0x6d]]
        %v732 = vstv %s731
        %v733 = vmul.f32 %v732, %v611
        %v734 = vmul.f32 %v732, %v612
        %737 = vrot.lane.b32.xlu0 %v733, 1
        %v738 = vpop.permute.xlu0 %737
        %739 = vrot.lane.b32.xlu0 %v734, 1
        %v740 = vpop.permute.xlu0 %739
        %v743 = vadd.f32 %v647, %v738
        %v744 = vadd.f32 %v648, %v740
        %s745 = sld [smem:[#allocation3 + $0x6e]]
        %v746 = vstv %s745
        %v747 = vmul.f32 %v746, %v611
        %v748 = vmul.f32 %v746, %v612
        %751 = vrot.lane.b32.xlu0 %v747, 1
        %v752 = vpop.permute.xlu0 %751
        %753 = vrot.lane.b32.xlu0 %v748, 1
        %v754 = vpop.permute.xlu0 %753
        %v757 = vadd.f32 %v653, %v752
        %v758 = vadd.f32 %v654, %v754
        %s759 = sld [smem:[#allocation3 + $0x6f]]
        %v760 = vstv %s759
        %v761 = vmul.f32 %v760, %v611
        %v762 = vmul.f32 %v760, %v612
        %765 = vrot.lane.b32.xlu0 %v761, 1
        %v766 = vpop.permute.xlu0 %765
        %767 = vrot.lane.b32.xlu0 %v762, 1
        %v768 = vpop.permute.xlu0 %767
        %v771 = vadd.f32 %v659, %v766
        %v772 = vadd.f32 %v660, %v768
        %s773 = scalar_lea.vmem %s123, 48
        %v774 = vld [vmem:[%s773 + $0x1] sm:$0xff]
        %v775 = vld [vmem:[%s773 + $0x9] sm:$0xff]
        %s776 = sld [smem:[#allocation3 + $0x10]]
        %v777 = vstv %s776
        %v778 = vmul.f32 %v777, %v774
        %v779 = vmul.f32 %v777, %v775
        %v780 = vadd.f32 %v673, %v778
        %v781 = vadd.f32 %v674, %v779
        %s782 = sld [smem:[#allocation3 + $0x11]]
        %v783 = vstv %s782
        %v784 = vmul.f32 %v783, %v774
        %v785 = vmul.f32 %v783, %v775
        %v786 = vadd.f32 %v687, %v784
        %v787 = vadd.f32 %v688, %v785
        %s788 = sld [smem:[#allocation3 + $0x12]]
        %v789 = vstv %s788
        %v790 = vmul.f32 %v789, %v774
        %v791 = vmul.f32 %v789, %v775
        %v792 = vadd.f32 %v701, %v790
        %v793 = vadd.f32 %v702, %v791
        %s794 = sld [smem:[#allocation3 + $0x13]]
        %v795 = vstv %s794
        %v796 = vmul.f32 %v795, %v774
        %v797 = vmul.f32 %v795, %v775
        %v798 = vadd.f32 %v715, %v796
        %v799 = vadd.f32 %v716, %v797
        %s800 = sld [smem:[#allocation3 + $0x14]]
        %v801 = vstv %s800
        %v802 = vmul.f32 %v801, %v774
        %v803 = vmul.f32 %v801, %v775
        %v804 = vadd.f32 %v729, %v802
        %v805 = vadd.f32 %v730, %v803
        %s806 = sld [smem:[#allocation3 + $0x15]]
        %v807 = vstv %s806
        %v808 = vmul.f32 %v807, %v774
        %v809 = vmul.f32 %v807, %v775
        %v810 = vadd.f32 %v743, %v808
        %v811 = vadd.f32 %v744, %v809
        %s812 = sld [smem:[#allocation3 + $0x16]]
        %v813 = vstv %s812
        %v814 = vmul.f32 %v813, %v774
        %v815 = vmul.f32 %v813, %v775
        %v816 = vadd.f32 %v757, %v814
        %v817 = vadd.f32 %v758, %v815
        %s818 = sld [smem:[#allocation3 + $0x17]]
        %v819 = vstv %s818
        %v820 = vmul.f32 %v819, %v774
        %v821 = vmul.f32 %v819, %v775
        %v822 = vadd.f32 %v771, %v820
        %v823 = vadd.f32 %v772, %v821
        %s824 = sld [smem:[#allocation3 + $0x30]]
        %v825 = vstv %s824
        %v826 = vmul.f32 %v825, %v774
        %v827 = vmul.f32 %v825, %v775
        %830 = vrot.lane.b32.xlu0 %v826, 1
        %v831 = vpop.permute.xlu0 %830
        %832 = vrot.lane.b32.xlu0 %v827, 1
        %v833 = vpop.permute.xlu0 %832
        %v836 = vadd.f32 %v780, %v831
        %v837 = vadd.f32 %v781, %v833
        %s838 = sld [smem:[#allocation3 + $0x31]]
        %v839 = vstv %s838
        %v840 = vmul.f32 %v839, %v774
        %v841 = vmul.f32 %v839, %v775
        %844 = vrot.lane.b32.xlu0 %v840, 1
        %v845 = vpop.permute.xlu0 %844
        %846 = vrot.lane.b32.xlu0 %v841, 1
        %v847 = vpop.permute.xlu0 %846
        %v850 = vadd.f32 %v786, %v845
        %v851 = vadd.f32 %v787, %v847
        %s852 = sld [smem:[#allocation3 + $0x32]]
        %v853 = vstv %s852
        %v854 = vmul.f32 %v853, %v774
        %v855 = vmul.f32 %v853, %v775
        %858 = vrot.lane.b32.xlu0 %v854, 1
        %v859 = vpop.permute.xlu0 %858
        %860 = vrot.lane.b32.xlu0 %v855, 1
        %v861 = vpop.permute.xlu0 %860
        %v864 = vadd.f32 %v792, %v859
        %v865 = vadd.f32 %v793, %v861
        %s866 = sld [smem:[#allocation3 + $0x33]]
        %v867 = vstv %s866
        %v868 = vmul.f32 %v867, %v774
        %v869 = vmul.f32 %v867, %v775
        %872 = vrot.lane.b32.xlu0 %v868, 1
        %v873 = vpop.permute.xlu0 %872
        %874 = vrot.lane.b32.xlu0 %v869, 1
        %v875 = vpop.permute.xlu0 %874
        %v878 = vadd.f32 %v798, %v873
        %v879 = vadd.f32 %v799, %v875
        %s880 = sld [smem:[#allocation3 + $0x34]]
        %v881 = vstv %s880
        %v882 = vmul.f32 %v881, %v774
        %v883 = vmul.f32 %v881, %v775
        %886 = vrot.lane.b32.xlu0 %v882, 1
        %v887 = vpop.permute.xlu0 %886
        %888 = vrot.lane.b32.xlu0 %v883, 1
        %v889 = vpop.permute.xlu0 %888
        %v892 = vadd.f32 %v804, %v887
        %v893 = vadd.f32 %v805, %v889
        %s894 = sld [smem:[#allocation3 + $0x35]]
        %v895 = vstv %s894
        %v896 = vmul.f32 %v895, %v774
        %v897 = vmul.f32 %v895, %v775
        %900 = vrot.lane.b32.xlu0 %v896, 1
        %v901 = vpop.permute.xlu0 %900
        %902 = vrot.lane.b32.xlu0 %v897, 1
        %v903 = vpop.permute.xlu0 %902
        %v906 = vadd.f32 %v810, %v901
        %v907 = vadd.f32 %v811, %v903
        %s908 = sld [smem:[#allocation3 + $0x36]]
        %v909 = vstv %s908
        %v910 = vmul.f32 %v909, %v774
        %v911 = vmul.f32 %v909, %v775
        %914 = vrot.lane.b32.xlu0 %v910, 1
        %v915 = vpop.permute.xlu0 %914
        %916 = vrot.lane.b32.xlu0 %v911, 1
        %v917 = vpop.permute.xlu0 %916
        %v920 = vadd.f32 %v816, %v915
        %v921 = vadd.f32 %v817, %v917
        %s922 = sld [smem:[#allocation3 + $0x37]]
        %v923 = vstv %s922
        %v924 = vmul.f32 %v923, %v774
        %v925 = vmul.f32 %v923, %v775
        %928 = vrot.lane.b32.xlu0 %v924, 1
        %v929 = vpop.permute.xlu0 %928
        %930 = vrot.lane.b32.xlu0 %v925, 1
        %v931 = vpop.permute.xlu0 %930
        %v934 = vadd.f32 %v822, %v929
        %v935 = vadd.f32 %v823, %v931
        %v936 = vld [vmem:[%s773] sm:$0xff]
        %v937 = vld [vmem:[%s773 + $0x8] sm:$0xff]
        %s938 = sld [smem:[#allocation3 + $0x50]]
        %v939 = vstv %s938
        %v940 = vmul.f32 %v939, %v936
        %v941 = vmul.f32 %v939, %v937
        %v942 = vadd.f32 %v836, %v940
        %v943 = vadd.f32 %v837, %v941
        %s944 = sld [smem:[#allocation3 + $0x51]]
        %v945 = vstv %s944
        %v946 = vmul.f32 %v945, %v936
        %v947 = vmul.f32 %v945, %v937
        %v948 = vadd.f32 %v850, %v946
        %v949 = vadd.f32 %v851, %v947
        %s950 = sld [smem:[#allocation3 + $0x52]]
        %v951 = vstv %s950
        %v952 = vmul.f32 %v951, %v936
        %v953 = vmul.f32 %v951, %v937
        %v954 = vadd.f32 %v864, %v952
        %v955 = vadd.f32 %v865, %v953
        %s956 = sld [smem:[#allocation3 + $0x53]]
        %v957 = vstv %s956
        %v958 = vmul.f32 %v957, %v936
        %v959 = vmul.f32 %v957, %v937
        %v960 = vadd.f32 %v878, %v958
        %v961 = vadd.f32 %v879, %v959
        %s962 = sld [smem:[#allocation3 + $0x54]]
        %v963 = vstv %s962
        %v964 = vmul.f32 %v963, %v936
        %v965 = vmul.f32 %v963, %v937
        %v966 = vadd.f32 %v892, %v964
        %v967 = vadd.f32 %v893, %v965
        %s968 = sld [smem:[#allocation3 + $0x55]]
        %v969 = vstv %s968
        %v970 = vmul.f32 %v969, %v936
        %v971 = vmul.f32 %v969, %v937
        %v972 = vadd.f32 %v906, %v970
        %v973 = vadd.f32 %v907, %v971
        %s974 = sld [smem:[#allocation3 + $0x56]]
        %v975 = vstv %s974
        %v976 = vmul.f32 %v975, %v936
        %v977 = vmul.f32 %v975, %v937
        %v978 = vadd.f32 %v920, %v976
        %v979 = vadd.f32 %v921, %v977
        %s980 = sld [smem:[#allocation3 + $0x57]]
        %v981 = vstv %s980
        %v982 = vmul.f32 %v981, %v936
        %v983 = vmul.f32 %v981, %v937
        %v984 = vadd.f32 %v934, %v982
        %v985 = vadd.f32 %v935, %v983
        %s986 = sld [smem:[#allocation3 + $0x70]]
        %v987 = vstv %s986
        %v988 = vmul.f32 %v987, %v936
        %v989 = vmul.f32 %v987, %v937
        %992 = vrot.lane.b32.xlu0 %v988, 1
        %v993 = vpop.permute.xlu0 %992
        %994 = vrot.lane.b32.xlu0 %v989, 1
        %v995 = vpop.permute.xlu0 %994
        %v998 = vadd.f32 %v942, %v993
        %v999 = vadd.f32 %v943, %v995
        %s1000 = sld [smem:[#allocation3 + $0x71]]
        %v1001 = vstv %s1000
        %v1002 = vmul.f32 %v1001, %v936
        %v1003 = vmul.f32 %v1001, %v937
        %1006 = vrot.lane.b32.xlu0 %v1002, 1
        %v1007 = vpop.permute.xlu0 %1006
        %1008 = vrot.lane.b32.xlu0 %v1003, 1
        %v1009 = vpop.permute.xlu0 %1008
        %v1012 = vadd.f32 %v948, %v1007
        %v1013 = vadd.f32 %v949, %v1009
        %s1014 = sld [smem:[#allocation3 + $0x72]]
        %v1015 = vstv %s1014
        %v1016 = vmul.f32 %v1015, %v936
        %v1017 = vmul.f32 %v1015, %v937
        %1020 = vrot.lane.b32.xlu0 %v1016, 1
        %v1021 = vpop.permute.xlu0 %1020
        %1022 = vrot.lane.b32.xlu0 %v1017, 1
        %v1023 = vpop.permute.xlu0 %1022
        %v1026 = vadd.f32 %v954, %v1021
        %v1027 = vadd.f32 %v955, %v1023
        %s1028 = sld [smem:[#allocation3 + $0x73]]
        %v1029 = vstv %s1028
        %v1030 = vmul.f32 %v1029, %v936
        %v1031 = vmul.f32 %v1029, %v937
        %1034 = vrot.lane.b32.xlu0 %v1030, 1
        %v1035 = vpop.permute.xlu0 %1034
        %1036 = vrot.lane.b32.xlu0 %v1031, 1
        %v1037 = vpop.permute.xlu0 %1036
        %v1040 = vadd.f32 %v960, %v1035
        %v1041 = vadd.f32 %v961, %v1037
        %s1042 = sld [smem:[#allocation3 + $0x74]]
        %v1043 = vstv %s1042
        %v1044 = vmul.f32 %v1043, %v936
        %v1045 = vmul.f32 %v1043, %v937
        %1048 = vrot.lane.b32.xlu0 %v1044, 1
        %v1049 = vpop.permute.xlu0 %1048
        %1050 = vrot.lane.b32.xlu0 %v1045, 1
        %v1051 = vpop.permute.xlu0 %1050
        %v1054 = vadd.f32 %v966, %v1049
        %v1055 = vadd.f32 %v967, %v1051
        %s1056 = sld [smem:[#allocation3 + $0x75]]
        %v1057 = vstv %s1056
        %v1058 = vmul.f32 %v1057, %v936
        %v1059 = vmul.f32 %v1057, %v937
        %1062 = vrot.lane.b32.xlu0 %v1058, 1
        %v1063 = vpop.permute.xlu0 %1062
        %1064 = vrot.lane.b32.xlu0 %v1059, 1
        %v1065 = vpop.permute.xlu0 %1064
        %v1068 = vadd.f32 %v972, %v1063
        %v1069 = vadd.f32 %v973, %v1065
        %s1070 = sld [smem:[#allocation3 + $0x76]]
        %v1071 = vstv %s1070
        %v1072 = vmul.f32 %v1071, %v936
        %v1073 = vmul.f32 %v1071, %v937
        %1076 = vrot.lane.b32.xlu0 %v1072, 1
        %v1077 = vpop.permute.xlu0 %1076
        %1078 = vrot.lane.b32.xlu0 %v1073, 1
        %v1079 = vpop.permute.xlu0 %1078
        %v1082 = vadd.f32 %v978, %v1077
        %v1083 = vadd.f32 %v979, %v1079
        %s1084 = sld [smem:[#allocation3 + $0x77]]
        %v1085 = vstv %s1084
        %v1086 = vmul.f32 %v1085, %v936
        %v1087 = vmul.f32 %v1085, %v937
        %1090 = vrot.lane.b32.xlu0 %v1086, 1
        %v1091 = vpop.permute.xlu0 %1090
        %1092 = vrot.lane.b32.xlu0 %v1087, 1
        %v1093 = vpop.permute.xlu0 %1092
        %v1096 = vadd.f32 %v984, %v1091
        %v1097 = vadd.f32 %v985, %v1093
        %s1098 = scalar_lea.vmem %s123, 72
        %v1099 = vld [vmem:[%s1098 + $0x1] sm:$0xff]
        %v1100 = vld [vmem:[%s1098 + $0x9] sm:$0xff]
        %s1101 = sld [smem:[#allocation3 + $0x18]]
        %v1102 = vstv %s1101
        %v1103 = vmul.f32 %v1102, %v1099
        %v1104 = vmul.f32 %v1102, %v1100
        %v1105 = vadd.f32 %v998, %v1103
        %v1106 = vadd.f32 %v999, %v1104
        %s1107 = sld [smem:[#allocation3 + $0x19]]
        %v1108 = vstv %s1107
        %v1109 = vmul.f32 %v1108, %v1099
        %v1110 = vmul.f32 %v1108, %v1100
        %v1111 = vadd.f32 %v1012, %v1109
        %v1112 = vadd.f32 %v1013, %v1110
        %s1113 = sld [smem:[#allocation3 + $0x1a]]
        %v1114 = vstv %s1113
        %v1115 = vmul.f32 %v1114, %v1099
        %v1116 = vmul.f32 %v1114, %v1100
        %v1117 = vadd.f32 %v1026, %v1115
        %v1118 = vadd.f32 %v1027, %v1116
        %s1119 = sld [smem:[#allocation3 + $0x1b]]
        %v1120 = vstv %s1119
        %v1121 = vmul.f32 %v1120, %v1099
        %v1122 = vmul.f32 %v1120, %v1100
        %v1123 = vadd.f32 %v1040, %v1121
        %v1124 = vadd.f32 %v1041, %v1122
        %s1125 = sld [smem:[#allocation3 + $0x1c]]
        %v1126 = vstv %s1125
        %v1127 = vmul.f32 %v1126, %v1099
        %v1128 = vmul.f32 %v1126, %v1100
        %v1129 = vadd.f32 %v1054, %v1127
        %v1130 = vadd.f32 %v1055, %v1128
        %s1131 = sld [smem:[#allocation3 + $0x1d]]
        %v1132 = vstv %s1131
        %v1133 = vmul.f32 %v1132, %v1099
        %v1134 = vmul.f32 %v1132, %v1100
        %v1135 = vadd.f32 %v1068, %v1133
        %v1136 = vadd.f32 %v1069, %v1134
        %s1137 = sld [smem:[#allocation3 + $0x1e]]
        %v1138 = vstv %s1137
        %v1139 = vmul.f32 %v1138, %v1099
        %v1140 = vmul.f32 %v1138, %v1100
        %v1141 = vadd.f32 %v1082, %v1139
        %v1142 = vadd.f32 %v1083, %v1140
        %s1143 = sld [smem:[#allocation3 + $0x1f]]
        %v1144 = vstv %s1143
        %v1145 = vmul.f32 %v1144, %v1099
        %v1146 = vmul.f32 %v1144, %v1100
        %v1147 = vadd.f32 %v1096, %v1145
        %v1148 = vadd.f32 %v1097, %v1146
        %s1149 = sld [smem:[#allocation3 + $0x38]]
        %v1150 = vstv %s1149
        %v1151 = vmul.f32 %v1150, %v1099
        %v1152 = vmul.f32 %v1150, %v1100
        %1155 = vrot.lane.b32.xlu0 %v1151, 1
        %v1156 = vpop.permute.xlu0 %1155
        %1157 = vrot.lane.b32.xlu0 %v1152, 1
        %v1158 = vpop.permute.xlu0 %1157
        %v1161 = vadd.f32 %v1105, %v1156
        %v1162 = vadd.f32 %v1106, %v1158
        %s1163 = sld [smem:[#allocation3 + $0x39]]
        %v1164 = vstv %s1163
        %v1165 = vmul.f32 %v1164, %v1099
        %v1166 = vmul.f32 %v1164, %v1100
        %1169 = vrot.lane.b32.xlu0 %v1165, 1
        %v1170 = vpop.permute.xlu0 %1169
        %1171 = vrot.lane.b32.xlu0 %v1166, 1
        %v1172 = vpop.permute.xlu0 %1171
        %v1175 = vadd.f32 %v1111, %v1170
        %v1176 = vadd.f32 %v1112, %v1172
        %s1177 = sld [smem:[#allocation3 + $0x3a]]
        %v1178 = vstv %s1177
        %v1179 = vmul.f32 %v1178, %v1099
        %v1180 = vmul.f32 %v1178, %v1100
        %1183 = vrot.lane.b32.xlu0 %v1179, 1
        %v1184 = vpop.permute.xlu0 %1183
        %1185 = vrot.lane.b32.xlu0 %v1180, 1
        %v1186 = vpop.permute.xlu0 %1185
        %v1189 = vadd.f32 %v1117, %v1184
        %v1190 = vadd.f32 %v1118, %v1186
        %s1191 = sld [smem:[#allocation3 + $0x3b]]
        %v1192 = vstv %s1191
        %v1193 = vmul.f32 %v1192, %v1099
        %v1194 = vmul.f32 %v1192, %v1100
        %1197 = vrot.lane.b32.xlu0 %v1193, 1
        %v1198 = vpop.permute.xlu0 %1197
        %1199 = vrot.lane.b32.xlu0 %v1194, 1
        %v1200 = vpop.permute.xlu0 %1199
        %v1203 = vadd.f32 %v1123, %v1198
        %v1204 = vadd.f32 %v1124, %v1200
        %s1205 = sld [smem:[#allocation3 + $0x3c]]
        %v1206 = vstv %s1205
        %v1207 = vmul.f32 %v1206, %v1099
        %v1208 = vmul.f32 %v1206, %v1100
        %1211 = vrot.lane.b32.xlu0 %v1207, 1
        %v1212 = vpop.permute.xlu0 %1211
        %1213 = vrot.lane.b32.xlu0 %v1208, 1
        %v1214 = vpop.permute.xlu0 %1213
        %v1217 = vadd.f32 %v1129, %v1212
        %v1218 = vadd.f32 %v1130, %v1214
        %s1219 = sld [smem:[#allocation3 + $0x3d]]
        %v1220 = vstv %s1219
        %v1221 = vmul.f32 %v1220, %v1099
        %v1222 = vmul.f32 %v1220, %v1100
        %1225 = vrot.lane.b32.xlu0 %v1221, 1
        %v1226 = vpop.permute.xlu0 %1225
        %1227 = vrot.lane.b32.xlu0 %v1222, 1
        %v1228 = vpop.permute.xlu0 %1227
        %v1231 = vadd.f32 %v1135, %v1226
        %v1232 = vadd.f32 %v1136, %v1228
        %s1233 = sld [smem:[#allocation3 + $0x3e]]
        %v1234 = vstv %s1233
        %v1235 = vmul.f32 %v1234, %v1099
        %v1236 = vmul.f32 %v1234, %v1100
        %1239 = vrot.lane.b32.xlu0 %v1235, 1
        %v1240 = vpop.permute.xlu0 %1239
        %1241 = vrot.lane.b32.xlu0 %v1236, 1
        %v1242 = vpop.permute.xlu0 %1241
        %v1245 = vadd.f32 %v1141, %v1240
        %v1246 = vadd.f32 %v1142, %v1242
        %s1247 = sld [smem:[#allocation3 + $0x3f]]
        %v1248 = vstv %s1247
        %v1249 = vmul.f32 %v1248, %v1099
        %v1250 = vmul.f32 %v1248, %v1100
        %1253 = vrot.lane.b32.xlu0 %v1249, 1
        %v1254 = vpop.permute.xlu0 %1253
        %1255 = vrot.lane.b32.xlu0 %v1250, 1
        %v1256 = vpop.permute.xlu0 %1255
        %v1259 = vadd.f32 %v1147, %v1254
        %v1260 = vadd.f32 %v1148, %v1256
        %v1261 = vld [vmem:[%s1098] sm:$0xff]
        %v1262 = vld [vmem:[%s1098 + $0x8] sm:$0xff]
        %s1263 = sld [smem:[#allocation3 + $0x58]]
        %v1264 = vstv %s1263
        %v1265 = vmul.f32 %v1264, %v1261
        %v1266 = vmul.f32 %v1264, %v1262
        %v1267 = vadd.f32 %v1161, %v1265
        %v1268 = vadd.f32 %v1162, %v1266
        %s1269 = sld [smem:[#allocation3 + $0x59]]
        %v1270 = vstv %s1269
        %v1271 = vmul.f32 %v1270, %v1261
        %v1272 = vmul.f32 %v1270, %v1262
        %v1273 = vadd.f32 %v1175, %v1271
        %v1274 = vadd.f32 %v1176, %v1272
        %s1275 = sld [smem:[#allocation3 + $0x5a]]
        %v1276 = vstv %s1275
        %v1277 = vmul.f32 %v1276, %v1261
        %v1278 = vmul.f32 %v1276, %v1262
        %v1279 = vadd.f32 %v1189, %v1277
        %v1280 = vadd.f32 %v1190, %v1278
        %s1281 = sld [smem:[#allocation3 + $0x5b]]
        %v1282 = vstv %s1281
        %v1283 = vmul.f32 %v1282, %v1261
        %v1284 = vmul.f32 %v1282, %v1262
        %v1285 = vadd.f32 %v1203, %v1283
        %v1286 = vadd.f32 %v1204, %v1284
        %s1287 = sld [smem:[#allocation3 + $0x5c]]
        %v1288 = vstv %s1287
        %v1289 = vmul.f32 %v1288, %v1261
        %v1290 = vmul.f32 %v1288, %v1262
        %v1291 = vadd.f32 %v1217, %v1289
        %v1292 = vadd.f32 %v1218, %v1290
        %s1293 = sld [smem:[#allocation3 + $0x5d]]
        %v1294 = vstv %s1293
        %v1295 = vmul.f32 %v1294, %v1261
        %v1296 = vmul.f32 %v1294, %v1262
        %v1297 = vadd.f32 %v1231, %v1295
        %v1298 = vadd.f32 %v1232, %v1296
        %s1299 = sld [smem:[#allocation3 + $0x5e]]
        %v1300 = vstv %s1299
        %v1301 = vmul.f32 %v1300, %v1261
        %v1302 = vmul.f32 %v1300, %v1262
        %v1303 = vadd.f32 %v1245, %v1301
        %v1304 = vadd.f32 %v1246, %v1302
        %s1305 = sld [smem:[#allocation3 + $0x5f]]
        %v1306 = vstv %s1305
        %v1307 = vmul.f32 %v1306, %v1261
        %v1308 = vmul.f32 %v1306, %v1262
        %v1309 = vadd.f32 %v1259, %v1307
        %v1310 = vadd.f32 %v1260, %v1308
        %s1311 = sld [smem:[#allocation3 + $0x78]]
        %v1312 = vstv %s1311
        %v1313 = vmul.f32 %v1312, %v1261
        %v1314 = vmul.f32 %v1312, %v1262
        %1317 = vrot.lane.b32.xlu0 %v1313, 1
        %v1318 = vpop.permute.xlu0 %1317
        %1319 = vrot.lane.b32.xlu0 %v1314, 1
        %v1320 = vpop.permute.xlu0 %1319
        %v1323 = vadd.f32 %v1267, %v1318
        %v1324 = vadd.f32 %v1268, %v1320
        %s1325 = sld [smem:[#allocation3 + $0x79]]
        %v1326 = vstv %s1325
        %v1327 = vmul.f32 %v1326, %v1261
        %v1328 = vmul.f32 %v1326, %v1262
        %1331 = vrot.lane.b32.xlu0 %v1327, 1
        %v1332 = vpop.permute.xlu0 %1331
        %1333 = vrot.lane.b32.xlu0 %v1328, 1
        %v1334 = vpop.permute.xlu0 %1333
        %v1337 = vadd.f32 %v1273, %v1332
        %v1338 = vadd.f32 %v1274, %v1334
        %s1339 = sld [smem:[#allocation3 + $0x7a]]
        %v1340 = vstv %s1339
        %v1341 = vmul.f32 %v1340, %v1261
        %v1342 = vmul.f32 %v1340, %v1262
        %1345 = vrot.lane.b32.xlu0 %v1341, 1
        %v1346 = vpop.permute.xlu0 %1345
        %1347 = vrot.lane.b32.xlu0 %v1342, 1
        %v1348 = vpop.permute.xlu0 %1347
        %v1351 = vadd.f32 %v1279, %v1346
        %v1352 = vadd.f32 %v1280, %v1348
        %s1353 = sld [smem:[#allocation3 + $0x7b]]
        %v1354 = vstv %s1353
        %v1355 = vmul.f32 %v1354, %v1261
        %v1356 = vmul.f32 %v1354, %v1262
        %1359 = vrot.lane.b32.xlu0 %v1355, 1
        %v1360 = vpop.permute.xlu0 %1359
        %1361 = vrot.lane.b32.xlu0 %v1356, 1
        %v1362 = vpop.permute.xlu0 %1361
        %v1365 = vadd.f32 %v1285, %v1360
        %v1366 = vadd.f32 %v1286, %v1362
        %s1367 = sld [smem:[#allocation3 + $0x7c]]
        %v1368 = vstv %s1367
        %v1369 = vmul.f32 %v1368, %v1261
        %v1370 = vmul.f32 %v1368, %v1262
        %1373 = vrot.lane.b32.xlu0 %v1369, 1
        %v1374 = vpop.permute.xlu0 %1373
        %1375 = vrot.lane.b32.xlu0 %v1370, 1
        %v1376 = vpop.permute.xlu0 %1375
        %v1379 = vadd.f32 %v1291, %v1374
        %v1380 = vadd.f32 %v1292, %v1376
        %s1381 = sld [smem:[#allocation3 + $0x7d]]
        %v1382 = vstv %s1381
        %v1383 = vmul.f32 %v1382, %v1261
        %v1384 = vmul.f32 %v1382, %v1262
        %1387 = vrot.lane.b32.xlu0 %v1383, 1
        %v1388 = vpop.permute.xlu0 %1387
        %1389 = vrot.lane.b32.xlu0 %v1384, 1
        %v1390 = vpop.permute.xlu0 %1389
        %v1393 = vadd.f32 %v1297, %v1388
        %v1394 = vadd.f32 %v1298, %v1390
        %s1395 = sld [smem:[#allocation3 + $0x7e]]
        %v1396 = vstv %s1395
        %v1397 = vmul.f32 %v1396, %v1261
        %v1398 = vmul.f32 %v1396, %v1262
        %1401 = vrot.lane.b32.xlu0 %v1397, 1
        %v1402 = vpop.permute.xlu0 %1401
        %1403 = vrot.lane.b32.xlu0 %v1398, 1
        %v1404 = vpop.permute.xlu0 %1403
        %v1407 = vadd.f32 %v1303, %v1402
        %v1408 = vadd.f32 %v1304, %v1404
        %s1409 = sld [smem:[#allocation3 + $0x7f]]
        %v1410 = vstv %s1409
        %v1411 = vmul.f32 %v1410, %v1261
        %v1412 = vmul.f32 %v1410, %v1262
        %1415 = vrot.lane.b32.xlu0 %v1411, 1
        %v1416 = vpop.permute.xlu0 %1415
        %1417 = vrot.lane.b32.xlu0 %v1412, 1
        %v1418 = vpop.permute.xlu0 %1417
        %v1421 = vadd.f32 %v1309, %v1416
        %v1422 = vadd.f32 %v1310, %v1418
        %1425 = vrot.lane.b32.xlu0 %v1323, 127
        %v1426 = vpop.permute.xlu0 %1425
        %1427 = vrot.lane.b32.xlu0 %v1324, 127
        %v1428 = vpop.permute.xlu0 %1427
        %vm1431 = vcmask 130048
        %1432 = vst.msk [vmem:[%s118] sm:$0xff] %vm1431, %v1426
        %1433 = vst.msk [vmem:[%s118 + $0x8] sm:$0xff] %vm1431, %v1428
        %1436 = vrot.lane.b32.xlu0 %v1337, 127
        %v1437 = vpop.permute.xlu0 %1436
        %1438 = vrot.lane.b32.xlu0 %v1338, 127
        %v1439 = vpop.permute.xlu0 %1438
        %s1442 = scalar_lea.vmem %s118, 16 [#allocation4]
        %1443 = vst.msk [vmem:[%s1442] sm:$0xff] %vm1431, %v1437
        %1444 = vst.msk [vmem:[%s1442 + $0x8] sm:$0xff] %vm1431, %v1439
        %1447 = vrot.lane.b32.xlu0 %v1351, 127
        %v1448 = vpop.permute.xlu0 %1447
        %1449 = vrot.lane.b32.xlu0 %v1352, 127
        %v1450 = vpop.permute.xlu0 %1449
        %s1453 = scalar_lea.vmem %s118, 32 [#allocation4]
        %1454 = vst.msk [vmem:[%s1453] sm:$0xff] %vm1431, %v1448
        %1455 = vst.msk [vmem:[%s1453 + $0x8] sm:$0xff] %vm1431, %v1450
        %1458 = vrot.lane.b32.xlu0 %v1365, 127
        %v1459 = vpop.permute.xlu0 %1458
        %1460 = vrot.lane.b32.xlu0 %v1366, 127
        %v1461 = vpop.permute.xlu0 %1460
        %s1464 = scalar_lea.vmem %s118, 48 [#allocation4]
        %1465 = vst.msk [vmem:[%s1464] sm:$0xff] %vm1431, %v1459
        %1466 = vst.msk [vmem:[%s1464 + $0x8] sm:$0xff] %vm1431, %v1461
        %1469 = vrot.lane.b32.xlu0 %v1379, 127
        %v1470 = vpop.permute.xlu0 %1469
        %1471 = vrot.lane.b32.xlu0 %v1380, 127
        %v1472 = vpop.permute.xlu0 %1471
        %s1475 = scalar_lea.vmem %s118, 64 [#allocation4]
        %1476 = vst.msk [vmem:[%s1475] sm:$0xff] %vm1431, %v1470
        %1477 = vst.msk [vmem:[%s1475 + $0x8] sm:$0xff] %vm1431, %v1472
        %1480 = vrot.lane.b32.xlu0 %v1393, 127
        %v1481 = vpop.permute.xlu0 %1480
        %1482 = vrot.lane.b32.xlu0 %v1394, 127
        %v1483 = vpop.permute.xlu0 %1482
        %s1486 = scalar_lea.vmem %s118, 80 [#allocation4]
        %1487 = vst.msk [vmem:[%s1486] sm:$0xff] %vm1431, %v1481
        %1488 = vst.msk [vmem:[%s1486 + $0x8] sm:$0xff] %vm1431, %v1483
        %1491 = vrot.lane.b32.xlu0 %v1407, 127
        %v1492 = vpop.permute.xlu0 %1491
        %1493 = vrot.lane.b32.xlu0 %v1408, 127
        %v1494 = vpop.permute.xlu0 %1493
        %s1497 = scalar_lea.vmem %s118, 96 [#allocation4]
        %1498 = vst.msk [vmem:[%s1497] sm:$0xff] %vm1431, %v1492
        %1499 = vst.msk [vmem:[%s1497 + $0x8] sm:$0xff] %vm1431, %v1494
        %1502 = vrot.lane.b32.xlu0 %v1421, 127
        %v1503 = vpop.permute.xlu0 %1502
        %1504 = vrot.lane.b32.xlu0 %v1422, 127
        %v1505 = vpop.permute.xlu0 %1504
        %s1508 = scalar_lea.vmem %s118, 112 [#allocation4]
        %1509 = vst.msk [vmem:[%s1508] sm:$0xff] %vm1431, %v1503
        %1510 = vst.msk [vmem:[%s1508 + $0x8] sm:$0xff] %vm1431, %v1505
        %v1511 = vld [vmem:[%s123 + $0x1] sm:$0xff]
        %v1512 = vld [vmem:[%s123 + $0x9] sm:$0xff]
        %s1513 = sld [smem:[#allocation3 + $0x80]]
        %v1514 = vstv %s1513
        %v1515 = vmul.f32 %v1514, %v1511
        %v1516 = vmul.f32 %v1514, %v1512
        %v1517 = vadd.f32 %v1515, 0.0
        %v1518 = vadd.f32 %v1516, 0.0
        %s1519 = sld [smem:[#allocation3 + $0x81]]
        %v1520 = vstv %s1519
        %v1521 = vmul.f32 %v1520, %v1511
        %v1522 = vmul.f32 %v1520, %v1512
        %v1523 = vadd.f32 %v1521, 0.0
        %v1524 = vadd.f32 %v1522, 0.0
        %s1525 = sld [smem:[#allocation3 + $0x82]]
        %v1526 = vstv %s1525
        %v1527 = vmul.f32 %v1526, %v1511
        %v1528 = vmul.f32 %v1526, %v1512
        %v1529 = vadd.f32 %v1527, 0.0
        %v1530 = vadd.f32 %v1528, 0.0
        %s1531 = sld [smem:[#allocation3 + $0x83]]
        %v1532 = vstv %s1531
        %v1533 = vmul.f32 %v1532, %v1511
        %v1534 = vmul.f32 %v1532, %v1512
        %v1535 = vadd.f32 %v1533, 0.0
        %v1536 = vadd.f32 %v1534, 0.0
        %s1537 = sld [smem:[#allocation3 + $0x84]]
        %v1538 = vstv %s1537
        %v1539 = vmul.f32 %v1538, %v1511
        %v1540 = vmul.f32 %v1538, %v1512
        %v1541 = vadd.f32 %v1539, 0.0
        %v1542 = vadd.f32 %v1540, 0.0
        %s1543 = sld [smem:[#allocation3 + $0x85]]
        %v1544 = vstv %s1543
        %v1545 = vmul.f32 %v1544, %v1511
        %v1546 = vmul.f32 %v1544, %v1512
        %v1547 = vadd.f32 %v1545, 0.0
        %v1548 = vadd.f32 %v1546, 0.0
        %s1549 = sld [smem:[#allocation3 + $0x86]]
        %v1550 = vstv %s1549
        %v1551 = vmul.f32 %v1550, %v1511
        %v1552 = vmul.f32 %v1550, %v1512
        %v1553 = vadd.f32 %v1551, 0.0
        %v1554 = vadd.f32 %v1552, 0.0
        %s1555 = sld [smem:[#allocation3 + $0x87]]
        %v1556 = vstv %s1555
        %v1557 = vmul.f32 %v1556, %v1511
        %v1558 = vmul.f32 %v1556, %v1512
        %v1559 = vadd.f32 %v1557, 0.0
        %v1560 = vadd.f32 %v1558, 0.0
        %s1561 = sld [smem:[#allocation3 + $0xa0]]
        %v1562 = vstv %s1561
        %v1563 = vmul.f32 %v1562, %v1511
        %v1564 = vmul.f32 %v1562, %v1512
        %1567 = vrot.lane.b32.xlu0 %v1563, 1
        %v1568 = vpop.permute.xlu0 %1567
        %1569 = vrot.lane.b32.xlu0 %v1564, 1
        %v1570 = vpop.permute.xlu0 %1569
        %v1573 = vadd.f32 %v1517, %v1568
        %v1574 = vadd.f32 %v1518, %v1570
        %s1575 = sld [smem:[#allocation3 + $0xa1]]
        %v1576 = vstv %s1575
        %v1577 = vmul.f32 %v1576, %v1511
        %v1578 = vmul.f32 %v1576, %v1512
        %1581 = vrot.lane.b32.xlu0 %v1577, 1
        %v1582 = vpop.permute.xlu0 %1581
        %1583 = vrot.lane.b32.xlu0 %v1578, 1
        %v1584 = vpop.permute.xlu0 %1583
        %v1587 = vadd.f32 %v1523, %v1582
        %v1588 = vadd.f32 %v1524, %v1584
        %s1589 = sld [smem:[#allocation3 + $0xa2]]
        %v1590 = vstv %s1589
        %v1591 = vmul.f32 %v1590, %v1511
        %v1592 = vmul.f32 %v1590, %v1512
        %1595 = vrot.lane.b32.xlu0 %v1591, 1
        %v1596 = vpop.permute.xlu0 %1595
        %1597 = vrot.lane.b32.xlu0 %v1592, 1
        %v1598 = vpop.permute.xlu0 %1597
        %v1601 = vadd.f32 %v1529, %v1596
        %v1602 = vadd.f32 %v1530, %v1598
        %s1603 = sld [smem:[#allocation3 + $0xa3]]
        %v1604 = vstv %s1603
        %v1605 = vmul.f32 %v1604, %v1511
        %v1606 = vmul.f32 %v1604, %v1512
        %1609 = vrot.lane.b32.xlu0 %v1605, 1
        %v1610 = vpop.permute.xlu0 %1609
        %1611 = vrot.lane.b32.xlu0 %v1606, 1
        %v1612 = vpop.permute.xlu0 %1611
        %v1615 = vadd.f32 %v1535, %v1610
        %v1616 = vadd.f32 %v1536, %v1612
        %s1617 = sld [smem:[#allocation3 + $0xa4]]
        %v1618 = vstv %s1617
        %v1619 = vmul.f32 %v1618, %v1511
        %v1620 = vmul.f32 %v1618, %v1512
        %1623 = vrot.lane.b32.xlu0 %v1619, 1
        %v1624 = vpop.permute.xlu0 %1623
        %1625 = vrot.lane.b32.xlu0 %v1620, 1
        %v1626 = vpop.permute.xlu0 %1625
        %v1629 = vadd.f32 %v1541, %v1624
        %v1630 = vadd.f32 %v1542, %v1626
        %s1631 = sld [smem:[#allocation3 + $0xa5]]
        %v1632 = vstv %s1631
        %v1633 = vmul.f32 %v1632, %v1511
        %v1634 = vmul.f32 %v1632, %v1512
        %1637 = vrot.lane.b32.xlu0 %v1633, 1
        %v1638 = vpop.permute.xlu0 %1637
        %1639 = vrot.lane.b32.xlu0 %v1634, 1
        %v1640 = vpop.permute.xlu0 %1639
        %v1643 = vadd.f32 %v1547, %v1638
        %v1644 = vadd.f32 %v1548, %v1640
        %s1645 = sld [smem:[#allocation3 + $0xa6]]
        %v1646 = vstv %s1645
        %v1647 = vmul.f32 %v1646, %v1511
        %v1648 = vmul.f32 %v1646, %v1512
        %1651 = vrot.lane.b32.xlu0 %v1647, 1
        %v1652 = vpop.permute.xlu0 %1651
        %1653 = vrot.lane.b32.xlu0 %v1648, 1
        %v1654 = vpop.permute.xlu0 %1653
        %v1657 = vadd.f32 %v1553, %v1652
        %v1658 = vadd.f32 %v1554, %v1654
        %s1659 = sld [smem:[#allocation3 + $0xa7]]
        %v1660 = vstv %s1659
        %v1661 = vmul.f32 %v1660, %v1511
        %v1662 = vmul.f32 %v1660, %v1512
        %1665 = vrot.lane.b32.xlu0 %v1661, 1
        %v1666 = vpop.permute.xlu0 %1665
        %1667 = vrot.lane.b32.xlu0 %v1662, 1
        %v1668 = vpop.permute.xlu0 %1667
        %v1671 = vadd.f32 %v1559, %v1666
        %v1672 = vadd.f32 %v1560, %v1668
        %v1673 = vld [vmem:[%s123] sm:$0xff]
        %v1674 = vld [vmem:[%s123 + $0x8] sm:$0xff]
        %s1675 = sld [smem:[#allocation3 + $0xc0]]
        %v1676 = vstv %s1675
        %v1677 = vmul.f32 %v1676, %v1673
        %v1678 = vmul.f32 %v1676, %v1674
        %v1679 = vadd.f32 %v1573, %v1677
        %v1680 = vadd.f32 %v1574, %v1678
        %s1681 = sld [smem:[#allocation3 + $0xc1]]
        %v1682 = vstv %s1681
        %v1683 = vmul.f32 %v1682, %v1673
        %v1684 = vmul.f32 %v1682, %v1674
        %v1685 = vadd.f32 %v1587, %v1683
        %v1686 = vadd.f32 %v1588, %v1684
        %s1687 = sld [smem:[#allocation3 + $0xc2]]
        %v1688 = vstv %s1687
        %v1689 = vmul.f32 %v1688, %v1673
        %v1690 = vmul.f32 %v1688, %v1674
        %v1691 = vadd.f32 %v1601, %v1689
        %v1692 = vadd.f32 %v1602, %v1690
        %s1693 = sld [smem:[#allocation3 + $0xc3]]
        %v1694 = vstv %s1693
        %v1695 = vmul.f32 %v1694, %v1673
        %v1696 = vmul.f32 %v1694, %v1674
        %v1697 = vadd.f32 %v1615, %v1695
        %v1698 = vadd.f32 %v1616, %v1696
        %s1699 = sld [smem:[#allocation3 + $0xc4]]
        %v1700 = vstv %s1699
        %v1701 = vmul.f32 %v1700, %v1673
        %v1702 = vmul.f32 %v1700, %v1674
        %v1703 = vadd.f32 %v1629, %v1701
        %v1704 = vadd.f32 %v1630, %v1702
        %s1705 = sld [smem:[#allocation3 + $0xc5]]
        %v1706 = vstv %s1705
        %v1707 = vmul.f32 %v1706, %v1673
        %v1708 = vmul.f32 %v1706, %v1674
        %v1709 = vadd.f32 %v1643, %v1707
        %v1710 = vadd.f32 %v1644, %v1708
        %s1711 = sld [smem:[#allocation3 + $0xc6]]
        %v1712 = vstv %s1711
        %v1713 = vmul.f32 %v1712, %v1673
        %v1714 = vmul.f32 %v1712, %v1674
        %v1715 = vadd.f32 %v1657, %v1713
        %v1716 = vadd.f32 %v1658, %v1714
        %s1717 = sld [smem:[#allocation3 + $0xc7]]
        %v1718 = vstv %s1717
        %v1719 = vmul.f32 %v1718, %v1673
        %v1720 = vmul.f32 %v1718, %v1674
        %v1721 = vadd.f32 %v1671, %v1719
        %v1722 = vadd.f32 %v1672, %v1720
        %s1723 = sld [smem:[#allocation3 + $0xe0]]
        %v1724 = vstv %s1723
        %v1725 = vmul.f32 %v1724, %v1673
        %v1726 = vmul.f32 %v1724, %v1674
        %1729 = vrot.lane.b32.xlu0 %v1725, 1
        %v1730 = vpop.permute.xlu0 %1729
        %1731 = vrot.lane.b32.xlu0 %v1726, 1
        %v1732 = vpop.permute.xlu0 %1731
        %v1735 = vadd.f32 %v1679, %v1730
        %v1736 = vadd.f32 %v1680, %v1732
        %s1737 = sld [smem:[#allocation3 + $0xe1]]
        %v1738 = vstv %s1737
        %v1739 = vmul.f32 %v1738, %v1673
        %v1740 = vmul.f32 %v1738, %v1674
        %1743 = vrot.lane.b32.xlu0 %v1739, 1
        %v1744 = vpop.permute.xlu0 %1743
        %1745 = vrot.lane.b32.xlu0 %v1740, 1
        %v1746 = vpop.permute.xlu0 %1745
        %v1749 = vadd.f32 %v1685, %v1744
        %v1750 = vadd.f32 %v1686, %v1746
        %s1751 = sld [smem:[#allocation3 + $0xe2]]
        %v1752 = vstv %s1751
        %v1753 = vmul.f32 %v1752, %v1673
        %v1754 = vmul.f32 %v1752, %v1674
        %1757 = vrot.lane.b32.xlu0 %v1753, 1
        %v1758 = vpop.permute.xlu0 %1757
        %1759 = vrot.lane.b32.xlu0 %v1754, 1
        %v1760 = vpop.permute.xlu0 %1759
        %v1763 = vadd.f32 %v1691, %v1758
        %v1764 = vadd.f32 %v1692, %v1760
        %s1765 = sld [smem:[#allocation3 + $0xe3]]
        %v1766 = vstv %s1765
        %v1767 = vmul.f32 %v1766, %v1673
        %v1768 = vmul.f32 %v1766, %v1674
        %1771 = vrot.lane.b32.xlu0 %v1767, 1
        %v1772 = vpop.permute.xlu0 %1771
        %1773 = vrot.lane.b32.xlu0 %v1768, 1
        %v1774 = vpop.permute.xlu0 %1773
        %v1777 = vadd.f32 %v1697, %v1772
        %v1778 = vadd.f32 %v1698, %v1774
        %s1779 = sld [smem:[#allocation3 + $0xe4]]
        %v1780 = vstv %s1779
        %v1781 = vmul.f32 %v1780, %v1673
        %v1782 = vmul.f32 %v1780, %v1674
        %1785 = vrot.lane.b32.xlu0 %v1781, 1
        %v1786 = vpop.permute.xlu0 %1785
        %1787 = vrot.lane.b32.xlu0 %v1782, 1
        %v1788 = vpop.permute.xlu0 %1787
        %v1791 = vadd.f32 %v1703, %v1786
        %v1792 = vadd.f32 %v1704, %v1788
        %s1793 = sld [smem:[#allocation3 + $0xe5]]
        %v1794 = vstv %s1793
        %v1795 = vmul.f32 %v1794, %v1673
        %v1796 = vmul.f32 %v1794, %v1674
        %1799 = vrot.lane.b32.xlu0 %v1795, 1
        %v1800 = vpop.permute.xlu0 %1799
        %1801 = vrot.lane.b32.xlu0 %v1796, 1
        %v1802 = vpop.permute.xlu0 %1801
        %v1805 = vadd.f32 %v1709, %v1800
        %v1806 = vadd.f32 %v1710, %v1802
        %s1807 = sld [smem:[#allocation3 + $0xe6]]
        %v1808 = vstv %s1807
        %v1809 = vmul.f32 %v1808, %v1673
        %v1810 = vmul.f32 %v1808, %v1674
        %1813 = vrot.lane.b32.xlu0 %v1809, 1
        %v1814 = vpop.permute.xlu0 %1813
        %1815 = vrot.lane.b32.xlu0 %v1810, 1
        %v1816 = vpop.permute.xlu0 %1815
        %v1819 = vadd.f32 %v1715, %v1814
        %v1820 = vadd.f32 %v1716, %v1816
        %s1821 = sld [smem:[#allocation3 + $0xe7]]
        %v1822 = vstv %s1821
        %v1823 = vmul.f32 %v1822, %v1673
        %v1824 = vmul.f32 %v1822, %v1674
        %1827 = vrot.lane.b32.xlu0 %v1823, 1
        %v1828 = vpop.permute.xlu0 %1827
        %1829 = vrot.lane.b32.xlu0 %v1824, 1
        %v1830 = vpop.permute.xlu0 %1829
        %v1833 = vadd.f32 %v1721, %v1828
        %v1834 = vadd.f32 %v1722, %v1830
        %v1835 = vld [vmem:[%s448 + $0x1] sm:$0xff]
        %v1836 = vld [vmem:[%s448 + $0x9] sm:$0xff]
        %s1837 = sld [smem:[#allocation3 + $0x88]]
        %v1838 = vstv %s1837
        %v1839 = vmul.f32 %v1838, %v1835
        %v1840 = vmul.f32 %v1838, %v1836
        %v1841 = vadd.f32 %v1735, %v1839
        %v1842 = vadd.f32 %v1736, %v1840
        %s1843 = sld [smem:[#allocation3 + $0x89]]
        %v1844 = vstv %s1843
        %v1845 = vmul.f32 %v1844, %v1835
        %v1846 = vmul.f32 %v1844, %v1836
        %v1847 = vadd.f32 %v1749, %v1845
        %v1848 = vadd.f32 %v1750, %v1846
        %s1849 = sld [smem:[#allocation3 + $0x8a]]
        %v1850 = vstv %s1849
        %v1851 = vmul.f32 %v1850, %v1835
        %v1852 = vmul.f32 %v1850, %v1836
        %v1853 = vadd.f32 %v1763, %v1851
        %v1854 = vadd.f32 %v1764, %v1852
        %s1855 = sld [smem:[#allocation3 + $0x8b]]
        %v1856 = vstv %s1855
        %v1857 = vmul.f32 %v1856, %v1835
        %v1858 = vmul.f32 %v1856, %v1836
        %v1859 = vadd.f32 %v1777, %v1857
        %v1860 = vadd.f32 %v1778, %v1858
        %s1861 = sld [smem:[#allocation3 + $0x8c]]
        %v1862 = vstv %s1861
        %v1863 = vmul.f32 %v1862, %v1835
        %v1864 = vmul.f32 %v1862, %v1836
        %v1865 = vadd.f32 %v1791, %v1863
        %v1866 = vadd.f32 %v1792, %v1864
        %s1867 = sld [smem:[#allocation3 + $0x8d]]
        %v1868 = vstv %s1867
        %v1869 = vmul.f32 %v1868, %v1835
        %v1870 = vmul.f32 %v1868, %v1836
        %v1871 = vadd.f32 %v1805, %v1869
        %v1872 = vadd.f32 %v1806, %v1870
        %s1873 = sld [smem:[#allocation3 + $0x8e]]
        %v1874 = vstv %s1873
        %v1875 = vmul.f32 %v1874, %v1835
        %v1876 = vmul.f32 %v1874, %v1836
        %v1877 = vadd.f32 %v1819, %v1875
        %v1878 = vadd.f32 %v1820, %v1876
        %s1879 = sld [smem:[#allocation3 + $0x8f]]
        %v1880 = vstv %s1879
        %v1881 = vmul.f32 %v1880, %v1835
        %v1882 = vmul.f32 %v1880, %v1836
        %v1883 = vadd.f32 %v1833, %v1881
        %v1884 = vadd.f32 %v1834, %v1882
        %s1885 = sld [smem:[#allocation3 + $0xa8]]
        %v1886 = vstv %s1885
        %v1887 = vmul.f32 %v1886, %v1835
        %v1888 = vmul.f32 %v1886, %v1836
        %1891 = vrot.lane.b32.xlu0 %v1887, 1
        %v1892 = vpop.permute.xlu0 %1891
        %1893 = vrot.lane.b32.xlu0 %v1888, 1
        %v1894 = vpop.permute.xlu0 %1893
        %v1897 = vadd.f32 %v1841, %v1892
        %v1898 = vadd.f32 %v1842, %v1894
        %s1899 = sld [smem:[#allocation3 + $0xa9]]
        %v1900 = vstv %s1899
        %v1901 = vmul.f32 %v1900, %v1835
        %v1902 = vmul.f32 %v1900, %v1836
        %1905 = vrot.lane.b32.xlu0 %v1901, 1
        %v1906 = vpop.permute.xlu0 %1905
        %1907 = vrot.lane.b32.xlu0 %v1902, 1
        %v1908 = vpop.permute.xlu0 %1907
        %v1911 = vadd.f32 %v1847, %v1906
        %v1912 = vadd.f32 %v1848, %v1908
        %s1913 = sld [smem:[#allocation3 + $0xaa]]
        %v1914 = vstv %s1913
        %v1915 = vmul.f32 %v1914, %v1835
        %v1916 = vmul.f32 %v1914, %v1836
        %1919 = vrot.lane.b32.xlu0 %v1915, 1
        %v1920 = vpop.permute.xlu0 %1919
        %1921 = vrot.lane.b32.xlu0 %v1916, 1
        %v1922 = vpop.permute.xlu0 %1921
        %v1925 = vadd.f32 %v1853, %v1920
        %v1926 = vadd.f32 %v1854, %v1922
        %s1927 = sld [smem:[#allocation3 + $0xab]]
        %v1928 = vstv %s1927
        %v1929 = vmul.f32 %v1928, %v1835
        %v1930 = vmul.f32 %v1928, %v1836
        %1933 = vrot.lane.b32.xlu0 %v1929, 1
        %v1934 = vpop.permute.xlu0 %1933
        %1935 = vrot.lane.b32.xlu0 %v1930, 1
        %v1936 = vpop.permute.xlu0 %1935
        %v1939 = vadd.f32 %v1859, %v1934
        %v1940 = vadd.f32 %v1860, %v1936
        %s1941 = sld [smem:[#allocation3 + $0xac]]
        %v1942 = vstv %s1941
        %v1943 = vmul.f32 %v1942, %v1835
        %v1944 = vmul.f32 %v1942, %v1836
        %1947 = vrot.lane.b32.xlu0 %v1943, 1
        %v1948 = vpop.permute.xlu0 %1947
        %1949 = vrot.lane.b32.xlu0 %v1944, 1
        %v1950 = vpop.permute.xlu0 %1949
        %v1953 = vadd.f32 %v1865, %v1948
        %v1954 = vadd.f32 %v1866, %v1950
        %s1955 = sld [smem:[#allocation3 + $0xad]]
        %v1956 = vstv %s1955
        %v1957 = vmul.f32 %v1956, %v1835
        %v1958 = vmul.f32 %v1956, %v1836
        %1961 = vrot.lane.b32.xlu0 %v1957, 1
        %v1962 = vpop.permute.xlu0 %1961
        %1963 = vrot.lane.b32.xlu0 %v1958, 1
        %v1964 = vpop.permute.xlu0 %1963
        %v1967 = vadd.f32 %v1871, %v1962
        %v1968 = vadd.f32 %v1872, %v1964
        %s1969 = sld [smem:[#allocation3 + $0xae]]
        %v1970 = vstv %s1969
        %v1971 = vmul.f32 %v1970, %v1835
        %v1972 = vmul.f32 %v1970, %v1836
        %1975 = vrot.lane.b32.xlu0 %v1971, 1
        %v1976 = vpop.permute.xlu0 %1975
        %1977 = vrot.lane.b32.xlu0 %v1972, 1
        %v1978 = vpop.permute.xlu0 %1977
        %v1981 = vadd.f32 %v1877, %v1976
        %v1982 = vadd.f32 %v1878, %v1978
        %s1983 = sld [smem:[#allocation3 + $0xaf]]
        %v1984 = vstv %s1983
        %v1985 = vmul.f32 %v1984, %v1835
        %v1986 = vmul.f32 %v1984, %v1836
        %1989 = vrot.lane.b32.xlu0 %v1985, 1
        %v1990 = vpop.permute.xlu0 %1989
        %1991 = vrot.lane.b32.xlu0 %v1986, 1
        %v1992 = vpop.permute.xlu0 %1991
        %v1995 = vadd.f32 %v1883, %v1990
        %v1996 = vadd.f32 %v1884, %v1992
        %v1997 = vld [vmem:[%s448] sm:$0xff]
        %v1998 = vld [vmem:[%s448 + $0x8] sm:$0xff]
        %s1999 = sld [smem:[#allocation3 + $0xc8]]
        %v2000 = vstv %s1999
        %v2001 = vmul.f32 %v2000, %v1997
        %v2002 = vmul.f32 %v2000, %v1998
        %v2003 = vadd.f32 %v1897, %v2001
        %v2004 = vadd.f32 %v1898, %v2002
        %s2005 = sld [smem:[#allocation3 + $0xc9]]
        %v2006 = vstv %s2005
        %v2007 = vmul.f32 %v2006, %v1997
        %v2008 = vmul.f32 %v2006, %v1998
        %v2009 = vadd.f32 %v1911, %v2007
        %v2010 = vadd.f32 %v1912, %v2008
        %s2011 = sld [smem:[#allocation3 + $0xca]]
        %v2012 = vstv %s2011
        %v2013 = vmul.f32 %v2012, %v1997
        %v2014 = vmul.f32 %v2012, %v1998
        %v2015 = vadd.f32 %v1925, %v2013
        %v2016 = vadd.f32 %v1926, %v2014
        %s2017 = sld [smem:[#allocation3 + $0xcb]]
        %v2018 = vstv %s2017
        %v2019 = vmul.f32 %v2018, %v1997
        %v2020 = vmul.f32 %v2018, %v1998
        %v2021 = vadd.f32 %v1939, %v2019
        %v2022 = vadd.f32 %v1940, %v2020
        %s2023 = sld [smem:[#allocation3 + $0xcc]]
        %v2024 = vstv %s2023
        %v2025 = vmul.f32 %v2024, %v1997
        %v2026 = vmul.f32 %v2024, %v1998
        %v2027 = vadd.f32 %v1953, %v2025
        %v2028 = vadd.f32 %v1954, %v2026
        %s2029 = sld [smem:[#allocation3 + $0xcd]]
        %v2030 = vstv %s2029
        %v2031 = vmul.f32 %v2030, %v1997
        %v2032 = vmul.f32 %v2030, %v1998
        %v2033 = vadd.f32 %v1967, %v2031
        %v2034 = vadd.f32 %v1968, %v2032
        %s2035 = sld [smem:[#allocation3 + $0xce]]
        %v2036 = vstv %s2035
        %v2037 = vmul.f32 %v2036, %v1997
        %v2038 = vmul.f32 %v2036, %v1998
        %v2039 = vadd.f32 %v1981, %v2037
        %v2040 = vadd.f32 %v1982, %v2038
        %s2041 = sld [smem:[#allocation3 + $0xcf]]
        %v2042 = vstv %s2041
        %v2043 = vmul.f32 %v2042, %v1997
        %v2044 = vmul.f32 %v2042, %v1998
        %v2045 = vadd.f32 %v1995, %v2043
        %v2046 = vadd.f32 %v1996, %v2044
        %s2047 = sld [smem:[#allocation3 + $0xe8]]
        %v2048 = vstv %s2047
        %v2049 = vmul.f32 %v2048, %v1997
        %v2050 = vmul.f32 %v2048, %v1998
        %2053 = vrot.lane.b32.xlu0 %v2049, 1
        %v2054 = vpop.permute.xlu0 %2053
        %2055 = vrot.lane.b32.xlu0 %v2050, 1
        %v2056 = vpop.permute.xlu0 %2055
        %v2059 = vadd.f32 %v2003, %v2054
        %v2060 = vadd.f32 %v2004, %v2056
        %s2061 = sld [smem:[#allocation3 + $0xe9]]
        %v2062 = vstv %s2061
        %v2063 = vmul.f32 %v2062, %v1997
        %v2064 = vmul.f32 %v2062, %v1998
        %2067 = vrot.lane.b32.xlu0 %v2063, 1
        %v2068 = vpop.permute.xlu0 %2067
        %2069 = vrot.lane.b32.xlu0 %v2064, 1
        %v2070 = vpop.permute.xlu0 %2069
        %v2073 = vadd.f32 %v2009, %v2068
        %v2074 = vadd.f32 %v2010, %v2070
        %s2075 = sld [smem:[#allocation3 + $0xea]]
        %v2076 = vstv %s2075
        %v2077 = vmul.f32 %v2076, %v1997
        %v2078 = vmul.f32 %v2076, %v1998
        %2081 = vrot.lane.b32.xlu0 %v2077, 1
        %v2082 = vpop.permute.xlu0 %2081
        %2083 = vrot.lane.b32.xlu0 %v2078, 1
        %v2084 = vpop.permute.xlu0 %2083
        %v2087 = vadd.f32 %v2015, %v2082
        %v2088 = vadd.f32 %v2016, %v2084
        %s2089 = sld [smem:[#allocation3 + $0xeb]]
        %v2090 = vstv %s2089
        %v2091 = vmul.f32 %v2090, %v1997
        %v2092 = vmul.f32 %v2090, %v1998
        %2095 = vrot.lane.b32.xlu0 %v2091, 1
        %v2096 = vpop.permute.xlu0 %2095
        %2097 = vrot.lane.b32.xlu0 %v2092, 1
        %v2098 = vpop.permute.xlu0 %2097
        %v2101 = vadd.f32 %v2021, %v2096
        %v2102 = vadd.f32 %v2022, %v2098
        %s2103 = sld [smem:[#allocation3 + $0xec]]
        %v2104 = vstv %s2103
        %v2105 = vmul.f32 %v2104, %v1997
        %v2106 = vmul.f32 %v2104, %v1998
        %2109 = vrot.lane.b32.xlu0 %v2105, 1
        %v2110 = vpop.permute.xlu0 %2109
        %2111 = vrot.lane.b32.xlu0 %v2106, 1
        %v2112 = vpop.permute.xlu0 %2111
        %v2115 = vadd.f32 %v2027, %v2110
        %v2116 = vadd.f32 %v2028, %v2112
        %s2117 = sld [smem:[#allocation3 + $0xed]]
        %v2118 = vstv %s2117
        %v2119 = vmul.f32 %v2118, %v1997
        %v2120 = vmul.f32 %v2118, %v1998
        %2123 = vrot.lane.b32.xlu0 %v2119, 1
        %v2124 = vpop.permute.xlu0 %2123
        %2125 = vrot.lane.b32.xlu0 %v2120, 1
        %v2126 = vpop.permute.xlu0 %2125
        %v2129 = vadd.f32 %v2033, %v2124
        %v2130 = vadd.f32 %v2034, %v2126
        %s2131 = sld [smem:[#allocation3 + $0xee]]
        %v2132 = vstv %s2131
        %v2133 = vmul.f32 %v2132, %v1997
        %v2134 = vmul.f32 %v2132, %v1998
        %2137 = vrot.lane.b32.xlu0 %v2133, 1
        %v2138 = vpop.permute.xlu0 %2137
        %2139 = vrot.lane.b32.xlu0 %v2134, 1
        %v2140 = vpop.permute.xlu0 %2139
        %v2143 = vadd.f32 %v2039, %v2138
        %v2144 = vadd.f32 %v2040, %v2140
        %s2145 = sld [smem:[#allocation3 + $0xef]]
        %v2146 = vstv %s2145
        %v2147 = vmul.f32 %v2146, %v1997
        %v2148 = vmul.f32 %v2146, %v1998
        %2151 = vrot.lane.b32.xlu0 %v2147, 1
        %v2152 = vpop.permute.xlu0 %2151
        %2153 = vrot.lane.b32.xlu0 %v2148, 1
        %v2154 = vpop.permute.xlu0 %2153
        %v2157 = vadd.f32 %v2045, %v2152
        %v2158 = vadd.f32 %v2046, %v2154
        %v2159 = vld [vmem:[%s773 + $0x1] sm:$0xff]
        %v2160 = vld [vmem:[%s773 + $0x9] sm:$0xff]
        %s2161 = sld [smem:[#allocation3 + $0x90]]
        %v2162 = vstv %s2161
        %v2163 = vmul.f32 %v2162, %v2159
        %v2164 = vmul.f32 %v2162, %v2160
        %v2165 = vadd.f32 %v2059, %v2163
        %v2166 = vadd.f32 %v2060, %v2164
        %s2167 = sld [smem:[#allocation3 + $0x91]]
        %v2168 = vstv %s2167
        %v2169 = vmul.f32 %v2168, %v2159
        %v2170 = vmul.f32 %v2168, %v2160
        %v2171 = vadd.f32 %v2073, %v2169
        %v2172 = vadd.f32 %v2074, %v2170
        %s2173 = sld [smem:[#allocation3 + $0x92]]
        %v2174 = vstv %s2173
        %v2175 = vmul.f32 %v2174, %v2159
        %v2176 = vmul.f32 %v2174, %v2160
        %v2177 = vadd.f32 %v2087, %v2175
        %v2178 = vadd.f32 %v2088, %v2176
        %s2179 = sld [smem:[#allocation3 + $0x93]]
        %v2180 = vstv %s2179
        %v2181 = vmul.f32 %v2180, %v2159
        %v2182 = vmul.f32 %v2180, %v2160
        %v2183 = vadd.f32 %v2101, %v2181
        %v2184 = vadd.f32 %v2102, %v2182
        %s2185 = sld [smem:[#allocation3 + $0x94]]
        %v2186 = vstv %s2185
        %v2187 = vmul.f32 %v2186, %v2159
        %v2188 = vmul.f32 %v2186, %v2160
        %v2189 = vadd.f32 %v2115, %v2187
        %v2190 = vadd.f32 %v2116, %v2188
        %s2191 = sld [smem:[#allocation3 + $0x95]]
        %v2192 = vstv %s2191
        %v2193 = vmul.f32 %v2192, %v2159
        %v2194 = vmul.f32 %v2192, %v2160
        %v2195 = vadd.f32 %v2129, %v2193
        %v2196 = vadd.f32 %v2130, %v2194
        %s2197 = sld [smem:[#allocation3 + $0x96]]
        %v2198 = vstv %s2197
        %v2199 = vmul.f32 %v2198, %v2159
        %v2200 = vmul.f32 %v2198, %v2160
        %v2201 = vadd.f32 %v2143, %v2199
        %v2202 = vadd.f32 %v2144, %v2200
        %s2203 = sld [smem:[#allocation3 + $0x97]]
        %v2204 = vstv %s2203
        %v2205 = vmul.f32 %v2204, %v2159
        %v2206 = vmul.f32 %v2204, %v2160
        %v2207 = vadd.f32 %v2157, %v2205
        %v2208 = vadd.f32 %v2158, %v2206
        %s2209 = sld [smem:[#allocation3 + $0xb0]]
        %v2210 = vstv %s2209
        %v2211 = vmul.f32 %v2210, %v2159
        %v2212 = vmul.f32 %v2210, %v2160
        %2215 = vrot.lane.b32.xlu0 %v2211, 1
        %v2216 = vpop.permute.xlu0 %2215
        %2217 = vrot.lane.b32.xlu0 %v2212, 1
        %v2218 = vpop.permute.xlu0 %2217
        %v2221 = vadd.f32 %v2165, %v2216
        %v2222 = vadd.f32 %v2166, %v2218
        %s2223 = sld [smem:[#allocation3 + $0xb1]]
        %v2224 = vstv %s2223
        %v2225 = vmul.f32 %v2224, %v2159
        %v2226 = vmul.f32 %v2224, %v2160
        %2229 = vrot.lane.b32.xlu0 %v2225, 1
        %v2230 = vpop.permute.xlu0 %2229
        %2231 = vrot.lane.b32.xlu0 %v2226, 1
        %v2232 = vpop.permute.xlu0 %2231
        %v2235 = vadd.f32 %v2171, %v2230
        %v2236 = vadd.f32 %v2172, %v2232
        %s2237 = sld [smem:[#allocation3 + $0xb2]]
        %v2238 = vstv %s2237
        %v2239 = vmul.f32 %v2238, %v2159
        %v2240 = vmul.f32 %v2238, %v2160
        %2243 = vrot.lane.b32.xlu0 %v2239, 1
        %v2244 = vpop.permute.xlu0 %2243
        %2245 = vrot.lane.b32.xlu0 %v2240, 1
        %v2246 = vpop.permute.xlu0 %2245
        %v2249 = vadd.f32 %v2177, %v2244
        %v2250 = vadd.f32 %v2178, %v2246
        %s2251 = sld [smem:[#allocation3 + $0xb3]]
        %v2252 = vstv %s2251
        %v2253 = vmul.f32 %v2252, %v2159
        %v2254 = vmul.f32 %v2252, %v2160
        %2257 = vrot.lane.b32.xlu0 %v2253, 1
        %v2258 = vpop.permute.xlu0 %2257
        %2259 = vrot.lane.b32.xlu0 %v2254, 1
        %v2260 = vpop.permute.xlu0 %2259
        %v2263 = vadd.f32 %v2183, %v2258
        %v2264 = vadd.f32 %v2184, %v2260
        %s2265 = sld [smem:[#allocation3 + $0xb4]]
        %v2266 = vstv %s2265
        %v2267 = vmul.f32 %v2266, %v2159
        %v2268 = vmul.f32 %v2266, %v2160
        %2271 = vrot.lane.b32.xlu0 %v2267, 1
        %v2272 = vpop.permute.xlu0 %2271
        %2273 = vrot.lane.b32.xlu0 %v2268, 1
        %v2274 = vpop.permute.xlu0 %2273
        %v2277 = vadd.f32 %v2189, %v2272
        %v2278 = vadd.f32 %v2190, %v2274
        %s2279 = sld [smem:[#allocation3 + $0xb5]]
        %v2280 = vstv %s2279
        %v2281 = vmul.f32 %v2280, %v2159
        %v2282 = vmul.f32 %v2280, %v2160
        %2285 = vrot.lane.b32.xlu0 %v2281, 1
        %v2286 = vpop.permute.xlu0 %2285
        %2287 = vrot.lane.b32.xlu0 %v2282, 1
        %v2288 = vpop.permute.xlu0 %2287
        %v2291 = vadd.f32 %v2195, %v2286
        %v2292 = vadd.f32 %v2196, %v2288
        %s2293 = sld [smem:[#allocation3 + $0xb6]]
        %v2294 = vstv %s2293
        %v2295 = vmul.f32 %v2294, %v2159
        %v2296 = vmul.f32 %v2294, %v2160
        %2299 = vrot.lane.b32.xlu0 %v2295, 1
        %v2300 = vpop.permute.xlu0 %2299
        %2301 = vrot.lane.b32.xlu0 %v2296, 1
        %v2302 = vpop.permute.xlu0 %2301
        %v2305 = vadd.f32 %v2201, %v2300
        %v2306 = vadd.f32 %v2202, %v2302
        %s2307 = sld [smem:[#allocation3 + $0xb7]]
        %v2308 = vstv %s2307
        %v2309 = vmul.f32 %v2308, %v2159
        %v2310 = vmul.f32 %v2308, %v2160
        %2313 = vrot.lane.b32.xlu0 %v2309, 1
        %v2314 = vpop.permute.xlu0 %2313
        %2315 = vrot.lane.b32.xlu0 %v2310, 1
        %v2316 = vpop.permute.xlu0 %2315
        %v2319 = vadd.f32 %v2207, %v2314
        %v2320 = vadd.f32 %v2208, %v2316
        %v2321 = vld [vmem:[%s773] sm:$0xff]
        %v2322 = vld [vmem:[%s773 + $0x8] sm:$0xff]
        %s2323 = sld [smem:[#allocation3 + $0xd0]]
        %v2324 = vstv %s2323
        %v2325 = vmul.f32 %v2324, %v2321
        %v2326 = vmul.f32 %v2324, %v2322
        %v2327 = vadd.f32 %v2221, %v2325
        %v2328 = vadd.f32 %v2222, %v2326
        %s2329 = sld [smem:[#allocation3 + $0xd1]]
        %v2330 = vstv %s2329
        %v2331 = vmul.f32 %v2330, %v2321
        %v2332 = vmul.f32 %v2330, %v2322
        %v2333 = vadd.f32 %v2235, %v2331
        %v2334 = vadd.f32 %v2236, %v2332
        %s2335 = sld [smem:[#allocation3 + $0xd2]]
        %v2336 = vstv %s2335
        %v2337 = vmul.f32 %v2336, %v2321
        %v2338 = vmul.f32 %v2336, %v2322
        %v2339 = vadd.f32 %v2249, %v2337
        %v2340 = vadd.f32 %v2250, %v2338
        %s2341 = sld [smem:[#allocation3 + $0xd3]]
        %v2342 = vstv %s2341
        %v2343 = vmul.f32 %v2342, %v2321
        %v2344 = vmul.f32 %v2342, %v2322
        %v2345 = vadd.f32 %v2263, %v2343
        %v2346 = vadd.f32 %v2264, %v2344
        %s2347 = sld [smem:[#allocation3 + $0xd4]]
        %v2348 = vstv %s2347
        %v2349 = vmul.f32 %v2348, %v2321
        %v2350 = vmul.f32 %v2348, %v2322
        %v2351 = vadd.f32 %v2277, %v2349
        %v2352 = vadd.f32 %v2278, %v2350
        %s2353 = sld [smem:[#allocation3 + $0xd5]]
        %v2354 = vstv %s2353
        %v2355 = vmul.f32 %v2354, %v2321
        %v2356 = vmul.f32 %v2354, %v2322
        %v2357 = vadd.f32 %v2291, %v2355
        %v2358 = vadd.f32 %v2292, %v2356
        %s2359 = sld [smem:[#allocation3 + $0xd6]]
        %v2360 = vstv %s2359
        %v2361 = vmul.f32 %v2360, %v2321
        %v2362 = vmul.f32 %v2360, %v2322
        %v2363 = vadd.f32 %v2305, %v2361
        %v2364 = vadd.f32 %v2306, %v2362
        %s2365 = sld [smem:[#allocation3 + $0xd7]]
        %v2366 = vstv %s2365
        %v2367 = vmul.f32 %v2366, %v2321
        %v2368 = vmul.f32 %v2366, %v2322
        %v2369 = vadd.f32 %v2319, %v2367
        %v2370 = vadd.f32 %v2320, %v2368
        %s2371 = sld [smem:[#allocation3 + $0xf0]]
        %v2372 = vstv %s2371
        %v2373 = vmul.f32 %v2372, %v2321
        %v2374 = vmul.f32 %v2372, %v2322
        %2377 = vrot.lane.b32.xlu0 %v2373, 1
        %v2378 = vpop.permute.xlu0 %2377
        %2379 = vrot.lane.b32.xlu0 %v2374, 1
        %v2380 = vpop.permute.xlu0 %2379
        %v2383 = vadd.f32 %v2327, %v2378
        %v2384 = vadd.f32 %v2328, %v2380
        %s2385 = sld [smem:[#allocation3 + $0xf1]]
        %v2386 = vstv %s2385
        %v2387 = vmul.f32 %v2386, %v2321
        %v2388 = vmul.f32 %v2386, %v2322
        %2391 = vrot.lane.b32.xlu0 %v2387, 1
        %v2392 = vpop.permute.xlu0 %2391
        %2393 = vrot.lane.b32.xlu0 %v2388, 1
        %v2394 = vpop.permute.xlu0 %2393
        %v2397 = vadd.f32 %v2333, %v2392
        %v2398 = vadd.f32 %v2334, %v2394
        %s2399 = sld [smem:[#allocation3 + $0xf2]]
        %v2400 = vstv %s2399
        %v2401 = vmul.f32 %v2400, %v2321
        %v2402 = vmul.f32 %v2400, %v2322
        %2405 = vrot.lane.b32.xlu0 %v2401, 1
        %v2406 = vpop.permute.xlu0 %2405
        %2407 = vrot.lane.b32.xlu0 %v2402, 1
        %v2408 = vpop.permute.xlu0 %2407
        %v2411 = vadd.f32 %v2339, %v2406
        %v2412 = vadd.f32 %v2340, %v2408
        %s2413 = sld [smem:[#allocation3 + $0xf3]]
        %v2414 = vstv %s2413
        %v2415 = vmul.f32 %v2414, %v2321
        %v2416 = vmul.f32 %v2414, %v2322
        %2419 = vrot.lane.b32.xlu0 %v2415, 1
        %v2420 = vpop.permute.xlu0 %2419
        %2421 = vrot.lane.b32.xlu0 %v2416, 1
        %v2422 = vpop.permute.xlu0 %2421
        %v2425 = vadd.f32 %v2345, %v2420
        %v2426 = vadd.f32 %v2346, %v2422
        %s2427 = sld [smem:[#allocation3 + $0xf4]]
        %v2428 = vstv %s2427
        %v2429 = vmul.f32 %v2428, %v2321
        %v2430 = vmul.f32 %v2428, %v2322
        %2433 = vrot.lane.b32.xlu0 %v2429, 1
        %v2434 = vpop.permute.xlu0 %2433
        %2435 = vrot.lane.b32.xlu0 %v2430, 1
        %v2436 = vpop.permute.xlu0 %2435
        %v2439 = vadd.f32 %v2351, %v2434
        %v2440 = vadd.f32 %v2352, %v2436
        %s2441 = sld [smem:[#allocation3 + $0xf5]]
        %v2442 = vstv %s2441
        %v2443 = vmul.f32 %v2442, %v2321
        %v2444 = vmul.f32 %v2442, %v2322
        %2447 = vrot.lane.b32.xlu0 %v2443, 1
        %v2448 = vpop.permute.xlu0 %2447
        %2449 = vrot.lane.b32.xlu0 %v2444, 1
        %v2450 = vpop.permute.xlu0 %2449
        %v2453 = vadd.f32 %v2357, %v2448
        %v2454 = vadd.f32 %v2358, %v2450
        %s2455 = sld [smem:[#allocation3 + $0xf6]]
        %v2456 = vstv %s2455
        %v2457 = vmul.f32 %v2456, %v2321
        %v2458 = vmul.f32 %v2456, %v2322
        %2461 = vrot.lane.b32.xlu0 %v2457, 1
        %v2462 = vpop.permute.xlu0 %2461
        %2463 = vrot.lane.b32.xlu0 %v2458, 1
        %v2464 = vpop.permute.xlu0 %2463
        %v2467 = vadd.f32 %v2363, %v2462
        %v2468 = vadd.f32 %v2364, %v2464
        %s2469 = sld [smem:[#allocation3 + $0xf7]]
        %v2470 = vstv %s2469
        %v2471 = vmul.f32 %v2470, %v2321
        %v2472 = vmul.f32 %v2470, %v2322
        %2475 = vrot.lane.b32.xlu0 %v2471, 1
        %v2476 = vpop.permute.xlu0 %2475
        %2477 = vrot.lane.b32.xlu0 %v2472, 1
        %v2478 = vpop.permute.xlu0 %2477
        %v2481 = vadd.f32 %v2369, %v2476
        %v2482 = vadd.f32 %v2370, %v2478
        %v2483 = vld [vmem:[%s1098 + $0x1] sm:$0xff]
        %v2484 = vld [vmem:[%s1098 + $0x9] sm:$0xff]
        %s2485 = sld [smem:[#allocation3 + $0x98]]
        %v2486 = vstv %s2485
        %v2487 = vmul.f32 %v2486, %v2483
        %v2488 = vmul.f32 %v2486, %v2484
        %v2489 = vadd.f32 %v2383, %v2487
        %v2490 = vadd.f32 %v2384, %v2488
        %s2491 = sld [smem:[#allocation3 + $0x99]]
        %v2492 = vstv %s2491
        %v2493 = vmul.f32 %v2492, %v2483
        %v2494 = vmul.f32 %v2492, %v2484
        %v2495 = vadd.f32 %v2397, %v2493
        %v2496 = vadd.f32 %v2398, %v2494
        %s2497 = sld [smem:[#allocation3 + $0x9a]]
        %v2498 = vstv %s2497
        %v2499 = vmul.f32 %v2498, %v2483
        %v2500 = vmul.f32 %v2498, %v2484
        %v2501 = vadd.f32 %v2411, %v2499
        %v2502 = vadd.f32 %v2412, %v2500
        %s2503 = sld [smem:[#allocation3 + $0x9b]]
        %v2504 = vstv %s2503
        %v2505 = vmul.f32 %v2504, %v2483
        %v2506 = vmul.f32 %v2504, %v2484
        %v2507 = vadd.f32 %v2425, %v2505
        %v2508 = vadd.f32 %v2426, %v2506
        %s2509 = sld [smem:[#allocation3 + $0x9c]]
        %v2510 = vstv %s2509
        %v2511 = vmul.f32 %v2510, %v2483
        %v2512 = vmul.f32 %v2510, %v2484
        %v2513 = vadd.f32 %v2439, %v2511
        %v2514 = vadd.f32 %v2440, %v2512
        %s2515 = sld [smem:[#allocation3 + $0x9d]]
        %v2516 = vstv %s2515
        %v2517 = vmul.f32 %v2516, %v2483
        %v2518 = vmul.f32 %v2516, %v2484
        %v2519 = vadd.f32 %v2453, %v2517
        %v2520 = vadd.f32 %v2454, %v2518
        %s2521 = sld [smem:[#allocation3 + $0x9e]]
        %v2522 = vstv %s2521
        %v2523 = vmul.f32 %v2522, %v2483
        %v2524 = vmul.f32 %v2522, %v2484
        %v2525 = vadd.f32 %v2467, %v2523
        %v2526 = vadd.f32 %v2468, %v2524
        %s2527 = sld [smem:[#allocation3 + $0x9f]]
        %v2528 = vstv %s2527
        %v2529 = vmul.f32 %v2528, %v2483
        %v2530 = vmul.f32 %v2528, %v2484
        %v2531 = vadd.f32 %v2481, %v2529
        %v2532 = vadd.f32 %v2482, %v2530
        %s2533 = sld [smem:[#allocation3 + $0xb8]]
        %v2534 = vstv %s2533
        %v2535 = vmul.f32 %v2534, %v2483
        %v2536 = vmul.f32 %v2534, %v2484
        %2539 = vrot.lane.b32.xlu0 %v2535, 1
        %v2540 = vpop.permute.xlu0 %2539
        %2541 = vrot.lane.b32.xlu0 %v2536, 1
        %v2542 = vpop.permute.xlu0 %2541
        %v2545 = vadd.f32 %v2489, %v2540
        %v2546 = vadd.f32 %v2490, %v2542
        %s2547 = sld [smem:[#allocation3 + $0xb9]]
        %v2548 = vstv %s2547
        %v2549 = vmul.f32 %v2548, %v2483
        %v2550 = vmul.f32 %v2548, %v2484
        %2553 = vrot.lane.b32.xlu0 %v2549, 1
        %v2554 = vpop.permute.xlu0 %2553
        %2555 = vrot.lane.b32.xlu0 %v2550, 1
        %v2556 = vpop.permute.xlu0 %2555
        %v2559 = vadd.f32 %v2495, %v2554
        %v2560 = vadd.f32 %v2496, %v2556
        %s2561 = sld [smem:[#allocation3 + $0xba]]
        %v2562 = vstv %s2561
        %v2563 = vmul.f32 %v2562, %v2483
        %v2564 = vmul.f32 %v2562, %v2484
        %2567 = vrot.lane.b32.xlu0 %v2563, 1
        %v2568 = vpop.permute.xlu0 %2567
        %2569 = vrot.lane.b32.xlu0 %v2564, 1
        %v2570 = vpop.permute.xlu0 %2569
        %v2573 = vadd.f32 %v2501, %v2568
        %v2574 = vadd.f32 %v2502, %v2570
        %s2575 = sld [smem:[#allocation3 + $0xbb]]
        %v2576 = vstv %s2575
        %v2577 = vmul.f32 %v2576, %v2483
        %v2578 = vmul.f32 %v2576, %v2484
        %2581 = vrot.lane.b32.xlu0 %v2577, 1
        %v2582 = vpop.permute.xlu0 %2581
        %2583 = vrot.lane.b32.xlu0 %v2578, 1
        %v2584 = vpop.permute.xlu0 %2583
        %v2587 = vadd.f32 %v2507, %v2582
        %v2588 = vadd.f32 %v2508, %v2584
        %s2589 = sld [smem:[#allocation3 + $0xbc]]
        %v2590 = vstv %s2589
        %v2591 = vmul.f32 %v2590, %v2483
        %v2592 = vmul.f32 %v2590, %v2484
        %2595 = vrot.lane.b32.xlu0 %v2591, 1
        %v2596 = vpop.permute.xlu0 %2595
        %2597 = vrot.lane.b32.xlu0 %v2592, 1
        %v2598 = vpop.permute.xlu0 %2597
        %v2601 = vadd.f32 %v2513, %v2596
        %v2602 = vadd.f32 %v2514, %v2598
        %s2603 = sld [smem:[#allocation3 + $0xbd]]
        %v2604 = vstv %s2603
        %v2605 = vmul.f32 %v2604, %v2483
        %v2606 = vmul.f32 %v2604, %v2484
        %2609 = vrot.lane.b32.xlu0 %v2605, 1
        %v2610 = vpop.permute.xlu0 %2609
        %2611 = vrot.lane.b32.xlu0 %v2606, 1
        %v2612 = vpop.permute.xlu0 %2611
        %v2615 = vadd.f32 %v2519, %v2610
        %v2616 = vadd.f32 %v2520, %v2612
        %s2617 = sld [smem:[#allocation3 + $0xbe]]
        %v2618 = vstv %s2617
        %v2619 = vmul.f32 %v2618, %v2483
        %v2620 = vmul.f32 %v2618, %v2484
        %2623 = vrot.lane.b32.xlu0 %v2619, 1
        %v2624 = vpop.permute.xlu0 %2623
        %2625 = vrot.lane.b32.xlu0 %v2620, 1
        %v2626 = vpop.permute.xlu0 %2625
        %v2629 = vadd.f32 %v2525, %v2624
        %v2630 = vadd.f32 %v2526, %v2626
        %s2631 = sld [smem:[#allocation3 + $0xbf]]
        %v2632 = vstv %s2631
        %v2633 = vmul.f32 %v2632, %v2483
        %v2634 = vmul.f32 %v2632, %v2484
        %2637 = vrot.lane.b32.xlu0 %v2633, 1
        %v2638 = vpop.permute.xlu0 %2637
        %2639 = vrot.lane.b32.xlu0 %v2634, 1
        %v2640 = vpop.permute.xlu0 %2639
        %v2643 = vadd.f32 %v2531, %v2638
        %v2644 = vadd.f32 %v2532, %v2640
        %v2645 = vld [vmem:[%s1098] sm:$0xff]
        %v2646 = vld [vmem:[%s1098 + $0x8] sm:$0xff]
        %s2647 = sld [smem:[#allocation3 + $0xd8]]
        %v2648 = vstv %s2647
        %v2649 = vmul.f32 %v2648, %v2645
        %v2650 = vmul.f32 %v2648, %v2646
        %v2651 = vadd.f32 %v2545, %v2649
        %v2652 = vadd.f32 %v2546, %v2650
        %s2653 = sld [smem:[#allocation3 + $0xd9]]
        %v2654 = vstv %s2653
        %v2655 = vmul.f32 %v2654, %v2645
        %v2656 = vmul.f32 %v2654, %v2646
        %v2657 = vadd.f32 %v2559, %v2655
        %v2658 = vadd.f32 %v2560, %v2656
        %s2659 = sld [smem:[#allocation3 + $0xda]]
        %v2660 = vstv %s2659
        %v2661 = vmul.f32 %v2660, %v2645
        %v2662 = vmul.f32 %v2660, %v2646
        %v2663 = vadd.f32 %v2573, %v2661
        %v2664 = vadd.f32 %v2574, %v2662
        %s2665 = sld [smem:[#allocation3 + $0xdb]]
        %v2666 = vstv %s2665
        %v2667 = vmul.f32 %v2666, %v2645
        %v2668 = vmul.f32 %v2666, %v2646
        %v2669 = vadd.f32 %v2587, %v2667
        %v2670 = vadd.f32 %v2588, %v2668
        %s2671 = sld [smem:[#allocation3 + $0xdc]]
        %v2672 = vstv %s2671
        %v2673 = vmul.f32 %v2672, %v2645
        %v2674 = vmul.f32 %v2672, %v2646
        %v2675 = vadd.f32 %v2601, %v2673
        %v2676 = vadd.f32 %v2602, %v2674
        %s2677 = sld [smem:[#allocation3 + $0xdd]]
        %v2678 = vstv %s2677
        %v2679 = vmul.f32 %v2678, %v2645
        %v2680 = vmul.f32 %v2678, %v2646
        %v2681 = vadd.f32 %v2615, %v2679
        %v2682 = vadd.f32 %v2616, %v2680
        %s2683 = sld [smem:[#allocation3 + $0xde]]
        %v2684 = vstv %s2683
        %v2685 = vmul.f32 %v2684, %v2645
        %v2686 = vmul.f32 %v2684, %v2646
        %v2687 = vadd.f32 %v2629, %v2685
        %v2688 = vadd.f32 %v2630, %v2686
        %s2689 = sld [smem:[#allocation3 + $0xdf]]
        %v2690 = vstv %s2689
        %v2691 = vmul.f32 %v2690, %v2645
        %v2692 = vmul.f32 %v2690, %v2646
        %v2693 = vadd.f32 %v2643, %v2691
        %v2694 = vadd.f32 %v2644, %v2692
        %s2695 = sld [smem:[#allocation3 + $0xf8]]
        %v2696 = vstv %s2695
        %v2697 = vmul.f32 %v2696, %v2645
        %v2698 = vmul.f32 %v2696, %v2646
        %2701 = vrot.lane.b32.xlu0 %v2697, 1
        %v2702 = vpop.permute.xlu0 %2701
        %2703 = vrot.lane.b32.xlu0 %v2698, 1
        %v2704 = vpop.permute.xlu0 %2703
        %v2707 = vadd.f32 %v2651, %v2702
        %v2708 = vadd.f32 %v2652, %v2704
        %s2709 = sld [smem:[#allocation3 + $0xf9]]
        %v2710 = vstv %s2709
        %v2711 = vmul.f32 %v2710, %v2645
        %v2712 = vmul.f32 %v2710, %v2646
        %2715 = vrot.lane.b32.xlu0 %v2711, 1
        %v2716 = vpop.permute.xlu0 %2715
        %2717 = vrot.lane.b32.xlu0 %v2712, 1
        %v2718 = vpop.permute.xlu0 %2717
        %v2721 = vadd.f32 %v2657, %v2716
        %v2722 = vadd.f32 %v2658, %v2718
        %s2723 = sld [smem:[#allocation3 + $0xfa]]
        %v2724 = vstv %s2723
        %v2725 = vmul.f32 %v2724, %v2645
        %v2726 = vmul.f32 %v2724, %v2646
        %2729 = vrot.lane.b32.xlu0 %v2725, 1
        %v2730 = vpop.permute.xlu0 %2729
        %2731 = vrot.lane.b32.xlu0 %v2726, 1
        %v2732 = vpop.permute.xlu0 %2731
        %v2735 = vadd.f32 %v2663, %v2730
        %v2736 = vadd.f32 %v2664, %v2732
        %s2737 = sld [smem:[#allocation3 + $0xfb]]
        %v2738 = vstv %s2737
        %v2739 = vmul.f32 %v2738, %v2645
        %v2740 = vmul.f32 %v2738, %v2646
        %2743 = vrot.lane.b32.xlu0 %v2739, 1
        %v2744 = vpop.permute.xlu0 %2743
        %2745 = vrot.lane.b32.xlu0 %v2740, 1
        %v2746 = vpop.permute.xlu0 %2745
        %v2749 = vadd.f32 %v2669, %v2744
        %v2750 = vadd.f32 %v2670, %v2746
        %s2751 = sld [smem:[#allocation3 + $0xfc]]
        %v2752 = vstv %s2751
        %v2753 = vmul.f32 %v2752, %v2645
        %v2754 = vmul.f32 %v2752, %v2646
        %2757 = vrot.lane.b32.xlu0 %v2753, 1
        %v2758 = vpop.permute.xlu0 %2757
        %2759 = vrot.lane.b32.xlu0 %v2754, 1
        %v2760 = vpop.permute.xlu0 %2759
        %v2763 = vadd.f32 %v2675, %v2758
        %v2764 = vadd.f32 %v2676, %v2760
        %s2765 = sld [smem:[#allocation3 + $0xfd]]
        %v2766 = vstv %s2765
        %v2767 = vmul.f32 %v2766, %v2645
        %v2768 = vmul.f32 %v2766, %v2646
        %2771 = vrot.lane.b32.xlu0 %v2767, 1
        %v2772 = vpop.permute.xlu0 %2771
        %2773 = vrot.lane.b32.xlu0 %v2768, 1
        %v2774 = vpop.permute.xlu0 %2773
        %v2777 = vadd.f32 %v2681, %v2772
        %v2778 = vadd.f32 %v2682, %v2774
        %s2779 = sld [smem:[#allocation3 + $0xfe]]
        %v2780 = vstv %s2779
        %v2781 = vmul.f32 %v2780, %v2645
        %v2782 = vmul.f32 %v2780, %v2646
        %2785 = vrot.lane.b32.xlu0 %v2781, 1
        %v2786 = vpop.permute.xlu0 %2785
        %2787 = vrot.lane.b32.xlu0 %v2782, 1
        %v2788 = vpop.permute.xlu0 %2787
        %v2791 = vadd.f32 %v2687, %v2786
        %v2792 = vadd.f32 %v2688, %v2788
        %s2793 = sld [smem:[#allocation3 + $0xff]]
        %v2794 = vstv %s2793
        %v2795 = vmul.f32 %v2794, %v2645
        %v2796 = vmul.f32 %v2794, %v2646
        %2799 = vrot.lane.b32.xlu0 %v2795, 1
        %v2800 = vpop.permute.xlu0 %2799
        %2801 = vrot.lane.b32.xlu0 %v2796, 1
        %v2802 = vpop.permute.xlu0 %2801
        %v2805 = vadd.f32 %v2693, %v2800
        %v2806 = vadd.f32 %v2694, %v2802
        %2809 = vrot.lane.b32.xlu0 %v2707, 14
        %v2810 = vpop.permute.xlu0 %2809
        %2811 = vrot.lane.b32.xlu0 %v2708, 14
        %v2812 = vpop.permute.xlu0 %2811
        %vm2815 = vcmask 261248
        %2816 = vst.msk [vmem:[%s118] sm:$0xff] %vm2815, %v2810
        %2817 = vst.msk [vmem:[%s118 + $0x8] sm:$0xff] %vm2815, %v2812
        %2820 = vrot.lane.b32.xlu0 %v2721, 14
        %v2821 = vpop.permute.xlu0 %2820
        %2822 = vrot.lane.b32.xlu0 %v2722, 14
        %v2823 = vpop.permute.xlu0 %2822
        %2826 = vst.msk [vmem:[%s1442] sm:$0xff] %vm2815, %v2821
        %2827 = vst.msk [vmem:[%s1442 + $0x8] sm:$0xff] %vm2815, %v2823
        %2830 = vrot.lane.b32.xlu0 %v2735, 14
        %v2831 = vpop.permute.xlu0 %2830
        %2832 = vrot.lane.b32.xlu0 %v2736, 14
        %v2833 = vpop.permute.xlu0 %2832
        %2836 = vst.msk [vmem:[%s1453] sm:$0xff] %vm2815, %v2831
        %2837 = vst.msk [vmem:[%s1453 + $0x8] sm:$0xff] %vm2815, %v2833
        %2840 = vrot.lane.b32.xlu0 %v2749, 14
        %v2841 = vpop.permute.xlu0 %2840
        %2842 = vrot.lane.b32.xlu0 %v2750, 14
        %v2843 = vpop.permute.xlu0 %2842
        %2846 = vst.msk [vmem:[%s1464] sm:$0xff] %vm2815, %v2841
        %2847 = vst.msk [vmem:[%s1464 + $0x8] sm:$0xff] %vm2815, %v2843
        %2850 = vrot.lane.b32.xlu0 %v2763, 14
        %v2851 = vpop.permute.xlu0 %2850
        %2852 = vrot.lane.b32.xlu0 %v2764, 14
        %v2853 = vpop.permute.xlu0 %2852
        %2856 = vst.msk [vmem:[%s1475] sm:$0xff] %vm2815, %v2851
        %2857 = vst.msk [vmem:[%s1475 + $0x8] sm:$0xff] %vm2815, %v2853
        %2860 = vrot.lane.b32.xlu0 %v2777, 14
        %v2861 = vpop.permute.xlu0 %2860
        %2862 = vrot.lane.b32.xlu0 %v2778, 14
        %v2863 = vpop.permute.xlu0 %2862
        %2866 = vst.msk [vmem:[%s1486] sm:$0xff] %vm2815, %v2861
        %2867 = vst.msk [vmem:[%s1486 + $0x8] sm:$0xff] %vm2815, %v2863
        %2870 = vrot.lane.b32.xlu0 %v2791, 14
        %v2871 = vpop.permute.xlu0 %2870
        %2872 = vrot.lane.b32.xlu0 %v2792, 14
        %v2873 = vpop.permute.xlu0 %2872
        %2876 = vst.msk [vmem:[%s1497] sm:$0xff] %vm2815, %v2871
        %2877 = vst.msk [vmem:[%s1497 + $0x8] sm:$0xff] %vm2815, %v2873
        %2880 = vrot.lane.b32.xlu0 %v2805, 14
        %v2881 = vpop.permute.xlu0 %2880
        %2882 = vrot.lane.b32.xlu0 %v2806, 14
        %v2883 = vpop.permute.xlu0 %2882
        %2886 = vst.msk [vmem:[%s1508] sm:$0xff] %vm2815, %v2881
        %2887 = vst.msk [vmem:[%s1508 + $0x8] sm:$0xff] %vm2815, %v2883
        %v2888 = vld [vmem:[%s123 + $0x2] sm:$0xff]
        %v2889 = vld [vmem:[%s123 + $0xa] sm:$0xff]
        %s2890 = sld [smem:[#allocation3 + $0x100]]
        %v2891 = vstv %s2890
        %v2892 = vmul.f32 %v2891, %v2888
        %v2893 = vmul.f32 %v2891, %v2889
        %v2894 = vadd.f32 %v2892, 0.0
        %v2895 = vadd.f32 %v2893, 0.0
        %s2896 = sld [smem:[#allocation3 + $0x101]]
        %v2897 = vstv %s2896
        %v2898 = vmul.f32 %v2897, %v2888
        %v2899 = vmul.f32 %v2897, %v2889
        %v2900 = vadd.f32 %v2898, 0.0
        %v2901 = vadd.f32 %v2899, 0.0
        %s2902 = sld [smem:[#allocation3 + $0x102]]
        %v2903 = vstv %s2902
        %v2904 = vmul.f32 %v2903, %v2888
        %v2905 = vmul.f32 %v2903, %v2889
        %v2906 = vadd.f32 %v2904, 0.0
        %v2907 = vadd.f32 %v2905, 0.0
        %s2908 = sld [smem:[#allocation3 + $0x103]]
        %v2909 = vstv %s2908
        %v2910 = vmul.f32 %v2909, %v2888
        %v2911 = vmul.f32 %v2909, %v2889
        %v2912 = vadd.f32 %v2910, 0.0
        %v2913 = vadd.f32 %v2911, 0.0
        %s2914 = sld [smem:[#allocation3 + $0x104]]
        %v2915 = vstv %s2914
        %v2916 = vmul.f32 %v2915, %v2888
        %v2917 = vmul.f32 %v2915, %v2889
        %v2918 = vadd.f32 %v2916, 0.0
        %v2919 = vadd.f32 %v2917, 0.0
        %s2920 = sld [smem:[#allocation3 + $0x105]]
        %v2921 = vstv %s2920
        %v2922 = vmul.f32 %v2921, %v2888
        %v2923 = vmul.f32 %v2921, %v2889
        %v2924 = vadd.f32 %v2922, 0.0
        %v2925 = vadd.f32 %v2923, 0.0
        %s2926 = sld [smem:[#allocation3 + $0x106]]
        %v2927 = vstv %s2926
        %v2928 = vmul.f32 %v2927, %v2888
        %v2929 = vmul.f32 %v2927, %v2889
        %v2930 = vadd.f32 %v2928, 0.0
        %v2931 = vadd.f32 %v2929, 0.0
        %s2932 = sld [smem:[#allocation3 + $0x107]]
        %v2933 = vstv %s2932
        %v2934 = vmul.f32 %v2933, %v2888
        %v2935 = vmul.f32 %v2933, %v2889
        %v2936 = vadd.f32 %v2934, 0.0
        %v2937 = vadd.f32 %v2935, 0.0
        %s2938 = sld [smem:[#allocation3 + $0x120]]
        %v2939 = vstv %s2938
        %v2940 = vmul.f32 %v2939, %v2888
        %v2941 = vmul.f32 %v2939, %v2889
        %2944 = vrot.lane.b32.xlu0 %v2940, 1
        %v2945 = vpop.permute.xlu0 %2944
        %2946 = vrot.lane.b32.xlu0 %v2941, 1
        %v2947 = vpop.permute.xlu0 %2946
        %v2950 = vadd.f32 %v2894, %v2945
        %v2951 = vadd.f32 %v2895, %v2947
        %s2952 = sld [smem:[#allocation3 + $0x121]]
        %v2953 = vstv %s2952
        %v2954 = vmul.f32 %v2953, %v2888
        %v2955 = vmul.f32 %v2953, %v2889
        %2958 = vrot.lane.b32.xlu0 %v2954, 1
        %v2959 = vpop.permute.xlu0 %2958
        %2960 = vrot.lane.b32.xlu0 %v2955, 1
        %v2961 = vpop.permute.xlu0 %2960
        %v2964 = vadd.f32 %v2900, %v2959
        %v2965 = vadd.f32 %v2901, %v2961
        %s2966 = sld [smem:[#allocation3 + $0x122]]
        %v2967 = vstv %s2966
        %v2968 = vmul.f32 %v2967, %v2888
        %v2969 = vmul.f32 %v2967, %v2889
        %2972 = vrot.lane.b32.xlu0 %v2968, 1
        %v2973 = vpop.permute.xlu0 %2972
        %2974 = vrot.lane.b32.xlu0 %v2969, 1
        %v2975 = vpop.permute.xlu0 %2974
        %v2978 = vadd.f32 %v2906, %v2973
        %v2979 = vadd.f32 %v2907, %v2975
        %s2980 = sld [smem:[#allocation3 + $0x123]]
        %v2981 = vstv %s2980
        %v2982 = vmul.f32 %v2981, %v2888
        %v2983 = vmul.f32 %v2981, %v2889
        %2986 = vrot.lane.b32.xlu0 %v2982, 1
        %v2987 = vpop.permute.xlu0 %2986
        %2988 = vrot.lane.b32.xlu0 %v2983, 1
        %v2989 = vpop.permute.xlu0 %2988
        %v2992 = vadd.f32 %v2912, %v2987
        %v2993 = vadd.f32 %v2913, %v2989
        %s2994 = sld [smem:[#allocation3 + $0x124]]
        %v2995 = vstv %s2994
        %v2996 = vmul.f32 %v2995, %v2888
        %v2997 = vmul.f32 %v2995, %v2889
        %3000 = vrot.lane.b32.xlu0 %v2996, 1
        %v3001 = vpop.permute.xlu0 %3000
        %3002 = vrot.lane.b32.xlu0 %v2997, 1
        %v3003 = vpop.permute.xlu0 %3002
        %v3006 = vadd.f32 %v2918, %v3001
        %v3007 = vadd.f32 %v2919, %v3003
        %s3008 = sld [smem:[#allocation3 + $0x125]]
        %v3009 = vstv %s3008
        %v3010 = vmul.f32 %v3009, %v2888
        %v3011 = vmul.f32 %v3009, %v2889
        %3014 = vrot.lane.b32.xlu0 %v3010, 1
        %v3015 = vpop.permute.xlu0 %3014
        %3016 = vrot.lane.b32.xlu0 %v3011, 1
        %v3017 = vpop.permute.xlu0 %3016
        %v3020 = vadd.f32 %v2924, %v3015
        %v3021 = vadd.f32 %v2925, %v3017
        %s3022 = sld [smem:[#allocation3 + $0x126]]
        %v3023 = vstv %s3022
        %v3024 = vmul.f32 %v3023, %v2888
        %v3025 = vmul.f32 %v3023, %v2889
        %3028 = vrot.lane.b32.xlu0 %v3024, 1
        %v3029 = vpop.permute.xlu0 %3028
        %3030 = vrot.lane.b32.xlu0 %v3025, 1
        %v3031 = vpop.permute.xlu0 %3030
        %v3034 = vadd.f32 %v2930, %v3029
        %v3035 = vadd.f32 %v2931, %v3031
        %s3036 = sld [smem:[#allocation3 + $0x127]]
        %v3037 = vstv %s3036
        %v3038 = vmul.f32 %v3037, %v2888
        %v3039 = vmul.f32 %v3037, %v2889
        %3042 = vrot.lane.b32.xlu0 %v3038, 1
        %v3043 = vpop.permute.xlu0 %3042
        %3044 = vrot.lane.b32.xlu0 %v3039, 1
        %v3045 = vpop.permute.xlu0 %3044
        %v3048 = vadd.f32 %v2936, %v3043
        %v3049 = vadd.f32 %v2937, %v3045
        %v3050 = vld [vmem:[%s123 + $0x1] sm:$0xff]
        %v3051 = vld [vmem:[%s123 + $0x9] sm:$0xff]
        %s3052 = sld [smem:[#allocation3 + $0x140]]
        %v3053 = vstv %s3052
        %v3054 = vmul.f32 %v3053, %v3050
        %v3055 = vmul.f32 %v3053, %v3051
        %v3056 = vadd.f32 %v2950, %v3054
        %v3057 = vadd.f32 %v2951, %v3055
        %s3058 = sld [smem:[#allocation3 + $0x141]]
        %v3059 = vstv %s3058
        %v3060 = vmul.f32 %v3059, %v3050
        %v3061 = vmul.f32 %v3059, %v3051
        %v3062 = vadd.f32 %v2964, %v3060
        %v3063 = vadd.f32 %v2965, %v3061
        %s3064 = sld [smem:[#allocation3 + $0x142]]
        %v3065 = vstv %s3064
        %v3066 = vmul.f32 %v3065, %v3050
        %v3067 = vmul.f32 %v3065, %v3051
        %v3068 = vadd.f32 %v2978, %v3066
        %v3069 = vadd.f32 %v2979, %v3067
        %s3070 = sld [smem:[#allocation3 + $0x143]]
        %v3071 = vstv %s3070
        %v3072 = vmul.f32 %v3071, %v3050
        %v3073 = vmul.f32 %v3071, %v3051
        %v3074 = vadd.f32 %v2992, %v3072
        %v3075 = vadd.f32 %v2993, %v3073
        %s3076 = sld [smem:[#allocation3 + $0x144]]
        %v3077 = vstv %s3076
        %v3078 = vmul.f32 %v3077, %v3050
        %v3079 = vmul.f32 %v3077, %v3051
        %v3080 = vadd.f32 %v3006, %v3078
        %v3081 = vadd.f32 %v3007, %v3079
        %s3082 = sld [smem:[#allocation3 + $0x145]]
        %v3083 = vstv %s3082
        %v3084 = vmul.f32 %v3083, %v3050
        %v3085 = vmul.f32 %v3083, %v3051
        %v3086 = vadd.f32 %v3020, %v3084
        %v3087 = vadd.f32 %v3021, %v3085
        %s3088 = sld [smem:[#allocation3 + $0x146]]
        %v3089 = vstv %s3088
        %v3090 = vmul.f32 %v3089, %v3050
        %v3091 = vmul.f32 %v3089, %v3051
        %v3092 = vadd.f32 %v3034, %v3090
        %v3093 = vadd.f32 %v3035, %v3091
        %s3094 = sld [smem:[#allocation3 + $0x147]]
        %v3095 = vstv %s3094
        %v3096 = vmul.f32 %v3095, %v3050
        %v3097 = vmul.f32 %v3095, %v3051
        %v3098 = vadd.f32 %v3048, %v3096
        %v3099 = vadd.f32 %v3049, %v3097
        %s3100 = sld [smem:[#allocation3 + $0x160]]
        %v3101 = vstv %s3100
        %v3102 = vmul.f32 %v3101, %v3050
        %v3103 = vmul.f32 %v3101, %v3051
        %3106 = vrot.lane.b32.xlu0 %v3102, 1
        %v3107 = vpop.permute.xlu0 %3106
        %3108 = vrot.lane.b32.xlu0 %v3103, 1
        %v3109 = vpop.permute.xlu0 %3108
        %v3112 = vadd.f32 %v3056, %v3107
        %v3113 = vadd.f32 %v3057, %v3109
        %s3114 = sld [smem:[#allocation3 + $0x161]]
        %v3115 = vstv %s3114
        %v3116 = vmul.f32 %v3115, %v3050
        %v3117 = vmul.f32 %v3115, %v3051
        %3120 = vrot.lane.b32.xlu0 %v3116, 1
        %v3121 = vpop.permute.xlu0 %3120
        %3122 = vrot.lane.b32.xlu0 %v3117, 1
        %v3123 = vpop.permute.xlu0 %3122
        %v3126 = vadd.f32 %v3062, %v3121
        %v3127 = vadd.f32 %v3063, %v3123
        %s3128 = sld [smem:[#allocation3 + $0x162]]
        %v3129 = vstv %s3128
        %v3130 = vmul.f32 %v3129, %v3050
        %v3131 = vmul.f32 %v3129, %v3051
        %3134 = vrot.lane.b32.xlu0 %v3130, 1
        %v3135 = vpop.permute.xlu0 %3134
        %3136 = vrot.lane.b32.xlu0 %v3131, 1
        %v3137 = vpop.permute.xlu0 %3136
        %v3140 = vadd.f32 %v3068, %v3135
        %v3141 = vadd.f32 %v3069, %v3137
        %s3142 = sld [smem:[#allocation3 + $0x163]]
        %v3143 = vstv %s3142
        %v3144 = vmul.f32 %v3143, %v3050
        %v3145 = vmul.f32 %v3143, %v3051
        %3148 = vrot.lane.b32.xlu0 %v3144, 1
        %v3149 = vpop.permute.xlu0 %3148
        %3150 = vrot.lane.b32.xlu0 %v3145, 1
        %v3151 = vpop.permute.xlu0 %3150
        %v3154 = vadd.f32 %v3074, %v3149
        %v3155 = vadd.f32 %v3075, %v3151
        %s3156 = sld [smem:[#allocation3 + $0x164]]
        %v3157 = vstv %s3156
        %v3158 = vmul.f32 %v3157, %v3050
        %v3159 = vmul.f32 %v3157, %v3051
        %3162 = vrot.lane.b32.xlu0 %v3158, 1
        %v3163 = vpop.permute.xlu0 %3162
        %3164 = vrot.lane.b32.xlu0 %v3159, 1
        %v3165 = vpop.permute.xlu0 %3164
        %v3168 = vadd.f32 %v3080, %v3163
        %v3169 = vadd.f32 %v3081, %v3165
        %s3170 = sld [smem:[#allocation3 + $0x165]]
        %v3171 = vstv %s3170
        %v3172 = vmul.f32 %v3171, %v3050
        %v3173 = vmul.f32 %v3171, %v3051
        %3176 = vrot.lane.b32.xlu0 %v3172, 1
        %v3177 = vpop.permute.xlu0 %3176
        %3178 = vrot.lane.b32.xlu0 %v3173, 1
        %v3179 = vpop.permute.xlu0 %3178
        %v3182 = vadd.f32 %v3086, %v3177
        %v3183 = vadd.f32 %v3087, %v3179
        %s3184 = sld [smem:[#allocation3 + $0x166]]
        %v3185 = vstv %s3184
        %v3186 = vmul.f32 %v3185, %v3050
        %v3187 = vmul.f32 %v3185, %v3051
        %3190 = vrot.lane.b32.xlu0 %v3186, 1
        %v3191 = vpop.permute.xlu0 %3190
        %3192 = vrot.lane.b32.xlu0 %v3187, 1
        %v3193 = vpop.permute.xlu0 %3192
        %v3196 = vadd.f32 %v3092, %v3191
        %v3197 = vadd.f32 %v3093, %v3193
        %s3198 = sld [smem:[#allocation3 + $0x167]]
        %v3199 = vstv %s3198
        %v3200 = vmul.f32 %v3199, %v3050
        %v3201 = vmul.f32 %v3199, %v3051
        %3204 = vrot.lane.b32.xlu0 %v3200, 1
        %v3205 = vpop.permute.xlu0 %3204
        %3206 = vrot.lane.b32.xlu0 %v3201, 1
        %v3207 = vpop.permute.xlu0 %3206
        %v3210 = vadd.f32 %v3098, %v3205
        %v3211 = vadd.f32 %v3099, %v3207
        %v3212 = vld [vmem:[%s448 + $0x2] sm:$0xff]
        %v3213 = vld [vmem:[%s448 + $0xa] sm:$0xff]
        %s3214 = sld [smem:[#allocation3 + $0x108]]
        %v3215 = vstv %s3214
        %v3216 = vmul.f32 %v3215, %v3212
        %v3217 = vmul.f32 %v3215, %v3213
        %v3218 = vadd.f32 %v3112, %v3216
        %v3219 = vadd.f32 %v3113, %v3217
        %s3220 = sld [smem:[#allocation3 + $0x109]]
        %v3221 = vstv %s3220
        %v3222 = vmul.f32 %v3221, %v3212
        %v3223 = vmul.f32 %v3221, %v3213
        %v3224 = vadd.f32 %v3126, %v3222
        %v3225 = vadd.f32 %v3127, %v3223
        %s3226 = sld [smem:[#allocation3 + $0x10a]]
        %v3227 = vstv %s3226
        %v3228 = vmul.f32 %v3227, %v3212
        %v3229 = vmul.f32 %v3227, %v3213
        %v3230 = vadd.f32 %v3140, %v3228
        %v3231 = vadd.f32 %v3141, %v3229
        %s3232 = sld [smem:[#allocation3 + $0x10b]]
        %v3233 = vstv %s3232
        %v3234 = vmul.f32 %v3233, %v3212
        %v3235 = vmul.f32 %v3233, %v3213
        %v3236 = vadd.f32 %v3154, %v3234
        %v3237 = vadd.f32 %v3155, %v3235
        %s3238 = sld [smem:[#allocation3 + $0x10c]]
        %v3239 = vstv %s3238
        %v3240 = vmul.f32 %v3239, %v3212
        %v3241 = vmul.f32 %v3239, %v3213
        %v3242 = vadd.f32 %v3168, %v3240
        %v3243 = vadd.f32 %v3169, %v3241
        %s3244 = sld [smem:[#allocation3 + $0x10d]]
        %v3245 = vstv %s3244
        %v3246 = vmul.f32 %v3245, %v3212
        %v3247 = vmul.f32 %v3245, %v3213
        %v3248 = vadd.f32 %v3182, %v3246
        %v3249 = vadd.f32 %v3183, %v3247
        %s3250 = sld [smem:[#allocation3 + $0x10e]]
        %v3251 = vstv %s3250
        %v3252 = vmul.f32 %v3251, %v3212
        %v3253 = vmul.f32 %v3251, %v3213
        %v3254 = vadd.f32 %v3196, %v3252
        %v3255 = vadd.f32 %v3197, %v3253
        %s3256 = sld [smem:[#allocation3 + $0x10f]]
        %v3257 = vstv %s3256
        %v3258 = vmul.f32 %v3257, %v3212
        %v3259 = vmul.f32 %v3257, %v3213
        %v3260 = vadd.f32 %v3210, %v3258
        %v3261 = vadd.f32 %v3211, %v3259
        %s3262 = sld [smem:[#allocation3 + $0x128]]
        %v3263 = vstv %s3262
        %v3264 = vmul.f32 %v3263, %v3212
        %v3265 = vmul.f32 %v3263, %v3213
        %3268 = vrot.lane.b32.xlu0 %v3264, 1
        %v3269 = vpop.permute.xlu0 %3268
        %3270 = vrot.lane.b32.xlu0 %v3265, 1
        %v3271 = vpop.permute.xlu0 %3270
        %v3274 = vadd.f32 %v3218, %v3269
        %v3275 = vadd.f32 %v3219, %v3271
        %s3276 = sld [smem:[#allocation3 + $0x129]]
        %v3277 = vstv %s3276
        %v3278 = vmul.f32 %v3277, %v3212
        %v3279 = vmul.f32 %v3277, %v3213
        %3282 = vrot.lane.b32.xlu0 %v3278, 1
        %v3283 = vpop.permute.xlu0 %3282
        %3284 = vrot.lane.b32.xlu0 %v3279, 1
        %v3285 = vpop.permute.xlu0 %3284
        %v3288 = vadd.f32 %v3224, %v3283
        %v3289 = vadd.f32 %v3225, %v3285
        %s3290 = sld [smem:[#allocation3 + $0x12a]]
        %v3291 = vstv %s3290
        %v3292 = vmul.f32 %v3291, %v3212
        %v3293 = vmul.f32 %v3291, %v3213
        %3296 = vrot.lane.b32.xlu0 %v3292, 1
        %v3297 = vpop.permute.xlu0 %3296
        %3298 = vrot.lane.b32.xlu0 %v3293, 1
        %v3299 = vpop.permute.xlu0 %3298
        %v3302 = vadd.f32 %v3230, %v3297
        %v3303 = vadd.f32 %v3231, %v3299
        %s3304 = sld [smem:[#allocation3 + $0x12b]]
        %v3305 = vstv %s3304
        %v3306 = vmul.f32 %v3305, %v3212
        %v3307 = vmul.f32 %v3305, %v3213
        %3310 = vrot.lane.b32.xlu0 %v3306, 1
        %v3311 = vpop.permute.xlu0 %3310
        %3312 = vrot.lane.b32.xlu0 %v3307, 1
        %v3313 = vpop.permute.xlu0 %3312
        %v3316 = vadd.f32 %v3236, %v3311
        %v3317 = vadd.f32 %v3237, %v3313
        %s3318 = sld [smem:[#allocation3 + $0x12c]]
        %v3319 = vstv %s3318
        %v3320 = vmul.f32 %v3319, %v3212
        %v3321 = vmul.f32 %v3319, %v3213
        %3324 = vrot.lane.b32.xlu0 %v3320, 1
        %v3325 = vpop.permute.xlu0 %3324
        %3326 = vrot.lane.b32.xlu0 %v3321, 1
        %v3327 = vpop.permute.xlu0 %3326
        %v3330 = vadd.f32 %v3242, %v3325
        %v3331 = vadd.f32 %v3243, %v3327
        %s3332 = sld [smem:[#allocation3 + $0x12d]]
        %v3333 = vstv %s3332
        %v3334 = vmul.f32 %v3333, %v3212
        %v3335 = vmul.f32 %v3333, %v3213
        %3338 = vrot.lane.b32.xlu0 %v3334, 1
        %v3339 = vpop.permute.xlu0 %3338
        %3340 = vrot.lane.b32.xlu0 %v3335, 1
        %v3341 = vpop.permute.xlu0 %3340
        %v3344 = vadd.f32 %v3248, %v3339
        %v3345 = vadd.f32 %v3249, %v3341
        %s3346 = sld [smem:[#allocation3 + $0x12e]]
        %v3347 = vstv %s3346
        %v3348 = vmul.f32 %v3347, %v3212
        %v3349 = vmul.f32 %v3347, %v3213
        %3352 = vrot.lane.b32.xlu0 %v3348, 1
        %v3353 = vpop.permute.xlu0 %3352
        %3354 = vrot.lane.b32.xlu0 %v3349, 1
        %v3355 = vpop.permute.xlu0 %3354
        %v3358 = vadd.f32 %v3254, %v3353
        %v3359 = vadd.f32 %v3255, %v3355
        %s3360 = sld [smem:[#allocation3 + $0x12f]]
        %v3361 = vstv %s3360
        %v3362 = vmul.f32 %v3361, %v3212
        %v3363 = vmul.f32 %v3361, %v3213
        %3366 = vrot.lane.b32.xlu0 %v3362, 1
        %v3367 = vpop.permute.xlu0 %3366
        %3368 = vrot.lane.b32.xlu0 %v3363, 1
        %v3369 = vpop.permute.xlu0 %3368
        %v3372 = vadd.f32 %v3260, %v3367
        %v3373 = vadd.f32 %v3261, %v3369
        %v3374 = vld [vmem:[%s448 + $0x1] sm:$0xff]
        %v3375 = vld [vmem:[%s448 + $0x9] sm:$0xff]
        %s3376 = sld [smem:[#allocation3 + $0x148]]
        %v3377 = vstv %s3376
        %v3378 = vmul.f32 %v3377, %v3374
        %v3379 = vmul.f32 %v3377, %v3375
        %v3380 = vadd.f32 %v3274, %v3378
        %v3381 = vadd.f32 %v3275, %v3379
        %s3382 = sld [smem:[#allocation3 + $0x149]]
        %v3383 = vstv %s3382
        %v3384 = vmul.f32 %v3383, %v3374
        %v3385 = vmul.f32 %v3383, %v3375
        %v3386 = vadd.f32 %v3288, %v3384
        %v3387 = vadd.f32 %v3289, %v3385
        %s3388 = sld [smem:[#allocation3 + $0x14a]]
        %v3389 = vstv %s3388
        %v3390 = vmul.f32 %v3389, %v3374
        %v3391 = vmul.f32 %v3389, %v3375
        %v3392 = vadd.f32 %v3302, %v3390
        %v3393 = vadd.f32 %v3303, %v3391
        %s3394 = sld [smem:[#allocation3 + $0x14b]]
        %v3395 = vstv %s3394
        %v3396 = vmul.f32 %v3395, %v3374
        %v3397 = vmul.f32 %v3395, %v3375
        %v3398 = vadd.f32 %v3316, %v3396
        %v3399 = vadd.f32 %v3317, %v3397
        %s3400 = sld [smem:[#allocation3 + $0x14c]]
        %v3401 = vstv %s3400
        %v3402 = vmul.f32 %v3401, %v3374
        %v3403 = vmul.f32 %v3401, %v3375
        %v3404 = vadd.f32 %v3330, %v3402
        %v3405 = vadd.f32 %v3331, %v3403
        %s3406 = sld [smem:[#allocation3 + $0x14d]]
        %v3407 = vstv %s3406
        %v3408 = vmul.f32 %v3407, %v3374
        %v3409 = vmul.f32 %v3407, %v3375
        %v3410 = vadd.f32 %v3344, %v3408
        %v3411 = vadd.f32 %v3345, %v3409
        %s3412 = sld [smem:[#allocation3 + $0x14e]]
        %v3413 = vstv %s3412
        %v3414 = vmul.f32 %v3413, %v3374
        %v3415 = vmul.f32 %v3413, %v3375
        %v3416 = vadd.f32 %v3358, %v3414
        %v3417 = vadd.f32 %v3359, %v3415
        %s3418 = sld [smem:[#allocation3 + $0x14f]]
        %v3419 = vstv %s3418
        %v3420 = vmul.f32 %v3419, %v3374
        %v3421 = vmul.f32 %v3419, %v3375
        %v3422 = vadd.f32 %v3372, %v3420
        %v3423 = vadd.f32 %v3373, %v3421
        %s3424 = sld [smem:[#allocation3 + $0x168]]
        %v3425 = vstv %s3424
        %v3426 = vmul.f32 %v3425, %v3374
        %v3427 = vmul.f32 %v3425, %v3375
        %3430 = vrot.lane.b32.xlu0 %v3426, 1
        %v3431 = vpop.permute.xlu0 %3430
        %3432 = vrot.lane.b32.xlu0 %v3427, 1
        %v3433 = vpop.permute.xlu0 %3432
        %v3436 = vadd.f32 %v3380, %v3431
        %v3437 = vadd.f32 %v3381, %v3433
        %s3438 = sld [smem:[#allocation3 + $0x169]]
        %v3439 = vstv %s3438
        %v3440 = vmul.f32 %v3439, %v3374
        %v3441 = vmul.f32 %v3439, %v3375
        %3444 = vrot.lane.b32.xlu0 %v3440, 1
        %v3445 = vpop.permute.xlu0 %3444
        %3446 = vrot.lane.b32.xlu0 %v3441, 1
        %v3447 = vpop.permute.xlu0 %3446
        %v3450 = vadd.f32 %v3386, %v3445
        %v3451 = vadd.f32 %v3387, %v3447
        %s3452 = sld [smem:[#allocation3 + $0x16a]]
        %v3453 = vstv %s3452
        %v3454 = vmul.f32 %v3453, %v3374
        %v3455 = vmul.f32 %v3453, %v3375
        %3458 = vrot.lane.b32.xlu0 %v3454, 1
        %v3459 = vpop.permute.xlu0 %3458
        %3460 = vrot.lane.b32.xlu0 %v3455, 1
        %v3461 = vpop.permute.xlu0 %3460
        %v3464 = vadd.f32 %v3392, %v3459
        %v3465 = vadd.f32 %v3393, %v3461
        %s3466 = sld [smem:[#allocation3 + $0x16b]]
        %v3467 = vstv %s3466
        %v3468 = vmul.f32 %v3467, %v3374
        %v3469 = vmul.f32 %v3467, %v3375
        %3472 = vrot.lane.b32.xlu0 %v3468, 1
        %v3473 = vpop.permute.xlu0 %3472
        %3474 = vrot.lane.b32.xlu0 %v3469, 1
        %v3475 = vpop.permute.xlu0 %3474
        %v3478 = vadd.f32 %v3398, %v3473
        %v3479 = vadd.f32 %v3399, %v3475
        %s3480 = sld [smem:[#allocation3 + $0x16c]]
        %v3481 = vstv %s3480
        %v3482 = vmul.f32 %v3481, %v3374
        %v3483 = vmul.f32 %v3481, %v3375
        %3486 = vrot.lane.b32.xlu0 %v3482, 1
        %v3487 = vpop.permute.xlu0 %3486
        %3488 = vrot.lane.b32.xlu0 %v3483, 1
        %v3489 = vpop.permute.xlu0 %3488
        %v3492 = vadd.f32 %v3404, %v3487
        %v3493 = vadd.f32 %v3405, %v3489
        %s3494 = sld [smem:[#allocation3 + $0x16d]]
        %v3495 = vstv %s3494
        %v3496 = vmul.f32 %v3495, %v3374
        %v3497 = vmul.f32 %v3495, %v3375
        %3500 = vrot.lane.b32.xlu0 %v3496, 1
        %v3501 = vpop.permute.xlu0 %3500
        %3502 = vrot.lane.b32.xlu0 %v3497, 1
        %v3503 = vpop.permute.xlu0 %3502
        %v3506 = vadd.f32 %v3410, %v3501
        %v3507 = vadd.f32 %v3411, %v3503
        %s3508 = sld [smem:[#allocation3 + $0x16e]]
        %v3509 = vstv %s3508
        %v3510 = vmul.f32 %v3509, %v3374
        %v3511 = vmul.f32 %v3509, %v3375
        %3514 = vrot.lane.b32.xlu0 %v3510, 1
        %v3515 = vpop.permute.xlu0 %3514
        %3516 = vrot.lane.b32.xlu0 %v3511, 1
        %v3517 = vpop.permute.xlu0 %3516
        %v3520 = vadd.f32 %v3416, %v3515
        %v3521 = vadd.f32 %v3417, %v3517
        %s3522 = sld [smem:[#allocation3 + $0x16f]]
        %v3523 = vstv %s3522
        %v3524 = vmul.f32 %v3523, %v3374
        %v3525 = vmul.f32 %v3523, %v3375
        %3528 = vrot.lane.b32.xlu0 %v3524, 1
        %v3529 = vpop.permute.xlu0 %3528
        %3530 = vrot.lane.b32.xlu0 %v3525, 1
        %v3531 = vpop.permute.xlu0 %3530
        %v3534 = vadd.f32 %v3422, %v3529
        %v3535 = vadd.f32 %v3423, %v3531
        %v3536 = vld [vmem:[%s773 + $0x2] sm:$0xff]
        %v3537 = vld [vmem:[%s773 + $0xa] sm:$0xff]
        %s3538 = sld [smem:[#allocation3 + $0x110]]
        %v3539 = vstv %s3538
        %v3540 = vmul.f32 %v3539, %v3536
        %v3541 = vmul.f32 %v3539, %v3537
        %v3542 = vadd.f32 %v3436, %v3540
        %v3543 = vadd.f32 %v3437, %v3541
        %s3544 = sld [smem:[#allocation3 + $0x111]]
        %v3545 = vstv %s3544
        %v3546 = vmul.f32 %v3545, %v3536
        %v3547 = vmul.f32 %v3545, %v3537
        %v3548 = vadd.f32 %v3450, %v3546
        %v3549 = vadd.f32 %v3451, %v3547
        %s3550 = sld [smem:[#allocation3 + $0x112]]
        %v3551 = vstv %s3550
        %v3552 = vmul.f32 %v3551, %v3536
        %v3553 = vmul.f32 %v3551, %v3537
        %v3554 = vadd.f32 %v3464, %v3552
        %v3555 = vadd.f32 %v3465, %v3553
        %s3556 = sld [smem:[#allocation3 + $0x113]]
        %v3557 = vstv %s3556
        %v3558 = vmul.f32 %v3557, %v3536
        %v3559 = vmul.f32 %v3557, %v3537
        %v3560 = vadd.f32 %v3478, %v3558
        %v3561 = vadd.f32 %v3479, %v3559
        %s3562 = sld [smem:[#allocation3 + $0x114]]
        %v3563 = vstv %s3562
        %v3564 = vmul.f32 %v3563, %v3536
        %v3565 = vmul.f32 %v3563, %v3537
        %v3566 = vadd.f32 %v3492, %v3564
        %v3567 = vadd.f32 %v3493, %v3565
        %s3568 = sld [smem:[#allocation3 + $0x115]]
        %v3569 = vstv %s3568
        %v3570 = vmul.f32 %v3569, %v3536
        %v3571 = vmul.f32 %v3569, %v3537
        %v3572 = vadd.f32 %v3506, %v3570
        %v3573 = vadd.f32 %v3507, %v3571
        %s3574 = sld [smem:[#allocation3 + $0x116]]
        %v3575 = vstv %s3574
        %v3576 = vmul.f32 %v3575, %v3536
        %v3577 = vmul.f32 %v3575, %v3537
        %v3578 = vadd.f32 %v3520, %v3576
        %v3579 = vadd.f32 %v3521, %v3577
        %s3580 = sld [smem:[#allocation3 + $0x117]]
        %v3581 = vstv %s3580
        %v3582 = vmul.f32 %v3581, %v3536
        %v3583 = vmul.f32 %v3581, %v3537
        %v3584 = vadd.f32 %v3534, %v3582
        %v3585 = vadd.f32 %v3535, %v3583
        %s3586 = sld [smem:[#allocation3 + $0x130]]
        %v3587 = vstv %s3586
        %v3588 = vmul.f32 %v3587, %v3536
        %v3589 = vmul.f32 %v3587, %v3537
        %3592 = vrot.lane.b32.xlu0 %v3588, 1
        %v3593 = vpop.permute.xlu0 %3592
        %3594 = vrot.lane.b32.xlu0 %v3589, 1
        %v3595 = vpop.permute.xlu0 %3594
        %v3598 = vadd.f32 %v3542, %v3593
        %v3599 = vadd.f32 %v3543, %v3595
        %s3600 = sld [smem:[#allocation3 + $0x131]]
        %v3601 = vstv %s3600
        %v3602 = vmul.f32 %v3601, %v3536
        %v3603 = vmul.f32 %v3601, %v3537
        %3606 = vrot.lane.b32.xlu0 %v3602, 1
        %v3607 = vpop.permute.xlu0 %3606
        %3608 = vrot.lane.b32.xlu0 %v3603, 1
        %v3609 = vpop.permute.xlu0 %3608
        %v3612 = vadd.f32 %v3548, %v3607
        %v3613 = vadd.f32 %v3549, %v3609
        %s3614 = sld [smem:[#allocation3 + $0x132]]
        %v3615 = vstv %s3614
        %v3616 = vmul.f32 %v3615, %v3536
        %v3617 = vmul.f32 %v3615, %v3537
        %3620 = vrot.lane.b32.xlu0 %v3616, 1
        %v3621 = vpop.permute.xlu0 %3620
        %3622 = vrot.lane.b32.xlu0 %v3617, 1
        %v3623 = vpop.permute.xlu0 %3622
        %v3626 = vadd.f32 %v3554, %v3621
        %v3627 = vadd.f32 %v3555, %v3623
        %s3628 = sld [smem:[#allocation3 + $0x133]]
        %v3629 = vstv %s3628
        %v3630 = vmul.f32 %v3629, %v3536
        %v3631 = vmul.f32 %v3629, %v3537
        %3634 = vrot.lane.b32.xlu0 %v3630, 1
        %v3635 = vpop.permute.xlu0 %3634
        %3636 = vrot.lane.b32.xlu0 %v3631, 1
        %v3637 = vpop.permute.xlu0 %3636
        %v3640 = vadd.f32 %v3560, %v3635
        %v3641 = vadd.f32 %v3561, %v3637
        %s3642 = sld [smem:[#allocation3 + $0x134]]
        %v3643 = vstv %s3642
        %v3644 = vmul.f32 %v3643, %v3536
        %v3645 = vmul.f32 %v3643, %v3537
        %3648 = vrot.lane.b32.xlu0 %v3644, 1
        %v3649 = vpop.permute.xlu0 %3648
        %3650 = vrot.lane.b32.xlu0 %v3645, 1
        %v3651 = vpop.permute.xlu0 %3650
        %v3654 = vadd.f32 %v3566, %v3649
        %v3655 = vadd.f32 %v3567, %v3651
        %s3656 = sld [smem:[#allocation3 + $0x135]]
        %v3657 = vstv %s3656
        %v3658 = vmul.f32 %v3657, %v3536
        %v3659 = vmul.f32 %v3657, %v3537
        %3662 = vrot.lane.b32.xlu0 %v3658, 1
        %v3663 = vpop.permute.xlu0 %3662
        %3664 = vrot.lane.b32.xlu0 %v3659, 1
        %v3665 = vpop.permute.xlu0 %3664
        %v3668 = vadd.f32 %v3572, %v3663
        %v3669 = vadd.f32 %v3573, %v3665
        %s3670 = sld [smem:[#allocation3 + $0x136]]
        %v3671 = vstv %s3670
        %v3672 = vmul.f32 %v3671, %v3536
        %v3673 = vmul.f32 %v3671, %v3537
        %3676 = vrot.lane.b32.xlu0 %v3672, 1
        %v3677 = vpop.permute.xlu0 %3676
        %3678 = vrot.lane.b32.xlu0 %v3673, 1
        %v3679 = vpop.permute.xlu0 %3678
        %v3682 = vadd.f32 %v3578, %v3677
        %v3683 = vadd.f32 %v3579, %v3679
        %s3684 = sld [smem:[#allocation3 + $0x137]]
        %v3685 = vstv %s3684
        %v3686 = vmul.f32 %v3685, %v3536
        %v3687 = vmul.f32 %v3685, %v3537
        %3690 = vrot.lane.b32.xlu0 %v3686, 1
        %v3691 = vpop.permute.xlu0 %3690
        %3692 = vrot.lane.b32.xlu0 %v3687, 1
        %v3693 = vpop.permute.xlu0 %3692
        %v3696 = vadd.f32 %v3584, %v3691
        %v3697 = vadd.f32 %v3585, %v3693
        %v3698 = vld [vmem:[%s773 + $0x1] sm:$0xff]
        %v3699 = vld [vmem:[%s773 + $0x9] sm:$0xff]
        %s3700 = sld [smem:[#allocation3 + $0x150]]
        %v3701 = vstv %s3700
        %v3702 = vmul.f32 %v3701, %v3698
        %v3703 = vmul.f32 %v3701, %v3699
        %v3704 = vadd.f32 %v3598, %v3702
        %v3705 = vadd.f32 %v3599, %v3703
        %s3706 = sld [smem:[#allocation3 + $0x151]]
        %v3707 = vstv %s3706
        %v3708 = vmul.f32 %v3707, %v3698
        %v3709 = vmul.f32 %v3707, %v3699
        %v3710 = vadd.f32 %v3612, %v3708
        %v3711 = vadd.f32 %v3613, %v3709
        %s3712 = sld [smem:[#allocation3 + $0x152]]
        %v3713 = vstv %s3712
        %v3714 = vmul.f32 %v3713, %v3698
        %v3715 = vmul.f32 %v3713, %v3699
        %v3716 = vadd.f32 %v3626, %v3714
        %v3717 = vadd.f32 %v3627, %v3715
        %s3718 = sld [smem:[#allocation3 + $0x153]]
        %v3719 = vstv %s3718
        %v3720 = vmul.f32 %v3719, %v3698
        %v3721 = vmul.f32 %v3719, %v3699
        %v3722 = vadd.f32 %v3640, %v3720
        %v3723 = vadd.f32 %v3641, %v3721
        %s3724 = sld [smem:[#allocation3 + $0x154]]
        %v3725 = vstv %s3724
        %v3726 = vmul.f32 %v3725, %v3698
        %v3727 = vmul.f32 %v3725, %v3699
        %v3728 = vadd.f32 %v3654, %v3726
        %v3729 = vadd.f32 %v3655, %v3727
        %s3730 = sld [smem:[#allocation3 + $0x155]]
        %v3731 = vstv %s3730
        %v3732 = vmul.f32 %v3731, %v3698
        %v3733 = vmul.f32 %v3731, %v3699
        %v3734 = vadd.f32 %v3668, %v3732
        %v3735 = vadd.f32 %v3669, %v3733
        %s3736 = sld [smem:[#allocation3 + $0x156]]
        %v3737 = vstv %s3736
        %v3738 = vmul.f32 %v3737, %v3698
        %v3739 = vmul.f32 %v3737, %v3699
        %v3740 = vadd.f32 %v3682, %v3738
        %v3741 = vadd.f32 %v3683, %v3739
        %s3742 = sld [smem:[#allocation3 + $0x157]]
        %v3743 = vstv %s3742
        %v3744 = vmul.f32 %v3743, %v3698
        %v3745 = vmul.f32 %v3743, %v3699
        %v3746 = vadd.f32 %v3696, %v3744
        %v3747 = vadd.f32 %v3697, %v3745
        %s3748 = sld [smem:[#allocation3 + $0x170]]
        %v3749 = vstv %s3748
        %v3750 = vmul.f32 %v3749, %v3698
        %v3751 = vmul.f32 %v3749, %v3699
        %3754 = vrot.lane.b32.xlu0 %v3750, 1
        %v3755 = vpop.permute.xlu0 %3754
        %3756 = vrot.lane.b32.xlu0 %v3751, 1
        %v3757 = vpop.permute.xlu0 %3756
        %v3760 = vadd.f32 %v3704, %v3755
        %v3761 = vadd.f32 %v3705, %v3757
        %s3762 = sld [smem:[#allocation3 + $0x171]]
        %v3763 = vstv %s3762
        %v3764 = vmul.f32 %v3763, %v3698
        %v3765 = vmul.f32 %v3763, %v3699
        %3768 = vrot.lane.b32.xlu0 %v3764, 1
        %v3769 = vpop.permute.xlu0 %3768
        %3770 = vrot.lane.b32.xlu0 %v3765, 1
        %v3771 = vpop.permute.xlu0 %3770
        %v3774 = vadd.f32 %v3710, %v3769
        %v3775 = vadd.f32 %v3711, %v3771
        %s3776 = sld [smem:[#allocation3 + $0x172]]
        %v3777 = vstv %s3776
        %v3778 = vmul.f32 %v3777, %v3698
        %v3779 = vmul.f32 %v3777, %v3699
        %3782 = vrot.lane.b32.xlu0 %v3778, 1
        %v3783 = vpop.permute.xlu0 %3782
        %3784 = vrot.lane.b32.xlu0 %v3779, 1
        %v3785 = vpop.permute.xlu0 %3784
        %v3788 = vadd.f32 %v3716, %v3783
        %v3789 = vadd.f32 %v3717, %v3785
        %s3790 = sld [smem:[#allocation3 + $0x173]]
        %v3791 = vstv %s3790
        %v3792 = vmul.f32 %v3791, %v3698
        %v3793 = vmul.f32 %v3791, %v3699
        %3796 = vrot.lane.b32.xlu0 %v3792, 1
        %v3797 = vpop.permute.xlu0 %3796
        %3798 = vrot.lane.b32.xlu0 %v3793, 1
        %v3799 = vpop.permute.xlu0 %3798
        %v3802 = vadd.f32 %v3722, %v3797
        %v3803 = vadd.f32 %v3723, %v3799
        %s3804 = sld [smem:[#allocation3 + $0x174]]
        %v3805 = vstv %s3804
        %v3806 = vmul.f32 %v3805, %v3698
        %v3807 = vmul.f32 %v3805, %v3699
        %3810 = vrot.lane.b32.xlu0 %v3806, 1
        %v3811 = vpop.permute.xlu0 %3810
        %3812 = vrot.lane.b32.xlu0 %v3807, 1
        %v3813 = vpop.permute.xlu0 %3812
        %v3816 = vadd.f32 %v3728, %v3811
        %v3817 = vadd.f32 %v3729, %v3813
        %s3818 = sld [smem:[#allocation3 + $0x175]]
        %v3819 = vstv %s3818
        %v3820 = vmul.f32 %v3819, %v3698
        %v3821 = vmul.f32 %v3819, %v3699
        %3824 = vrot.lane.b32.xlu0 %v3820, 1
        %v3825 = vpop.permute.xlu0 %3824
        %3826 = vrot.lane.b32.xlu0 %v3821, 1
        %v3827 = vpop.permute.xlu0 %3826
        %v3830 = vadd.f32 %v3734, %v3825
        %v3831 = vadd.f32 %v3735, %v3827
        %s3832 = sld [smem:[#allocation3 + $0x176]]
        %v3833 = vstv %s3832
        %v3834 = vmul.f32 %v3833, %v3698
        %v3835 = vmul.f32 %v3833, %v3699
        %3838 = vrot.lane.b32.xlu0 %v3834, 1
        %v3839 = vpop.permute.xlu0 %3838
        %3840 = vrot.lane.b32.xlu0 %v3835, 1
        %v3841 = vpop.permute.xlu0 %3840
        %v3844 = vadd.f32 %v3740, %v3839
        %v3845 = vadd.f32 %v3741, %v3841
        %s3846 = sld [smem:[#allocation3 + $0x177]]
        %v3847 = vstv %s3846
        %v3848 = vmul.f32 %v3847, %v3698
        %v3849 = vmul.f32 %v3847, %v3699
        %3852 = vrot.lane.b32.xlu0 %v3848, 1
        %v3853 = vpop.permute.xlu0 %3852
        %3854 = vrot.lane.b32.xlu0 %v3849, 1
        %v3855 = vpop.permute.xlu0 %3854
        %v3858 = vadd.f32 %v3746, %v3853
        %v3859 = vadd.f32 %v3747, %v3855
        %v3860 = vld [vmem:[%s1098 + $0x2] sm:$0xff]
        %v3861 = vld [vmem:[%s1098 + $0xa] sm:$0xff]
        %s3862 = sld [smem:[#allocation3 + $0x118]]
        %v3863 = vstv %s3862
        %v3864 = vmul.f32 %v3863, %v3860
        %v3865 = vmul.f32 %v3863, %v3861
        %v3866 = vadd.f32 %v3760, %v3864
        %v3867 = vadd.f32 %v3761, %v3865
        %s3868 = sld [smem:[#allocation3 + $0x119]]
        %v3869 = vstv %s3868
        %v3870 = vmul.f32 %v3869, %v3860
        %v3871 = vmul.f32 %v3869, %v3861
        %v3872 = vadd.f32 %v3774, %v3870
        %v3873 = vadd.f32 %v3775, %v3871
        %s3874 = sld [smem:[#allocation3 + $0x11a]]
        %v3875 = vstv %s3874
        %v3876 = vmul.f32 %v3875, %v3860
        %v3877 = vmul.f32 %v3875, %v3861
        %v3878 = vadd.f32 %v3788, %v3876
        %v3879 = vadd.f32 %v3789, %v3877
        %s3880 = sld [smem:[#allocation3 + $0x11b]]
        %v3881 = vstv %s3880
        %v3882 = vmul.f32 %v3881, %v3860
        %v3883 = vmul.f32 %v3881, %v3861
        %v3884 = vadd.f32 %v3802, %v3882
        %v3885 = vadd.f32 %v3803, %v3883
        %s3886 = sld [smem:[#allocation3 + $0x11c]]
        %v3887 = vstv %s3886
        %v3888 = vmul.f32 %v3887, %v3860
        %v3889 = vmul.f32 %v3887, %v3861
        %v3890 = vadd.f32 %v3816, %v3888
        %v3891 = vadd.f32 %v3817, %v3889
        %s3892 = sld [smem:[#allocation3 + $0x11d]]
        %v3893 = vstv %s3892
        %v3894 = vmul.f32 %v3893, %v3860
        %v3895 = vmul.f32 %v3893, %v3861
        %v3896 = vadd.f32 %v3830, %v3894
        %v3897 = vadd.f32 %v3831, %v3895
        %s3898 = sld [smem:[#allocation3 + $0x11e]]
        %v3899 = vstv %s3898
        %v3900 = vmul.f32 %v3899, %v3860
        %v3901 = vmul.f32 %v3899, %v3861
        %v3902 = vadd.f32 %v3844, %v3900
        %v3903 = vadd.f32 %v3845, %v3901
        %s3904 = sld [smem:[#allocation3 + $0x11f]]
        %v3905 = vstv %s3904
        %v3906 = vmul.f32 %v3905, %v3860
        %v3907 = vmul.f32 %v3905, %v3861
        %v3908 = vadd.f32 %v3858, %v3906
        %v3909 = vadd.f32 %v3859, %v3907
        %s3910 = sld [smem:[#allocation3 + $0x138]]
        %v3911 = vstv %s3910
        %v3912 = vmul.f32 %v3911, %v3860
        %v3913 = vmul.f32 %v3911, %v3861
        %3916 = vrot.lane.b32.xlu0 %v3912, 1
        %v3917 = vpop.permute.xlu0 %3916
        %3918 = vrot.lane.b32.xlu0 %v3913, 1
        %v3919 = vpop.permute.xlu0 %3918
        %v3922 = vadd.f32 %v3866, %v3917
        %v3923 = vadd.f32 %v3867, %v3919
        %s3924 = sld [smem:[#allocation3 + $0x139]]
        %v3925 = vstv %s3924
        %v3926 = vmul.f32 %v3925, %v3860
        %v3927 = vmul.f32 %v3925, %v3861
        %3930 = vrot.lane.b32.xlu0 %v3926, 1
        %v3931 = vpop.permute.xlu0 %3930
        %3932 = vrot.lane.b32.xlu0 %v3927, 1
        %v3933 = vpop.permute.xlu0 %3932
        %v3936 = vadd.f32 %v3872, %v3931
        %v3937 = vadd.f32 %v3873, %v3933
        %s3938 = sld [smem:[#allocation3 + $0x13a]]
        %v3939 = vstv %s3938
        %v3940 = vmul.f32 %v3939, %v3860
        %v3941 = vmul.f32 %v3939, %v3861
        %3944 = vrot.lane.b32.xlu0 %v3940, 1
        %v3945 = vpop.permute.xlu0 %3944
        %3946 = vrot.lane.b32.xlu0 %v3941, 1
        %v3947 = vpop.permute.xlu0 %3946
        %v3950 = vadd.f32 %v3878, %v3945
        %v3951 = vadd.f32 %v3879, %v3947
        %s3952 = sld [smem:[#allocation3 + $0x13b]]
        %v3953 = vstv %s3952
        %v3954 = vmul.f32 %v3953, %v3860
        %v3955 = vmul.f32 %v3953, %v3861
        %3958 = vrot.lane.b32.xlu0 %v3954, 1
        %v3959 = vpop.permute.xlu0 %3958
        %3960 = vrot.lane.b32.xlu0 %v3955, 1
        %v3961 = vpop.permute.xlu0 %3960
        %v3964 = vadd.f32 %v3884, %v3959
        %v3965 = vadd.f32 %v3885, %v3961
        %s3966 = sld [smem:[#allocation3 + $0x13c]]
        %v3967 = vstv %s3966
        %v3968 = vmul.f32 %v3967, %v3860
        %v3969 = vmul.f32 %v3967, %v3861
        %3972 = vrot.lane.b32.xlu0 %v3968, 1
        %v3973 = vpop.permute.xlu0 %3972
        %3974 = vrot.lane.b32.xlu0 %v3969, 1
        %v3975 = vpop.permute.xlu0 %3974
        %v3978 = vadd.f32 %v3890, %v3973
        %v3979 = vadd.f32 %v3891, %v3975
        %s3980 = sld [smem:[#allocation3 + $0x13d]]
        %v3981 = vstv %s3980
        %v3982 = vmul.f32 %v3981, %v3860
        %v3983 = vmul.f32 %v3981, %v3861
        %3986 = vrot.lane.b32.xlu0 %v3982, 1
        %v3987 = vpop.permute.xlu0 %3986
        %3988 = vrot.lane.b32.xlu0 %v3983, 1
        %v3989 = vpop.permute.xlu0 %3988
        %v3992 = vadd.f32 %v3896, %v3987
        %v3993 = vadd.f32 %v3897, %v3989
        %s3994 = sld [smem:[#allocation3 + $0x13e]]
        %v3995 = vstv %s3994
        %v3996 = vmul.f32 %v3995, %v3860
        %v3997 = vmul.f32 %v3995, %v3861
        %4000 = vrot.lane.b32.xlu0 %v3996, 1
        %v4001 = vpop.permute.xlu0 %4000
        %4002 = vrot.lane.b32.xlu0 %v3997, 1
        %v4003 = vpop.permute.xlu0 %4002
        %v4006 = vadd.f32 %v3902, %v4001
        %v4007 = vadd.f32 %v3903, %v4003
        %s4008 = sld [smem:[#allocation3 + $0x13f]]
        %v4009 = vstv %s4008
        %v4010 = vmul.f32 %v4009, %v3860
        %v4011 = vmul.f32 %v4009, %v3861
        %4014 = vrot.lane.b32.xlu0 %v4010, 1
        %v4015 = vpop.permute.xlu0 %4014
        %4016 = vrot.lane.b32.xlu0 %v4011, 1
        %v4017 = vpop.permute.xlu0 %4016
        %v4020 = vadd.f32 %v3908, %v4015
        %v4021 = vadd.f32 %v3909, %v4017
        %v4022 = vld [vmem:[%s1098 + $0x1] sm:$0xff]
        %v4023 = vld [vmem:[%s1098 + $0x9] sm:$0xff]
        %s4024 = sld [smem:[#allocation3 + $0x158]]
        %v4025 = vstv %s4024
        %v4026 = vmul.f32 %v4025, %v4022
        %v4027 = vmul.f32 %v4025, %v4023
        %v4028 = vadd.f32 %v3922, %v4026
        %v4029 = vadd.f32 %v3923, %v4027
        %s4030 = sld [smem:[#allocation3 + $0x159]]
        %v4031 = vstv %s4030
        %v4032 = vmul.f32 %v4031, %v4022
        %v4033 = vmul.f32 %v4031, %v4023
        %v4034 = vadd.f32 %v3936, %v4032
        %v4035 = vadd.f32 %v3937, %v4033
        %s4036 = sld [smem:[#allocation3 + $0x15a]]
        %v4037 = vstv %s4036
        %v4038 = vmul.f32 %v4037, %v4022
        %v4039 = vmul.f32 %v4037, %v4023
        %v4040 = vadd.f32 %v3950, %v4038
        %v4041 = vadd.f32 %v3951, %v4039
        %s4042 = sld [smem:[#allocation3 + $0x15b]]
        %v4043 = vstv %s4042
        %v4044 = vmul.f32 %v4043, %v4022
        %v4045 = vmul.f32 %v4043, %v4023
        %v4046 = vadd.f32 %v3964, %v4044
        %v4047 = vadd.f32 %v3965, %v4045
        %s4048 = sld [smem:[#allocation3 + $0x15c]]
        %v4049 = vstv %s4048
        %v4050 = vmul.f32 %v4049, %v4022
        %v4051 = vmul.f32 %v4049, %v4023
        %v4052 = vadd.f32 %v3978, %v4050
        %v4053 = vadd.f32 %v3979, %v4051
        %s4054 = sld [smem:[#allocation3 + $0x15d]]
        %v4055 = vstv %s4054
        %v4056 = vmul.f32 %v4055, %v4022
        %v4057 = vmul.f32 %v4055, %v4023
        %v4058 = vadd.f32 %v3992, %v4056
        %v4059 = vadd.f32 %v3993, %v4057
        %s4060 = sld [smem:[#allocation3 + $0x15e]]
        %v4061 = vstv %s4060
        %v4062 = vmul.f32 %v4061, %v4022
        %v4063 = vmul.f32 %v4061, %v4023
        %v4064 = vadd.f32 %v4006, %v4062
        %v4065 = vadd.f32 %v4007, %v4063
        %s4066 = sld [smem:[#allocation3 + $0x15f]]
        %v4067 = vstv %s4066
        %v4068 = vmul.f32 %v4067, %v4022
        %v4069 = vmul.f32 %v4067, %v4023
        %v4070 = vadd.f32 %v4020, %v4068
        %v4071 = vadd.f32 %v4021, %v4069
        %s4072 = sld [smem:[#allocation3 + $0x178]]
        %v4073 = vstv %s4072
        %v4074 = vmul.f32 %v4073, %v4022
        %v4075 = vmul.f32 %v4073, %v4023
        %4078 = vrot.lane.b32.xlu0 %v4074, 1
        %v4079 = vpop.permute.xlu0 %4078
        %4080 = vrot.lane.b32.xlu0 %v4075, 1
        %v4081 = vpop.permute.xlu0 %4080
        %v4084 = vadd.f32 %v4028, %v4079
        %v4085 = vadd.f32 %v4029, %v4081
        %s4086 = sld [smem:[#allocation3 + $0x179]]
        %v4087 = vstv %s4086
        %v4088 = vmul.f32 %v4087, %v4022
        %v4089 = vmul.f32 %v4087, %v4023
        %4092 = vrot.lane.b32.xlu0 %v4088, 1
        %v4093 = vpop.permute.xlu0 %4092
        %4094 = vrot.lane.b32.xlu0 %v4089, 1
        %v4095 = vpop.permute.xlu0 %4094
        %v4098 = vadd.f32 %v4034, %v4093
        %v4099 = vadd.f32 %v4035, %v4095
        %s4100 = sld [smem:[#allocation3 + $0x17a]]
        %v4101 = vstv %s4100
        %v4102 = vmul.f32 %v4101, %v4022
        %v4103 = vmul.f32 %v4101, %v4023
        %4106 = vrot.lane.b32.xlu0 %v4102, 1
        %v4107 = vpop.permute.xlu0 %4106
        %4108 = vrot.lane.b32.xlu0 %v4103, 1
        %v4109 = vpop.permute.xlu0 %4108
        %v4112 = vadd.f32 %v4040, %v4107
        %v4113 = vadd.f32 %v4041, %v4109
        %s4114 = sld [smem:[#allocation3 + $0x17b]]
        %v4115 = vstv %s4114
        %v4116 = vmul.f32 %v4115, %v4022
        %v4117 = vmul.f32 %v4115, %v4023
        %4120 = vrot.lane.b32.xlu0 %v4116, 1
        %v4121 = vpop.permute.xlu0 %4120
        %4122 = vrot.lane.b32.xlu0 %v4117, 1
        %v4123 = vpop.permute.xlu0 %4122
        %v4126 = vadd.f32 %v4046, %v4121
        %v4127 = vadd.f32 %v4047, %v4123
        %s4128 = sld [smem:[#allocation3 + $0x17c]]
        %v4129 = vstv %s4128
        %v4130 = vmul.f32 %v4129, %v4022
        %v4131 = vmul.f32 %v4129, %v4023
        %4134 = vrot.lane.b32.xlu0 %v4130, 1
        %v4135 = vpop.permute.xlu0 %4134
        %4136 = vrot.lane.b32.xlu0 %v4131, 1
        %v4137 = vpop.permute.xlu0 %4136
        %v4140 = vadd.f32 %v4052, %v4135
        %v4141 = vadd.f32 %v4053, %v4137
        %s4142 = sld [smem:[#allocation3 + $0x17d]]
        %v4143 = vstv %s4142
        %v4144 = vmul.f32 %v4143, %v4022
        %v4145 = vmul.f32 %v4143, %v4023
        %4148 = vrot.lane.b32.xlu0 %v4144, 1
        %v4149 = vpop.permute.xlu0 %4148
        %4150 = vrot.lane.b32.xlu0 %v4145, 1
        %v4151 = vpop.permute.xlu0 %4150
        %v4154 = vadd.f32 %v4058, %v4149
        %v4155 = vadd.f32 %v4059, %v4151
        %s4156 = sld [smem:[#allocation3 + $0x17e]]
        %v4157 = vstv %s4156
        %v4158 = vmul.f32 %v4157, %v4022
        %v4159 = vmul.f32 %v4157, %v4023
        %4162 = vrot.lane.b32.xlu0 %v4158, 1
        %v4163 = vpop.permute.xlu0 %4162
        %4164 = vrot.lane.b32.xlu0 %v4159, 1
        %v4165 = vpop.permute.xlu0 %4164
        %v4168 = vadd.f32 %v4064, %v4163
        %v4169 = vadd.f32 %v4065, %v4165
        %s4170 = sld [smem:[#allocation3 + $0x17f]]
        %v4171 = vstv %s4170
        %v4172 = vmul.f32 %v4171, %v4022
        %v4173 = vmul.f32 %v4171, %v4023
        %4176 = vrot.lane.b32.xlu0 %v4172, 1
        %v4177 = vpop.permute.xlu0 %4176
        %4178 = vrot.lane.b32.xlu0 %v4173, 1
        %v4179 = vpop.permute.xlu0 %4178
        %v4182 = vadd.f32 %v4070, %v4177
        %v4183 = vadd.f32 %v4071, %v4179
        %4186 = vrot.lane.b32.xlu0 %v4084, 31
        %v4187 = vpop.permute.xlu0 %4186
        %4188 = vrot.lane.b32.xlu0 %v4085, 31
        %v4189 = vpop.permute.xlu0 %4188
        %vm4192 = vcmask 392448
        %4193 = vst.msk [vmem:[%s118] sm:$0xff] %vm4192, %v4187
        %4194 = vst.msk [vmem:[%s118 + $0x8] sm:$0xff] %vm4192, %v4189
        %4197 = vrot.lane.b32.xlu0 %v4098, 31
        %v4198 = vpop.permute.xlu0 %4197
        %4199 = vrot.lane.b32.xlu0 %v4099, 31
        %v4200 = vpop.permute.xlu0 %4199
        %4203 = vst.msk [vmem:[%s1442] sm:$0xff] %vm4192, %v4198
        %4204 = vst.msk [vmem:[%s1442 + $0x8] sm:$0xff] %vm4192, %v4200
        %4207 = vrot.lane.b32.xlu0 %v4112, 31
        %v4208 = vpop.permute.xlu0 %4207
        %4209 = vrot.lane.b32.xlu0 %v4113, 31
        %v4210 = vpop.permute.xlu0 %4209
        %4213 = vst.msk [vmem:[%s1453] sm:$0xff] %vm4192, %v4208
        %4214 = vst.msk [vmem:[%s1453 + $0x8] sm:$0xff] %vm4192, %v4210
        %4217 = vrot.lane.b32.xlu0 %v4126, 31
        %v4218 = vpop.permute.xlu0 %4217
        %4219 = vrot.lane.b32.xlu0 %v4127, 31
        %v4220 = vpop.permute.xlu0 %4219
        %4223 = vst.msk [vmem:[%s1464] sm:$0xff] %vm4192, %v4218
        %4224 = vst.msk [vmem:[%s1464 + $0x8] sm:$0xff] %vm4192, %v4220
        %4227 = vrot.lane.b32.xlu0 %v4140, 31
        %v4228 = vpop.permute.xlu0 %4227
        %4229 = vrot.lane.b32.xlu0 %v4141, 31
        %v4230 = vpop.permute.xlu0 %4229
        %4233 = vst.msk [vmem:[%s1475] sm:$0xff] %vm4192, %v4228
        %4234 = vst.msk [vmem:[%s1475 + $0x8] sm:$0xff] %vm4192, %v4230
        %4237 = vrot.lane.b32.xlu0 %v4154, 31
        %v4238 = vpop.permute.xlu0 %4237
        %4239 = vrot.lane.b32.xlu0 %v4155, 31
        %v4240 = vpop.permute.xlu0 %4239
        %4243 = vst.msk [vmem:[%s1486] sm:$0xff] %vm4192, %v4238
        %4244 = vst.msk [vmem:[%s1486 + $0x8] sm:$0xff] %vm4192, %v4240
        %4247 = vrot.lane.b32.xlu0 %v4168, 31
        %v4248 = vpop.permute.xlu0 %4247
        %4249 = vrot.lane.b32.xlu0 %v4169, 31
        %v4250 = vpop.permute.xlu0 %4249
        %4253 = vst.msk [vmem:[%s1497] sm:$0xff] %vm4192, %v4248
        %4254 = vst.msk [vmem:[%s1497 + $0x8] sm:$0xff] %vm4192, %v4250
        %4257 = vrot.lane.b32.xlu0 %v4182, 31
        %v4258 = vpop.permute.xlu0 %4257
        %4259 = vrot.lane.b32.xlu0 %v4183, 31
        %v4260 = vpop.permute.xlu0 %4259
        %4263 = vst.msk [vmem:[%s1508] sm:$0xff] %vm4192, %v4258
        %4264 = vst.msk [vmem:[%s1508 + $0x8] sm:$0xff] %vm4192, %v4260
        %v4265 = vld [vmem:[%s123 + $0x2] sm:$0xff]
        %v4266 = vld [vmem:[%s123 + $0xa] sm:$0xff]
        %s4267 = sld [smem:[#allocation3 + $0x180]]
        %v4268 = vstv %s4267
        %v4269 = vmul.f32 %v4268, %v4265
        %v4270 = vmul.f32 %v4268, %v4266
        %v4271 = vadd.f32 %v4269, 0.0
        %v4272 = vadd.f32 %v4270, 0.0
        %s4273 = sld [smem:[#allocation3 + $0x181]]
        %v4274 = vstv %s4273
        %v4275 = vmul.f32 %v4274, %v4265
        %v4276 = vmul.f32 %v4274, %v4266
        %v4277 = vadd.f32 %v4275, 0.0
        %v4278 = vadd.f32 %v4276, 0.0
        %s4279 = sld [smem:[#allocation3 + $0x182]]
        %v4280 = vstv %s4279
        %v4281 = vmul.f32 %v4280, %v4265
        %v4282 = vmul.f32 %v4280, %v4266
        %v4283 = vadd.f32 %v4281, 0.0
        %v4284 = vadd.f32 %v4282, 0.0
        %s4285 = sld [smem:[#allocation3 + $0x183]]
        %v4286 = vstv %s4285
        %v4287 = vmul.f32 %v4286, %v4265
        %v4288 = vmul.f32 %v4286, %v4266
        %v4289 = vadd.f32 %v4287, 0.0
        %v4290 = vadd.f32 %v4288, 0.0
        %s4291 = sld [smem:[#allocation3 + $0x184]]
        %v4292 = vstv %s4291
        %v4293 = vmul.f32 %v4292, %v4265
        %v4294 = vmul.f32 %v4292, %v4266
        %v4295 = vadd.f32 %v4293, 0.0
        %v4296 = vadd.f32 %v4294, 0.0
        %s4297 = sld [smem:[#allocation3 + $0x185]]
        %v4298 = vstv %s4297
        %v4299 = vmul.f32 %v4298, %v4265
        %v4300 = vmul.f32 %v4298, %v4266
        %v4301 = vadd.f32 %v4299, 0.0
        %v4302 = vadd.f32 %v4300, 0.0
        %s4303 = sld [smem:[#allocation3 + $0x186]]
        %v4304 = vstv %s4303
        %v4305 = vmul.f32 %v4304, %v4265
        %v4306 = vmul.f32 %v4304, %v4266
        %v4307 = vadd.f32 %v4305, 0.0
        %v4308 = vadd.f32 %v4306, 0.0
        %s4309 = sld [smem:[#allocation3 + $0x187]]
        %v4310 = vstv %s4309
        %v4311 = vmul.f32 %v4310, %v4265
        %v4312 = vmul.f32 %v4310, %v4266
        %v4313 = vadd.f32 %v4311, 0.0
        %v4314 = vadd.f32 %v4312, 0.0
        %s4315 = sld [smem:[#allocation3 + $0x1a0]]
        %v4316 = vstv %s4315
        %v4317 = vmul.f32 %v4316, %v4265
        %v4318 = vmul.f32 %v4316, %v4266
        %4321 = vrot.lane.b32.xlu0 %v4317, 1
        %v4322 = vpop.permute.xlu0 %4321
        %4323 = vrot.lane.b32.xlu0 %v4318, 1
        %v4324 = vpop.permute.xlu0 %4323
        %v4327 = vadd.f32 %v4271, %v4322
        %v4328 = vadd.f32 %v4272, %v4324
        %s4329 = sld [smem:[#allocation3 + $0x1a1]]
        %v4330 = vstv %s4329
        %v4331 = vmul.f32 %v4330, %v4265
        %v4332 = vmul.f32 %v4330, %v4266
        %4335 = vrot.lane.b32.xlu0 %v4331, 1
        %v4336 = vpop.permute.xlu0 %4335
        %4337 = vrot.lane.b32.xlu0 %v4332, 1
        %v4338 = vpop.permute.xlu0 %4337
        %v4341 = vadd.f32 %v4277, %v4336
        %v4342 = vadd.f32 %v4278, %v4338
        %s4343 = sld [smem:[#allocation3 + $0x1a2]]
        %v4344 = vstv %s4343
        %v4345 = vmul.f32 %v4344, %v4265
        %v4346 = vmul.f32 %v4344, %v4266
        %4349 = vrot.lane.b32.xlu0 %v4345, 1
        %v4350 = vpop.permute.xlu0 %4349
        %4351 = vrot.lane.b32.xlu0 %v4346, 1
        %v4352 = vpop.permute.xlu0 %4351
        %v4355 = vadd.f32 %v4283, %v4350
        %v4356 = vadd.f32 %v4284, %v4352
        %s4357 = sld [smem:[#allocation3 + $0x1a3]]
        %v4358 = vstv %s4357
        %v4359 = vmul.f32 %v4358, %v4265
        %v4360 = vmul.f32 %v4358, %v4266
        %4363 = vrot.lane.b32.xlu0 %v4359, 1
        %v4364 = vpop.permute.xlu0 %4363
        %4365 = vrot.lane.b32.xlu0 %v4360, 1
        %v4366 = vpop.permute.xlu0 %4365
        %v4369 = vadd.f32 %v4289, %v4364
        %v4370 = vadd.f32 %v4290, %v4366
        %s4371 = sld [smem:[#allocation3 + $0x1a4]]
        %v4372 = vstv %s4371
        %v4373 = vmul.f32 %v4372, %v4265
        %v4374 = vmul.f32 %v4372, %v4266
        %4377 = vrot.lane.b32.xlu0 %v4373, 1
        %v4378 = vpop.permute.xlu0 %4377
        %4379 = vrot.lane.b32.xlu0 %v4374, 1
        %v4380 = vpop.permute.xlu0 %4379
        %v4383 = vadd.f32 %v4295, %v4378
        %v4384 = vadd.f32 %v4296, %v4380
        %s4385 = sld [smem:[#allocation3 + $0x1a5]]
        %v4386 = vstv %s4385
        %v4387 = vmul.f32 %v4386, %v4265
        %v4388 = vmul.f32 %v4386, %v4266
        %4391 = vrot.lane.b32.xlu0 %v4387, 1
        %v4392 = vpop.permute.xlu0 %4391
        %4393 = vrot.lane.b32.xlu0 %v4388, 1
        %v4394 = vpop.permute.xlu0 %4393
        %v4397 = vadd.f32 %v4301, %v4392
        %v4398 = vadd.f32 %v4302, %v4394
        %s4399 = sld [smem:[#allocation3 + $0x1a6]]
        %v4400 = vstv %s4399
        %v4401 = vmul.f32 %v4400, %v4265
        %v4402 = vmul.f32 %v4400, %v4266
        %4405 = vrot.lane.b32.xlu0 %v4401, 1
        %v4406 = vpop.permute.xlu0 %4405
        %4407 = vrot.lane.b32.xlu0 %v4402, 1
        %v4408 = vpop.permute.xlu0 %4407
        %v4411 = vadd.f32 %v4307, %v4406
        %v4412 = vadd.f32 %v4308, %v4408
        %s4413 = sld [smem:[#allocation3 + $0x1a7]]
        %v4414 = vstv %s4413
        %v4415 = vmul.f32 %v4414, %v4265
        %v4416 = vmul.f32 %v4414, %v4266
        %4419 = vrot.lane.b32.xlu0 %v4415, 1
        %v4420 = vpop.permute.xlu0 %4419
        %4421 = vrot.lane.b32.xlu0 %v4416, 1
        %v4422 = vpop.permute.xlu0 %4421
        %v4425 = vadd.f32 %v4313, %v4420
        %v4426 = vadd.f32 %v4314, %v4422
        %v4427 = vld [vmem:[%s123 + $0x1] sm:$0xff]
        %v4428 = vld [vmem:[%s123 + $0x9] sm:$0xff]
        %s4429 = sld [smem:[#allocation3 + $0x1c0]]
        %v4430 = vstv %s4429
        %v4431 = vmul.f32 %v4430, %v4427
        %v4432 = vmul.f32 %v4430, %v4428
        %v4433 = vadd.f32 %v4327, %v4431
        %v4434 = vadd.f32 %v4328, %v4432
        %s4435 = sld [smem:[#allocation3 + $0x1c1]]
        %v4436 = vstv %s4435
        %v4437 = vmul.f32 %v4436, %v4427
        %v4438 = vmul.f32 %v4436, %v4428
        %v4439 = vadd.f32 %v4341, %v4437
        %v4440 = vadd.f32 %v4342, %v4438
        %s4441 = sld [smem:[#allocation3 + $0x1c2]]
        %v4442 = vstv %s4441
        %v4443 = vmul.f32 %v4442, %v4427
        %v4444 = vmul.f32 %v4442, %v4428
        %v4445 = vadd.f32 %v4355, %v4443
        %v4446 = vadd.f32 %v4356, %v4444
        %s4447 = sld [smem:[#allocation3 + $0x1c3]]
        %v4448 = vstv %s4447
        %v4449 = vmul.f32 %v4448, %v4427
        %v4450 = vmul.f32 %v4448, %v4428
        %v4451 = vadd.f32 %v4369, %v4449
        %v4452 = vadd.f32 %v4370, %v4450
        %s4453 = sld [smem:[#allocation3 + $0x1c4]]
        %v4454 = vstv %s4453
        %v4455 = vmul.f32 %v4454, %v4427
        %v4456 = vmul.f32 %v4454, %v4428
        %v4457 = vadd.f32 %v4383, %v4455
        %v4458 = vadd.f32 %v4384, %v4456
        %s4459 = sld [smem:[#allocation3 + $0x1c5]]
        %v4460 = vstv %s4459
        %v4461 = vmul.f32 %v4460, %v4427
        %v4462 = vmul.f32 %v4460, %v4428
        %v4463 = vadd.f32 %v4397, %v4461
        %v4464 = vadd.f32 %v4398, %v4462
        %s4465 = sld [smem:[#allocation3 + $0x1c6]]
        %v4466 = vstv %s4465
        %v4467 = vmul.f32 %v4466, %v4427
        %v4468 = vmul.f32 %v4466, %v4428
        %v4469 = vadd.f32 %v4411, %v4467
        %v4470 = vadd.f32 %v4412, %v4468
        %s4471 = sld [smem:[#allocation3 + $0x1c7]]
        %v4472 = vstv %s4471
        %v4473 = vmul.f32 %v4472, %v4427
        %v4474 = vmul.f32 %v4472, %v4428
        %v4475 = vadd.f32 %v4425, %v4473
        %v4476 = vadd.f32 %v4426, %v4474
        %s4477 = sld [smem:[#allocation3 + $0x1e0]]
        %v4478 = vstv %s4477
        %v4479 = vmul.f32 %v4478, %v4427
        %v4480 = vmul.f32 %v4478, %v4428
        %4483 = vrot.lane.b32.xlu0 %v4479, 1
        %v4484 = vpop.permute.xlu0 %4483
        %4485 = vrot.lane.b32.xlu0 %v4480, 1
        %v4486 = vpop.permute.xlu0 %4485
        %v4489 = vadd.f32 %v4433, %v4484
        %v4490 = vadd.f32 %v4434, %v4486
        %s4491 = sld [smem:[#allocation3 + $0x1e1]]
        %v4492 = vstv %s4491
        %v4493 = vmul.f32 %v4492, %v4427
        %v4494 = vmul.f32 %v4492, %v4428
        %4497 = vrot.lane.b32.xlu0 %v4493, 1
        %v4498 = vpop.permute.xlu0 %4497
        %4499 = vrot.lane.b32.xlu0 %v4494, 1
        %v4500 = vpop.permute.xlu0 %4499
        %v4503 = vadd.f32 %v4439, %v4498
        %v4504 = vadd.f32 %v4440, %v4500
        %s4505 = sld [smem:[#allocation3 + $0x1e2]]
        %v4506 = vstv %s4505
        %v4507 = vmul.f32 %v4506, %v4427
        %v4508 = vmul.f32 %v4506, %v4428
        %4511 = vrot.lane.b32.xlu0 %v4507, 1
        %v4512 = vpop.permute.xlu0 %4511
        %4513 = vrot.lane.b32.xlu0 %v4508, 1
        %v4514 = vpop.permute.xlu0 %4513
        %v4517 = vadd.f32 %v4445, %v4512
        %v4518 = vadd.f32 %v4446, %v4514
        %s4519 = sld [smem:[#allocation3 + $0x1e3]]
        %v4520 = vstv %s4519
        %v4521 = vmul.f32 %v4520, %v4427
        %v4522 = vmul.f32 %v4520, %v4428
        %4525 = vrot.lane.b32.xlu0 %v4521, 1
        %v4526 = vpop.permute.xlu0 %4525
        %4527 = vrot.lane.b32.xlu0 %v4522, 1
        %v4528 = vpop.permute.xlu0 %4527
        %v4531 = vadd.f32 %v4451, %v4526
        %v4532 = vadd.f32 %v4452, %v4528
        %s4533 = sld [smem:[#allocation3 + $0x1e4]]
        %v4534 = vstv %s4533
        %v4535 = vmul.f32 %v4534, %v4427
        %v4536 = vmul.f32 %v4534, %v4428
        %4539 = vrot.lane.b32.xlu0 %v4535, 1
        %v4540 = vpop.permute.xlu0 %4539
        %4541 = vrot.lane.b32.xlu0 %v4536, 1
        %v4542 = vpop.permute.xlu0 %4541
        %v4545 = vadd.f32 %v4457, %v4540
        %v4546 = vadd.f32 %v4458, %v4542
        %s4547 = sld [smem:[#allocation3 + $0x1e5]]
        %v4548 = vstv %s4547
        %v4549 = vmul.f32 %v4548, %v4427
        %v4550 = vmul.f32 %v4548, %v4428
        %4553 = vrot.lane.b32.xlu0 %v4549, 1
        %v4554 = vpop.permute.xlu0 %4553
        %4555 = vrot.lane.b32.xlu0 %v4550, 1
        %v4556 = vpop.permute.xlu0 %4555
        %v4559 = vadd.f32 %v4463, %v4554
        %v4560 = vadd.f32 %v4464, %v4556
        %s4561 = sld [smem:[#allocation3 + $0x1e6]]
        %v4562 = vstv %s4561
        %v4563 = vmul.f32 %v4562, %v4427
        %v4564 = vmul.f32 %v4562, %v4428
        %4567 = vrot.lane.b32.xlu0 %v4563, 1
        %v4568 = vpop.permute.xlu0 %4567
        %4569 = vrot.lane.b32.xlu0 %v4564, 1
        %v4570 = vpop.permute.xlu0 %4569
        %v4573 = vadd.f32 %v4469, %v4568
        %v4574 = vadd.f32 %v4470, %v4570
        %s4575 = sld [smem:[#allocation3 + $0x1e7]]
        %v4576 = vstv %s4575
        %v4577 = vmul.f32 %v4576, %v4427
        %v4578 = vmul.f32 %v4576, %v4428
        %4581 = vrot.lane.b32.xlu0 %v4577, 1
        %v4582 = vpop.permute.xlu0 %4581
        %4583 = vrot.lane.b32.xlu0 %v4578, 1
        %v4584 = vpop.permute.xlu0 %4583
        %v4587 = vadd.f32 %v4475, %v4582
        %v4588 = vadd.f32 %v4476, %v4584
        %v4589 = vld [vmem:[%s448 + $0x2] sm:$0xff]
        %v4590 = vld [vmem:[%s448 + $0xa] sm:$0xff]
        %s4591 = sld [smem:[#allocation3 + $0x188]]
        %v4592 = vstv %s4591
        %v4593 = vmul.f32 %v4592, %v4589
        %v4594 = vmul.f32 %v4592, %v4590
        %v4595 = vadd.f32 %v4489, %v4593
        %v4596 = vadd.f32 %v4490, %v4594
        %s4597 = sld [smem:[#allocation3 + $0x189]]
        %v4598 = vstv %s4597
        %v4599 = vmul.f32 %v4598, %v4589
        %v4600 = vmul.f32 %v4598, %v4590
        %v4601 = vadd.f32 %v4503, %v4599
        %v4602 = vadd.f32 %v4504, %v4600
        %s4603 = sld [smem:[#allocation3 + $0x18a]]
        %v4604 = vstv %s4603
        %v4605 = vmul.f32 %v4604, %v4589
        %v4606 = vmul.f32 %v4604, %v4590
        %v4607 = vadd.f32 %v4517, %v4605
        %v4608 = vadd.f32 %v4518, %v4606
        %s4609 = sld [smem:[#allocation3 + $0x18b]]
        %v4610 = vstv %s4609
        %v4611 = vmul.f32 %v4610, %v4589
        %v4612 = vmul.f32 %v4610, %v4590
        %v4613 = vadd.f32 %v4531, %v4611
        %v4614 = vadd.f32 %v4532, %v4612
        %s4615 = sld [smem:[#allocation3 + $0x18c]]
        %v4616 = vstv %s4615
        %v4617 = vmul.f32 %v4616, %v4589
        %v4618 = vmul.f32 %v4616, %v4590
        %v4619 = vadd.f32 %v4545, %v4617
        %v4620 = vadd.f32 %v4546, %v4618
        %s4621 = sld [smem:[#allocation3 + $0x18d]]
        %v4622 = vstv %s4621
        %v4623 = vmul.f32 %v4622, %v4589
        %v4624 = vmul.f32 %v4622, %v4590
        %v4625 = vadd.f32 %v4559, %v4623
        %v4626 = vadd.f32 %v4560, %v4624
        %s4627 = sld [smem:[#allocation3 + $0x18e]]
        %v4628 = vstv %s4627
        %v4629 = vmul.f32 %v4628, %v4589
        %v4630 = vmul.f32 %v4628, %v4590
        %v4631 = vadd.f32 %v4573, %v4629
        %v4632 = vadd.f32 %v4574, %v4630
        %s4633 = sld [smem:[#allocation3 + $0x18f]]
        %v4634 = vstv %s4633
        %v4635 = vmul.f32 %v4634, %v4589
        %v4636 = vmul.f32 %v4634, %v4590
        %v4637 = vadd.f32 %v4587, %v4635
        %v4638 = vadd.f32 %v4588, %v4636
        %s4639 = sld [smem:[#allocation3 + $0x1a8]]
        %v4640 = vstv %s4639
        %v4641 = vmul.f32 %v4640, %v4589
        %v4642 = vmul.f32 %v4640, %v4590
        %4645 = vrot.lane.b32.xlu0 %v4641, 1
        %v4646 = vpop.permute.xlu0 %4645
        %4647 = vrot.lane.b32.xlu0 %v4642, 1
        %v4648 = vpop.permute.xlu0 %4647
        %v4651 = vadd.f32 %v4595, %v4646
        %v4652 = vadd.f32 %v4596, %v4648
        %s4653 = sld [smem:[#allocation3 + $0x1a9]]
        %v4654 = vstv %s4653
        %v4655 = vmul.f32 %v4654, %v4589
        %v4656 = vmul.f32 %v4654, %v4590
        %4659 = vrot.lane.b32.xlu0 %v4655, 1
        %v4660 = vpop.permute.xlu0 %4659
        %4661 = vrot.lane.b32.xlu0 %v4656, 1
        %v4662 = vpop.permute.xlu0 %4661
        %v4665 = vadd.f32 %v4601, %v4660
        %v4666 = vadd.f32 %v4602, %v4662
        %s4667 = sld [smem:[#allocation3 + $0x1aa]]
        %v4668 = vstv %s4667
        %v4669 = vmul.f32 %v4668, %v4589
        %v4670 = vmul.f32 %v4668, %v4590
        %4673 = vrot.lane.b32.xlu0 %v4669, 1
        %v4674 = vpop.permute.xlu0 %4673
        %4675 = vrot.lane.b32.xlu0 %v4670, 1
        %v4676 = vpop.permute.xlu0 %4675
        %v4679 = vadd.f32 %v4607, %v4674
        %v4680 = vadd.f32 %v4608, %v4676
        %s4681 = sld [smem:[#allocation3 + $0x1ab]]
        %v4682 = vstv %s4681
        %v4683 = vmul.f32 %v4682, %v4589
        %v4684 = vmul.f32 %v4682, %v4590
        %4687 = vrot.lane.b32.xlu0 %v4683, 1
        %v4688 = vpop.permute.xlu0 %4687
        %4689 = vrot.lane.b32.xlu0 %v4684, 1
        %v4690 = vpop.permute.xlu0 %4689
        %v4693 = vadd.f32 %v4613, %v4688
        %v4694 = vadd.f32 %v4614, %v4690
        %s4695 = sld [smem:[#allocation3 + $0x1ac]]
        %v4696 = vstv %s4695
        %v4697 = vmul.f32 %v4696, %v4589
        %v4698 = vmul.f32 %v4696, %v4590
        %4701 = vrot.lane.b32.xlu0 %v4697, 1
        %v4702 = vpop.permute.xlu0 %4701
        %4703 = vrot.lane.b32.xlu0 %v4698, 1
        %v4704 = vpop.permute.xlu0 %4703
        %v4707 = vadd.f32 %v4619, %v4702
        %v4708 = vadd.f32 %v4620, %v4704
        %s4709 = sld [smem:[#allocation3 + $0x1ad]]
        %v4710 = vstv %s4709
        %v4711 = vmul.f32 %v4710, %v4589
        %v4712 = vmul.f32 %v4710, %v4590
        %4715 = vrot.lane.b32.xlu0 %v4711, 1
        %v4716 = vpop.permute.xlu0 %4715
        %4717 = vrot.lane.b32.xlu0 %v4712, 1
        %v4718 = vpop.permute.xlu0 %4717
        %v4721 = vadd.f32 %v4625, %v4716
        %v4722 = vadd.f32 %v4626, %v4718
        %s4723 = sld [smem:[#allocation3 + $0x1ae]]
        %v4724 = vstv %s4723
        %v4725 = vmul.f32 %v4724, %v4589
        %v4726 = vmul.f32 %v4724, %v4590
        %4729 = vrot.lane.b32.xlu0 %v4725, 1
        %v4730 = vpop.permute.xlu0 %4729
        %4731 = vrot.lane.b32.xlu0 %v4726, 1
        %v4732 = vpop.permute.xlu0 %4731
        %v4735 = vadd.f32 %v4631, %v4730
        %v4736 = vadd.f32 %v4632, %v4732
        %s4737 = sld [smem:[#allocation3 + $0x1af]]
        %v4738 = vstv %s4737
        %v4739 = vmul.f32 %v4738, %v4589
        %v4740 = vmul.f32 %v4738, %v4590
        %4743 = vrot.lane.b32.xlu0 %v4739, 1
        %v4744 = vpop.permute.xlu0 %4743
        %4745 = vrot.lane.b32.xlu0 %v4740, 1
        %v4746 = vpop.permute.xlu0 %4745
        %v4749 = vadd.f32 %v4637, %v4744
        %v4750 = vadd.f32 %v4638, %v4746
        %v4751 = vld [vmem:[%s448 + $0x1] sm:$0xff]
        %v4752 = vld [vmem:[%s448 + $0x9] sm:$0xff]
        %s4753 = sld [smem:[#allocation3 + $0x1c8]]
        %v4754 = vstv %s4753
        %v4755 = vmul.f32 %v4754, %v4751
        %v4756 = vmul.f32 %v4754, %v4752
        %v4757 = vadd.f32 %v4651, %v4755
        %v4758 = vadd.f32 %v4652, %v4756
        %s4759 = sld [smem:[#allocation3 + $0x1c9]]
        %v4760 = vstv %s4759
        %v4761 = vmul.f32 %v4760, %v4751
        %v4762 = vmul.f32 %v4760, %v4752
        %v4763 = vadd.f32 %v4665, %v4761
        %v4764 = vadd.f32 %v4666, %v4762
        %s4765 = sld [smem:[#allocation3 + $0x1ca]]
        %v4766 = vstv %s4765
        %v4767 = vmul.f32 %v4766, %v4751
        %v4768 = vmul.f32 %v4766, %v4752
        %v4769 = vadd.f32 %v4679, %v4767
        %v4770 = vadd.f32 %v4680, %v4768
        %s4771 = sld [smem:[#allocation3 + $0x1cb]]
        %v4772 = vstv %s4771
        %v4773 = vmul.f32 %v4772, %v4751
        %v4774 = vmul.f32 %v4772, %v4752
        %v4775 = vadd.f32 %v4693, %v4773
        %v4776 = vadd.f32 %v4694, %v4774
        %s4777 = sld [smem:[#allocation3 + $0x1cc]]
        %v4778 = vstv %s4777
        %v4779 = vmul.f32 %v4778, %v4751
        %v4780 = vmul.f32 %v4778, %v4752
        %v4781 = vadd.f32 %v4707, %v4779
        %v4782 = vadd.f32 %v4708, %v4780
        %s4783 = sld [smem:[#allocation3 + $0x1cd]]
        %v4784 = vstv %s4783
        %v4785 = vmul.f32 %v4784, %v4751
        %v4786 = vmul.f32 %v4784, %v4752
        %v4787 = vadd.f32 %v4721, %v4785
        %v4788 = vadd.f32 %v4722, %v4786
        %s4789 = sld [smem:[#allocation3 + $0x1ce]]
        %v4790 = vstv %s4789
        %v4791 = vmul.f32 %v4790, %v4751
        %v4792 = vmul.f32 %v4790, %v4752
        %v4793 = vadd.f32 %v4735, %v4791
        %v4794 = vadd.f32 %v4736, %v4792
        %s4795 = sld [smem:[#allocation3 + $0x1cf]]
        %v4796 = vstv %s4795
        %v4797 = vmul.f32 %v4796, %v4751
        %v4798 = vmul.f32 %v4796, %v4752
        %v4799 = vadd.f32 %v4749, %v4797
        %v4800 = vadd.f32 %v4750, %v4798
        %s4801 = sld [smem:[#allocation3 + $0x1e8]]
        %v4802 = vstv %s4801
        %v4803 = vmul.f32 %v4802, %v4751
        %v4804 = vmul.f32 %v4802, %v4752
        %4807 = vrot.lane.b32.xlu0 %v4803, 1
        %v4808 = vpop.permute.xlu0 %4807
        %4809 = vrot.lane.b32.xlu0 %v4804, 1
        %v4810 = vpop.permute.xlu0 %4809
        %v4813 = vadd.f32 %v4757, %v4808
        %v4814 = vadd.f32 %v4758, %v4810
        %s4815 = sld [smem:[#allocation3 + $0x1e9]]
        %v4816 = vstv %s4815
        %v4817 = vmul.f32 %v4816, %v4751
        %v4818 = vmul.f32 %v4816, %v4752
        %4821 = vrot.lane.b32.xlu0 %v4817, 1
        %v4822 = vpop.permute.xlu0 %4821
        %4823 = vrot.lane.b32.xlu0 %v4818, 1
        %v4824 = vpop.permute.xlu0 %4823
        %v4827 = vadd.f32 %v4763, %v4822
        %v4828 = vadd.f32 %v4764, %v4824
        %s4829 = sld [smem:[#allocation3 + $0x1ea]]
        %v4830 = vstv %s4829
        %v4831 = vmul.f32 %v4830, %v4751
        %v4832 = vmul.f32 %v4830, %v4752
        %4835 = vrot.lane.b32.xlu0 %v4831, 1
        %v4836 = vpop.permute.xlu0 %4835
        %4837 = vrot.lane.b32.xlu0 %v4832, 1
        %v4838 = vpop.permute.xlu0 %4837
        %v4841 = vadd.f32 %v4769, %v4836
        %v4842 = vadd.f32 %v4770, %v4838
        %s4843 = sld [smem:[#allocation3 + $0x1eb]]
        %v4844 = vstv %s4843
        %v4845 = vmul.f32 %v4844, %v4751
        %v4846 = vmul.f32 %v4844, %v4752
        %4849 = vrot.lane.b32.xlu0 %v4845, 1
        %v4850 = vpop.permute.xlu0 %4849
        %4851 = vrot.lane.b32.xlu0 %v4846, 1
        %v4852 = vpop.permute.xlu0 %4851
        %v4855 = vadd.f32 %v4775, %v4850
        %v4856 = vadd.f32 %v4776, %v4852
        %s4857 = sld [smem:[#allocation3 + $0x1ec]]
        %v4858 = vstv %s4857
        %v4859 = vmul.f32 %v4858, %v4751
        %v4860 = vmul.f32 %v4858, %v4752
        %4863 = vrot.lane.b32.xlu0 %v4859, 1
        %v4864 = vpop.permute.xlu0 %4863
        %4865 = vrot.lane.b32.xlu0 %v4860, 1
        %v4866 = vpop.permute.xlu0 %4865
        %v4869 = vadd.f32 %v4781, %v4864
        %v4870 = vadd.f32 %v4782, %v4866
        %s4871 = sld [smem:[#allocation3 + $0x1ed]]
        %v4872 = vstv %s4871
        %v4873 = vmul.f32 %v4872, %v4751
        %v4874 = vmul.f32 %v4872, %v4752
        %4877 = vrot.lane.b32.xlu0 %v4873, 1
        %v4878 = vpop.permute.xlu0 %4877
        %4879 = vrot.lane.b32.xlu0 %v4874, 1
        %v4880 = vpop.permute.xlu0 %4879
        %v4883 = vadd.f32 %v4787, %v4878
        %v4884 = vadd.f32 %v4788, %v4880
        %s4885 = sld [smem:[#allocation3 + $0x1ee]]
        %v4886 = vstv %s4885
        %v4887 = vmul.f32 %v4886, %v4751
        %v4888 = vmul.f32 %v4886, %v4752
        %4891 = vrot.lane.b32.xlu0 %v4887, 1
        %v4892 = vpop.permute.xlu0 %4891
        %4893 = vrot.lane.b32.xlu0 %v4888, 1
        %v4894 = vpop.permute.xlu0 %4893
        %v4897 = vadd.f32 %v4793, %v4892
        %v4898 = vadd.f32 %v4794, %v4894
        %s4899 = sld [smem:[#allocation3 + $0x1ef]]
        %v4900 = vstv %s4899
        %v4901 = vmul.f32 %v4900, %v4751
        %v4902 = vmul.f32 %v4900, %v4752
        %4905 = vrot.lane.b32.xlu0 %v4901, 1
        %v4906 = vpop.permute.xlu0 %4905
        %4907 = vrot.lane.b32.xlu0 %v4902, 1
        %v4908 = vpop.permute.xlu0 %4907
        %v4911 = vadd.f32 %v4799, %v4906
        %v4912 = vadd.f32 %v4800, %v4908
        %v4913 = vld [vmem:[%s773 + $0x2] sm:$0xff]
        %v4914 = vld [vmem:[%s773 + $0xa] sm:$0xff]
        %s4915 = sld [smem:[#allocation3 + $0x190]]
        %v4916 = vstv %s4915
        %v4917 = vmul.f32 %v4916, %v4913
        %v4918 = vmul.f32 %v4916, %v4914
        %v4919 = vadd.f32 %v4813, %v4917
        %v4920 = vadd.f32 %v4814, %v4918
        %s4921 = sld [smem:[#allocation3 + $0x191]]
        %v4922 = vstv %s4921
        %v4923 = vmul.f32 %v4922, %v4913
        %v4924 = vmul.f32 %v4922, %v4914
        %v4925 = vadd.f32 %v4827, %v4923
        %v4926 = vadd.f32 %v4828, %v4924
        %s4927 = sld [smem:[#allocation3 + $0x192]]
        %v4928 = vstv %s4927
        %v4929 = vmul.f32 %v4928, %v4913
        %v4930 = vmul.f32 %v4928, %v4914
        %v4931 = vadd.f32 %v4841, %v4929
        %v4932 = vadd.f32 %v4842, %v4930
        %s4933 = sld [smem:[#allocation3 + $0x193]]
        %v4934 = vstv %s4933
        %v4935 = vmul.f32 %v4934, %v4913
        %v4936 = vmul.f32 %v4934, %v4914
        %v4937 = vadd.f32 %v4855, %v4935
        %v4938 = vadd.f32 %v4856, %v4936
        %s4939 = sld [smem:[#allocation3 + $0x194]]
        %v4940 = vstv %s4939
        %v4941 = vmul.f32 %v4940, %v4913
        %v4942 = vmul.f32 %v4940, %v4914
        %v4943 = vadd.f32 %v4869, %v4941
        %v4944 = vadd.f32 %v4870, %v4942
        %s4945 = sld [smem:[#allocation3 + $0x195]]
        %v4946 = vstv %s4945
        %v4947 = vmul.f32 %v4946, %v4913
        %v4948 = vmul.f32 %v4946, %v4914
        %v4949 = vadd.f32 %v4883, %v4947
        %v4950 = vadd.f32 %v4884, %v4948
        %s4951 = sld [smem:[#allocation3 + $0x196]]
        %v4952 = vstv %s4951
        %v4953 = vmul.f32 %v4952, %v4913
        %v4954 = vmul.f32 %v4952, %v4914
        %v4955 = vadd.f32 %v4897, %v4953
        %v4956 = vadd.f32 %v4898, %v4954
        %s4957 = sld [smem:[#allocation3 + $0x197]]
        %v4958 = vstv %s4957
        %v4959 = vmul.f32 %v4958, %v4913
        %v4960 = vmul.f32 %v4958, %v4914
        %v4961 = vadd.f32 %v4911, %v4959
        %v4962 = vadd.f32 %v4912, %v4960
        %s4963 = sld [smem:[#allocation3 + $0x1b0]]
        %v4964 = vstv %s4963
        %v4965 = vmul.f32 %v4964, %v4913
        %v4966 = vmul.f32 %v4964, %v4914
        %4969 = vrot.lane.b32.xlu0 %v4965, 1
        %v4970 = vpop.permute.xlu0 %4969
        %4971 = vrot.lane.b32.xlu0 %v4966, 1
        %v4972 = vpop.permute.xlu0 %4971
        %v4975 = vadd.f32 %v4919, %v4970
        %v4976 = vadd.f32 %v4920, %v4972
        %s4977 = sld [smem:[#allocation3 + $0x1b1]]
        %v4978 = vstv %s4977
        %v4979 = vmul.f32 %v4978, %v4913
        %v4980 = vmul.f32 %v4978, %v4914
        %4983 = vrot.lane.b32.xlu0 %v4979, 1
        %v4984 = vpop.permute.xlu0 %4983
        %4985 = vrot.lane.b32.xlu0 %v4980, 1
        %v4986 = vpop.permute.xlu0 %4985
        %v4989 = vadd.f32 %v4925, %v4984
        %v4990 = vadd.f32 %v4926, %v4986
        %s4991 = sld [smem:[#allocation3 + $0x1b2]]
        %v4992 = vstv %s4991
        %v4993 = vmul.f32 %v4992, %v4913
        %v4994 = vmul.f32 %v4992, %v4914
        %4997 = vrot.lane.b32.xlu0 %v4993, 1
        %v4998 = vpop.permute.xlu0 %4997
        %4999 = vrot.lane.b32.xlu0 %v4994, 1
        %v5000 = vpop.permute.xlu0 %4999
        %v5003 = vadd.f32 %v4931, %v4998
        %v5004 = vadd.f32 %v4932, %v5000
        %s5005 = sld [smem:[#allocation3 + $0x1b3]]
        %v5006 = vstv %s5005
        %v5007 = vmul.f32 %v5006, %v4913
        %v5008 = vmul.f32 %v5006, %v4914
        %5011 = vrot.lane.b32.xlu0 %v5007, 1
        %v5012 = vpop.permute.xlu0 %5011
        %5013 = vrot.lane.b32.xlu0 %v5008, 1
        %v5014 = vpop.permute.xlu0 %5013
        %v5017 = vadd.f32 %v4937, %v5012
        %v5018 = vadd.f32 %v4938, %v5014
        %s5019 = sld [smem:[#allocation3 + $0x1b4]]
        %v5020 = vstv %s5019
        %v5021 = vmul.f32 %v5020, %v4913
        %v5022 = vmul.f32 %v5020, %v4914
        %5025 = vrot.lane.b32.xlu0 %v5021, 1
        %v5026 = vpop.permute.xlu0 %5025
        %5027 = vrot.lane.b32.xlu0 %v5022, 1
        %v5028 = vpop.permute.xlu0 %5027
        %v5031 = vadd.f32 %v4943, %v5026
        %v5032 = vadd.f32 %v4944, %v5028
        %s5033 = sld [smem:[#allocation3 + $0x1b5]]
        %v5034 = vstv %s5033
        %v5035 = vmul.f32 %v5034, %v4913
        %v5036 = vmul.f32 %v5034, %v4914
        %5039 = vrot.lane.b32.xlu0 %v5035, 1
        %v5040 = vpop.permute.xlu0 %5039
        %5041 = vrot.lane.b32.xlu0 %v5036, 1
        %v5042 = vpop.permute.xlu0 %5041
        %v5045 = vadd.f32 %v4949, %v5040
        %v5046 = vadd.f32 %v4950, %v5042
        %s5047 = sld [smem:[#allocation3 + $0x1b6]]
        %v5048 = vstv %s5047
        %v5049 = vmul.f32 %v5048, %v4913
        %v5050 = vmul.f32 %v5048, %v4914
        %5053 = vrot.lane.b32.xlu0 %v5049, 1
        %v5054 = vpop.permute.xlu0 %5053
        %5055 = vrot.lane.b32.xlu0 %v5050, 1
        %v5056 = vpop.permute.xlu0 %5055
        %v5059 = vadd.f32 %v4955, %v5054
        %v5060 = vadd.f32 %v4956, %v5056
        %s5061 = sld [smem:[#allocation3 + $0x1b7]]
        %v5062 = vstv %s5061
        %v5063 = vmul.f32 %v5062, %v4913
        %v5064 = vmul.f32 %v5062, %v4914
        %5067 = vrot.lane.b32.xlu0 %v5063, 1
        %v5068 = vpop.permute.xlu0 %5067
        %5069 = vrot.lane.b32.xlu0 %v5064, 1
        %v5070 = vpop.permute.xlu0 %5069
        %v5073 = vadd.f32 %v4961, %v5068
        %v5074 = vadd.f32 %v4962, %v5070
        %v5075 = vld [vmem:[%s773 + $0x1] sm:$0xff]
        %v5076 = vld [vmem:[%s773 + $0x9] sm:$0xff]
        %s5077 = sld [smem:[#allocation3 + $0x1d0]]
        %v5078 = vstv %s5077
        %v5079 = vmul.f32 %v5078, %v5075
        %v5080 = vmul.f32 %v5078, %v5076
        %v5081 = vadd.f32 %v4975, %v5079
        %v5082 = vadd.f32 %v4976, %v5080
        %s5083 = sld [smem:[#allocation3 + $0x1d1]]
        %v5084 = vstv %s5083
        %v5085 = vmul.f32 %v5084, %v5075
        %v5086 = vmul.f32 %v5084, %v5076
        %v5087 = vadd.f32 %v4989, %v5085
        %v5088 = vadd.f32 %v4990, %v5086
        %s5089 = sld [smem:[#allocation3 + $0x1d2]]
        %v5090 = vstv %s5089
        %v5091 = vmul.f32 %v5090, %v5075
        %v5092 = vmul.f32 %v5090, %v5076
        %v5093 = vadd.f32 %v5003, %v5091
        %v5094 = vadd.f32 %v5004, %v5092
        %s5095 = sld [smem:[#allocation3 + $0x1d3]]
        %v5096 = vstv %s5095
        %v5097 = vmul.f32 %v5096, %v5075
        %v5098 = vmul.f32 %v5096, %v5076
        %v5099 = vadd.f32 %v5017, %v5097
        %v5100 = vadd.f32 %v5018, %v5098
        %s5101 = sld [smem:[#allocation3 + $0x1d4]]
        %v5102 = vstv %s5101
        %v5103 = vmul.f32 %v5102, %v5075
        %v5104 = vmul.f32 %v5102, %v5076
        %v5105 = vadd.f32 %v5031, %v5103
        %v5106 = vadd.f32 %v5032, %v5104
        %s5107 = sld [smem:[#allocation3 + $0x1d5]]
        %v5108 = vstv %s5107
        %v5109 = vmul.f32 %v5108, %v5075
        %v5110 = vmul.f32 %v5108, %v5076
        %v5111 = vadd.f32 %v5045, %v5109
        %v5112 = vadd.f32 %v5046, %v5110
        %s5113 = sld [smem:[#allocation3 + $0x1d6]]
        %v5114 = vstv %s5113
        %v5115 = vmul.f32 %v5114, %v5075
        %v5116 = vmul.f32 %v5114, %v5076
        %v5117 = vadd.f32 %v5059, %v5115
        %v5118 = vadd.f32 %v5060, %v5116
        %s5119 = sld [smem:[#allocation3 + $0x1d7]]
        %v5120 = vstv %s5119
        %v5121 = vmul.f32 %v5120, %v5075
        %v5122 = vmul.f32 %v5120, %v5076
        %v5123 = vadd.f32 %v5073, %v5121
        %v5124 = vadd.f32 %v5074, %v5122
        %s5125 = sld [smem:[#allocation3 + $0x1f0]]
        %v5126 = vstv %s5125
        %v5127 = vmul.f32 %v5126, %v5075
        %v5128 = vmul.f32 %v5126, %v5076
        %5131 = vrot.lane.b32.xlu0 %v5127, 1
        %v5132 = vpop.permute.xlu0 %5131
        %5133 = vrot.lane.b32.xlu0 %v5128, 1
        %v5134 = vpop.permute.xlu0 %5133
        %v5137 = vadd.f32 %v5081, %v5132
        %v5138 = vadd.f32 %v5082, %v5134
        %s5139 = sld [smem:[#allocation3 + $0x1f1]]
        %v5140 = vstv %s5139
        %v5141 = vmul.f32 %v5140, %v5075
        %v5142 = vmul.f32 %v5140, %v5076
        %5145 = vrot.lane.b32.xlu0 %v5141, 1
        %v5146 = vpop.permute.xlu0 %5145
        %5147 = vrot.lane.b32.xlu0 %v5142, 1
        %v5148 = vpop.permute.xlu0 %5147
        %v5151 = vadd.f32 %v5087, %v5146
        %v5152 = vadd.f32 %v5088, %v5148
        %s5153 = sld [smem:[#allocation3 + $0x1f2]]
        %v5154 = vstv %s5153
        %v5155 = vmul.f32 %v5154, %v5075
        %v5156 = vmul.f32 %v5154, %v5076
        %5159 = vrot.lane.b32.xlu0 %v5155, 1
        %v5160 = vpop.permute.xlu0 %5159
        %5161 = vrot.lane.b32.xlu0 %v5156, 1
        %v5162 = vpop.permute.xlu0 %5161
        %v5165 = vadd.f32 %v5093, %v5160
        %v5166 = vadd.f32 %v5094, %v5162
        %s5167 = sld [smem:[#allocation3 + $0x1f3]]
        %v5168 = vstv %s5167
        %v5169 = vmul.f32 %v5168, %v5075
        %v5170 = vmul.f32 %v5168, %v5076
        %5173 = vrot.lane.b32.xlu0 %v5169, 1
        %v5174 = vpop.permute.xlu0 %5173
        %5175 = vrot.lane.b32.xlu0 %v5170, 1
        %v5176 = vpop.permute.xlu0 %5175
        %v5179 = vadd.f32 %v5099, %v5174
        %v5180 = vadd.f32 %v5100, %v5176
        %s5181 = sld [smem:[#allocation3 + $0x1f4]]
        %v5182 = vstv %s5181
        %v5183 = vmul.f32 %v5182, %v5075
        %v5184 = vmul.f32 %v5182, %v5076
        %5187 = vrot.lane.b32.xlu0 %v5183, 1
        %v5188 = vpop.permute.xlu0 %5187
        %5189 = vrot.lane.b32.xlu0 %v5184, 1
        %v5190 = vpop.permute.xlu0 %5189
        %v5193 = vadd.f32 %v5105, %v5188
        %v5194 = vadd.f32 %v5106, %v5190
        %s5195 = sld [smem:[#allocation3 + $0x1f5]]
        %v5196 = vstv %s5195
        %v5197 = vmul.f32 %v5196, %v5075
        %v5198 = vmul.f32 %v5196, %v5076
        %5201 = vrot.lane.b32.xlu0 %v5197, 1
        %v5202 = vpop.permute.xlu0 %5201
        %5203 = vrot.lane.b32.xlu0 %v5198, 1
        %v5204 = vpop.permute.xlu0 %5203
        %v5207 = vadd.f32 %v5111, %v5202
        %v5208 = vadd.f32 %v5112, %v5204
        %s5209 = sld [smem:[#allocation3 + $0x1f6]]
        %v5210 = vstv %s5209
        %v5211 = vmul.f32 %v5210, %v5075
        %v5212 = vmul.f32 %v5210, %v5076
        %5215 = vrot.lane.b32.xlu0 %v5211, 1
        %v5216 = vpop.permute.xlu0 %5215
        %5217 = vrot.lane.b32.xlu0 %v5212, 1
        %v5218 = vpop.permute.xlu0 %5217
        %v5221 = vadd.f32 %v5117, %v5216
        %v5222 = vadd.f32 %v5118, %v5218
        %s5223 = sld [smem:[#allocation3 + $0x1f7]]
        %v5224 = vstv %s5223
        %v5225 = vmul.f32 %v5224, %v5075
        %v5226 = vmul.f32 %v5224, %v5076
        %5229 = vrot.lane.b32.xlu0 %v5225, 1
        %v5230 = vpop.permute.xlu0 %5229
        %5231 = vrot.lane.b32.xlu0 %v5226, 1
        %v5232 = vpop.permute.xlu0 %5231
        %v5235 = vadd.f32 %v5123, %v5230
        %v5236 = vadd.f32 %v5124, %v5232
        %v5237 = vld [vmem:[%s1098 + $0x2] sm:$0xff]
        %v5238 = vld [vmem:[%s1098 + $0xa] sm:$0xff]
        %s5239 = sld [smem:[#allocation3 + $0x198]]
        %v5240 = vstv %s5239
        %v5241 = vmul.f32 %v5240, %v5237
        %v5242 = vmul.f32 %v5240, %v5238
        %v5243 = vadd.f32 %v5137, %v5241
        %v5244 = vadd.f32 %v5138, %v5242
        %s5245 = sld [smem:[#allocation3 + $0x199]]
        %v5246 = vstv %s5245
        %v5247 = vmul.f32 %v5246, %v5237
        %v5248 = vmul.f32 %v5246, %v5238
        %v5249 = vadd.f32 %v5151, %v5247
        %v5250 = vadd.f32 %v5152, %v5248
        %s5251 = sld [smem:[#allocation3 + $0x19a]]
        %v5252 = vstv %s5251
        %v5253 = vmul.f32 %v5252, %v5237
        %v5254 = vmul.f32 %v5252, %v5238
        %v5255 = vadd.f32 %v5165, %v5253
        %v5256 = vadd.f32 %v5166, %v5254
        %s5257 = sld [smem:[#allocation3 + $0x19b]]
        %v5258 = vstv %s5257
        %v5259 = vmul.f32 %v5258, %v5237
        %v5260 = vmul.f32 %v5258, %v5238
        %v5261 = vadd.f32 %v5179, %v5259
        %v5262 = vadd.f32 %v5180, %v5260
        %s5263 = sld [smem:[#allocation3 + $0x19c]]
        %v5264 = vstv %s5263
        %v5265 = vmul.f32 %v5264, %v5237
        %v5266 = vmul.f32 %v5264, %v5238
        %v5267 = vadd.f32 %v5193, %v5265
        %v5268 = vadd.f32 %v5194, %v5266
        %s5269 = sld [smem:[#allocation3 + $0x19d]]
        %v5270 = vstv %s5269
        %v5271 = vmul.f32 %v5270, %v5237
        %v5272 = vmul.f32 %v5270, %v5238
        %v5273 = vadd.f32 %v5207, %v5271
        %v5274 = vadd.f32 %v5208, %v5272
        %s5275 = sld [smem:[#allocation3 + $0x19e]]
        %v5276 = vstv %s5275
        %v5277 = vmul.f32 %v5276, %v5237
        %v5278 = vmul.f32 %v5276, %v5238
        %v5279 = vadd.f32 %v5221, %v5277
        %v5280 = vadd.f32 %v5222, %v5278
        %s5281 = sld [smem:[#allocation3 + $0x19f]]
        %v5282 = vstv %s5281
        %v5283 = vmul.f32 %v5282, %v5237
        %v5284 = vmul.f32 %v5282, %v5238
        %v5285 = vadd.f32 %v5235, %v5283
        %v5286 = vadd.f32 %v5236, %v5284
        %s5287 = sld [smem:[#allocation3 + $0x1b8]]
        %v5288 = vstv %s5287
        %v5289 = vmul.f32 %v5288, %v5237
        %v5290 = vmul.f32 %v5288, %v5238
        %5293 = vrot.lane.b32.xlu0 %v5289, 1
        %v5294 = vpop.permute.xlu0 %5293
        %5295 = vrot.lane.b32.xlu0 %v5290, 1
        %v5296 = vpop.permute.xlu0 %5295
        %v5299 = vadd.f32 %v5243, %v5294
        %v5300 = vadd.f32 %v5244, %v5296
        %s5301 = sld [smem:[#allocation3 + $0x1b9]]
        %v5302 = vstv %s5301
        %v5303 = vmul.f32 %v5302, %v5237
        %v5304 = vmul.f32 %v5302, %v5238
        %5307 = vrot.lane.b32.xlu0 %v5303, 1
        %v5308 = vpop.permute.xlu0 %5307
        %5309 = vrot.lane.b32.xlu0 %v5304, 1
        %v5310 = vpop.permute.xlu0 %5309
        %v5313 = vadd.f32 %v5249, %v5308
        %v5314 = vadd.f32 %v5250, %v5310
        %s5315 = sld [smem:[#allocation3 + $0x1ba]]
        %v5316 = vstv %s5315
        %v5317 = vmul.f32 %v5316, %v5237
        %v5318 = vmul.f32 %v5316, %v5238
        %5321 = vrot.lane.b32.xlu0 %v5317, 1
        %v5322 = vpop.permute.xlu0 %5321
        %5323 = vrot.lane.b32.xlu0 %v5318, 1
        %v5324 = vpop.permute.xlu0 %5323
        %v5327 = vadd.f32 %v5255, %v5322
        %v5328 = vadd.f32 %v5256, %v5324
        %s5329 = sld [smem:[#allocation3 + $0x1bb]]
        %v5330 = vstv %s5329
        %v5331 = vmul.f32 %v5330, %v5237
        %v5332 = vmul.f32 %v5330, %v5238
        %5335 = vrot.lane.b32.xlu0 %v5331, 1
        %v5336 = vpop.permute.xlu0 %5335
        %5337 = vrot.lane.b32.xlu0 %v5332, 1
        %v5338 = vpop.permute.xlu0 %5337
        %v5341 = vadd.f32 %v5261, %v5336
        %v5342 = vadd.f32 %v5262, %v5338
        %s5343 = sld [smem:[#allocation3 + $0x1bc]]
        %v5344 = vstv %s5343
        %v5345 = vmul.f32 %v5344, %v5237
        %v5346 = vmul.f32 %v5344, %v5238
        %5349 = vrot.lane.b32.xlu0 %v5345, 1
        %v5350 = vpop.permute.xlu0 %5349
        %5351 = vrot.lane.b32.xlu0 %v5346, 1
        %v5352 = vpop.permute.xlu0 %5351
        %v5355 = vadd.f32 %v5267, %v5350
        %v5356 = vadd.f32 %v5268, %v5352
        %s5357 = sld [smem:[#allocation3 + $0x1bd]]
        %v5358 = vstv %s5357
        %v5359 = vmul.f32 %v5358, %v5237
        %v5360 = vmul.f32 %v5358, %v5238
        %5363 = vrot.lane.b32.xlu0 %v5359, 1
        %v5364 = vpop.permute.xlu0 %5363
        %5365 = vrot.lane.b32.xlu0 %v5360, 1
        %v5366 = vpop.permute.xlu0 %5365
        %v5369 = vadd.f32 %v5273, %v5364
        %v5370 = vadd.f32 %v5274, %v5366
        %s5371 = sld [smem:[#allocation3 + $0x1be]]
        %v5372 = vstv %s5371
        %v5373 = vmul.f32 %v5372, %v5237
        %v5374 = vmul.f32 %v5372, %v5238
        %5377 = vrot.lane.b32.xlu0 %v5373, 1
        %v5378 = vpop.permute.xlu0 %5377
        %5379 = vrot.lane.b32.xlu0 %v5374, 1
        %v5380 = vpop.permute.xlu0 %5379
        %v5383 = vadd.f32 %v5279, %v5378
        %v5384 = vadd.f32 %v5280, %v5380
        %s5385 = sld [smem:[#allocation3 + $0x1bf]]
        %v5386 = vstv %s5385
        %v5387 = vmul.f32 %v5386, %v5237
        %v5388 = vmul.f32 %v5386, %v5238
        %5391 = vrot.lane.b32.xlu0 %v5387, 1
        %v5392 = vpop.permute.xlu0 %5391
        %5393 = vrot.lane.b32.xlu0 %v5388, 1
        %v5394 = vpop.permute.xlu0 %5393
        %v5397 = vadd.f32 %v5285, %v5392
        %v5398 = vadd.f32 %v5286, %v5394
        %v5399 = vld [vmem:[%s1098 + $0x1] sm:$0xff]
        %v5400 = vld [vmem:[%s1098 + $0x9] sm:$0xff]
        %s5401 = sld [smem:[#allocation3 + $0x1d8]]
        %v5402 = vstv %s5401
        %v5403 = vmul.f32 %v5402, %v5399
        %v5404 = vmul.f32 %v5402, %v5400
        %v5405 = vadd.f32 %v5299, %v5403
        %v5406 = vadd.f32 %v5300, %v5404
        %s5407 = sld [smem:[#allocation3 + $0x1d9]]
        %v5408 = vstv %s5407
        %v5409 = vmul.f32 %v5408, %v5399
        %v5410 = vmul.f32 %v5408, %v5400
        %v5411 = vadd.f32 %v5313, %v5409
        %v5412 = vadd.f32 %v5314, %v5410
        %s5413 = sld [smem:[#allocation3 + $0x1da]]
        %v5414 = vstv %s5413
        %v5415 = vmul.f32 %v5414, %v5399
        %v5416 = vmul.f32 %v5414, %v5400
        %v5417 = vadd.f32 %v5327, %v5415
        %v5418 = vadd.f32 %v5328, %v5416
        %s5419 = sld [smem:[#allocation3 + $0x1db]]
        %v5420 = vstv %s5419
        %v5421 = vmul.f32 %v5420, %v5399
        %v5422 = vmul.f32 %v5420, %v5400
        %v5423 = vadd.f32 %v5341, %v5421
        %v5424 = vadd.f32 %v5342, %v5422
        %s5425 = sld [smem:[#allocation3 + $0x1dc]]
        %v5426 = vstv %s5425
        %v5427 = vmul.f32 %v5426, %v5399
        %v5428 = vmul.f32 %v5426, %v5400
        %v5429 = vadd.f32 %v5355, %v5427
        %v5430 = vadd.f32 %v5356, %v5428
        %s5431 = sld [smem:[#allocation3 + $0x1dd]]
        %v5432 = vstv %s5431
        %v5433 = vmul.f32 %v5432, %v5399
        %v5434 = vmul.f32 %v5432, %v5400
        %v5435 = vadd.f32 %v5369, %v5433
        %v5436 = vadd.f32 %v5370, %v5434
        %s5437 = sld [smem:[#allocation3 + $0x1de]]
        %v5438 = vstv %s5437
        %v5439 = vmul.f32 %v5438, %v5399
        %v5440 = vmul.f32 %v5438, %v5400
        %v5441 = vadd.f32 %v5383, %v5439
        %v5442 = vadd.f32 %v5384, %v5440
        %s5443 = sld [smem:[#allocation3 + $0x1df]]
        %v5444 = vstv %s5443
        %v5445 = vmul.f32 %v5444, %v5399
        %v5446 = vmul.f32 %v5444, %v5400
        %v5447 = vadd.f32 %v5397, %v5445
        %v5448 = vadd.f32 %v5398, %v5446
        %s5449 = sld [smem:[#allocation3 + $0x1f8]]
        %v5450 = vstv %s5449
        %v5451 = vmul.f32 %v5450, %v5399
        %v5452 = vmul.f32 %v5450, %v5400
        %5455 = vrot.lane.b32.xlu0 %v5451, 1
        %v5456 = vpop.permute.xlu0 %5455
        %5457 = vrot.lane.b32.xlu0 %v5452, 1
        %v5458 = vpop.permute.xlu0 %5457
        %v5461 = vadd.f32 %v5405, %v5456
        %v5462 = vadd.f32 %v5406, %v5458
        %s5463 = sld [smem:[#allocation3 + $0x1f9]]
        %v5464 = vstv %s5463
        %v5465 = vmul.f32 %v5464, %v5399
        %v5466 = vmul.f32 %v5464, %v5400
        %5469 = vrot.lane.b32.xlu0 %v5465, 1
        %v5470 = vpop.permute.xlu0 %5469
        %5471 = vrot.lane.b32.xlu0 %v5466, 1
        %v5472 = vpop.permute.xlu0 %5471
        %v5475 = vadd.f32 %v5411, %v5470
        %v5476 = vadd.f32 %v5412, %v5472
        %s5477 = sld [smem:[#allocation3 + $0x1fa]]
        %v5478 = vstv %s5477
        %v5479 = vmul.f32 %v5478, %v5399
        %v5480 = vmul.f32 %v5478, %v5400
        %5483 = vrot.lane.b32.xlu0 %v5479, 1
        %v5484 = vpop.permute.xlu0 %5483
        %5485 = vrot.lane.b32.xlu0 %v5480, 1
        %v5486 = vpop.permute.xlu0 %5485
        %v5489 = vadd.f32 %v5417, %v5484
        %v5490 = vadd.f32 %v5418, %v5486
        %s5491 = sld [smem:[#allocation3 + $0x1fb]]
        %v5492 = vstv %s5491
        %v5493 = vmul.f32 %v5492, %v5399
        %v5494 = vmul.f32 %v5492, %v5400
        %5497 = vrot.lane.b32.xlu0 %v5493, 1
        %v5498 = vpop.permute.xlu0 %5497
        %5499 = vrot.lane.b32.xlu0 %v5494, 1
        %v5500 = vpop.permute.xlu0 %5499
        %v5503 = vadd.f32 %v5423, %v5498
        %v5504 = vadd.f32 %v5424, %v5500
        %s5505 = sld [smem:[#allocation3 + $0x1fc]]
        %v5506 = vstv %s5505
        %v5507 = vmul.f32 %v5506, %v5399
        %v5508 = vmul.f32 %v5506, %v5400
        %5511 = vrot.lane.b32.xlu0 %v5507, 1
        %v5512 = vpop.permute.xlu0 %5511
        %5513 = vrot.lane.b32.xlu0 %v5508, 1
        %v5514 = vpop.permute.xlu0 %5513
        %v5517 = vadd.f32 %v5429, %v5512
        %v5518 = vadd.f32 %v5430, %v5514
        %s5519 = sld [smem:[#allocation3 + $0x1fd]]
        %v5520 = vstv %s5519
        %v5521 = vmul.f32 %v5520, %v5399
        %v5522 = vmul.f32 %v5520, %v5400
        %5525 = vrot.lane.b32.xlu0 %v5521, 1
        %v5526 = vpop.permute.xlu0 %5525
        %5527 = vrot.lane.b32.xlu0 %v5522, 1
        %v5528 = vpop.permute.xlu0 %5527
        %v5531 = vadd.f32 %v5435, %v5526
        %v5532 = vadd.f32 %v5436, %v5528
        %s5533 = sld [smem:[#allocation3 + $0x1fe]]
        %v5534 = vstv %s5533
        %v5535 = vmul.f32 %v5534, %v5399
        %v5536 = vmul.f32 %v5534, %v5400
        %5539 = vrot.lane.b32.xlu0 %v5535, 1
        %v5540 = vpop.permute.xlu0 %5539
        %5541 = vrot.lane.b32.xlu0 %v5536, 1
        %v5542 = vpop.permute.xlu0 %5541
        %v5545 = vadd.f32 %v5441, %v5540
        %v5546 = vadd.f32 %v5442, %v5542
        %s5547 = sld [smem:[#allocation3 + $0x1ff]]
        %v5548 = vstv %s5547
        %v5549 = vmul.f32 %v5548, %v5399
        %v5550 = vmul.f32 %v5548, %v5400
        %5553 = vrot.lane.b32.xlu0 %v5549, 1
        %v5554 = vpop.permute.xlu0 %5553
        %5555 = vrot.lane.b32.xlu0 %v5550, 1
        %v5556 = vpop.permute.xlu0 %5555
        %v5559 = vadd.f32 %v5447, %v5554
        %v5560 = vadd.f32 %v5448, %v5556
        %5563 = vrot.lane.b32.xlu0 %v5461, 46
        %v5564 = vpop.permute.xlu0 %5563
        %5565 = vrot.lane.b32.xlu0 %v5462, 46
        %v5566 = vpop.permute.xlu0 %5565
        %vm5569 = vcmask 523648
        %5570 = vst.msk [vmem:[%s118] sm:$0xff] %vm5569, %v5564
        %5571 = vst.msk [vmem:[%s118 + $0x8] sm:$0xff] %vm5569, %v5566
        %5574 = vrot.lane.b32.xlu0 %v5475, 46
        %v5575 = vpop.permute.xlu0 %5574
        %5576 = vrot.lane.b32.xlu0 %v5476, 46
        %v5577 = vpop.permute.xlu0 %5576
        %5580 = vst.msk [vmem:[%s1442] sm:$0xff] %vm5569, %v5575
        %5581 = vst.msk [vmem:[%s1442 + $0x8] sm:$0xff] %vm5569, %v5577
        %5584 = vrot.lane.b32.xlu0 %v5489, 46
        %v5585 = vpop.permute.xlu0 %5584
        %5586 = vrot.lane.b32.xlu0 %v5490, 46
        %v5587 = vpop.permute.xlu0 %5586
        %5590 = vst.msk [vmem:[%s1453] sm:$0xff] %vm5569, %v5585
        %5591 = vst.msk [vmem:[%s1453 + $0x8] sm:$0xff] %vm5569, %v5587
        %5594 = vrot.lane.b32.xlu0 %v5503, 46
        %v5595 = vpop.permute.xlu0 %5594
        %5596 = vrot.lane.b32.xlu0 %v5504, 46
        %v5597 = vpop.permute.xlu0 %5596
        %5600 = vst.msk [vmem:[%s1464] sm:$0xff] %vm5569, %v5595
        %5601 = vst.msk [vmem:[%s1464 + $0x8] sm:$0xff] %vm5569, %v5597
        %5604 = vrot.lane.b32.xlu0 %v5517, 46
        %v5605 = vpop.permute.xlu0 %5604
        %5606 = vrot.lane.b32.xlu0 %v5518, 46
        %v5607 = vpop.permute.xlu0 %5606
        %5610 = vst.msk [vmem:[%s1475] sm:$0xff] %vm5569, %v5605
        %5611 = vst.msk [vmem:[%s1475 + $0x8] sm:$0xff] %vm5569, %v5607
        %5614 = vrot.lane.b32.xlu0 %v5531, 46
        %v5615 = vpop.permute.xlu0 %5614
        %5616 = vrot.lane.b32.xlu0 %v5532, 46
        %v5617 = vpop.permute.xlu0 %5616
        %5620 = vst.msk [vmem:[%s1486] sm:$0xff] %vm5569, %v5615
        %5621 = vst.msk [vmem:[%s1486 + $0x8] sm:$0xff] %vm5569, %v5617
        %5624 = vrot.lane.b32.xlu0 %v5545, 46
        %v5625 = vpop.permute.xlu0 %5624
        %5626 = vrot.lane.b32.xlu0 %v5546, 46
        %v5627 = vpop.permute.xlu0 %5626
        %5630 = vst.msk [vmem:[%s1497] sm:$0xff] %vm5569, %v5625
        %5631 = vst.msk [vmem:[%s1497 + $0x8] sm:$0xff] %vm5569, %v5627
        %5634 = vrot.lane.b32.xlu0 %v5559, 46
        %v5635 = vpop.permute.xlu0 %5634
        %5636 = vrot.lane.b32.xlu0 %v5560, 46
        %v5637 = vpop.permute.xlu0 %5636
        %5640 = vst.msk [vmem:[%s1508] sm:$0xff] %vm5569, %v5635
        %5641 = vst.msk [vmem:[%s1508 + $0x8] sm:$0xff] %vm5569, %v5637
        %v5642 = vld [vmem:[%s118] sm:$0xff]
        %v5643 = vld [vmem:[%s118 + $0x8] sm:$0xff]
        %vm5644 = vcmask 523264
        %v5645 = vsel %vm5644, %v5642, 0.0
        %5646 = vadd.xlane.f32.xlu0 %v5645
        %v5647 = vpop.xlane.xlu0 %5646
        %v5648 = vsel %vm5644, %v5643, 0.0
        %5649 = vadd.xlane.f32.xlu0 %v5648
        %v5650 = vpop.xlane.xlu0 %5649
        %v5651 = vadd.f32 %v5647, %v5650
        %v5652 = vrot.slane %v5651, 4
        %v5653 = vadd.f32 %v5651, %v5652
        %v5654 = vrot.slane %v5653, 2
        %v5655 = vadd.f32 %v5653, %v5654
        %v5656 = vrot.slane %v5655, 1
        %v5657 = vadd.f32 %v5655, %v5656
        %v5658 = vmul.f32 %v5657, 0.0009765625
        %v5659 = vsub.f32 %v5642, %v5658
        %v5660 = vsub.f32 %v5643, %v5658
        %v5661 = vmul.f32 %v5659, %v5659
        %v5662 = vmul.f32 %v5660, %v5660
        %v5663 = vsel %vm5644, %v5661, 0.0
        %5664 = vadd.xlane.f32.xlu0 %v5663
        %v5665 = vpop.xlane.xlu0 %5664
        %v5666 = vsel %vm5644, %v5662, 0.0
        %5667 = vadd.xlane.f32.xlu0 %v5666
        %v5668 = vpop.xlane.xlu0 %5667
        %v5669 = vadd.f32 %v5665, %v5668
        %v5670 = vrot.slane %v5669, 4
        %v5671 = vadd.f32 %v5669, %v5670
        %v5672 = vrot.slane %v5671, 2
        %v5673 = vadd.f32 %v5671, %v5672
        %v5674 = vrot.slane %v5673, 1
        %v5675 = vadd.f32 %v5673, %v5674
        %v5676 = vmul.f32 %v5675, 0.0009765625
        %v5677 = vadd.f32 %v5676, 1e-05
        %v5678 = vrsqrt.pop %v5677
        %v5679 = vmul.f32 %v5678, %v5677
        %v5680 = vmul.f32 %v5679, %v5678
        %v5681 = vmul.f32 0.5, %v5680
        %v5682 = vsub.f32 1.5, %v5681
        %v5683 = vmul.f32 %v5678, %v5682
        %vm5684 = vweird.f32 %v5677
        %vm5685 = vweird.f32 %v5678
        %vm5686 = vmor %vm5684, %vm5685
        %v5687 = vsel %vm5686, %v5678, %v5683
        %v5688 = vmul.f32 %v5659, %v5687
        %v5689 = vmul.f32 %v5660, %v5687
        %v5690 = vmax.f32 %v5688, 0.0
        %v5691 = vmax.f32 %v5689, 0.0
        %5692 = vst.msk [vmem:[%s118] sm:$0xff] %vm5644, %v5690
        %5693 = vst.msk [vmem:[%s118 + $0x8] sm:$0xff] %vm5644, %v5691
        %v5694 = vld [vmem:[%s1442] sm:$0xff]
        %v5695 = vld [vmem:[%s1442 + $0x8] sm:$0xff]
        %v5696 = vsel %vm5644, %v5694, 0.0
        %5697 = vadd.xlane.f32.xlu0 %v5696
        %v5698 = vpop.xlane.xlu0 %5697
        %v5699 = vsel %vm5644, %v5695, 0.0
        %5700 = vadd.xlane.f32.xlu0 %v5699
        %v5701 = vpop.xlane.xlu0 %5700
        %v5702 = vadd.f32 %v5698, %v5701
        %v5703 = vrot.slane %v5702, 4
        %v5704 = vadd.f32 %v5702, %v5703
        %v5705 = vrot.slane %v5704, 2
        %v5706 = vadd.f32 %v5704, %v5705
        %v5707 = vrot.slane %v5706, 1
        %v5708 = vadd.f32 %v5706, %v5707
        %v5709 = vmul.f32 %v5708, 0.0009765625
        %v5710 = vsub.f32 %v5694, %v5709
        %v5711 = vsub.f32 %v5695, %v5709
        %v5712 = vmul.f32 %v5710, %v5710
        %v5713 = vmul.f32 %v5711, %v5711
        %v5714 = vsel %vm5644, %v5712, 0.0
        %5715 = vadd.xlane.f32.xlu0 %v5714
        %v5716 = vpop.xlane.xlu0 %5715
        %v5717 = vsel %vm5644, %v5713, 0.0
        %5718 = vadd.xlane.f32.xlu0 %v5717
        %v5719 = vpop.xlane.xlu0 %5718
        %v5720 = vadd.f32 %v5716, %v5719
        %v5721 = vrot.slane %v5720, 4
        %v5722 = vadd.f32 %v5720, %v5721
        %v5723 = vrot.slane %v5722, 2
        %v5724 = vadd.f32 %v5722, %v5723
        %v5725 = vrot.slane %v5724, 1
        %v5726 = vadd.f32 %v5724, %v5725
        %v5727 = vmul.f32 %v5726, 0.0009765625
        %v5728 = vadd.f32 %v5727, 1e-05
        %v5729 = vrsqrt.pop %v5728
        %v5730 = vmul.f32 %v5729, %v5728
        %v5731 = vmul.f32 %v5730, %v5729
        %v5732 = vmul.f32 0.5, %v5731
        %v5733 = vsub.f32 1.5, %v5732
        %v5734 = vmul.f32 %v5729, %v5733
        %vm5735 = vweird.f32 %v5728
        %vm5736 = vweird.f32 %v5729
        %vm5737 = vmor %vm5735, %vm5736
        %v5738 = vsel %vm5737, %v5729, %v5734
        %v5739 = vmul.f32 %v5710, %v5738
        %v5740 = vmul.f32 %v5711, %v5738
        %v5741 = vmax.f32 %v5739, 0.0
        %v5742 = vmax.f32 %v5740, 0.0
        %5743 = vst.msk [vmem:[%s1442] sm:$0xff] %vm5644, %v5741
        %5744 = vst.msk [vmem:[%s1442 + $0x8] sm:$0xff] %vm5644, %v5742
        %v5745 = vld [vmem:[%s1453] sm:$0xff]
        %v5746 = vld [vmem:[%s1453 + $0x8] sm:$0xff]
        %v5747 = vsel %vm5644, %v5745, 0.0
        %5748 = vadd.xlane.f32.xlu0 %v5747
        %v5749 = vpop.xlane.xlu0 %5748
        %v5750 = vsel %vm5644, %v5746, 0.0
        %5751 = vadd.xlane.f32.xlu0 %v5750
        %v5752 = vpop.xlane.xlu0 %5751
        %v5753 = vadd.f32 %v5749, %v5752
        %v5754 = vrot.slane %v5753, 4
        %v5755 = vadd.f32 %v5753, %v5754
        %v5756 = vrot.slane %v5755, 2
        %v5757 = vadd.f32 %v5755, %v5756
        %v5758 = vrot.slane %v5757, 1
        %v5759 = vadd.f32 %v5757, %v5758
        %v5760 = vmul.f32 %v5759, 0.0009765625
        %v5761 = vsub.f32 %v5745, %v5760
        %v5762 = vsub.f32 %v5746, %v5760
        %v5763 = vmul.f32 %v5761, %v5761
        %v5764 = vmul.f32 %v5762, %v5762
        %v5765 = vsel %vm5644, %v5763, 0.0
        %5766 = vadd.xlane.f32.xlu0 %v5765
        %v5767 = vpop.xlane.xlu0 %5766
        %v5768 = vsel %vm5644, %v5764, 0.0
        %5769 = vadd.xlane.f32.xlu0 %v5768
        %v5770 = vpop.xlane.xlu0 %5769
        %v5771 = vadd.f32 %v5767, %v5770
        %v5772 = vrot.slane %v5771, 4
        %v5773 = vadd.f32 %v5771, %v5772
        %v5774 = vrot.slane %v5773, 2
        %v5775 = vadd.f32 %v5773, %v5774
        %v5776 = vrot.slane %v5775, 1
        %v5777 = vadd.f32 %v5775, %v5776
        %v5778 = vmul.f32 %v5777, 0.0009765625
        %v5779 = vadd.f32 %v5778, 1e-05
        %v5780 = vrsqrt.pop %v5779
        %v5781 = vmul.f32 %v5780, %v5779
        %v5782 = vmul.f32 %v5781, %v5780
        %v5783 = vmul.f32 0.5, %v5782
        %v5784 = vsub.f32 1.5, %v5783
        %v5785 = vmul.f32 %v5780, %v5784
        %vm5786 = vweird.f32 %v5779
        %vm5787 = vweird.f32 %v5780
        %vm5788 = vmor %vm5786, %vm5787
        %v5789 = vsel %vm5788, %v5780, %v5785
        %v5790 = vmul.f32 %v5761, %v5789
        %v5791 = vmul.f32 %v5762, %v5789
        %v5792 = vmax.f32 %v5790, 0.0
        %v5793 = vmax.f32 %v5791, 0.0
        %5794 = vst.msk [vmem:[%s1453] sm:$0xff] %vm5644, %v5792
        %5795 = vst.msk [vmem:[%s1453 + $0x8] sm:$0xff] %vm5644, %v5793
        %v5796 = vld [vmem:[%s1464] sm:$0xff]
        %v5797 = vld [vmem:[%s1464 + $0x8] sm:$0xff]
        %v5798 = vsel %vm5644, %v5796, 0.0
        %5799 = vadd.xlane.f32.xlu0 %v5798
        %v5800 = vpop.xlane.xlu0 %5799
        %v5801 = vsel %vm5644, %v5797, 0.0
        %5802 = vadd.xlane.f32.xlu0 %v5801
        %v5803 = vpop.xlane.xlu0 %5802
        %v5804 = vadd.f32 %v5800, %v5803
        %v5805 = vrot.slane %v5804, 4
        %v5806 = vadd.f32 %v5804, %v5805
        %v5807 = vrot.slane %v5806, 2
        %v5808 = vadd.f32 %v5806, %v5807
        %v5809 = vrot.slane %v5808, 1
        %v5810 = vadd.f32 %v5808, %v5809
        %v5811 = vmul.f32 %v5810, 0.0009765625
        %v5812 = vsub.f32 %v5796, %v5811
        %v5813 = vsub.f32 %v5797, %v5811
        %v5814 = vmul.f32 %v5812, %v5812
        %v5815 = vmul.f32 %v5813, %v5813
        %v5816 = vsel %vm5644, %v5814, 0.0
        %5817 = vadd.xlane.f32.xlu0 %v5816
        %v5818 = vpop.xlane.xlu0 %5817
        %v5819 = vsel %vm5644, %v5815, 0.0
        %5820 = vadd.xlane.f32.xlu0 %v5819
        %v5821 = vpop.xlane.xlu0 %5820
        %v5822 = vadd.f32 %v5818, %v5821
        %v5823 = vrot.slane %v5822, 4
        %v5824 = vadd.f32 %v5822, %v5823
        %v5825 = vrot.slane %v5824, 2
        %v5826 = vadd.f32 %v5824, %v5825
        %v5827 = vrot.slane %v5826, 1
        %v5828 = vadd.f32 %v5826, %v5827
        %v5829 = vmul.f32 %v5828, 0.0009765625
        %v5830 = vadd.f32 %v5829, 1e-05
        %v5831 = vrsqrt.pop %v5830
        %v5832 = vmul.f32 %v5831, %v5830
        %v5833 = vmul.f32 %v5832, %v5831
        %v5834 = vmul.f32 0.5, %v5833
        %v5835 = vsub.f32 1.5, %v5834
        %v5836 = vmul.f32 %v5831, %v5835
        %vm5837 = vweird.f32 %v5830
        %vm5838 = vweird.f32 %v5831
        %vm5839 = vmor %vm5837, %vm5838
        %v5840 = vsel %vm5839, %v5831, %v5836
        %v5841 = vmul.f32 %v5812, %v5840
        %v5842 = vmul.f32 %v5813, %v5840
        %v5843 = vmax.f32 %v5841, 0.0
        %v5844 = vmax.f32 %v5842, 0.0
        %5845 = vst.msk [vmem:[%s1464] sm:$0xff] %vm5644, %v5843
        %5846 = vst.msk [vmem:[%s1464 + $0x8] sm:$0xff] %vm5644, %v5844
        %v5847 = vld [vmem:[%s1475] sm:$0xff]
        %v5848 = vld [vmem:[%s1475 + $0x8] sm:$0xff]
        %v5849 = vsel %vm5644, %v5847, 0.0
        %5850 = vadd.xlane.f32.xlu0 %v5849
        %v5851 = vpop.xlane.xlu0 %5850
        %v5852 = vsel %vm5644, %v5848, 0.0
        %5853 = vadd.xlane.f32.xlu0 %v5852
        %v5854 = vpop.xlane.xlu0 %5853
        %v5855 = vadd.f32 %v5851, %v5854
        %v5856 = vrot.slane %v5855, 4
        %v5857 = vadd.f32 %v5855, %v5856
        %v5858 = vrot.slane %v5857, 2
        %v5859 = vadd.f32 %v5857, %v5858
        %v5860 = vrot.slane %v5859, 1
        %v5861 = vadd.f32 %v5859, %v5860
        %v5862 = vmul.f32 %v5861, 0.0009765625
        %v5863 = vsub.f32 %v5847, %v5862
        %v5864 = vsub.f32 %v5848, %v5862
        %v5865 = vmul.f32 %v5863, %v5863
        %v5866 = vmul.f32 %v5864, %v5864
        %v5867 = vsel %vm5644, %v5865, 0.0
        %5868 = vadd.xlane.f32.xlu0 %v5867
        %v5869 = vpop.xlane.xlu0 %5868
        %v5870 = vsel %vm5644, %v5866, 0.0
        %5871 = vadd.xlane.f32.xlu0 %v5870
        %v5872 = vpop.xlane.xlu0 %5871
        %v5873 = vadd.f32 %v5869, %v5872
        %v5874 = vrot.slane %v5873, 4
        %v5875 = vadd.f32 %v5873, %v5874
        %v5876 = vrot.slane %v5875, 2
        %v5877 = vadd.f32 %v5875, %v5876
        %v5878 = vrot.slane %v5877, 1
        %v5879 = vadd.f32 %v5877, %v5878
        %v5880 = vmul.f32 %v5879, 0.0009765625
        %v5881 = vadd.f32 %v5880, 1e-05
        %v5882 = vrsqrt.pop %v5881
        %v5883 = vmul.f32 %v5882, %v5881
        %v5884 = vmul.f32 %v5883, %v5882
        %v5885 = vmul.f32 0.5, %v5884
        %v5886 = vsub.f32 1.5, %v5885
        %v5887 = vmul.f32 %v5882, %v5886
        %vm5888 = vweird.f32 %v5881
        %vm5889 = vweird.f32 %v5882
        %vm5890 = vmor %vm5888, %vm5889
        %v5891 = vsel %vm5890, %v5882, %v5887
        %v5892 = vmul.f32 %v5863, %v5891
        %v5893 = vmul.f32 %v5864, %v5891
        %v5894 = vmax.f32 %v5892, 0.0
        %v5895 = vmax.f32 %v5893, 0.0
        %5896 = vst.msk [vmem:[%s1475] sm:$0xff] %vm5644, %v5894
        %5897 = vst.msk [vmem:[%s1475 + $0x8] sm:$0xff] %vm5644, %v5895
        %v5898 = vld [vmem:[%s1486] sm:$0xff]
        %v5899 = vld [vmem:[%s1486 + $0x8] sm:$0xff]
        %v5900 = vsel %vm5644, %v5898, 0.0
        %5901 = vadd.xlane.f32.xlu0 %v5900
        %v5902 = vpop.xlane.xlu0 %5901
        %v5903 = vsel %vm5644, %v5899, 0.0
        %5904 = vadd.xlane.f32.xlu0 %v5903
        %v5905 = vpop.xlane.xlu0 %5904
        %v5906 = vadd.f32 %v5902, %v5905
        %v5907 = vrot.slane %v5906, 4
        %v5908 = vadd.f32 %v5906, %v5907
        %v5909 = vrot.slane %v5908, 2
        %v5910 = vadd.f32 %v5908, %v5909
        %v5911 = vrot.slane %v5910, 1
        %v5912 = vadd.f32 %v5910, %v5911
        %v5913 = vmul.f32 %v5912, 0.0009765625
        %v5914 = vsub.f32 %v5898, %v5913
        %v5915 = vsub.f32 %v5899, %v5913
        %v5916 = vmul.f32 %v5914, %v5914
        %v5917 = vmul.f32 %v5915, %v5915
        %v5918 = vsel %vm5644, %v5916, 0.0
        %5919 = vadd.xlane.f32.xlu0 %v5918
        %v5920 = vpop.xlane.xlu0 %5919
        %v5921 = vsel %vm5644, %v5917, 0.0
        %5922 = vadd.xlane.f32.xlu0 %v5921
        %v5923 = vpop.xlane.xlu0 %5922
        %v5924 = vadd.f32 %v5920, %v5923
        %v5925 = vrot.slane %v5924, 4
        %v5926 = vadd.f32 %v5924, %v5925
        %v5927 = vrot.slane %v5926, 2
        %v5928 = vadd.f32 %v5926, %v5927
        %v5929 = vrot.slane %v5928, 1
        %v5930 = vadd.f32 %v5928, %v5929
        %v5931 = vmul.f32 %v5930, 0.0009765625
        %v5932 = vadd.f32 %v5931, 1e-05
        %v5933 = vrsqrt.pop %v5932
        %v5934 = vmul.f32 %v5933, %v5932
        %v5935 = vmul.f32 %v5934, %v5933
        %v5936 = vmul.f32 0.5, %v5935
        %v5937 = vsub.f32 1.5, %v5936
        %v5938 = vmul.f32 %v5933, %v5937
        %vm5939 = vweird.f32 %v5932
        %vm5940 = vweird.f32 %v5933
        %vm5941 = vmor %vm5939, %vm5940
        %v5942 = vsel %vm5941, %v5933, %v5938
        %v5943 = vmul.f32 %v5914, %v5942
        %v5944 = vmul.f32 %v5915, %v5942
        %v5945 = vmax.f32 %v5943, 0.0
        %v5946 = vmax.f32 %v5944, 0.0
        %5947 = vst.msk [vmem:[%s1486] sm:$0xff] %vm5644, %v5945
        %5948 = vst.msk [vmem:[%s1486 + $0x8] sm:$0xff] %vm5644, %v5946
        %v5949 = vld [vmem:[%s1497] sm:$0xff]
        %v5950 = vld [vmem:[%s1497 + $0x8] sm:$0xff]
        %v5951 = vsel %vm5644, %v5949, 0.0
        %5952 = vadd.xlane.f32.xlu0 %v5951
        %v5953 = vpop.xlane.xlu0 %5952
        %v5954 = vsel %vm5644, %v5950, 0.0
        %5955 = vadd.xlane.f32.xlu0 %v5954
        %v5956 = vpop.xlane.xlu0 %5955
        %v5957 = vadd.f32 %v5953, %v5956
        %v5958 = vrot.slane %v5957, 4
        %v5959 = vadd.f32 %v5957, %v5958
        %v5960 = vrot.slane %v5959, 2
        %v5961 = vadd.f32 %v5959, %v5960
        %v5962 = vrot.slane %v5961, 1
        %v5963 = vadd.f32 %v5961, %v5962
        %v5964 = vmul.f32 %v5963, 0.0009765625
        %v5965 = vsub.f32 %v5949, %v5964
        %v5966 = vsub.f32 %v5950, %v5964
        %v5967 = vmul.f32 %v5965, %v5965
        %v5968 = vmul.f32 %v5966, %v5966
        %v5969 = vsel %vm5644, %v5967, 0.0
        %5970 = vadd.xlane.f32.xlu0 %v5969
        %v5971 = vpop.xlane.xlu0 %5970
        %v5972 = vsel %vm5644, %v5968, 0.0
        %5973 = vadd.xlane.f32.xlu0 %v5972
        %v5974 = vpop.xlane.xlu0 %5973
        %v5975 = vadd.f32 %v5971, %v5974
        %v5976 = vrot.slane %v5975, 4
        %v5977 = vadd.f32 %v5975, %v5976
        %v5978 = vrot.slane %v5977, 2
        %v5979 = vadd.f32 %v5977, %v5978
        %v5980 = vrot.slane %v5979, 1
        %v5981 = vadd.f32 %v5979, %v5980
        %v5982 = vmul.f32 %v5981, 0.0009765625
        %v5983 = vadd.f32 %v5982, 1e-05
        %v5984 = vrsqrt.pop %v5983
        %v5985 = vmul.f32 %v5984, %v5983
        %v5986 = vmul.f32 %v5985, %v5984
        %v5987 = vmul.f32 0.5, %v5986
        %v5988 = vsub.f32 1.5, %v5987
        %v5989 = vmul.f32 %v5984, %v5988
        %vm5990 = vweird.f32 %v5983
        %vm5991 = vweird.f32 %v5984
        %vm5992 = vmor %vm5990, %vm5991
        %v5993 = vsel %vm5992, %v5984, %v5989
        %v5994 = vmul.f32 %v5965, %v5993
        %v5995 = vmul.f32 %v5966, %v5993
        %v5996 = vmax.f32 %v5994, 0.0
        %v5997 = vmax.f32 %v5995, 0.0
        %5998 = vst.msk [vmem:[%s1497] sm:$0xff] %vm5644, %v5996
        %5999 = vst.msk [vmem:[%s1497 + $0x8] sm:$0xff] %vm5644, %v5997
        %v6000 = vld [vmem:[%s1508] sm:$0xff]
        %v6001 = vld [vmem:[%s1508 + $0x8] sm:$0xff]
        %v6002 = vsel %vm5644, %v6000, 0.0
        %6003 = vadd.xlane.f32.xlu0 %v6002
        %v6004 = vpop.xlane.xlu0 %6003
        %v6005 = vsel %vm5644, %v6001, 0.0
        %6006 = vadd.xlane.f32.xlu0 %v6005
        %v6007 = vpop.xlane.xlu0 %6006
        %v6008 = vadd.f32 %v6004, %v6007
        %v6009 = vrot.slane %v6008, 4
        %v6010 = vadd.f32 %v6008, %v6009
        %v6011 = vrot.slane %v6010, 2
        %v6012 = vadd.f32 %v6010, %v6011
        %v6013 = vrot.slane %v6012, 1
        %v6014 = vadd.f32 %v6012, %v6013
        %v6015 = vmul.f32 %v6014, 0.0009765625
        %v6016 = vsub.f32 %v6000, %v6015
        %v6017 = vsub.f32 %v6001, %v6015
        %v6018 = vmul.f32 %v6016, %v6016
        %v6019 = vmul.f32 %v6017, %v6017
        %v6020 = vsel %vm5644, %v6018, 0.0
        %6021 = vadd.xlane.f32.xlu0 %v6020
        %v6022 = vpop.xlane.xlu0 %6021
        %v6023 = vsel %vm5644, %v6019, 0.0
        %6024 = vadd.xlane.f32.xlu0 %v6023
        %v6025 = vpop.xlane.xlu0 %6024
        %v6026 = vadd.f32 %v6022, %v6025
        %v6027 = vrot.slane %v6026, 4
        %v6028 = vadd.f32 %v6026, %v6027
        %v6029 = vrot.slane %v6028, 2
        %v6030 = vadd.f32 %v6028, %v6029
        %v6031 = vrot.slane %v6030, 1
        %v6032 = vadd.f32 %v6030, %v6031
        %v6033 = vmul.f32 %v6032, 0.0009765625
        %v6034 = vadd.f32 %v6033, 1e-05
        %v6035 = vrsqrt.pop %v6034
        %v6036 = vmul.f32 %v6035, %v6034
        %v6037 = vmul.f32 %v6036, %v6035
        %v6038 = vmul.f32 0.5, %v6037
        %v6039 = vsub.f32 1.5, %v6038
        %v6040 = vmul.f32 %v6035, %v6039
        %vm6041 = vweird.f32 %v6034
        %vm6042 = vweird.f32 %v6035
        %vm6043 = vmor %vm6041, %vm6042
        %v6044 = vsel %vm6043, %v6035, %v6040
        %v6045 = vmul.f32 %v6016, %v6044
        %v6046 = vmul.f32 %v6017, %v6044
        %v6047 = vmax.f32 %v6045, 0.0
        %v6048 = vmax.f32 %v6046, 0.0
        %6049 = vst.msk [vmem:[%s1508] sm:$0xff] %vm5644, %v6047
        %6050 = vst.msk [vmem:[%s1508 + $0x8] sm:$0xff] %vm5644, %v6048
        %s6051 = sand.u32 %s58, 1
        %s6052 = scalar_lea.sflag [#allocation5], %s6051
        %s6053 = sand.u32 %s58, 1
        %s6054 = smul.addr %s6053, 128
        %s6055 = scalar_lea.vmem [#allocation4], %s6054
        // Predicated region
        $region25: #{tpu_custom_call.1} parent=23 // pred_check
          %p6056 = pneg %p68
        $region26: #{tpu_custom_call.1} parent=23 // pred_check_branch
          %6058 = sbr.rel (%p6056) target = $region28
        $region27: #{tpu_custom_call.1} parent=23 // pred_region
          %6060 = vsyncadd %s6052, 0
          %s6061 = smul.addr %s24, 16
          %s6062 = smul.addr %s6061, 8
          %s6063 = scalar_lea.hbm %s2, %s6062
          %s6064 = sshll.u32 %s6055, 4
          %s6065 = int_to_ptr.vmem [resolvable:$true] %s6064
          %s6066 = sshll.u32 %s6063, 4
          %s6067 = int_to_ptr.hbm [resolvable:$true] %s6066
          %6072 = dma.vmem_to_hbm [thread:$0]  %s6065, 2048, %s6067, %s6052, 128, 128, 8
        $region28: #{tpu_custom_call.1} parent=23 // pred_fallthru
          _
      $region24: #{tpu_custom_call.1} parent=5 // pred_fallthru
        _
      %p6073 = scmp.le.s32.totalorder 2, %s19
      // Predicated region
      $region29: #{tpu_custom_call.1} parent=5 // pred_check
        %p6074 = pneg %p6073
      $region30: #{tpu_custom_call.1} parent=5 // pred_check_branch
        %6076 = sbr.rel (%p6074) target = $region32
      $region31: #{tpu_custom_call.1} parent=5 // pred_region
        %s6077 = ssub.s32 %s19, 2
        // Predicated region
        $region33: #{tpu_custom_call.1} parent=31 // pred_check
          %p6078 = pneg %p74
        $region34: #{tpu_custom_call.1} parent=31 // pred_check_branch
          %6080 = sbr.rel (%p6078) target = $region36
        $region35: #{tpu_custom_call.1} parent=31 // pred_region
          %s6081 = sand.u32 %s59, 1
          %s6082 = scalar_lea.sflag [#allocation5], %s6081
          %s6083 = sand.u32 %s59, 1
          %s6084 = smul.addr %s6083, 128
          %s6085 = scalar_lea.vmem [#allocation4], %s6084
          %6087 = dma.done %s6082, 2048
        $region36: #{tpu_custom_call.1} parent=31 // pred_fallthru
          _
      $region32: #{tpu_custom_call.1} parent=5 // pred_fallthru
        _
    $region6: #{tpu_custom_call.1} parent=1 // loop_footer
      %s23 = sadd.s32 1, %s19
    $region7: #{tpu_custom_call.1} parent=1 // loop_footer_branch
      %18 = sbr.rel target = $region3
    $region8: #{tpu_custom_call.1} parent=1 // loop_exit
      _
    %6088 = vsyncpa [#allocation5], 1
    %s6089 = scalar_lea.sflag [#allocation5], 1
    %6090 = vsyncpa %s6089, 1

</llo_original>
